<compile_context>
chip_gen: v7x
topology: tpu7x:2x2x1
jax: 0.10.0
libtpu: 0.0.40
codegen_flags: <defaults>
</compile_context>

<pallas_src>
import jax
import jax.numpy as jnp
from jax import lax
from jax.experimental import pallas as pl
from jax.experimental.pallas import tpu as pltpu


_LPAD = 8  # column offset of the data block inside every padded map (multiple of 8)


def _round_up(x, m):
    return (x + m - 1) // m * m


def _hard_sigmoid(v):
    return jnp.clip(v + 3.0, 0.0, 6.0) * (1.0 / 6.0)


def _geometry(H1):
    """All sizes are Python ints baked in at trace time."""
    H2 = H1 + 2            # conv2 output spatial
    H4 = H2                # conv4 output spatial (pad 1 keeps the size)
    B = H4 + 1             # conv3 odd/odd block size
    Hout = 2 * H4 + 3      # conv3 full output spatial
    # one shared, 8-aligned over-wide row pitch for every flattened feature map
    Wp = _round_up(H4 + _LPAD + 2, 8)        # largest need: conv3 (width H4, pad 2)
    M1 = H1 * Wp           # conv1 over-wide output rows
    M2 = H2 * Wp           # conv2 over-wide output rows
    M4 = H4 * Wp           # conv4 over-wide output rows
    M3 = B * Wp            # conv3 (odd/odd block) over-wide output rows
    # padded-map scratch sizes: big enough that every shifted tap slice stays in bounds
    R2 = _round_up((H1 + 4) * Wp + _LPAD + 2, 8)   # conv2: pad 2
    R4 = _round_up((H2 + 2) * Wp + _LPAD + 1, 8)   # conv4: pad 1
    R3 = _round_up((H4 + 4) * Wp + _LPAD + 2, 8)   # conv3: pad 2
    return dict(H1=H1, H2=H2, H4=H4, B=B, Hout=Hout, Wp=Wp,
                M1=M1, M2=M2, M4=M4, M3=M3, R2=R2, R4=R4, R3=R3)


# ----------------------------------------------------------------------------
# Fused forward kernel.
# Feature maps are stored flattened (row = h*Wp + w, col = channel) inside padded VMEM scratch.
# A KxK stride-1 conv over the padded map is computed as ONE wide matmul
#     Y = S @ W_cat        (W_cat = all taps' (Cin, Cout) matrices side by side)
# followed by a sum of row/column-shifted slices of Y ("over-wide rows" trick: the garbage
# columns of each output row are masked to zero and become the next layer's zero padding).
# ----------------------------------------------------------------------------
def _make_kernel(g):
    H1, H2, H4, B = g["H1"], g["H2"], g["H4"], g["B"]
    Wp, M1, M2, M4, M3 = g["Wp"], g["M1"], g["M2"], g["M4"], g["M3"]
    R2, R4, R3 = g["R2"], g["R4"], g["R3"]
    L = _LPAD
    # data offsets (all multiples of 8) of the input block inside each padded map
    D2, D4, D3 = 2 * Wp + L, 1 * Wp + L, 2 * Wp + L
    # start of the bottom zero ring in each padded map (also multiples of 8)
    Z2, Z4, Z3 = D2 + M1, D4 + M2, D3 + M4

    def kernel(x_ref, m1_ref, mv_ref, w1_ref, b1_ref, w2_ref, b2_ref,
               w4_ref, b4_ref, w3_ref, b3_ref, o_ref, s2, s4, s3, y):
        f32 = jnp.float32

        # ---- zero only the small top/bottom pad rings; the rest of each padded map is fully
        #      rewritten every step (aligned block stores), so no full-scratch clear is needed.
        s2[pl.ds(0, D2), :] = jnp.zeros((D2, 64), f32)
        s2[pl.ds(Z2, R2 - Z2), :] = jnp.zeros((R2 - Z2, 64), f32)
        s4[pl.ds(0, D4), :] = jnp.zeros((D4, 16), f32)
        s4[pl.ds(Z4, R4 - Z4), :] = jnp.zeros((R4 - Z4, 16), f32)
        s3[pl.ds(0, D3), :] = jnp.zeros((D3, 64), f32)
        s3[pl.ds(Z3, R3 - Z3), :] = jnp.zeros((R3 - Z3, 64), f32)

        # ---- conv1: 1x1 stride-2 conv == channel matmul on the presampled pixels ----
        t1 = jnp.dot(x_ref[0], w1_ref[...], preferred_element_type=f32) + b1_ref[...]
        # masking the over-wide garbage columns turns them into conv2's zero padding
        s2[pl.ds(D2, M1), :] = t1 * m1_ref[...]          # single aligned block store

        # ---- conv2: ConvT(64->16, k3, s1, p0) == pad-2 conv with the flipped kernel ----
        y[0:R2, 0:144] = jnp.dot(s2[...], w2_ref[...], preferred_element_type=f32)
        acc = None
        for ki in range(3):
            for kj in range(3):
                t = ki * 3 + kj
                off = ki * Wp + kj + (L - 2)
                v = y[off:off + M2, t * 16:(t + 1) * 16]
                acc = v if acc is None else acc + v
        t2 = _hard_sigmoid(acc + b2_ref[...]) * mv_ref[...]
        s4[pl.ds(D4, M2), :] = t2                         # single aligned block store

        # ---- conv4: ConvT(16->64, k3, s1, p1) == pad-1 conv with the flipped kernel ----
        y[0:R4, 0:576] = jnp.dot(s4[...], w4_ref[...], preferred_element_type=f32)
        acc = None
        for ki in range(3):
            for kj in range(3):
                t = ki * 3 + kj
                off = ki * Wp + kj + (L - 1)
                v = y[off:off + M4, t * 64:(t + 1) * 64]
                acc = v if acc is None else acc + v
        t4 = _hard_sigmoid(acc + b4_ref[...]) * mv_ref[...]
        s3[pl.ds(D3, M4), :] = t4                         # single aligned block store

        # ---- conv3 (odd/odd block only): 4x4 dilated-tap conv, 16 taps == one 256-col matmul ----
        y[0:R3, 0:256] = jnp.dot(s3[...], w3_ref[...], preferred_element_type=f32)
        acc = None
        for ki in range(4):
            for kj in range(4):
                t = ki * 4 + kj
                off = ki * Wp + kj + (L - 2)
                v = y[off:off + M3, t * 16:(t + 1) * 16]
                acc = v if acc is None else acc + v
        o_ref[0] = acc + b3_ref[...]

    return kernel


def _build_fused_call(N, H1):
    g = _geometry(H1)
    kernel = _make_kernel(g)
    M1, M2, M3, M4 = g["M1"], g["M2"], g["M3"], g["M4"]
    R2, R4, R3 = g["R2"], g["R4"], g["R3"]
    RY = max(R2, R4, R3)

    # VMEM footprint is tiny; size the scoped limit from the geometry instead of a blanket 32 MiB.
    vmem_est = 4 * (R2 * 64 + R4 * 16 + R3 * 64 + RY * 576          # scratches
                    + M4 * 64 + M2 * 16 + M3 * 16                   # live accumulator values
                    + 2 * (M1 * 32 + M3 * 16) + M1 + M2             # pipelined I/O blocks + masks
                    + 64 * 144 + 16 * 576 + 64 * 256 + 32 * 64 + 160)
    vmem_limit = int(min(64 * 1024 * 1024, max(8 * 1024 * 1024, 2 * vmem_est)))

    return pl.pallas_call(
        kernel,
        out_shape=jax.ShapeDtypeStruct((N, M3, 16), jnp.float32),
        grid_spec=pltpu.PrefetchScalarGridSpec(
            num_scalar_prefetch=0,
            grid=(N,),
            in_specs=[
                pl.BlockSpec((1, M1, 32), lambda b: (b, 0, 0)),   # sampled, over-wide input pixels
                pl.BlockSpec((M1, 1), lambda b: (0, 0)),          # conv1 output column mask
                pl.BlockSpec((M2, 1), lambda b: (0, 0)),          # conv2/conv4 output column mask
                pl.BlockSpec((32, 64), lambda b: (0, 0)),         # w1  (Cin, Cout)
                pl.BlockSpec((1, 64), lambda b: (0, 0)),          # b1
                pl.BlockSpec((64, 144), lambda b: (0, 0)),        # w2: 9 flipped taps concatenated
                pl.BlockSpec((1, 16), lambda b: (0, 0)),          # b2
                pl.BlockSpec((16, 576), lambda b: (0, 0)),        # w4: 9 flipped taps concatenated
                pl.BlockSpec((1, 64), lambda b: (0, 0)),          # b4
                pl.BlockSpec((64, 256), lambda b: (0, 0)),        # w3: 16 flipped dilated taps
                pl.BlockSpec((1, 16), lambda b: (0, 0)),          # b3
            ],
            out_specs=pl.BlockSpec((1, M3, 16), lambda b: (b, 0, 0)),
            scratch_shapes=[
                pltpu.VMEM((R2, 64), jnp.float32),    # s2: conv2 padded input (flattened)
                pltpu.VMEM((R4, 16), jnp.float32),    # s4: conv4 padded input (flattened)
                pltpu.VMEM((R3, 64), jnp.float32),    # s3: conv3 padded input (flattened)
                pltpu.VMEM((RY, 576), jnp.float32),   # y : shared wide-matmul result buffer
            ],
        ),
        compiler_params=pltpu.CompilerParams(
            dimension_semantics=("parallel",),        # batch shards across the 2 TCs on v7x
            vmem_limit_bytes=vmem_limit,
        ),
    )


# ----------------------------------------------------------------------------
# Model forward (NCHW in / NCHW out, like the PyTorch module)
# ----------------------------------------------------------------------------
def model_forward(x_nchw, params):
    w1, b1, w2, b2, w3, b3, w4, b4 = params
    N = x_nchw.shape[0]

    # conv1 is 1x1/stride-2: its input is a strided pixel sampling (one small XLA prep fusion),
    # laid out with the kernel's shared over-wide row pitch Wp (zero padded on the right).
    xs = jnp.transpose(x_nchw, (0, 2, 3, 1))[:, ::2, ::2, :]        # (N, H1, H1, 32)
    H1 = xs.shape[1]
    g = _geometry(H1)
    Wp, B, Hout = g["Wp"], g["B"], g["Hout"]

    xs = jnp.pad(xs, ((0, 0), (0, 0), (0, Wp - H1), (0, 0)))
    x0 = xs.reshape(N, g["M1"], 32).astype(jnp.float32)

    # 0/1 column masks that zero the over-wide garbage columns of each layer's output
    col = jnp.arange(Wp, dtype=jnp.int32)
    m1 = jnp.tile((col < H1).astype(jnp.float32), H1).reshape(g["M1"], 1)
    mv = jnp.tile((col < g["H2"]).astype(jnp.float32), g["H2"]).reshape(g["M2"], 1)

    # per-tap (Cin, Cout) matrices of the equivalent forward convs (transposed convs use the
    # spatially flipped kernel), concatenated along the output dim -> one wide matmul per layer.
    w1m = jnp.transpose(w1[:, :, 0, 0], (1, 0))                                     # (32, 64)
    w2c = jnp.transpose(w2[:, :, ::-1, ::-1], (2, 3, 0, 1)).reshape(9, 64, 16)
    w2c = jnp.transpose(w2c, (1, 0, 2)).reshape(64, 9 * 16)
    w4c = jnp.transpose(w4[:, :, ::-1, ::-1], (2, 3, 0, 1)).reshape(9, 16, 64)
    w4c = jnp.transpose(w4c, (1, 0, 2)).reshape(16, 9 * 64)
    w3c = jnp.transpose(w3[:, :, ::-1, ::-1], (2, 3, 0, 1)).reshape(16, 64, 16)
    w3c = jnp.transpose(w3c, (1, 0, 2)).reshape(64, 16 * 16)

    call = _build_fused_call(N, H1)
    blk = call(x0, m1, mv, w1m, b1[None], w2c, b2[None], w4c, b4[None], w3c, b3[None])

    blk = blk.reshape(N, B, Wp, 16)[:, :, :B, :]      # drop the over-wide garbage columns

    # Assemble the full ConvTranspose2d(k=4, s=2, p=1, d=2) output: only odd/odd pixels receive
    # contributions (computed above, bias included); every other pixel is bias-only.
    out = jnp.broadcast_to(b3.reshape(1, 1, 1, 16), (N, Hout, Hout, 16))
    out = out.at[:, 1::2, 1::2, :].set(blk)
    return jnp.transpose(out, (0, 3, 1, 2))           # NHWC -> NCHW


# ----------------------------------------------------------------------------
# Pure-XLA reference (lax convolutions) for the correctness check, and params.
# ----------------------------------------------------------------------------
def _reference_forward(x, params):
    w1, b1, w2, b2, w3, b3, w4, b4 = params
    dn = ("NCHW", "OIHW", "NCHW")
    hi = lax.Precision.HIGHEST

    def conv_t(h, w, b, stride, padding, dilation):
        k = w.shape[2]
        wf = jnp.transpose(w, (1, 0, 2, 3))[:, :, ::-1, ::-1]
        p = dilation * (k - 1) - padding
        y = lax.conv_general_dilated(h, wf, (1, 1), [(p, p), (p, p)],
                                     lhs_dilation=(stride, stride),
                                     rhs_dilation=(dilation, dilation),
                                     dimension_numbers=dn, precision=hi)
        return y + b[None, :, None, None]

    h = lax.conv_general_dilated(x, w1, (2, 2), "VALID",
                                 dimension_numbers=dn, precision=hi)
    h = h + b1[None, :, None, None]
    h = conv_t(h, w2, b2, 1, 0, 1)
    h = jnp.clip(h + 3.0, 0.0, 6.0) / 6.0
    h = conv_t(h, w4, b4, 1, 1, 1)
    h = jnp.clip(h + 3.0, 0.0, 6.0) / 6.0
    return conv_t(h, w3, b3, 2, 1, 2)


def init_params(key):
    ks = jax.random.split(key, 8)
    w1 = jax.random.normal(ks[0], (64, 32, 1, 1), jnp.float32) * 0.10   # Conv2d (Cout, Cin, 1, 1)
    b1 = jax.random.normal(ks[1], (64,), jnp.float32) * 0.10
    w2 = jax.random.normal(ks[2], (64, 16, 3, 3), jnp.float32) * 0.05   # ConvT (Cin, Cout, K, K)
    b2 = jax.random.normal(ks[3], (16,), jnp.float32) * 0.05
    # conv3: original declares in_channels=32; using 64 (see TODO at the top of the file)
    w3 = jax.random.normal(ks[4], (64, 16, 4, 4), jnp.float32) * 0.05
    b3 = jax.random.normal(ks[5], (16,), jnp.float32) * 0.05
    w4 = jax.random.normal(ks[6], (16, 64, 3, 3), jnp.float32) * 0.05
    b4 = jax.random.normal(ks[7], (64,), jnp.float32) * 0.05
    return (w1, b1, w2, b2, w3, b3, w4, b4)


if __name__ == "__main__":
    key = jax.random.PRNGKey(0)
    k_x, k_p = jax.random.split(key)
    x = jax.random.normal(k_x, (2, 32, 16, 16), jnp.float32)    # small spatial (PyTorch used 64x64)
    params = init_params(k_p)

    fwd = jax.jit(model_forward)
    out = jax.block_until_ready(fwd(x, params))

    # conv1 -> (2,64,8,8); conv2 -> (2,16,10,10); conv4 -> (2,64,10,10); conv3 -> (2,16,23,23)
    assert out.shape == (2, 16, 23, 23), out.shape
    assert bool(jnp.all(jnp.isfinite(out)))

    ref = _reference_forward(x, params)
    err = float(jnp.max(jnp.abs(out - ref)))
    assert err < 5e-3, f"max abs error vs lax reference: {err}"   # tightened from 5e-2 per review
    print("KERNEL_OK")
</pallas_src>

<mosaic_0001>
module attributes {stable_mosaic.version = 11 : i64} {
  func.func @kernel(%arg0: i32, %arg1: memref<1x192x32xf32, #tpu.memory_space<vmem>>, %arg2: memref<192x1xf32, #tpu.memory_space<vmem>>, %arg3: memref<240x1xf32, #tpu.memory_space<vmem>>, %arg4: memref<32x64xf32, #tpu.memory_space<vmem>>, %arg5: memref<1x64xf32, #tpu.memory_space<vmem>>, %arg6: memref<64x144xf32, #tpu.memory_space<vmem>>, %arg7: memref<1x16xf32, #tpu.memory_space<vmem>>, %arg8: memref<16x576xf32, #tpu.memory_space<vmem>>, %arg9: memref<1x64xf32, #tpu.memory_space<vmem>>, %arg10: memref<64x256xf32, #tpu.memory_space<vmem>>, %arg11: memref<1x16xf32, #tpu.memory_space<vmem>>, %arg12: memref<1x264x16xf32, #tpu.memory_space<vmem>>, %arg13: memref<304x64xf32, #tpu.memory_space<vmem>>, %arg14: memref<304x16xf32, #tpu.memory_space<vmem>>, %arg15: memref<352x64xf32, #tpu.memory_space<vmem>>, %arg16: memref<352x576xf32, #tpu.memory_space<vmem>>) attributes {dimension_semantics = [#tpu.dimension_semantics<parallel>], iteration_bounds = array<i64: 2>, scalar_prefetch = 0 : i64, scratch_operands = 4 : i64, tpu.core_type = #tpu.core_type<tc>, window_params = [{transform_indices = @transform_0, window_bounds = array<i64: 1, 192, 32>}, {pipeline_mode = #tpu.pipeline_mode<synchronous>, transform_indices = @transform_1, window_bounds = array<i64: 192, 1>}, {pipeline_mode = #tpu.pipeline_mode<synchronous>, transform_indices = @transform_2, window_bounds = array<i64: 240, 1>}, {pipeline_mode = #tpu.pipeline_mode<synchronous>, transform_indices = @transform_3, window_bounds = array<i64: 32, 64>}, {pipeline_mode = #tpu.pipeline_mode<synchronous>, transform_indices = @transform_4, window_bounds = array<i64: 1, 64>}, {pipeline_mode = #tpu.pipeline_mode<synchronous>, transform_indices = @transform_5, window_bounds = array<i64: 64, 144>}, {pipeline_mode = #tpu.pipeline_mode<synchronous>, transform_indices = @transform_6, window_bounds = array<i64: 1, 16>}, {pipeline_mode = #tpu.pipeline_mode<synchronous>, transform_indices = @transform_7, window_bounds = array<i64: 16, 576>}, {pipeline_mode = #tpu.pipeline_mode<synchronous>, transform_indices = @transform_8, window_bounds = array<i64: 1, 64>}, {pipeline_mode = #tpu.pipeline_mode<synchronous>, transform_indices = @transform_9, window_bounds = array<i64: 64, 256>}, {pipeline_mode = #tpu.pipeline_mode<synchronous>, transform_indices = @transform_10, window_bounds = array<i64: 1, 16>}, {transform_indices = @transform_11, window_bounds = array<i64: 1, 264, 16>}]} {
    %cst = arith.constant 0.000000e+00 : f32
    %0 = vector.broadcast %cst : f32 to vector<56x64xf32>
    %c0 = arith.constant 0 : index
    %c0_0 = arith.constant 0 : index
    %1 = vector.load %arg13[%c0, %c0_0] : memref<304x64xf32, #tpu.memory_space<vmem>>, vector<56x64xf32>
    tpu.vector_store %arg13[%c0, %c0_0], %0 {strides = array<i32>} : memref<304x64xf32, #tpu.memory_space<vmem>>, vector<56x64xf32>,
    %cst_1 = arith.constant 0.000000e+00 : f32
    %2 = vector.broadcast %cst_1 : f32 to vector<56x64xf32>
    %c248 = arith.constant 248 : index
    %c0_2 = arith.constant 0 : index
    %3 = vector.load %arg13[%c248, %c0_2] : memref<304x64xf32, #tpu.memory_space<vmem>>, vector<56x64xf32>
    tpu.vector_store %arg13[%c248, %c0_2], %2 {strides = array<i32>} : memref<304x64xf32, #tpu.memory_space<vmem>>, vector<56x64xf32>,
    %cst_3 = arith.constant 0.000000e+00 : f32
    %4 = vector.broadcast %cst_3 : f32 to vector<32x16xf32>
    %c0_4 = arith.constant 0 : index
    %c0_5 = arith.constant 0 : index
    %5 = vector.load %arg14[%c0_4, %c0_5] : memref<304x16xf32, #tpu.memory_space<vmem>>, vector<32x16xf32>
    tpu.vector_store %arg14[%c0_4, %c0_5], %4 {strides = array<i32>} : memref<304x16xf32, #tpu.memory_space<vmem>>, vector<32x16xf32>,
    %cst_6 = arith.constant 0.000000e+00 : f32
    %6 = vector.broadcast %cst_6 : f32 to vector<32x16xf32>
    %c272 = arith.constant 272 : index
    %c0_7 = arith.constant 0 : index
    %7 = vector.load %arg14[%c272, %c0_7] : memref<304x16xf32, #tpu.memory_space<vmem>>, vector<32x16xf32>
    tpu.vector_store %arg14[%c272, %c0_7], %6 {strides = array<i32>} : memref<304x16xf32, #tpu.memory_space<vmem>>, vector<32x16xf32>,
    %cst_8 = arith.constant 0.000000e+00 : f32
    %8 = vector.broadcast %cst_8 : f32 to vector<56x64xf32>
    %c0_9 = arith.constant 0 : index
    %c0_10 = arith.constant 0 : index
    %9 = vector.load %arg15[%c0_9, %c0_10] : memref<352x64xf32, #tpu.memory_space<vmem>>, vector<56x64xf32>
    tpu.vector_store %arg15[%c0_9, %c0_10], %8 {strides = array<i32>} : memref<352x64xf32, #tpu.memory_space<vmem>>, vector<56x64xf32>,
    %cst_11 = arith.constant 0.000000e+00 : f32
    %10 = vector.broadcast %cst_11 : f32 to vector<56x64xf32>
    %c296 = arith.constant 296 : index
    %c0_12 = arith.constant 0 : index
    %11 = vector.load %arg15[%c296, %c0_12] : memref<352x64xf32, #tpu.memory_space<vmem>>, vector<56x64xf32>
    tpu.vector_store %arg15[%c296, %c0_12], %10 {strides = array<i32>} : memref<352x64xf32, #tpu.memory_space<vmem>>, vector<56x64xf32>,
    %c0_13 = arith.constant 0 : index
    %c0_14 = arith.constant 0 : index
    %c0_15 = arith.constant 0 : index
    %12 = vector.load %arg1[%c0_13, %c0_14, %c0_15] : memref<1x192x32xf32, #tpu.memory_space<vmem>>, vector<1x192x32xf32>
    %13 = vector.shape_cast %12 : vector<1x192x32xf32> to vector<192x32xf32>
    %c0_16 = arith.constant 0 : index
    %c0_17 = arith.constant 0 : index
    %14 = vector.load %arg4[%c0_16, %c0_17] : memref<32x64xf32, #tpu.memory_space<vmem>>, vector<32x64xf32>
    %cst_18 = arith.constant dense<0.000000e+00> : vector<192x64xf32>
    %15 = tpu.matmul %13, %14, %cst_18 {dimension_numbers = #tpu.dot_dimension_numbers<[1], [0], [0], [1], [0, 0, 1, 1], [], []>} : vector<192x32xf32>, vector<32x64xf32>, vector<192x64xf32> -> vector<192x64xf32>
    %c0_19 = arith.constant 0 : index
    %c0_20 = arith.constant 0 : index
    %16 = vector.load %arg5[%c0_19, %c0_20] : memref<1x64xf32, #tpu.memory_space<vmem>>, vector<1x64xf32>
    %17 = vector.broadcast %16 : vector<1x64xf32> to vector<192x64xf32>
    %18 = arith.addf %15, %17 : vector<192x64xf32>
    %c0_21 = arith.constant 0 : index
    %c0_22 = arith.constant 0 : index
    %19 = vector.load %arg2[%c0_21, %c0_22] : memref<192x1xf32, #tpu.memory_space<vmem>>, vector<192x1xf32>
    %20 = vector.broadcast %19 : vector<192x1xf32> to vector<192x64xf32>
    %21 = arith.mulf %18, %20 : vector<192x64xf32>
    %c56 = arith.constant 56 : index
    %c0_23 = arith.constant 0 : index
    %22 = vector.load %arg13[%c56, %c0_23] : memref<304x64xf32, #tpu.memory_space<vmem>>, vector<192x64xf32>
    tpu.vector_store %arg13[%c56, %c0_23], %21 {strides = array<i32>} : memref<304x64xf32, #tpu.memory_space<vmem>>, vector<192x64xf32>,
    %c0_24 = arith.constant 0 : index
    %c0_25 = arith.constant 0 : index
    %23 = vector.load %arg13[%c0_24, %c0_25] : memref<304x64xf32, #tpu.memory_space<vmem>>, vector<304x64xf32>
    %c0_26 = arith.constant 0 : index
    %c0_27 = arith.constant 0 : index
    %24 = vector.load %arg6[%c0_26, %c0_27] : memref<64x144xf32, #tpu.memory_space<vmem>>, vector<64x144xf32>
    %cst_28 = arith.constant dense<0.000000e+00> : vector<304x144xf32>
    %25 = tpu.matmul %23, %24, %cst_28 {dimension_numbers = #tpu.dot_dimension_numbers<[1], [0], [0], [1], [0, 0, 1, 1], [], []>} : vector<304x64xf32>, vector<64x144xf32>, vector<304x144xf32> -> vector<304x144xf32>
    %c0_29 = arith.constant 0 : index
    %c0_30 = arith.constant 0 : index
    %26 = vector.load %arg16[%c0_29, %c0_30] : memref<352x576xf32, #tpu.memory_space<vmem>>, vector<304x144xf32>
    tpu.vector_store %arg16[%c0_29, %c0_30], %25 {strides = array<i32>} : memref<352x576xf32, #tpu.memory_space<vmem>>, vector<304x144xf32>,
    %c6 = arith.constant 6 : index
    %c0_31 = arith.constant 0 : index
    %27 = vector.load %arg16[%c6, %c0_31] : memref<352x576xf32, #tpu.memory_space<vmem>>, vector<240x16xf32>
    %c7 = arith.constant 7 : index
    %c16 = arith.constant 16 : index
    %28 = vector.load %arg16[%c7, %c16] : memref<352x576xf32, #tpu.memory_space<vmem>>, vector<240x16xf32>
    %29 = arith.addf %27, %28 : vector<240x16xf32>
    %c8 = arith.constant 8 : index
    %c32 = arith.constant 32 : index
    %30 = vector.load %arg16[%c8, %c32] : memref<352x576xf32, #tpu.memory_space<vmem>>, vector<240x16xf32>
    %31 = arith.addf %29, %30 : vector<240x16xf32>
    %c30 = arith.constant 30 : index
    %c48 = arith.constant 48 : index
    %32 = vector.load %arg16[%c30, %c48] : memref<352x576xf32, #tpu.memory_space<vmem>>, vector<240x16xf32>
    %33 = arith.addf %31, %32 : vector<240x16xf32>
    %c31 = arith.constant 31 : index
    %c64 = arith.constant 64 : index
    %34 = vector.load %arg16[%c31, %c64] : memref<352x576xf32, #tpu.memory_space<vmem>>, vector<240x16xf32>
    %35 = arith.addf %33, %34 : vector<240x16xf32>
    %c32_32 = arith.constant 32 : index
    %c80 = arith.constant 80 : index
    %36 = vector.load %arg16[%c32_32, %c80] : memref<352x576xf32, #tpu.memory_space<vmem>>, vector<240x16xf32>
    %37 = arith.addf %35, %36 : vector<240x16xf32>
    %c54 = arith.constant 54 : index
    %c96 = arith.constant 96 : index
    %38 = vector.load %arg16[%c54, %c96] : memref<352x576xf32, #tpu.memory_space<vmem>>, vector<240x16xf32>
    %39 = arith.addf %37, %38 : vector<240x16xf32>
    %c55 = arith.constant 55 : index
    %c112 = arith.constant 112 : index
    %40 = vector.load %arg16[%c55, %c112] : memref<352x576xf32, #tpu.memory_space<vmem>>, vector<240x16xf32>
    %41 = arith.addf %39, %40 : vector<240x16xf32>
    %c56_33 = arith.constant 56 : index
    %c128 = arith.constant 128 : index
    %42 = vector.load %arg16[%c56_33, %c128] : memref<352x576xf32, #tpu.memory_space<vmem>>, vector<240x16xf32>
    %43 = arith.addf %41, %42 : vector<240x16xf32>
    %c0_34 = arith.constant 0 : index
    %c0_35 = arith.constant 0 : index
    %44 = vector.load %arg7[%c0_34, %c0_35] : memref<1x16xf32, #tpu.memory_space<vmem>>, vector<1x16xf32>
    %45 = vector.broadcast %44 : vector<1x16xf32> to vector<240x16xf32>
    %46 = arith.addf %43, %45 : vector<240x16xf32>
    %cst_36 = arith.constant 3.000000e+00 : f32
    %47 = vector.broadcast %cst_36 : f32 to vector<240x16xf32>
    %48 = arith.addf %46, %47 : vector<240x16xf32>
    %cst_37 = arith.constant 0.000000e+00 : f32
    %cst_38 = arith.constant 6.000000e+00 : f32
    %49 = vector.broadcast %cst_37 : f32 to vector<240x16xf32>
    %50 = arith.maximumf %49, %48 : vector<240x16xf32>
    %51 = vector.broadcast %cst_38 : f32 to vector<240x16xf32>
    %52 = arith.minimumf %51, %50 : vector<240x16xf32>
    %cst_39 = arith.constant 0.166666672 : f32
    %53 = vector.broadcast %cst_39 : f32 to vector<240x16xf32>
    %54 = arith.mulf %52, %53 : vector<240x16xf32>
    %c0_40 = arith.constant 0 : index
    %c0_41 = arith.constant 0 : index
    %55 = vector.load %arg3[%c0_40, %c0_41] : memref<240x1xf32, #tpu.memory_space<vmem>>, vector<240x1xf32>
    %56 = vector.broadcast %55 : vector<240x1xf32> to vector<240x16xf32>
    %57 = arith.mulf %54, %56 : vector<240x16xf32>
    %c32_42 = arith.constant 32 : index
    %c0_43 = arith.constant 0 : index
    %58 = vector.load %arg14[%c32_42, %c0_43] : memref<304x16xf32, #tpu.memory_space<vmem>>, vector<240x16xf32>
    tpu.vector_store %arg14[%c32_42, %c0_43], %57 {strides = array<i32>} : memref<304x16xf32, #tpu.memory_space<vmem>>, vector<240x16xf32>,
    %c0_44 = arith.constant 0 : index
    %c0_45 = arith.constant 0 : index
    %59 = vector.load %arg14[%c0_44, %c0_45] : memref<304x16xf32, #tpu.memory_space<vmem>>, vector<304x16xf32>
    %c0_46 = arith.constant 0 : index
    %c0_47 = arith.constant 0 : index
    %60 = vector.load %arg8[%c0_46, %c0_47] : memref<16x576xf32, #tpu.memory_space<vmem>>, vector<16x576xf32>
    %cst_48 = arith.constant dense<0.000000e+00> : vector<304x576xf32>
    %61 = tpu.matmul %59, %60, %cst_48 {dimension_numbers = #tpu.dot_dimension_numbers<[1], [0], [0], [1], [0, 0, 1, 1], [], []>} : vector<304x16xf32>, vector<16x576xf32>, vector<304x576xf32> -> vector<304x576xf32>
    %c0_49 = arith.constant 0 : index
    %c0_50 = arith.constant 0 : index
    %62 = vector.load %arg16[%c0_49, %c0_50] : memref<352x576xf32, #tpu.memory_space<vmem>>, vector<304x576xf32>
    tpu.vector_store %arg16[%c0_49, %c0_50], %61 {strides = array<i32>} : memref<352x576xf32, #tpu.memory_space<vmem>>, vector<304x576xf32>,
    %c7_51 = arith.constant 7 : index
    %c0_52 = arith.constant 0 : index
    %63 = vector.load %arg16[%c7_51, %c0_52] : memref<352x576xf32, #tpu.memory_space<vmem>>, vector<240x64xf32>
    %c8_53 = arith.constant 8 : index
    %c64_54 = arith.constant 64 : index
    %64 = vector.load %arg16[%c8_53, %c64_54] : memref<352x576xf32, #tpu.memory_space<vmem>>, vector<240x64xf32>
    %65 = arith.addf %63, %64 : vector<240x64xf32>
    %c9 = arith.constant 9 : index
    %c128_55 = arith.constant 128 : index
    %66 = vector.load %arg16[%c9, %c128_55] : memref<352x576xf32, #tpu.memory_space<vmem>>, vector<240x64xf32>
    %67 = arith.addf %65, %66 : vector<240x64xf32>
    %c31_56 = arith.constant 31 : index
    %c192 = arith.constant 192 : index
    %68 = vector.load %arg16[%c31_56, %c192] : memref<352x576xf32, #tpu.memory_space<vmem>>, vector<240x64xf32>
    %69 = arith.addf %67, %68 : vector<240x64xf32>
    %c32_57 = arith.constant 32 : index
    %c256 = arith.constant 256 : index
    %70 = vector.load %arg16[%c32_57, %c256] : memref<352x576xf32, #tpu.memory_space<vmem>>, vector<240x64xf32>
    %71 = arith.addf %69, %70 : vector<240x64xf32>
    %c33 = arith.constant 33 : index
    %c320 = arith.constant 320 : index
    %72 = vector.load %arg16[%c33, %c320] : memref<352x576xf32, #tpu.memory_space<vmem>>, vector<240x64xf32>
    %73 = arith.addf %71, %72 : vector<240x64xf32>
    %c55_58 = arith.constant 55 : index
    %c384 = arith.constant 384 : index
    %74 = vector.load %arg16[%c55_58, %c384] : memref<352x576xf32, #tpu.memory_space<vmem>>, vector<240x64xf32>
    %75 = arith.addf %73, %74 : vector<240x64xf32>
    %c56_59 = arith.constant 56 : index
    %c448 = arith.constant 448 : index
    %76 = vector.load %arg16[%c56_59, %c448] : memref<352x576xf32, #tpu.memory_space<vmem>>, vector<240x64xf32>
    %77 = arith.addf %75, %76 : vector<240x64xf32>
    %c57 = arith.constant 57 : index
    %c512 = arith.constant 512 : index
    %78 = vector.load %arg16[%c57, %c512] : memref<352x576xf32, #tpu.memory_space<vmem>>, vector<240x64xf32>
    %79 = arith.addf %77, %78 : vector<240x64xf32>
    %c0_60 = arith.constant 0 : index
    %c0_61 = arith.constant 0 : index
    %80 = vector.load %arg9[%c0_60, %c0_61] : memref<1x64xf32, #tpu.memory_space<vmem>>, vector<1x64xf32>
    %81 = vector.broadcast %80 : vector<1x64xf32> to vector<240x64xf32>
    %82 = arith.addf %79, %81 : vector<240x64xf32>
    %cst_62 = arith.constant 3.000000e+00 : f32
    %83 = vector.broadcast %cst_62 : f32 to vector<240x64xf32>
    %84 = arith.addf %82, %83 : vector<240x64xf32>
    %cst_63 = arith.constant 0.000000e+00 : f32
    %cst_64 = arith.constant 6.000000e+00 : f32
    %85 = vector.broadcast %cst_63 : f32 to vector<240x64xf32>
    %86 = arith.maximumf %85, %84 : vector<240x64xf32>
    %87 = vector.broadcast %cst_64 : f32 to vector<240x64xf32>
    %88 = arith.minimumf %87, %86 : vector<240x64xf32>
    %cst_65 = arith.constant 0.166666672 : f32
    %89 = vector.broadcast %cst_65 : f32 to vector<240x64xf32>
    %90 = arith.mulf %88, %89 : vector<240x64xf32>
    %c0_66 = arith.constant 0 : index
    %c0_67 = arith.constant 0 : index
    %91 = vector.load %arg3[%c0_66, %c0_67] : memref<240x1xf32, #tpu.memory_space<vmem>>, vector<240x1xf32>
    %92 = vector.broadcast %91 : vector<240x1xf32> to vector<240x64xf32>
    %93 = arith.mulf %90, %92 : vector<240x64xf32>
    %c56_68 = arith.constant 56 : index
    %c0_69 = arith.constant 0 : index
    %94 = vector.load %arg15[%c56_68, %c0_69] : memref<352x64xf32, #tpu.memory_space<vmem>>, vector<240x64xf32>
    tpu.vector_store %arg15[%c56_68, %c0_69], %93 {strides = array<i32>} : memref<352x64xf32, #tpu.memory_space<vmem>>, vector<240x64xf32>,
    %c0_70 = arith.constant 0 : index
    %c0_71 = arith.constant 0 : index
    %95 = vector.load %arg15[%c0_70, %c0_71] : memref<352x64xf32, #tpu.memory_space<vmem>>, vector<352x64xf32>
    %c0_72 = arith.constant 0 : index
    %c0_73 = arith.constant 0 : index
    %96 = vector.load %arg10[%c0_72, %c0_73] : memref<64x256xf32, #tpu.memory_space<vmem>>, vector<64x256xf32>
    %cst_74 = arith.constant dense<0.000000e+00> : vector<352x256xf32>
    %97 = tpu.matmul %95, %96, %cst_74 {dimension_numbers = #tpu.dot_dimension_numbers<[1], [0], [0], [1], [0, 0, 1, 1], [], []>} : vector<352x64xf32>, vector<64x256xf32>, vector<352x256xf32> -> vector<352x256xf32>
    %c0_75 = arith.constant 0 : index
    %c0_76 = arith.constant 0 : index
    %98 = vector.load %arg16[%c0_75, %c0_76] : memref<352x576xf32, #tpu.memory_space<vmem>>, vector<352x256xf32>
    tpu.vector_store %arg16[%c0_75, %c0_76], %97 {strides = array<i32>} : memref<352x576xf32, #tpu.memory_space<vmem>>, vector<352x256xf32>,
    %c6_77 = arith.constant 6 : index
    %c0_78 = arith.constant 0 : index
    %99 = vector.load %arg16[%c6_77, %c0_78] : memref<352x576xf32, #tpu.memory_space<vmem>>, vector<264x16xf32>
    %c7_79 = arith.constant 7 : index
    %c16_80 = arith.constant 16 : index
    %100 = vector.load %arg16[%c7_79, %c16_80] : memref<352x576xf32, #tpu.memory_space<vmem>>, vector<264x16xf32>
    %101 = arith.addf %99, %100 : vector<264x16xf32>
    %c8_81 = arith.constant 8 : index
    %c32_82 = arith.constant 32 : index
    %102 = vector.load %arg16[%c8_81, %c32_82] : memref<352x576xf32, #tpu.memory_space<vmem>>, vector<264x16xf32>
    %103 = arith.addf %101, %102 : vector<264x16xf32>
    %c9_83 = arith.constant 9 : index
    %c48_84 = arith.constant 48 : index
    %104 = vector.load %arg16[%c9_83, %c48_84] : memref<352x576xf32, #tpu.memory_space<vmem>>, vector<264x16xf32>
    %105 = arith.addf %103, %104 : vector<264x16xf32>
    %c30_85 = arith.constant 30 : index
    %c64_86 = arith.constant 64 : index
    %106 = vector.load %arg16[%c30_85, %c64_86] : memref<352x576xf32, #tpu.memory_space<vmem>>, vector<264x16xf32>
    %107 = arith.addf %105, %106 : vector<264x16xf32>
    %c31_87 = arith.constant 31 : index
    %c80_88 = arith.constant 80 : index
    %108 = vector.load %arg16[%c31_87, %c80_88] : memref<352x576xf32, #tpu.memory_space<vmem>>, vector<264x16xf32>
    %109 = arith.addf %107, %108 : vector<264x16xf32>
    %c32_89 = arith.constant 32 : index
    %c96_90 = arith.constant 96 : index
    %110 = vector.load %arg16[%c32_89, %c96_90] : memref<352x576xf32, #tpu.memory_space<vmem>>, vector<264x16xf32>
    %111 = arith.addf %109, %110 : vector<264x16xf32>
    %c33_91 = arith.constant 33 : index
    %c112_92 = arith.constant 112 : index
    %112 = vector.load %arg16[%c33_91, %c112_92] : memref<352x576xf32, #tpu.memory_space<vmem>>, vector<264x16xf32>
    %113 = arith.addf %111, %112 : vector<264x16xf32>
    %c54_93 = arith.constant 54 : index
    %c128_94 = arith.constant 128 : index
    %114 = vector.load %arg16[%c54_93, %c128_94] : memref<352x576xf32, #tpu.memory_space<vmem>>, vector<264x16xf32>
    %115 = arith.addf %113, %114 : vector<264x16xf32>
    %c55_95 = arith.constant 55 : index
    %c144 = arith.constant 144 : index
    %116 = vector.load %arg16[%c55_95, %c144] : memref<352x576xf32, #tpu.memory_space<vmem>>, vector<264x16xf32>
    %117 = arith.addf %115, %116 : vector<264x16xf32>
    %c56_96 = arith.constant 56 : index
    %c160 = arith.constant 160 : index
    %118 = vector.load %arg16[%c56_96, %c160] : memref<352x576xf32, #tpu.memory_space<vmem>>, vector<264x16xf32>
    %119 = arith.addf %117, %118 : vector<264x16xf32>
    %c57_97 = arith.constant 57 : index
    %c176 = arith.constant 176 : index
    %120 = vector.load %arg16[%c57_97, %c176] : memref<352x576xf32, #tpu.memory_space<vmem>>, vector<264x16xf32>
    %121 = arith.addf %119, %120 : vector<264x16xf32>
    %c78 = arith.constant 78 : index
    %c192_98 = arith.constant 192 : index
    %122 = vector.load %arg16[%c78, %c192_98] : memref<352x576xf32, #tpu.memory_space<vmem>>, vector<264x16xf32>
    %123 = arith.addf %121, %122 : vector<264x16xf32>
    %c79 = arith.constant 79 : index
    %c208 = arith.constant 208 : index
    %124 = vector.load %arg16[%c79, %c208] : memref<352x576xf32, #tpu.memory_space<vmem>>, vector<264x16xf32>
    %125 = arith.addf %123, %124 : vector<264x16xf32>
    %c80_99 = arith.constant 80 : index
    %c224 = arith.constant 224 : index
    %126 = vector.load %arg16[%c80_99, %c224] : memref<352x576xf32, #tpu.memory_space<vmem>>, vector<264x16xf32>
    %127 = arith.addf %125, %126 : vector<264x16xf32>
    %c81 = arith.constant 81 : index
    %c240 = arith.constant 240 : index
    %128 = vector.load %arg16[%c81, %c240] : memref<352x576xf32, #tpu.memory_space<vmem>>, vector<264x16xf32>
    %129 = arith.addf %127, %128 : vector<264x16xf32>
    %c0_100 = arith.constant 0 : index
    %c0_101 = arith.constant 0 : index
    %130 = vector.load %arg11[%c0_100, %c0_101] : memref<1x16xf32, #tpu.memory_space<vmem>>, vector<1x16xf32>
    %131 = vector.broadcast %130 : vector<1x16xf32> to vector<264x16xf32>
    %132 = arith.addf %129, %131 : vector<264x16xf32>
    %c0_102 = arith.constant 0 : index
    %c0_103 = arith.constant 0 : index
    %c0_104 = arith.constant 0 : index
    %133 = vector.load %arg12[%c0_102, %c0_103, %c0_104] : memref<1x264x16xf32, #tpu.memory_space<vmem>>, vector<1x264x16xf32>
    %134 = vector.shape_cast %133 : vector<1x264x16xf32> to vector<264x16xf32>
    %135 = vector.shape_cast %132 : vector<264x16xf32> to vector<1x264x16xf32>
    tpu.vector_store %arg12[%c0_102, %c0_103, %c0_104], %135 {strides = array<i32>} : memref<1x264x16xf32, #tpu.memory_space<vmem>>, vector<1x264x16xf32>,
    return
  }
  func.func @transform_0(%arg0: i32) -> (i32, i32, i32) {
    %c0_i32 = arith.constant 0 : i32
    %c0_i32_0 = arith.constant 0 : i32
    %c0_i32_1 = arith.constant 0 : i32
    return %arg0, %c0_i32, %c0_i32_0 : i32, i32, i32
  }
  func.func @transform_1(%arg0: i32) -> (i32, i32) {
    %c0_i32 = arith.constant 0 : i32
    %c0_i32_0 = arith.constant 0 : i32
    %c0_i32_1 = arith.constant 0 : i32
    return %c0_i32, %c0_i32_0 : i32, i32
  }
  func.func @transform_2(%arg0: i32) -> (i32, i32) {
    %c0_i32 = arith.constant 0 : i32
    %c0_i32_0 = arith.constant 0 : i32
    %c0_i32_1 = arith.constant 0 : i32
    return %c0_i32, %c0_i32_0 : i32, i32
  }
  func.func @transform_3(%arg0: i32) -> (i32, i32) {
    %c0_i32 = arith.constant 0 : i32
    %c0_i32_0 = arith.constant 0 : i32
    %c0_i32_1 = arith.constant 0 : i32
    return %c0_i32, %c0_i32_0 : i32, i32
  }
  func.func @transform_4(%arg0: i32) -> (i32, i32) {
    %c0_i32 = arith.constant 0 : i32
    %c0_i32_0 = arith.constant 0 : i32
    %c0_i32_1 = arith.constant 0 : i32
    return %c0_i32, %c0_i32_0 : i32, i32
  }
  func.func @transform_5(%arg0: i32) -> (i32, i32) {
    %c0_i32 = arith.constant 0 : i32
    %c0_i32_0 = arith.constant 0 : i32
    %c0_i32_1 = arith.constant 0 : i32
    return %c0_i32, %c0_i32_0 : i32, i32
  }
  func.func @transform_6(%arg0: i32) -> (i32, i32) {
    %c0_i32 = arith.constant 0 : i32
    %c0_i32_0 = arith.constant 0 : i32
    %c0_i32_1 = arith.constant 0 : i32
    return %c0_i32, %c0_i32_0 : i32, i32
  }
  func.func @transform_7(%arg0: i32) -> (i32, i32) {
    %c0_i32 = arith.constant 0 : i32
    %c0_i32_0 = arith.constant 0 : i32
    %c0_i32_1 = arith.constant 0 : i32
    return %c0_i32, %c0_i32_0 : i32, i32
  }
  func.func @transform_8(%arg0: i32) -> (i32, i32) {
    %c0_i32 = arith.constant 0 : i32
    %c0_i32_0 = arith.constant 0 : i32
    %c0_i32_1 = arith.constant 0 : i32
    return %c0_i32, %c0_i32_0 : i32, i32
  }
  func.func @transform_9(%arg0: i32) -> (i32, i32) {
    %c0_i32 = arith.constant 0 : i32
    %c0_i32_0 = arith.constant 0 : i32
    %c0_i32_1 = arith.constant 0 : i32
    return %c0_i32, %c0_i32_0 : i32, i32
  }
  func.func @transform_10(%arg0: i32) -> (i32, i32) {
    %c0_i32 = arith.constant 0 : i32
    %c0_i32_0 = arith.constant 0 : i32
    %c0_i32_1 = arith.constant 0 : i32
    return %c0_i32, %c0_i32_0 : i32, i32
  }
  func.func @transform_11(%arg0: i32) -> (i32, i32, i32) {
    %c0_i32 = arith.constant 0 : i32
    %c0_i32_0 = arith.constant 0 : i32
    %c0_i32_1 = arith.constant 0 : i32
    return %arg0, %c0_i32, %c0_i32_0 : i32, i32, i32
  }
}

</mosaic_0001>

<llo_original>
// kernel: tile.18
$region0: #{tile.18}
  #allocation0 [shape = 's32[1]{0}', space=sflag, size = 0x4, scoped, tag = 'scoped memory for tile.18']
  %s0 = inlined_call_operand.vmem [shape: f32[24], index: 0, kind: input, shape index: {}]
  %s1 = inlined_call_operand.vmem [shape: f32[10,24], index: 1, kind: output, shape index: {}]
  // Predicated region
  $region2: #{tile.18} parent=0 // pred_check
    _
  $region3: #{tile.18} parent=0 // pred_check_branch
    %3 = sbr.rel (0) target = $region5
  $region4: #{tile.18} parent=0 // pred_region
    _
  $region5: #{tile.18} parent=0 // pred_fallthru
    _
  %v4 = vld [vmem:[%s0] ss:$0 sm:$0xff]
  %5 = vst [vmem:[%s1] sm:$0xff] %v4
  %s6 = scalar_lea.vmem %s1, 8
  %7 = vst [vmem:[%s6] sm:$0xff] %v4

// kernel: tile.13
$region0: #{tile.13}
  #allocation0 [shape = 's32[1]{0}', space=sflag, size = 0x4, scoped, tag = 'scoped memory for tile.13']
  %s0 = inlined_call_operand.vmem [shape: f32[24], index: 0, kind: input, shape index: {}]
  %s1 = inlined_call_operand.vmem [shape: f32[8,24], index: 1, kind: output, shape index: {}]
  // Predicated region
  $region2: #{tile.13} parent=0 // pred_check
    _
  $region3: #{tile.13} parent=0 // pred_check_branch
    %3 = sbr.rel (0) target = $region5
  $region4: #{tile.13} parent=0 // pred_region
    _
  $region5: #{tile.13} parent=0 // pred_fallthru
    _
  %v4 = vld [vmem:[%s0] ss:$0 sm:$0xff]
  %5 = vst [vmem:[%s1] sm:$0xff] %v4

// kernel: tile.0
$region0: #{tile.0}
  %s0 = inlined_call_operand.vmem [shape: f32[8,24], index: 0, kind: input, shape index: {}]
  %s1 = inlined_call_operand.vmem [shape: f32[192,1], index: 1, kind: output, shape index: {}]
  %v2 = vld [vmem:[%s0] sm:$0xff]
  %vm3 = vcmask 7168
  %4 = vst.msk [vmem:[%s1] ss:$24 sm:$0xf] %vm3, %v2
  %5 = vst.msk [vmem:[%s1] ss:$24 sm:$0xf0] %vm3, %v2
  %v6 = vld.sshfl [vmem:[%s0] sm:$0xff pattern:$0x56741230]
  %7 = vrot.lane.b32.xlu0 %v6, 127
  %v8 = vpop.permute.xlu0 %7
  %vm9 = vcmask 7168
  %s10 = scalar_lea.vmem %s1, 1
  %11 = vst.msk [vmem:[%s10] ss:$72 sm:$0x3] %vm9, %v8
  %s12 = scalar_lea.vmem %s1, 97
  %13 = vst.msk [vmem:[%s12] ss:$-24 sm:$0xc] %vm9, %v8
  %s14 = scalar_lea.vmem %s1, 4294967105
  %15 = vst.msk [vmem:[%s14] ss:$72 sm:$0x30] %vm9, %v8
  %s16 = scalar_lea.vmem %s1, 289
  %17 = vst.msk [vmem:[%s16] ss:$-24 sm:$0xc0] %vm9, %v8
  %v18 = vld.sshfl [vmem:[%s0] sm:$0xff pattern:$0x56741230]
  %19 = vrot.lane.b32.xlu0 %v18, 126
  %v20 = vpop.permute.xlu0 %19
  %vm21 = vcmask 7168
  %s22 = scalar_lea.vmem %s1, 2
  %23 = vst.msk [vmem:[%s22] ss:$72 sm:$0x3] %vm21, %v20
  %s24 = scalar_lea.vmem %s1, 98
  %25 = vst.msk [vmem:[%s24] ss:$-24 sm:$0xc] %vm21, %v20
  %s26 = scalar_lea.vmem %s1, 4294967106
  %27 = vst.msk [vmem:[%s26] ss:$72 sm:$0x30] %vm21, %v20
  %s28 = scalar_lea.vmem %s1, 290
  %29 = vst.msk [vmem:[%s28] ss:$-24 sm:$0xc0] %vm21, %v20
  %v30 = vld.sshfl [vmem:[%s0] sm:$0xff pattern:$0x56741230]
  %31 = vrot.lane.b32.xlu0 %v30, 125
  %v32 = vpop.permute.xlu0 %31
  %vm33 = vcmask 7168
  %s34 = scalar_lea.vmem %s1, 3
  %35 = vst.msk [vmem:[%s34] ss:$72 sm:$0x3] %vm33, %v32
  %s36 = scalar_lea.vmem %s1, 99
  %37 = vst.msk [vmem:[%s36] ss:$-24 sm:$0xc] %vm33, %v32
  %s38 = scalar_lea.vmem %s1, 4294967107
  %39 = vst.msk [vmem:[%s38] ss:$72 sm:$0x30] %vm33, %v32
  %s40 = scalar_lea.vmem %s1, 291
  %41 = vst.msk [vmem:[%s40] ss:$-24 sm:$0xc0] %vm33, %v32
  %v42 = vld.sshfl [vmem:[%s0] sm:$0xff pattern:$0x56741230]
  %43 = vrot.lane.b32.xlu0 %v42, 124
  %v44 = vpop.permute.xlu0 %43
  %vm45 = vcmask 7168
  %s46 = scalar_lea.vmem %s1, 4
  %47 = vst.msk [vmem:[%s46] ss:$72 sm:$0x3] %vm45, %v44
  %s48 = scalar_lea.vmem %s1, 100
  %49 = vst.msk [vmem:[%s48] ss:$-24 sm:$0xc] %vm45, %v44
  %s50 = scalar_lea.vmem %s1, 4294967108
  %51 = vst.msk [vmem:[%s50] ss:$72 sm:$0x30] %vm45, %v44
  %s52 = scalar_lea.vmem %s1, 292
  %53 = vst.msk [vmem:[%s52] ss:$-24 sm:$0xc0] %vm45, %v44
  %v54 = vld.sshfl [vmem:[%s0] sm:$0xff pattern:$0x56741230]
  %55 = vrot.lane.b32.xlu0 %v54, 123
  %v56 = vpop.permute.xlu0 %55
  %vm57 = vcmask 7168
  %s58 = scalar_lea.vmem %s1, 5
  %59 = vst.msk [vmem:[%s58] ss:$72 sm:$0x3] %vm57, %v56
  %s60 = scalar_lea.vmem %s1, 101
  %61 = vst.msk [vmem:[%s60] ss:$-24 sm:$0xc] %vm57, %v56
  %s62 = scalar_lea.vmem %s1, 4294967109
  %63 = vst.msk [vmem:[%s62] ss:$72 sm:$0x30] %vm57, %v56
  %s64 = scalar_lea.vmem %s1, 293
  %65 = vst.msk [vmem:[%s64] ss:$-24 sm:$0xc0] %vm57, %v56
  %v66 = vld.sshfl [vmem:[%s0] sm:$0xff pattern:$0x56741230]
  %67 = vrot.lane.b32.xlu0 %v66, 122
  %v68 = vpop.permute.xlu0 %67
  %vm69 = vcmask 7168
  %s70 = scalar_lea.vmem %s1, 6
  %71 = vst.msk [vmem:[%s70] ss:$72 sm:$0x3] %vm69, %v68
  %s72 = scalar_lea.vmem %s1, 102
  %73 = vst.msk [vmem:[%s72] ss:$-24 sm:$0xc] %vm69, %v68
  %s74 = scalar_lea.vmem %s1, 4294967110
  %75 = vst.msk [vmem:[%s74] ss:$72 sm:$0x30] %vm69, %v68
  %s76 = scalar_lea.vmem %s1, 294
  %77 = vst.msk [vmem:[%s76] ss:$-24 sm:$0xc0] %vm69, %v68
  %v78 = vld.sshfl [vmem:[%s0] sm:$0xff pattern:$0x56741230]
  %79 = vrot.lane.b32.xlu0 %v78, 121
  %v80 = vpop.permute.xlu0 %79
  %vm81 = vcmask 7168
  %s82 = scalar_lea.vmem %s1, 7
  %83 = vst.msk [vmem:[%s82] ss:$72 sm:$0x3] %vm81, %v80
  %s84 = scalar_lea.vmem %s1, 103
  %85 = vst.msk [vmem:[%s84] ss:$-24 sm:$0xc] %vm81, %v80
  %s86 = scalar_lea.vmem %s1, 4294967111
  %87 = vst.msk [vmem:[%s86] ss:$72 sm:$0x30] %vm81, %v80
  %s88 = scalar_lea.vmem %s1, 295
  %89 = vst.msk [vmem:[%s88] ss:$-24 sm:$0xc0] %vm81, %v80
  %v90 = vld.sshfl [vmem:[%s0] sm:$0xff pattern:$0x67452301]
  %91 = vrot.lane.b32.xlu0 %v90, 120
  %v92 = vpop.permute.xlu0 %91
  %vm93 = vcmask 7168
  %s94 = scalar_lea.vmem %s1, 32
  %95 = vst.msk [vmem:[%s94] ss:$-24 sm:$0x3] %vm93, %v92
  %s96 = scalar_lea.vmem %s1, 128
  %97 = vst.msk [vmem:[%s96] ss:$-24 sm:$0xc] %vm93, %v92
  %s98 = scalar_lea.vmem %s1, 224
  %99 = vst.msk [vmem:[%s98] ss:$-24 sm:$0x30] %vm93, %v92
  %s100 = scalar_lea.vmem %s1, 320
  %101 = vst.msk [vmem:[%s100] ss:$-24 sm:$0xc0] %vm93, %v92
  %v102 = vld.sshfl [vmem:[%s0] sm:$0xff pattern:$0x67452301]
  %103 = vrot.lane.b32.xlu0 %v102, 119
  %v104 = vpop.permute.xlu0 %103
  %vm105 = vcmask 7168
  %s106 = scalar_lea.vmem %s1, 33
  %107 = vst.msk [vmem:[%s106] ss:$-24 sm:$0x3] %vm105, %v104
  %s108 = scalar_lea.vmem %s1, 129
  %109 = vst.msk [vmem:[%s108] ss:$-24 sm:$0xc] %vm105, %v104
  %s110 = scalar_lea.vmem %s1, 225
  %111 = vst.msk [vmem:[%s110] ss:$-24 sm:$0x30] %vm105, %v104
  %s112 = scalar_lea.vmem %s1, 321
  %113 = vst.msk [vmem:[%s112] ss:$-24 sm:$0xc0] %vm105, %v104
  %v114 = vld.sshfl [vmem:[%s0] sm:$0xff pattern:$0x67452301]
  %115 = vrot.lane.b32.xlu0 %v114, 118
  %v116 = vpop.permute.xlu0 %115
  %vm117 = vcmask 7168
  %s118 = scalar_lea.vmem %s1, 34
  %119 = vst.msk [vmem:[%s118] ss:$-24 sm:$0x3] %vm117, %v116
  %s120 = scalar_lea.vmem %s1, 130
  %121 = vst.msk [vmem:[%s120] ss:$-24 sm:$0xc] %vm117, %v116
  %s122 = scalar_lea.vmem %s1, 226
  %123 = vst.msk [vmem:[%s122] ss:$-24 sm:$0x30] %vm117, %v116
  %s124 = scalar_lea.vmem %s1, 322
  %125 = vst.msk [vmem:[%s124] ss:$-24 sm:$0xc0] %vm117, %v116
  %v126 = vld.sshfl [vmem:[%s0] sm:$0xff pattern:$0x67452301]
  %127 = vrot.lane.b32.xlu0 %v126, 117
  %v128 = vpop.permute.xlu0 %127
  %vm129 = vcmask 7168
  %s130 = scalar_lea.vmem %s1, 35
  %131 = vst.msk [vmem:[%s130] ss:$-24 sm:$0x3] %vm129, %v128
  %s132 = scalar_lea.vmem %s1, 131
  %133 = vst.msk [vmem:[%s132] ss:$-24 sm:$0xc] %vm129, %v128
  %s134 = scalar_lea.vmem %s1, 227
  %135 = vst.msk [vmem:[%s134] ss:$-24 sm:$0x30] %vm129, %v128
  %s136 = scalar_lea.vmem %s1, 323
  %137 = vst.msk [vmem:[%s136] ss:$-24 sm:$0xc0] %vm129, %v128
  %v138 = vld.sshfl [vmem:[%s0] sm:$0xff pattern:$0x67452301]
  %139 = vrot.lane.b32.xlu0 %v138, 116
  %v140 = vpop.permute.xlu0 %139
  %vm141 = vcmask 7168
  %s142 = scalar_lea.vmem %s1, 36
  %143 = vst.msk [vmem:[%s142] ss:$-24 sm:$0x3] %vm141, %v140
  %s144 = scalar_lea.vmem %s1, 132
  %145 = vst.msk [vmem:[%s144] ss:$-24 sm:$0xc] %vm141, %v140
  %s146 = scalar_lea.vmem %s1, 228
  %147 = vst.msk [vmem:[%s146] ss:$-24 sm:$0x30] %vm141, %v140
  %s148 = scalar_lea.vmem %s1, 324
  %149 = vst.msk [vmem:[%s148] ss:$-24 sm:$0xc0] %vm141, %v140
  %v150 = vld.sshfl [vmem:[%s0] sm:$0xff pattern:$0x67452301]
  %151 = vrot.lane.b32.xlu0 %v150, 115
  %v152 = vpop.permute.xlu0 %151
  %vm153 = vcmask 7168
  %s154 = scalar_lea.vmem %s1, 37
  %155 = vst.msk [vmem:[%s154] ss:$-24 sm:$0x3] %vm153, %v152
  %s156 = scalar_lea.vmem %s1, 133
  %157 = vst.msk [vmem:[%s156] ss:$-24 sm:$0xc] %vm153, %v152
  %s158 = scalar_lea.vmem %s1, 229
  %159 = vst.msk [vmem:[%s158] ss:$-24 sm:$0x30] %vm153, %v152
  %s160 = scalar_lea.vmem %s1, 325
  %161 = vst.msk [vmem:[%s160] ss:$-24 sm:$0xc0] %vm153, %v152
  %v162 = vld.sshfl [vmem:[%s0] sm:$0xff pattern:$0x67452301]
  %163 = vrot.lane.b32.xlu0 %v162, 114
  %v164 = vpop.permute.xlu0 %163
  %vm165 = vcmask 7168
  %s166 = scalar_lea.vmem %s1, 38
  %167 = vst.msk [vmem:[%s166] ss:$-24 sm:$0x3] %vm165, %v164
  %s168 = scalar_lea.vmem %s1, 134
  %169 = vst.msk [vmem:[%s168] ss:$-24 sm:$0xc] %vm165, %v164
  %s170 = scalar_lea.vmem %s1, 230
  %171 = vst.msk [vmem:[%s170] ss:$-24 sm:$0x30] %vm165, %v164
  %s172 = scalar_lea.vmem %s1, 326
  %173 = vst.msk [vmem:[%s172] ss:$-24 sm:$0xc0] %vm165, %v164
  %v174 = vld.sshfl [vmem:[%s0] sm:$0xff pattern:$0x67452301]
  %175 = vrot.lane.b32.xlu0 %v174, 113
  %v176 = vpop.permute.xlu0 %175
  %vm177 = vcmask 7168
  %s178 = scalar_lea.vmem %s1, 39
  %179 = vst.msk [vmem:[%s178] ss:$-24 sm:$0x3] %vm177, %v176
  %s180 = scalar_lea.vmem %s1, 135
  %181 = vst.msk [vmem:[%s180] ss:$-24 sm:$0xc] %vm177, %v176
  %s182 = scalar_lea.vmem %s1, 231
  %183 = vst.msk [vmem:[%s182] ss:$-24 sm:$0x30] %vm177, %v176
  %s184 = scalar_lea.vmem %s1, 327
  %185 = vst.msk [vmem:[%s184] ss:$-24 sm:$0xc0] %vm177, %v176
  %v186 = vld.sshfl [vmem:[%s0] sm:$0xff pattern:$0x74563012]
  %187 = vrot.lane.b32.xlu0 %v186, 112
  %v188 = vpop.permute.xlu0 %187
  %vm189 = vcmask 7168
  %s190 = scalar_lea.vmem %s1, 64
  %191 = vst.msk [vmem:[%s190] ss:$-24 sm:$0x7] %vm189, %v188
  %s192 = scalar_lea.vmem %s1, 4294967168
  %193 = vst.msk [vmem:[%s192] ss:$72 sm:$0x18] %vm189, %v188
  %s194 = scalar_lea.vmem %s1, 256
  %195 = vst.msk [vmem:[%s194] ss:$-24 sm:$0x60] %vm189, %v188
  %s196 = scalar_lea.vmem %s1, 177
  %197 = vst.msk [vmem:[%s196] sm:$0x80] %vm189, %v188
  %v198 = vld.sshfl [vmem:[%s0] sm:$0xff pattern:$0x74563012]
  %199 = vrot.lane.b32.xlu0 %v198, 111
  %v200 = vpop.permute.xlu0 %199
  %vm201 = vcmask 7168
  %s202 = scalar_lea.vmem %s1, 65
  %203 = vst.msk [vmem:[%s202] ss:$-24 sm:$0x7] %vm201, %v200
  %s204 = scalar_lea.vmem %s1, 4294967169
  %205 = vst.msk [vmem:[%s204] ss:$72 sm:$0x18] %vm201, %v200
  %s206 = scalar_lea.vmem %s1, 257
  %207 = vst.msk [vmem:[%s206] ss:$-24 sm:$0x60] %vm201, %v200
  %s208 = scalar_lea.vmem %s1, 178
  %209 = vst.msk [vmem:[%s208] sm:$0x80] %vm201, %v200
  %v210 = vld.sshfl [vmem:[%s0] sm:$0xff pattern:$0x74563012]
  %211 = vrot.lane.b32.xlu0 %v210, 110
  %v212 = vpop.permute.xlu0 %211
  %vm213 = vcmask 7168
  %s214 = scalar_lea.vmem %s1, 66
  %215 = vst.msk [vmem:[%s214] ss:$-24 sm:$0x7] %vm213, %v212
  %s216 = scalar_lea.vmem %s1, 4294967170
  %217 = vst.msk [vmem:[%s216] ss:$72 sm:$0x18] %vm213, %v212
  %s218 = scalar_lea.vmem %s1, 258
  %219 = vst.msk [vmem:[%s218] ss:$-24 sm:$0x60] %vm213, %v212
  %s220 = scalar_lea.vmem %s1, 179
  %221 = vst.msk [vmem:[%s220] sm:$0x80] %vm213, %v212
  %v222 = vld.sshfl [vmem:[%s0] sm:$0xff pattern:$0x74563012]
  %223 = vrot.lane.b32.xlu0 %v222, 109
  %v224 = vpop.permute.xlu0 %223
  %vm225 = vcmask 7168
  %s226 = scalar_lea.vmem %s1, 67
  %227 = vst.msk [vmem:[%s226] ss:$-24 sm:$0x7] %vm225, %v224
  %s228 = scalar_lea.vmem %s1, 4294967171
  %229 = vst.msk [vmem:[%s228] ss:$72 sm:$0x18] %vm225, %v224
  %s230 = scalar_lea.vmem %s1, 259
  %231 = vst.msk [vmem:[%s230] ss:$-24 sm:$0x60] %vm225, %v224
  %s232 = scalar_lea.vmem %s1, 180
  %233 = vst.msk [vmem:[%s232] sm:$0x80] %vm225, %v224
  %v234 = vld.sshfl [vmem:[%s0] sm:$0xff pattern:$0x74563012]
  %235 = vrot.lane.b32.xlu0 %v234, 108
  %v236 = vpop.permute.xlu0 %235
  %vm237 = vcmask 7168
  %s238 = scalar_lea.vmem %s1, 68
  %239 = vst.msk [vmem:[%s238] ss:$-24 sm:$0x7] %vm237, %v236
  %s240 = scalar_lea.vmem %s1, 4294967172
  %241 = vst.msk [vmem:[%s240] ss:$72 sm:$0x18] %vm237, %v236
  %s242 = scalar_lea.vmem %s1, 260
  %243 = vst.msk [vmem:[%s242] ss:$-24 sm:$0x60] %vm237, %v236
  %s244 = scalar_lea.vmem %s1, 181
  %245 = vst.msk [vmem:[%s244] sm:$0x80] %vm237, %v236
  %v246 = vld.sshfl [vmem:[%s0] sm:$0xff pattern:$0x74563012]
  %247 = vrot.lane.b32.xlu0 %v246, 107
  %v248 = vpop.permute.xlu0 %247
  %vm249 = vcmask 7168
  %s250 = scalar_lea.vmem %s1, 69
  %251 = vst.msk [vmem:[%s250] ss:$-24 sm:$0x7] %vm249, %v248
  %s252 = scalar_lea.vmem %s1, 4294967173
  %253 = vst.msk [vmem:[%s252] ss:$72 sm:$0x18] %vm249, %v248
  %s254 = scalar_lea.vmem %s1, 261
  %255 = vst.msk [vmem:[%s254] ss:$-24 sm:$0x60] %vm249, %v248
  %s256 = scalar_lea.vmem %s1, 182
  %257 = vst.msk [vmem:[%s256] sm:$0x80] %vm249, %v248
  %v258 = vld.sshfl [vmem:[%s0] sm:$0xff pattern:$0x74563012]
  %259 = vrot.lane.b32.xlu0 %v258, 106
  %v260 = vpop.permute.xlu0 %259
  %vm261 = vcmask 7168
  %s262 = scalar_lea.vmem %s1, 70
  %263 = vst.msk [vmem:[%s262] ss:$-24 sm:$0x7] %vm261, %v260
  %s264 = scalar_lea.vmem %s1, 4294967174
  %265 = vst.msk [vmem:[%s264] ss:$72 sm:$0x18] %vm261, %v260
  %s266 = scalar_lea.vmem %s1, 262
  %267 = vst.msk [vmem:[%s266] ss:$-24 sm:$0x60] %vm261, %v260
  %s268 = scalar_lea.vmem %s1, 183
  %269 = vst.msk [vmem:[%s268] sm:$0x80] %vm261, %v260
  %v270 = vld.sshfl [vmem:[%s0] sm:$0xff pattern:$0x74563012]
  %271 = vrot.lane.b32.xlu0 %v270, 105
  %v272 = vpop.permute.xlu0 %271
  %vm273 = vcmask 7168
  %s274 = scalar_lea.vmem %s1, 71
  %275 = vst.msk [vmem:[%s274] ss:$-24 sm:$0x7] %vm273, %v272
  %s276 = scalar_lea.vmem %s1, 4294967175
  %277 = vst.msk [vmem:[%s276] ss:$72 sm:$0x18] %vm273, %v272
  %s278 = scalar_lea.vmem %s1, 263
  %279 = vst.msk [vmem:[%s278] ss:$-24 sm:$0x60] %vm273, %v272
  %s280 = scalar_lea.vmem %s1, 184
  %281 = vst.msk [vmem:[%s280] sm:$0x80] %vm273, %v272

// kernel: tile.1
$region0: #{tile.1}
  %s0 = inlined_call_operand.vmem [shape: f32[10,24], index: 0, kind: input, shape index: {}]
  %s1 = inlined_call_operand.vmem [shape: f32[240,1], index: 1, kind: output, shape index: {}]
  %v2 = vld [vmem:[%s0] sm:$0xff]
  %vm3 = vcmask 7168
  %4 = vst.msk [vmem:[%s1] ss:$24 sm:$0xf] %vm3, %v2
  %5 = vst.msk [vmem:[%s1] ss:$24 sm:$0xf0] %vm3, %v2
  %s6 = scalar_lea.vmem %s0, 8
  %v7 = vld [vmem:[%s6] sm:$0x3]
  %vm8 = vcmask 7168
  %s9 = scalar_lea.vmem %s1, 192
  %10 = vst.msk [vmem:[%s9] ss:$24 sm:$0x3] %vm8, %v7
  %v11 = vld.sshfl [vmem:[%s0] sm:$0xff pattern:$0x56741230]
  %12 = vrot.lane.b32.xlu0 %v11, 127
  %v13 = vpop.permute.xlu0 %12
  %vm14 = vcmask 7168
  %s15 = scalar_lea.vmem %s1, 1
  %16 = vst.msk [vmem:[%s15] ss:$72 sm:$0x3] %vm14, %v13
  %s17 = scalar_lea.vmem %s1, 97
  %18 = vst.msk [vmem:[%s17] ss:$-24 sm:$0xc] %vm14, %v13
  %s19 = scalar_lea.vmem %s1, 4294967105
  %20 = vst.msk [vmem:[%s19] ss:$72 sm:$0x30] %vm14, %v13
  %s21 = scalar_lea.vmem %s1, 289
  %22 = vst.msk [vmem:[%s21] ss:$-24 sm:$0xc0] %vm14, %v13
  %s23 = scalar_lea.vmem %s0, 8
  %v24 = vld [vmem:[%s23] sm:$0x3]
  %25 = vrot.lane.b32.xlu0 %v24, 127
  %v26 = vpop.permute.xlu0 %25
  %vm27 = vcmask 7168
  %s28 = scalar_lea.vmem %s1, 193
  %29 = vst.msk [vmem:[%s28] ss:$24 sm:$0x3] %vm27, %v26
  %v30 = vld.sshfl [vmem:[%s0] sm:$0xff pattern:$0x56741230]
  %31 = vrot.lane.b32.xlu0 %v30, 126
  %v32 = vpop.permute.xlu0 %31
  %vm33 = vcmask 7168
  %s34 = scalar_lea.vmem %s1, 2
  %35 = vst.msk [vmem:[%s34] ss:$72 sm:$0x3] %vm33, %v32
  %s36 = scalar_lea.vmem %s1, 98
  %37 = vst.msk [vmem:[%s36] ss:$-24 sm:$0xc] %vm33, %v32
  %s38 = scalar_lea.vmem %s1, 4294967106
  %39 = vst.msk [vmem:[%s38] ss:$72 sm:$0x30] %vm33, %v32
  %s40 = scalar_lea.vmem %s1, 290
  %41 = vst.msk [vmem:[%s40] ss:$-24 sm:$0xc0] %vm33, %v32
  %s42 = scalar_lea.vmem %s0, 8
  %v43 = vld [vmem:[%s42] sm:$0x3]
  %44 = vrot.lane.b32.xlu0 %v43, 126
  %v45 = vpop.permute.xlu0 %44
  %vm46 = vcmask 7168
  %s47 = scalar_lea.vmem %s1, 194
  %48 = vst.msk [vmem:[%s47] ss:$24 sm:$0x3] %vm46, %v45
  %v49 = vld.sshfl [vmem:[%s0] sm:$0xff pattern:$0x56741230]
  %50 = vrot.lane.b32.xlu0 %v49, 125
  %v51 = vpop.permute.xlu0 %50
  %vm52 = vcmask 7168
  %s53 = scalar_lea.vmem %s1, 3
  %54 = vst.msk [vmem:[%s53] ss:$72 sm:$0x3] %vm52, %v51
  %s55 = scalar_lea.vmem %s1, 99
  %56 = vst.msk [vmem:[%s55] ss:$-24 sm:$0xc] %vm52, %v51
  %s57 = scalar_lea.vmem %s1, 4294967107
  %58 = vst.msk [vmem:[%s57] ss:$72 sm:$0x30] %vm52, %v51
  %s59 = scalar_lea.vmem %s1, 291
  %60 = vst.msk [vmem:[%s59] ss:$-24 sm:$0xc0] %vm52, %v51
  %s61 = scalar_lea.vmem %s0, 8
  %v62 = vld [vmem:[%s61] sm:$0x3]
  %63 = vrot.lane.b32.xlu0 %v62, 125
  %v64 = vpop.permute.xlu0 %63
  %vm65 = vcmask 7168
  %s66 = scalar_lea.vmem %s1, 195
  %67 = vst.msk [vmem:[%s66] ss:$24 sm:$0x3] %vm65, %v64
  %v68 = vld.sshfl [vmem:[%s0] sm:$0xff pattern:$0x56741230]
  %69 = vrot.lane.b32.xlu0 %v68, 124
  %v70 = vpop.permute.xlu0 %69
  %vm71 = vcmask 7168
  %s72 = scalar_lea.vmem %s1, 4
  %73 = vst.msk [vmem:[%s72] ss:$72 sm:$0x3] %vm71, %v70
  %s74 = scalar_lea.vmem %s1, 100
  %75 = vst.msk [vmem:[%s74] ss:$-24 sm:$0xc] %vm71, %v70
  %s76 = scalar_lea.vmem %s1, 4294967108
  %77 = vst.msk [vmem:[%s76] ss:$72 sm:$0x30] %vm71, %v70
  %s78 = scalar_lea.vmem %s1, 292
  %79 = vst.msk [vmem:[%s78] ss:$-24 sm:$0xc0] %vm71, %v70
  %s80 = scalar_lea.vmem %s0, 8
  %v81 = vld [vmem:[%s80] sm:$0x3]
  %82 = vrot.lane.b32.xlu0 %v81, 124
  %v83 = vpop.permute.xlu0 %82
  %vm84 = vcmask 7168
  %s85 = scalar_lea.vmem %s1, 196
  %86 = vst.msk [vmem:[%s85] ss:$24 sm:$0x3] %vm84, %v83
  %v87 = vld.sshfl [vmem:[%s0] sm:$0xff pattern:$0x56741230]
  %88 = vrot.lane.b32.xlu0 %v87, 123
  %v89 = vpop.permute.xlu0 %88
  %vm90 = vcmask 7168
  %s91 = scalar_lea.vmem %s1, 5
  %92 = vst.msk [vmem:[%s91] ss:$72 sm:$0x3] %vm90, %v89
  %s93 = scalar_lea.vmem %s1, 101
  %94 = vst.msk [vmem:[%s93] ss:$-24 sm:$0xc] %vm90, %v89
  %s95 = scalar_lea.vmem %s1, 4294967109
  %96 = vst.msk [vmem:[%s95] ss:$72 sm:$0x30] %vm90, %v89
  %s97 = scalar_lea.vmem %s1, 293
  %98 = vst.msk [vmem:[%s97] ss:$-24 sm:$0xc0] %vm90, %v89
  %s99 = scalar_lea.vmem %s0, 8
  %v100 = vld [vmem:[%s99] sm:$0x3]
  %101 = vrot.lane.b32.xlu0 %v100, 123
  %v102 = vpop.permute.xlu0 %101
  %vm103 = vcmask 7168
  %s104 = scalar_lea.vmem %s1, 197
  %105 = vst.msk [vmem:[%s104] ss:$24 sm:$0x3] %vm103, %v102
  %v106 = vld.sshfl [vmem:[%s0] sm:$0xff pattern:$0x56741230]
  %107 = vrot.lane.b32.xlu0 %v106, 122
  %v108 = vpop.permute.xlu0 %107
  %vm109 = vcmask 7168
  %s110 = scalar_lea.vmem %s1, 6
  %111 = vst.msk [vmem:[%s110] ss:$72 sm:$0x3] %vm109, %v108
  %s112 = scalar_lea.vmem %s1, 102
  %113 = vst.msk [vmem:[%s112] ss:$-24 sm:$0xc] %vm109, %v108
  %s114 = scalar_lea.vmem %s1, 4294967110
  %115 = vst.msk [vmem:[%s114] ss:$72 sm:$0x30] %vm109, %v108
  %s116 = scalar_lea.vmem %s1, 294
  %117 = vst.msk [vmem:[%s116] ss:$-24 sm:$0xc0] %vm109, %v108
  %s118 = scalar_lea.vmem %s0, 8
  %v119 = vld [vmem:[%s118] sm:$0x3]
  %120 = vrot.lane.b32.xlu0 %v119, 122
  %v121 = vpop.permute.xlu0 %120
  %vm122 = vcmask 7168
  %s123 = scalar_lea.vmem %s1, 198
  %124 = vst.msk [vmem:[%s123] ss:$24 sm:$0x3] %vm122, %v121
  %v125 = vld.sshfl [vmem:[%s0] sm:$0xff pattern:$0x56741230]
  %126 = vrot.lane.b32.xlu0 %v125, 121
  %v127 = vpop.permute.xlu0 %126
  %vm128 = vcmask 7168
  %s129 = scalar_lea.vmem %s1, 7
  %130 = vst.msk [vmem:[%s129] ss:$72 sm:$0x3] %vm128, %v127
  %s131 = scalar_lea.vmem %s1, 103
  %132 = vst.msk [vmem:[%s131] ss:$-24 sm:$0xc] %vm128, %v127
  %s133 = scalar_lea.vmem %s1, 4294967111
  %134 = vst.msk [vmem:[%s133] ss:$72 sm:$0x30] %vm128, %v127
  %s135 = scalar_lea.vmem %s1, 295
  %136 = vst.msk [vmem:[%s135] ss:$-24 sm:$0xc0] %vm128, %v127
  %s137 = scalar_lea.vmem %s0, 8
  %v138 = vld [vmem:[%s137] sm:$0x3]
  %139 = vrot.lane.b32.xlu0 %v138, 121
  %v140 = vpop.permute.xlu0 %139
  %vm141 = vcmask 7168
  %s142 = scalar_lea.vmem %s1, 199
  %143 = vst.msk [vmem:[%s142] ss:$24 sm:$0x3] %vm141, %v140
  %v144 = vld.sshfl [vmem:[%s0] sm:$0xff pattern:$0x67452301]
  %145 = vrot.lane.b32.xlu0 %v144, 120
  %v146 = vpop.permute.xlu0 %145
  %vm147 = vcmask 7168
  %s148 = scalar_lea.vmem %s1, 32
  %149 = vst.msk [vmem:[%s148] ss:$-24 sm:$0x3] %vm147, %v146
  %s150 = scalar_lea.vmem %s1, 128
  %151 = vst.msk [vmem:[%s150] ss:$-24 sm:$0xc] %vm147, %v146
  %s152 = scalar_lea.vmem %s1, 224
  %153 = vst.msk [vmem:[%s152] ss:$-24 sm:$0x30] %vm147, %v146
  %s154 = scalar_lea.vmem %s1, 320
  %155 = vst.msk [vmem:[%s154] ss:$-24 sm:$0xc0] %vm147, %v146
  %s156 = scalar_lea.vmem %s0, 9
  %s157 = smov 3
  %v158 = vld [vmem:[%s156] ss:$-1 sm:%s157]
  %159 = vrot.lane.b32.xlu0 %v158, 120
  %v160 = vpop.permute.xlu0 %159
  %vm161 = vcmask 7168
  %s162 = scalar_lea.vmem %s1, 224
  %163 = vst.msk [vmem:[%s162] ss:$-24 sm:$0x3] %vm161, %v160
  %v164 = vld.sshfl [vmem:[%s0] sm:$0xff pattern:$0x67452301]
  %165 = vrot.lane.b32.xlu0 %v164, 119
  %v166 = vpop.permute.xlu0 %165
  %vm167 = vcmask 7168
  %s168 = scalar_lea.vmem %s1, 33
  %169 = vst.msk [vmem:[%s168] ss:$-24 sm:$0x3] %vm167, %v166
  %s170 = scalar_lea.vmem %s1, 129
  %171 = vst.msk [vmem:[%s170] ss:$-24 sm:$0xc] %vm167, %v166
  %s172 = scalar_lea.vmem %s1, 225
  %173 = vst.msk [vmem:[%s172] ss:$-24 sm:$0x30] %vm167, %v166
  %s174 = scalar_lea.vmem %s1, 321
  %175 = vst.msk [vmem:[%s174] ss:$-24 sm:$0xc0] %vm167, %v166
  %s176 = scalar_lea.vmem %s0, 9
  %s177 = smov 3
  %v178 = vld [vmem:[%s176] ss:$-1 sm:%s177]
  %179 = vrot.lane.b32.xlu0 %v178, 119
  %v180 = vpop.permute.xlu0 %179
  %vm181 = vcmask 7168
  %s182 = scalar_lea.vmem %s1, 225
  %183 = vst.msk [vmem:[%s182] ss:$-24 sm:$0x3] %vm181, %v180
  %v184 = vld.sshfl [vmem:[%s0] sm:$0xff pattern:$0x67452301]
  %185 = vrot.lane.b32.xlu0 %v184, 118
  %v186 = vpop.permute.xlu0 %185
  %vm187 = vcmask 7168
  %s188 = scalar_lea.vmem %s1, 34
  %189 = vst.msk [vmem:[%s188] ss:$-24 sm:$0x3] %vm187, %v186
  %s190 = scalar_lea.vmem %s1, 130
  %191 = vst.msk [vmem:[%s190] ss:$-24 sm:$0xc] %vm187, %v186
  %s192 = scalar_lea.vmem %s1, 226
  %193 = vst.msk [vmem:[%s192] ss:$-24 sm:$0x30] %vm187, %v186
  %s194 = scalar_lea.vmem %s1, 322
  %195 = vst.msk [vmem:[%s194] ss:$-24 sm:$0xc0] %vm187, %v186
  %s196 = scalar_lea.vmem %s0, 9
  %s197 = smov 3
  %v198 = vld [vmem:[%s196] ss:$-1 sm:%s197]
  %199 = vrot.lane.b32.xlu0 %v198, 118
  %v200 = vpop.permute.xlu0 %199
  %vm201 = vcmask 7168
  %s202 = scalar_lea.vmem %s1, 226
  %203 = vst.msk [vmem:[%s202] ss:$-24 sm:$0x3] %vm201, %v200
  %v204 = vld.sshfl [vmem:[%s0] sm:$0xff pattern:$0x67452301]
  %205 = vrot.lane.b32.xlu0 %v204, 117
  %v206 = vpop.permute.xlu0 %205
  %vm207 = vcmask 7168
  %s208 = scalar_lea.vmem %s1, 35
  %209 = vst.msk [vmem:[%s208] ss:$-24 sm:$0x3] %vm207, %v206
  %s210 = scalar_lea.vmem %s1, 131
  %211 = vst.msk [vmem:[%s210] ss:$-24 sm:$0xc] %vm207, %v206
  %s212 = scalar_lea.vmem %s1, 227
  %213 = vst.msk [vmem:[%s212] ss:$-24 sm:$0x30] %vm207, %v206
  %s214 = scalar_lea.vmem %s1, 323
  %215 = vst.msk [vmem:[%s214] ss:$-24 sm:$0xc0] %vm207, %v206
  %s216 = scalar_lea.vmem %s0, 9
  %s217 = smov 3
  %v218 = vld [vmem:[%s216] ss:$-1 sm:%s217]
  %219 = vrot.lane.b32.xlu0 %v218, 117
  %v220 = vpop.permute.xlu0 %219
  %vm221 = vcmask 7168
  %s222 = scalar_lea.vmem %s1, 227
  %223 = vst.msk [vmem:[%s222] ss:$-24 sm:$0x3] %vm221, %v220
  %v224 = vld.sshfl [vmem:[%s0] sm:$0xff pattern:$0x67452301]
  %225 = vrot.lane.b32.xlu0 %v224, 116
  %v226 = vpop.permute.xlu0 %225
  %vm227 = vcmask 7168
  %s228 = scalar_lea.vmem %s1, 36
  %229 = vst.msk [vmem:[%s228] ss:$-24 sm:$0x3] %vm227, %v226
  %s230 = scalar_lea.vmem %s1, 132
  %231 = vst.msk [vmem:[%s230] ss:$-24 sm:$0xc] %vm227, %v226
  %s232 = scalar_lea.vmem %s1, 228
  %233 = vst.msk [vmem:[%s232] ss:$-24 sm:$0x30] %vm227, %v226
  %s234 = scalar_lea.vmem %s1, 324
  %235 = vst.msk [vmem:[%s234] ss:$-24 sm:$0xc0] %vm227, %v226
  %s236 = scalar_lea.vmem %s0, 9
  %s237 = smov 3
  %v238 = vld [vmem:[%s236] ss:$-1 sm:%s237]
  %239 = vrot.lane.b32.xlu0 %v238, 116
  %v240 = vpop.permute.xlu0 %239
  %vm241 = vcmask 7168
  %s242 = scalar_lea.vmem %s1, 228
  %243 = vst.msk [vmem:[%s242] ss:$-24 sm:$0x3] %vm241, %v240
  %v244 = vld.sshfl [vmem:[%s0] sm:$0xff pattern:$0x67452301]
  %245 = vrot.lane.b32.xlu0 %v244, 115
  %v246 = vpop.permute.xlu0 %245
  %vm247 = vcmask 7168
  %s248 = scalar_lea.vmem %s1, 37
  %249 = vst.msk [vmem:[%s248] ss:$-24 sm:$0x3] %vm247, %v246
  %s250 = scalar_lea.vmem %s1, 133
  %251 = vst.msk [vmem:[%s250] ss:$-24 sm:$0xc] %vm247, %v246
  %s252 = scalar_lea.vmem %s1, 229
  %253 = vst.msk [vmem:[%s252] ss:$-24 sm:$0x30] %vm247, %v246
  %s254 = scalar_lea.vmem %s1, 325
  %255 = vst.msk [vmem:[%s254] ss:$-24 sm:$0xc0] %vm247, %v246
  %s256 = scalar_lea.vmem %s0, 9
  %s257 = smov 3
  %v258 = vld [vmem:[%s256] ss:$-1 sm:%s257]
  %259 = vrot.lane.b32.xlu0 %v258, 115
  %v260 = vpop.permute.xlu0 %259
  %vm261 = vcmask 7168
  %s262 = scalar_lea.vmem %s1, 229
  %263 = vst.msk [vmem:[%s262] ss:$-24 sm:$0x3] %vm261, %v260
  %v264 = vld.sshfl [vmem:[%s0] sm:$0xff pattern:$0x67452301]
  %265 = vrot.lane.b32.xlu0 %v264, 114
  %v266 = vpop.permute.xlu0 %265
  %vm267 = vcmask 7168
  %s268 = scalar_lea.vmem %s1, 38
  %269 = vst.msk [vmem:[%s268] ss:$-24 sm:$0x3] %vm267, %v266
  %s270 = scalar_lea.vmem %s1, 134
  %271 = vst.msk [vmem:[%s270] ss:$-24 sm:$0xc] %vm267, %v266
  %s272 = scalar_lea.vmem %s1, 230
  %273 = vst.msk [vmem:[%s272] ss:$-24 sm:$0x30] %vm267, %v266
  %s274 = scalar_lea.vmem %s1, 326
  %275 = vst.msk [vmem:[%s274] ss:$-24 sm:$0xc0] %vm267, %v266
  %s276 = scalar_lea.vmem %s0, 9
  %s277 = smov 3
  %v278 = vld [vmem:[%s276] ss:$-1 sm:%s277]
  %279 = vrot.lane.b32.xlu0 %v278, 114
  %v280 = vpop.permute.xlu0 %279
  %vm281 = vcmask 7168
  %s282 = scalar_lea.vmem %s1, 230
  %283 = vst.msk [vmem:[%s282] ss:$-24 sm:$0x3] %vm281, %v280
  %v284 = vld.sshfl [vmem:[%s0] sm:$0xff pattern:$0x67452301]
  %285 = vrot.lane.b32.xlu0 %v284, 113
  %v286 = vpop.permute.xlu0 %285
  %vm287 = vcmask 7168
  %s288 = scalar_lea.vmem %s1, 39
  %289 = vst.msk [vmem:[%s288] ss:$-24 sm:$0x3] %vm287, %v286
  %s290 = scalar_lea.vmem %s1, 135
  %291 = vst.msk [vmem:[%s290] ss:$-24 sm:$0xc] %vm287, %v286
  %s292 = scalar_lea.vmem %s1, 231
  %293 = vst.msk [vmem:[%s292] ss:$-24 sm:$0x30] %vm287, %v286
  %s294 = scalar_lea.vmem %s1, 327
  %295 = vst.msk [vmem:[%s294] ss:$-24 sm:$0xc0] %vm287, %v286
  %s296 = scalar_lea.vmem %s0, 9
  %s297 = smov 3
  %v298 = vld [vmem:[%s296] ss:$-1 sm:%s297]
  %299 = vrot.lane.b32.xlu0 %v298, 113
  %v300 = vpop.permute.xlu0 %299
  %vm301 = vcmask 7168
  %s302 = scalar_lea.vmem %s1, 231
  %303 = vst.msk [vmem:[%s302] ss:$-24 sm:$0x3] %vm301, %v300
  %v304 = vld.sshfl [vmem:[%s0] sm:$0xff pattern:$0x74563012]
  %305 = vrot.lane.b32.xlu0 %v304, 112
  %v306 = vpop.permute.xlu0 %305
  %vm307 = vcmask 7168
  %s308 = scalar_lea.vmem %s1, 64
  %309 = vst.msk [vmem:[%s308] ss:$-24 sm:$0x7] %vm307, %v306
  %s310 = scalar_lea.vmem %s1, 4294967168
  %311 = vst.msk [vmem:[%s310] ss:$72 sm:$0x18] %vm307, %v306
  %s312 = scalar_lea.vmem %s1, 256
  %313 = vst.msk [vmem:[%s312] ss:$-24 sm:$0x60] %vm307, %v306
  %s314 = scalar_lea.vmem %s1, 177
  %315 = vst.msk [vmem:[%s314] sm:$0x80] %vm307, %v306
  %s316 = scalar_lea.vmem %s0, 9
  %s317 = smov 3
  %v318 = vld [vmem:[%s316] ss:$-1 sm:%s317]
  %319 = vrot.lane.b32.xlu0 %v318, 112
  %v320 = vpop.permute.xlu0 %319
  %vm321 = vcmask 7168
  %s322 = scalar_lea.vmem %s1, 232
  %323 = vst.msk [vmem:[%s322] ss:$-24 sm:$0x3] %vm321, %v320
  %v324 = vld.sshfl [vmem:[%s0] sm:$0xff pattern:$0x74563012]
  %325 = vrot.lane.b32.xlu0 %v324, 111
  %v326 = vpop.permute.xlu0 %325
  %vm327 = vcmask 7168
  %s328 = scalar_lea.vmem %s1, 65
  %329 = vst.msk [vmem:[%s328] ss:$-24 sm:$0x7] %vm327, %v326
  %s330 = scalar_lea.vmem %s1, 4294967169
  %331 = vst.msk [vmem:[%s330] ss:$72 sm:$0x18] %vm327, %v326
  %s332 = scalar_lea.vmem %s1, 257
  %333 = vst.msk [vmem:[%s332] ss:$-24 sm:$0x60] %vm327, %v326
  %s334 = scalar_lea.vmem %s1, 178
  %335 = vst.msk [vmem:[%s334] sm:$0x80] %vm327, %v326
  %s336 = scalar_lea.vmem %s0, 9
  %s337 = smov 3
  %v338 = vld [vmem:[%s336] ss:$-1 sm:%s337]
  %339 = vrot.lane.b32.xlu0 %v338, 111
  %v340 = vpop.permute.xlu0 %339
  %vm341 = vcmask 7168
  %s342 = scalar_lea.vmem %s1, 233
  %343 = vst.msk [vmem:[%s342] ss:$-24 sm:$0x3] %vm341, %v340
  %v344 = vld.sshfl [vmem:[%s0] sm:$0xff pattern:$0x74563012]
  %345 = vrot.lane.b32.xlu0 %v344, 110
  %v346 = vpop.permute.xlu0 %345
  %vm347 = vcmask 7168
  %s348 = scalar_lea.vmem %s1, 66
  %349 = vst.msk [vmem:[%s348] ss:$-24 sm:$0x7] %vm347, %v346
  %s350 = scalar_lea.vmem %s1, 4294967170
  %351 = vst.msk [vmem:[%s350] ss:$72 sm:$0x18] %vm347, %v346
  %s352 = scalar_lea.vmem %s1, 258
  %353 = vst.msk [vmem:[%s352] ss:$-24 sm:$0x60] %vm347, %v346
  %s354 = scalar_lea.vmem %s1, 179
  %355 = vst.msk [vmem:[%s354] sm:$0x80] %vm347, %v346
  %s356 = scalar_lea.vmem %s0, 9
  %s357 = smov 3
  %v358 = vld [vmem:[%s356] ss:$-1 sm:%s357]
  %359 = vrot.lane.b32.xlu0 %v358, 110
  %v360 = vpop.permute.xlu0 %359
  %vm361 = vcmask 7168
  %s362 = scalar_lea.vmem %s1, 234
  %363 = vst.msk [vmem:[%s362] ss:$-24 sm:$0x3] %vm361, %v360
  %v364 = vld.sshfl [vmem:[%s0] sm:$0xff pattern:$0x74563012]
  %365 = vrot.lane.b32.xlu0 %v364, 109
  %v366 = vpop.permute.xlu0 %365
  %vm367 = vcmask 7168
  %s368 = scalar_lea.vmem %s1, 67
  %369 = vst.msk [vmem:[%s368] ss:$-24 sm:$0x7] %vm367, %v366
  %s370 = scalar_lea.vmem %s1, 4294967171
  %371 = vst.msk [vmem:[%s370] ss:$72 sm:$0x18] %vm367, %v366
  %s372 = scalar_lea.vmem %s1, 259
  %373 = vst.msk [vmem:[%s372] ss:$-24 sm:$0x60] %vm367, %v366
  %s374 = scalar_lea.vmem %s1, 180
  %375 = vst.msk [vmem:[%s374] sm:$0x80] %vm367, %v366
  %s376 = scalar_lea.vmem %s0, 9
  %s377 = smov 3
  %v378 = vld [vmem:[%s376] ss:$-1 sm:%s377]
  %379 = vrot.lane.b32.xlu0 %v378, 109
  %v380 = vpop.permute.xlu0 %379
  %vm381 = vcmask 7168
  %s382 = scalar_lea.vmem %s1, 235
  %383 = vst.msk [vmem:[%s382] ss:$-24 sm:$0x3] %vm381, %v380
  %v384 = vld.sshfl [vmem:[%s0] sm:$0xff pattern:$0x74563012]
  %385 = vrot.lane.b32.xlu0 %v384, 108
  %v386 = vpop.permute.xlu0 %385
  %vm387 = vcmask 7168
  %s388 = scalar_lea.vmem %s1, 68
  %389 = vst.msk [vmem:[%s388] ss:$-24 sm:$0x7] %vm387, %v386
  %s390 = scalar_lea.vmem %s1, 4294967172
  %391 = vst.msk [vmem:[%s390] ss:$72 sm:$0x18] %vm387, %v386
  %s392 = scalar_lea.vmem %s1, 260
  %393 = vst.msk [vmem:[%s392] ss:$-24 sm:$0x60] %vm387, %v386
  %s394 = scalar_lea.vmem %s1, 181
  %395 = vst.msk [vmem:[%s394] sm:$0x80] %vm387, %v386
  %s396 = scalar_lea.vmem %s0, 9
  %s397 = smov 3
  %v398 = vld [vmem:[%s396] ss:$-1 sm:%s397]
  %399 = vrot.lane.b32.xlu0 %v398, 108
  %v400 = vpop.permute.xlu0 %399
  %vm401 = vcmask 7168
  %s402 = scalar_lea.vmem %s1, 236
  %403 = vst.msk [vmem:[%s402] ss:$-24 sm:$0x3] %vm401, %v400
  %v404 = vld.sshfl [vmem:[%s0] sm:$0xff pattern:$0x74563012]
  %405 = vrot.lane.b32.xlu0 %v404, 107
  %v406 = vpop.permute.xlu0 %405
  %vm407 = vcmask 7168
  %s408 = scalar_lea.vmem %s1, 69
  %409 = vst.msk [vmem:[%s408] ss:$-24 sm:$0x7] %vm407, %v406
  %s410 = scalar_lea.vmem %s1, 4294967173
  %411 = vst.msk [vmem:[%s410] ss:$72 sm:$0x18] %vm407, %v406
  %s412 = scalar_lea.vmem %s1, 261
  %413 = vst.msk [vmem:[%s412] ss:$-24 sm:$0x60] %vm407, %v406
  %s414 = scalar_lea.vmem %s1, 182
  %415 = vst.msk [vmem:[%s414] sm:$0x80] %vm407, %v406
  %s416 = scalar_lea.vmem %s0, 9
  %s417 = smov 3
  %v418 = vld [vmem:[%s416] ss:$-1 sm:%s417]
  %419 = vrot.lane.b32.xlu0 %v418, 107
  %v420 = vpop.permute.xlu0 %419
  %vm421 = vcmask 7168
  %s422 = scalar_lea.vmem %s1, 237
  %423 = vst.msk [vmem:[%s422] ss:$-24 sm:$0x3] %vm421, %v420
  %v424 = vld.sshfl [vmem:[%s0] sm:$0xff pattern:$0x74563012]
  %425 = vrot.lane.b32.xlu0 %v424, 106
  %v426 = vpop.permute.xlu0 %425
  %vm427 = vcmask 7168
  %s428 = scalar_lea.vmem %s1, 70
  %429 = vst.msk [vmem:[%s428] ss:$-24 sm:$0x7] %vm427, %v426
  %s430 = scalar_lea.vmem %s1, 4294967174
  %431 = vst.msk [vmem:[%s430] ss:$72 sm:$0x18] %vm427, %v426
  %s432 = scalar_lea.vmem %s1, 262
  %433 = vst.msk [vmem:[%s432] ss:$-24 sm:$0x60] %vm427, %v426
  %s434 = scalar_lea.vmem %s1, 183
  %435 = vst.msk [vmem:[%s434] sm:$0x80] %vm427, %v426
  %s436 = scalar_lea.vmem %s0, 9
  %s437 = smov 3
  %v438 = vld [vmem:[%s436] ss:$-1 sm:%s437]
  %439 = vrot.lane.b32.xlu0 %v438, 106
  %v440 = vpop.permute.xlu0 %439
  %vm441 = vcmask 7168
  %s442 = scalar_lea.vmem %s1, 238
  %443 = vst.msk [vmem:[%s442] ss:$-24 sm:$0x3] %vm441, %v440
  %v444 = vld.sshfl [vmem:[%s0] sm:$0xff pattern:$0x74563012]
  %445 = vrot.lane.b32.xlu0 %v444, 105
  %v446 = vpop.permute.xlu0 %445
  %vm447 = vcmask 7168
  %s448 = scalar_lea.vmem %s1, 71
  %449 = vst.msk [vmem:[%s448] ss:$-24 sm:$0x7] %vm447, %v446
  %s450 = scalar_lea.vmem %s1, 4294967175
  %451 = vst.msk [vmem:[%s450] ss:$72 sm:$0x18] %vm447, %v446
  %s452 = scalar_lea.vmem %s1, 263
  %453 = vst.msk [vmem:[%s452] ss:$-24 sm:$0x60] %vm447, %v446
  %s454 = scalar_lea.vmem %s1, 184
  %455 = vst.msk [vmem:[%s454] sm:$0x80] %vm447, %v446
  %s456 = scalar_lea.vmem %s0, 9
  %s457 = smov 3
  %v458 = vld [vmem:[%s456] ss:$-1 sm:%s457]
  %459 = vrot.lane.b32.xlu0 %v458, 105
  %v460 = vpop.permute.xlu0 %459
  %vm461 = vcmask 7168
  %s462 = scalar_lea.vmem %s1, 239
  %463 = vst.msk [vmem:[%s462] ss:$-24 sm:$0x3] %vm461, %v460

// kernel: model_forward.1
$region0: #{model_forward.1}
  #allocation0 [shape = 'u32[]', space=smem, size = 0x4, offset = 0x4, fixed_abs, tag = 'smem constant byte address 0x4 - core index']
  #allocation1 [shape = 'u32[144,128]{1,0:T(1,128)}', space=vmem, size = 0x12000, scoped, tag = 'internal scratch']
  #allocation2 [shape = 'f32[304,64]{1,0:T(8,128)}', space=vmem, size = 0x26000, scoped, tag = 'scratch operand']
  #allocation3 [shape = 'f32[304,16]{1,0:T(8,128)}', space=vmem, size = 0x26000, scoped, tag = 'scratch operand']
  #allocation4 [shape = 'f32[352,64]{1,0:T(8,128)}', space=vmem, size = 0x2c000, scoped, tag = 'scratch operand']
  #allocation5 [shape = 'f32[352,576]{1,0:T(8,128)}', space=vmem, size = 0xdc000, scoped, tag = 'scratch operand']
  %s0 = inlined_call_operand.vmem [shape: f32[2,192,32], index: 0, kind: input, shape index: {}]
  %s1 = inlined_call_operand.vmem [shape: f32[192,1], index: 1, kind: input, shape index: {}]
  %s2 = inlined_call_operand.vmem [shape: f32[240,1], index: 2, kind: input, shape index: {}]
  %s3 = inlined_call_operand.vmem [shape: f32[32,64], index: 3, kind: input, shape index: {}]
  %s4 = inlined_call_operand.vmem [shape: f32[1,64], index: 4, kind: input, shape index: {}]
  %s5 = inlined_call_operand.vmem [shape: f32[64,144], index: 5, kind: input, shape index: {}]
  %s6 = inlined_call_operand.vmem [shape: f32[1,16], index: 6, kind: input, shape index: {}]
  %s7 = inlined_call_operand.vmem [shape: f32[16,576], index: 7, kind: input, shape index: {}]
  %s8 = inlined_call_operand.vmem [shape: f32[1,64], index: 8, kind: input, shape index: {}]
  %s9 = inlined_call_operand.vmem [shape: f32[64,256], index: 9, kind: input, shape index: {}]
  %s10 = inlined_call_operand.vmem [shape: f32[1,16], index: 10, kind: input, shape index: {}]
  %s11 = inlined_call_operand.vmem [shape: f32[2,264,16], index: 11, kind: output, shape index: {}]
  %s12 = sld [smem:[#allocation0]]
  $region77: #{model_forward.1} parent=0
    _
  %s14 = ssub.s32 1, %s12
  %s15 = scalar_select 0, %s14, %s12
  loop: start=0, step=1, limit=4
  $region2: #{model_forward.1} parent=0 // loop_pre_header
    _
  $region3: #{model_forward.1} parent=0 // loop_header
    %s17 = sphi 0, %s21
    %p18 = scmp.ge.s32.totalorder %s17, 4
    %s27 = sphi 0, %s29
    %s30 = sphi 0, %s27
    %s31 = sphi 0, %s30
    %s47 = sphi 0, %s31
    %s51 = sphi 0, %s51
    %s53 = sphi 0, %s51
    %s54 = sphi 0, %s53
    %s68 = sphi 0, %s54
    %s72 = sphi 0, %s72
    %s74 = sphi 0, %s72
    %s75 = sphi 0, %s74
    %s89 = sphi 0, %s75
    %s93 = sphi 0, %s93
    %s95 = sphi 0, %s93
    %s96 = sphi 0, %s95
    %s110 = sphi 0, %s96
    %s114 = sphi 0, %s114
    %s116 = sphi 0, %s114
    %s117 = sphi 0, %s116
    %s131 = sphi 0, %s117
    %s135 = sphi 0, %s135
    %s137 = sphi 0, %s135
    %s138 = sphi 0, %s137
    %s152 = sphi 0, %s138
    %s156 = sphi 0, %s156
    %s158 = sphi 0, %s156
    %s159 = sphi 0, %s158
    %s173 = sphi 0, %s159
    %s177 = sphi 0, %s177
    %s179 = sphi 0, %s177
    %s180 = sphi 0, %s179
    %s194 = sphi 0, %s180
    %s198 = sphi 0, %s198
    %s200 = sphi 0, %s198
    %s201 = sphi 0, %s200
    %s215 = sphi 0, %s201
    %s219 = sphi 0, %s219
    %s221 = sphi 0, %s219
    %s222 = sphi 0, %s221
    %s236 = sphi 0, %s222
    %s240 = sphi 0, %s240
    %s242 = sphi 0, %s240
    %s243 = sphi 0, %s242
    %s257 = sphi 0, %s243
    %s263 = sphi 0, %s265
    %s266 = sphi 0, %s263
    %s267 = sphi 0, %s266
    %s283 = sphi 0, %s267
  $region4: #{model_forward.1} parent=0 // loop_header_branch
    %20 = sbr.rel (%p18) target = $region8
  $region5: #{model_forward.1} parent=0 // loop_body
    %s22 = ssub.s32 %s17, 1
    %s23 = ssub.s32 %s17, 2
    %s24 = sadd.s32 %s17, 1
    %s25 = ssub.s32 %s17, %s24
    %p26 = scmp.eq.s32.totalorder %s25, 0
    %s28 = sadd.s32 %s27, 1
    %s29 = scalar_select %p26, %s27, %s28
    %p32 = pneg %p26
    %p33 = scmp.eq.s32.totalorder %s17, 1
    %p34 = por %p32, %p33
    %p35 = scmp.ne.s32.totalorder %s27, %s30
    %p36 = scmp.eq.s32.totalorder %s17, 0
    %p37 = por %p35, %p36
    %p38 = scmp.ne.s32.totalorder %s27, %s30
    %p39 = scmp.eq.s32.totalorder %s22, 1
    %p40 = por %p38, %p39
    %p41 = scmp.ne.s32.totalorder %s30, %s31
    %p42 = scmp.eq.s32.totalorder %s22, 0
    %p43 = por %p41, %p42
    %p44 = scmp.ne.s32.totalorder %s30, %s31
    %p45 = scmp.eq.s32.totalorder %s23, 1
    %p46 = por %p44, %p45
    %p48 = scmp.ne.s32.totalorder %s31, %s47
    %p49 = scmp.eq.s32.totalorder %s23, 0
    %p50 = por %p48, %p49
    %s52 = sadd.s32 %s51, 1
    %p55 = scmp.eq.s32.totalorder %s17, 1
    %p56 = scmp.ne.s32.totalorder %s51, %s53
    %p57 = scmp.eq.s32.totalorder %s17, 0
    %p58 = por %p56, %p57
    %p59 = scmp.ne.s32.totalorder %s51, %s53
    %p60 = scmp.eq.s32.totalorder %s22, 1
    %p61 = por %p59, %p60
    %p62 = scmp.ne.s32.totalorder %s53, %s54
    %p63 = scmp.eq.s32.totalorder %s22, 0
    %p64 = por %p62, %p63
    %p65 = scmp.ne.s32.totalorder %s53, %s54
    %p66 = scmp.eq.s32.totalorder %s23, 1
    %p67 = por %p65, %p66
    %p69 = scmp.ne.s32.totalorder %s54, %s68
    %p70 = scmp.eq.s32.totalorder %s23, 0
    %p71 = por %p69, %p70
    %s73 = sadd.s32 %s72, 1
    %p76 = scmp.eq.s32.totalorder %s17, 1
    %p77 = scmp.ne.s32.totalorder %s72, %s74
    %p78 = scmp.eq.s32.totalorder %s17, 0
    %p79 = por %p77, %p78
    %p80 = scmp.ne.s32.totalorder %s72, %s74
    %p81 = scmp.eq.s32.totalorder %s22, 1
    %p82 = por %p80, %p81
    %p83 = scmp.ne.s32.totalorder %s74, %s75
    %p84 = scmp.eq.s32.totalorder %s22, 0
    %p85 = por %p83, %p84
    %p86 = scmp.ne.s32.totalorder %s74, %s75
    %p87 = scmp.eq.s32.totalorder %s23, 1
    %p88 = por %p86, %p87
    %p90 = scmp.ne.s32.totalorder %s75, %s89
    %p91 = scmp.eq.s32.totalorder %s23, 0
    %p92 = por %p90, %p91
    %s94 = sadd.s32 %s93, 1
    %p97 = scmp.eq.s32.totalorder %s17, 1
    %p98 = scmp.ne.s32.totalorder %s93, %s95
    %p99 = scmp.eq.s32.totalorder %s17, 0
    %p100 = por %p98, %p99
    %p101 = scmp.ne.s32.totalorder %s93, %s95
    %p102 = scmp.eq.s32.totalorder %s22, 1
    %p103 = por %p101, %p102
    %p104 = scmp.ne.s32.totalorder %s95, %s96
    %p105 = scmp.eq.s32.totalorder %s22, 0
    %p106 = por %p104, %p105
    %p107 = scmp.ne.s32.totalorder %s95, %s96
    %p108 = scmp.eq.s32.totalorder %s23, 1
    %p109 = por %p107, %p108
    %p111 = scmp.ne.s32.totalorder %s96, %s110
    %p112 = scmp.eq.s32.totalorder %s23, 0
    %p113 = por %p111, %p112
    %s115 = sadd.s32 %s114, 1
    %p118 = scmp.eq.s32.totalorder %s17, 1
    %p119 = scmp.ne.s32.totalorder %s114, %s116
    %p120 = scmp.eq.s32.totalorder %s17, 0
    %p121 = por %p119, %p120
    %p122 = scmp.ne.s32.totalorder %s114, %s116
    %p123 = scmp.eq.s32.totalorder %s22, 1
    %p124 = por %p122, %p123
    %p125 = scmp.ne.s32.totalorder %s116, %s117
    %p126 = scmp.eq.s32.totalorder %s22, 0
    %p127 = por %p125, %p126
    %p128 = scmp.ne.s32.totalorder %s116, %s117
    %p129 = scmp.eq.s32.totalorder %s23, 1
    %p130 = por %p128, %p129
    %p132 = scmp.ne.s32.totalorder %s117, %s131
    %p133 = scmp.eq.s32.totalorder %s23, 0
    %p134 = por %p132, %p133
    %s136 = sadd.s32 %s135, 1
    %p139 = scmp.eq.s32.totalorder %s17, 1
    %p140 = scmp.ne.s32.totalorder %s135, %s137
    %p141 = scmp.eq.s32.totalorder %s17, 0
    %p142 = por %p140, %p141
    %p143 = scmp.ne.s32.totalorder %s135, %s137
    %p144 = scmp.eq.s32.totalorder %s22, 1
    %p145 = por %p143, %p144
    %p146 = scmp.ne.s32.totalorder %s137, %s138
    %p147 = scmp.eq.s32.totalorder %s22, 0
    %p148 = por %p146, %p147
    %p149 = scmp.ne.s32.totalorder %s137, %s138
    %p150 = scmp.eq.s32.totalorder %s23, 1
    %p151 = por %p149, %p150
    %p153 = scmp.ne.s32.totalorder %s138, %s152
    %p154 = scmp.eq.s32.totalorder %s23, 0
    %p155 = por %p153, %p154
    %s157 = sadd.s32 %s156, 1
    %p160 = scmp.eq.s32.totalorder %s17, 1
    %p161 = scmp.ne.s32.totalorder %s156, %s158
    %p162 = scmp.eq.s32.totalorder %s17, 0
    %p163 = por %p161, %p162
    %p164 = scmp.ne.s32.totalorder %s156, %s158
    %p165 = scmp.eq.s32.totalorder %s22, 1
    %p166 = por %p164, %p165
    %p167 = scmp.ne.s32.totalorder %s158, %s159
    %p168 = scmp.eq.s32.totalorder %s22, 0
    %p169 = por %p167, %p168
    %p170 = scmp.ne.s32.totalorder %s158, %s159
    %p171 = scmp.eq.s32.totalorder %s23, 1
    %p172 = por %p170, %p171
    %p174 = scmp.ne.s32.totalorder %s159, %s173
    %p175 = scmp.eq.s32.totalorder %s23, 0
    %p176 = por %p174, %p175
    %s178 = sadd.s32 %s177, 1
    %p181 = scmp.eq.s32.totalorder %s17, 1
    %p182 = scmp.ne.s32.totalorder %s177, %s179
    %p183 = scmp.eq.s32.totalorder %s17, 0
    %p184 = por %p182, %p183
    %p185 = scmp.ne.s32.totalorder %s177, %s179
    %p186 = scmp.eq.s32.totalorder %s22, 1
    %p187 = por %p185, %p186
    %p188 = scmp.ne.s32.totalorder %s179, %s180
    %p189 = scmp.eq.s32.totalorder %s22, 0
    %p190 = por %p188, %p189
    %p191 = scmp.ne.s32.totalorder %s179, %s180
    %p192 = scmp.eq.s32.totalorder %s23, 1
    %p193 = por %p191, %p192
    %p195 = scmp.ne.s32.totalorder %s180, %s194
    %p196 = scmp.eq.s32.totalorder %s23, 0
    %p197 = por %p195, %p196
    %s199 = sadd.s32 %s198, 1
    %p202 = scmp.eq.s32.totalorder %s17, 1
    %p203 = scmp.ne.s32.totalorder %s198, %s200
    %p204 = scmp.eq.s32.totalorder %s17, 0
    %p205 = por %p203, %p204
    %p206 = scmp.ne.s32.totalorder %s198, %s200
    %p207 = scmp.eq.s32.totalorder %s22, 1
    %p208 = por %p206, %p207
    %p209 = scmp.ne.s32.totalorder %s200, %s201
    %p210 = scmp.eq.s32.totalorder %s22, 0
    %p211 = por %p209, %p210
    %p212 = scmp.ne.s32.totalorder %s200, %s201
    %p213 = scmp.eq.s32.totalorder %s23, 1
    %p214 = por %p212, %p213
    %p216 = scmp.ne.s32.totalorder %s201, %s215
    %p217 = scmp.eq.s32.totalorder %s23, 0
    %p218 = por %p216, %p217
    %s220 = sadd.s32 %s219, 1
    %p223 = scmp.eq.s32.totalorder %s17, 1
    %p224 = scmp.ne.s32.totalorder %s219, %s221
    %p225 = scmp.eq.s32.totalorder %s17, 0
    %p226 = por %p224, %p225
    %p227 = scmp.ne.s32.totalorder %s219, %s221
    %p228 = scmp.eq.s32.totalorder %s22, 1
    %p229 = por %p227, %p228
    %p230 = scmp.ne.s32.totalorder %s221, %s222
    %p231 = scmp.eq.s32.totalorder %s22, 0
    %p232 = por %p230, %p231
    %p233 = scmp.ne.s32.totalorder %s221, %s222
    %p234 = scmp.eq.s32.totalorder %s23, 1
    %p235 = por %p233, %p234
    %p237 = scmp.ne.s32.totalorder %s222, %s236
    %p238 = scmp.eq.s32.totalorder %s23, 0
    %p239 = por %p237, %p238
    %s241 = sadd.s32 %s240, 1
    %p244 = scmp.eq.s32.totalorder %s17, 1
    %p245 = scmp.ne.s32.totalorder %s240, %s242
    %p246 = scmp.eq.s32.totalorder %s17, 0
    %p247 = por %p245, %p246
    %p248 = scmp.ne.s32.totalorder %s240, %s242
    %p249 = scmp.eq.s32.totalorder %s22, 1
    %p250 = por %p248, %p249
    %p251 = scmp.ne.s32.totalorder %s242, %s243
    %p252 = scmp.eq.s32.totalorder %s22, 0
    %p253 = por %p251, %p252
    %p254 = scmp.ne.s32.totalorder %s242, %s243
    %p255 = scmp.eq.s32.totalorder %s23, 1
    %p256 = por %p254, %p255
    %p258 = scmp.ne.s32.totalorder %s243, %s257
    %p259 = scmp.eq.s32.totalorder %s23, 0
    %p260 = por %p258, %p259
    %s261 = ssub.s32 %s17, %s24
    %p262 = scmp.eq.s32.totalorder %s261, 0
    %s264 = sadd.s32 %s263, 1
    %s265 = scalar_select %p262, %s263, %s264
    %p268 = pneg %p262
    %p269 = scmp.eq.s32.totalorder %s17, 1
    %p270 = por %p268, %p269
    %p271 = scmp.ne.s32.totalorder %s263, %s266
    %p272 = scmp.eq.s32.totalorder %s17, 0
    %p273 = por %p271, %p272
    %p274 = scmp.ne.s32.totalorder %s263, %s266
    %p275 = scmp.eq.s32.totalorder %s22, 1
    %p276 = por %p274, %p275
    %p277 = scmp.ne.s32.totalorder %s266, %s267
    %p278 = scmp.eq.s32.totalorder %s22, 0
    %p279 = por %p277, %p278
    %p280 = scmp.ne.s32.totalorder %s266, %s267
    %p281 = scmp.eq.s32.totalorder %s23, 1
    %p282 = por %p280, %p281
    %p284 = scmp.ne.s32.totalorder %s267, %s283
    %p285 = scmp.eq.s32.totalorder %s23, 0
    %p286 = por %p284, %p285
    %p287 = scmp.le.s32.totalorder 1, %s17
    %p288 = scmp.lt.s32.totalorder %s17, 3
    %p289 = pnand %p287, %p288
    %p290 = pneg %p289
    // Predicated region
    $region9: #{model_forward.1} parent=5 // pred_check
      _
    $region10: #{model_forward.1} parent=5 // pred_check_branch
      %292 = sbr.rel (%p289) target = $region12
    $region11: #{model_forward.1} parent=5 // pred_region
      %s293 = ssub.s32 %s17, 1
      // Predicated region
      $region13: #{model_forward.1} parent=11 // pred_check
        %p294 = pneg %p64
      $region14: #{model_forward.1} parent=11 // pred_check_branch
        %296 = sbr.rel (%p294) target = $region16
      $region15: #{model_forward.1} parent=11 // pred_region
        _
      $region16: #{model_forward.1} parent=11 // pred_fallthru
        _
      // Predicated region
      $region17: #{model_forward.1} parent=11 // pred_check
        %p297 = pneg %p85
      $region18: #{model_forward.1} parent=11 // pred_check_branch
        %299 = sbr.rel (%p297) target = $region20
      $region19: #{model_forward.1} parent=11 // pred_region
        _
      $region20: #{model_forward.1} parent=11 // pred_fallthru
        _
      // Predicated region
      $region21: #{model_forward.1} parent=11 // pred_check
        %p300 = pneg %p106
      $region22: #{model_forward.1} parent=11 // pred_check_branch
        %302 = sbr.rel (%p300) target = $region24
      $region23: #{model_forward.1} parent=11 // pred_region
        _
      $region24: #{model_forward.1} parent=11 // pred_fallthru
        _
      // Predicated region
      $region25: #{model_forward.1} parent=11 // pred_check
        %p303 = pneg %p127
      $region26: #{model_forward.1} parent=11 // pred_check_branch
        %305 = sbr.rel (%p303) target = $region28
      $region27: #{model_forward.1} parent=11 // pred_region
        _
      $region28: #{model_forward.1} parent=11 // pred_fallthru
        _
      // Predicated region
      $region29: #{model_forward.1} parent=11 // pred_check
        %p306 = pneg %p148
      $region30: #{model_forward.1} parent=11 // pred_check_branch
        %308 = sbr.rel (%p306) target = $region32
      $region31: #{model_forward.1} parent=11 // pred_region
        _
      $region32: #{model_forward.1} parent=11 // pred_fallthru
        _
      // Predicated region
      $region33: #{model_forward.1} parent=11 // pred_check
        %p309 = pneg %p169
      $region34: #{model_forward.1} parent=11 // pred_check_branch
        %311 = sbr.rel (%p309) target = $region36
      $region35: #{model_forward.1} parent=11 // pred_region
        _
      $region36: #{model_forward.1} parent=11 // pred_fallthru
        _
      // Predicated region
      $region37: #{model_forward.1} parent=11 // pred_check
        %p312 = pneg %p190
      $region38: #{model_forward.1} parent=11 // pred_check_branch
        %314 = sbr.rel (%p312) target = $region40
      $region39: #{model_forward.1} parent=11 // pred_region
        _
      $region40: #{model_forward.1} parent=11 // pred_fallthru
        _
      // Predicated region
      $region41: #{model_forward.1} parent=11 // pred_check
        %p315 = pneg %p211
      $region42: #{model_forward.1} parent=11 // pred_check_branch
        %317 = sbr.rel (%p315) target = $region44
      $region43: #{model_forward.1} parent=11 // pred_region
        _
      $region44: #{model_forward.1} parent=11 // pred_fallthru
        _
      // Predicated region
      $region45: #{model_forward.1} parent=11 // pred_check
        %p318 = pneg %p232
      $region46: #{model_forward.1} parent=11 // pred_check_branch
        %320 = sbr.rel (%p318) target = $region48
      $region47: #{model_forward.1} parent=11 // pred_region
        _
      $region48: #{model_forward.1} parent=11 // pred_fallthru
        _
      // Predicated region
      $region49: #{model_forward.1} parent=11 // pred_check
        %p321 = pneg %p253
      $region50: #{model_forward.1} parent=11 // pred_check_branch
        %323 = sbr.rel (%p321) target = $region52
      $region51: #{model_forward.1} parent=11 // pred_region
        _
      $region52: #{model_forward.1} parent=11 // pred_fallthru
        _
    $region12: #{model_forward.1} parent=5 // pred_fallthru
      _
    %p324 = scmp.lt.s32.totalorder %s17, 2
    // Predicated region
    $region53: #{model_forward.1} parent=5 // pred_check
      %p325 = pneg %p324
    $region54: #{model_forward.1} parent=5 // pred_check_branch
      %327 = sbr.rel (%p325) target = $region56
    $region55: #{model_forward.1} parent=5 // pred_region
      // Predicated region
      $region57: #{model_forward.1} parent=55 // pred_check
        %p328 = pneg %p37
      $region58: #{model_forward.1} parent=55 // pred_check_branch
        %330 = sbr.rel (%p328) target = $region60
      $region59: #{model_forward.1} parent=55 // pred_region
        %p331 = scmp.lt.s32.totalorder %s17, 1
        %s332 = scalar_select %p331, %s17, 1
        %s333 = smul.addr %s332, 24
        %s334 = smul.addr %s333, 8
        %s335 = scalar_lea.vmem %s0, %s334
      $region60: #{model_forward.1} parent=55 // pred_fallthru
        _
    $region56: #{model_forward.1} parent=5 // pred_fallthru
      _
    %p336 = scmp.le.s32.totalorder 1, %s17
    %p337 = scmp.lt.s32.totalorder %s17, 3
    %p338 = pnand %p336, %p337
    %p339 = pneg %p338
    // Predicated region
    $region61: #{model_forward.1} parent=5 // pred_check
      _
    $region62: #{model_forward.1} parent=5 // pred_check_branch
      %341 = sbr.rel (%p338) target = $region64
    $region63: #{model_forward.1} parent=5 // pred_region
      %s342 = ssub.s32 %s17, 1
      %p343 = scmp.lt.s32.totalorder %s22, 1
      %s344 = scalar_select %p343, %s22, 1
      %s345 = smul.addr %s344, 24
      %s346 = smul.addr %s345, 8
      %s347 = scalar_lea.vmem %s0, %s346
      %p348 = pneg %p43
      %p349 = pneg %p40
      %p350 = pneg %p64
      %p351 = pneg %p61
      %p352 = pneg %p85
      %p353 = pneg %p82
      %p354 = pneg %p106
      %p355 = pneg %p103
      %p356 = pneg %p127
      %p357 = pneg %p124
      %p358 = pneg %p148
      %p359 = pneg %p145
      %p360 = pneg %p169
      %p361 = pneg %p166
      %p362 = pneg %p190
      %p363 = pneg %p187
      %p364 = pneg %p211
      %p365 = pneg %p208
      %p366 = pneg %p232
      %p367 = pneg %p229
      %p368 = pneg %p253
      %p369 = pneg %p250
      %p370 = pneg %p279
      %p371 = pneg %p276
      %p372 = scmp.lt.s32.totalorder %s22, 1
      %s373 = scalar_select %p372, %s22, 1
      %s374 = smul.addr %s373, 33
      %s375 = smul.addr %s374, 8
      %s376 = scalar_lea.vmem %s11, %s375
      %p377 = scmp.lt.s32.totalorder %s22, 1
      %s378 = scalar_select %p377, %s22, 1
      %s379 = smul.addr %s378, 24
      %s380 = smul.addr %s379, 8
      %s381 = scalar_lea.vmem %s0, %s380
      %p382 = scmp.lt.s32.totalorder %s22, 1
      %s383 = scalar_select %p382, %s22, 1
      %s384 = smul.addr %s383, 33
      %s385 = smul.addr %s384, 8
      %s386 = scalar_lea.vmem %s11, %s385
      %vm387 = vcmask 523264
      %388 = vst.msk [vmem:[#allocation2] sm:$0xff] %vm387, 0.0
      %389 = vst.msk [vmem:[#allocation2 + $0x8] sm:$0xff] %vm387, 0.0
      %390 = vst.msk [vmem:[#allocation2 + $0x10] sm:$0xff] %vm387, 0.0
      %391 = vst.msk [vmem:[#allocation2 + $0x18] sm:$0xff] %vm387, 0.0
      %392 = vst.msk [vmem:[#allocation2 + $0x20] sm:$0xff] %vm387, 0.0
      %393 = vst.msk [vmem:[#allocation2 + $0x28] sm:$0xff] %vm387, 0.0
      %394 = vst.msk [vmem:[#allocation2 + $0x30] sm:$0xff] %vm387, 0.0
      %395 = vst.msk [vmem:[#allocation2 + $0xf8] sm:$0xff] %vm387, 0.0
      %396 = vst.msk [vmem:[#allocation2 + $0x100] sm:$0xff] %vm387, 0.0
      %397 = vst.msk [vmem:[#allocation2 + $0x108] sm:$0xff] %vm387, 0.0
      %398 = vst.msk [vmem:[#allocation2 + $0x110] sm:$0xff] %vm387, 0.0
      %399 = vst.msk [vmem:[#allocation2 + $0x118] sm:$0xff] %vm387, 0.0
      %400 = vst.msk [vmem:[#allocation2 + $0x120] sm:$0xff] %vm387, 0.0
      %401 = vst.msk [vmem:[#allocation2 + $0x128] sm:$0xff] %vm387, 0.0
      %vm402 = vcmask 130048
      %403 = vst.msk [vmem:[#allocation3] sm:$0xff] %vm402, 0.0
      %404 = vst.msk [vmem:[#allocation3 + $0x8] sm:$0xff] %vm402, 0.0
      %405 = vst.msk [vmem:[#allocation3 + $0x10] sm:$0xff] %vm402, 0.0
      %406 = vst.msk [vmem:[#allocation3 + $0x18] sm:$0xff] %vm402, 0.0
      %407 = vst.msk [vmem:[#allocation3 + $0x110] sm:$0xff] %vm402, 0.0
      %408 = vst.msk [vmem:[#allocation3 + $0x118] sm:$0xff] %vm402, 0.0
      %409 = vst.msk [vmem:[#allocation3 + $0x120] sm:$0xff] %vm402, 0.0
      %410 = vst.msk [vmem:[#allocation3 + $0x128] sm:$0xff] %vm402, 0.0
      %411 = vst.msk [vmem:[#allocation4] sm:$0xff] %vm387, 0.0
      %412 = vst.msk [vmem:[#allocation4 + $0x8] sm:$0xff] %vm387, 0.0
      %413 = vst.msk [vmem:[#allocation4 + $0x10] sm:$0xff] %vm387, 0.0
      %414 = vst.msk [vmem:[#allocation4 + $0x18] sm:$0xff] %vm387, 0.0
      %415 = vst.msk [vmem:[#allocation4 + $0x20] sm:$0xff] %vm387, 0.0
      %416 = vst.msk [vmem:[#allocation4 + $0x28] sm:$0xff] %vm387, 0.0
      %417 = vst.msk [vmem:[#allocation4 + $0x30] sm:$0xff] %vm387, 0.0
      %418 = vst.msk [vmem:[#allocation4 + $0x128] sm:$0xff] %vm387, 0.0
      %419 = vst.msk [vmem:[#allocation4 + $0x130] sm:$0xff] %vm387, 0.0
      %420 = vst.msk [vmem:[#allocation4 + $0x138] sm:$0xff] %vm387, 0.0
      %421 = vst.msk [vmem:[#allocation4 + $0x140] sm:$0xff] %vm387, 0.0
      %422 = vst.msk [vmem:[#allocation4 + $0x148] sm:$0xff] %vm387, 0.0
      %423 = vst.msk [vmem:[#allocation4 + $0x150] sm:$0xff] %vm387, 0.0
      %424 = vst.msk [vmem:[#allocation4 + $0x158] sm:$0xff] %vm387, 0.0
      %v425 = vld [vmem:[%s381] sm:$0xff]
      %v426 = vld [vmem:[%s381 + $0x8] sm:$0xff]
      %v427 = vld [vmem:[%s381 + $0x10] sm:$0xff]
      %v428 = vld [vmem:[%s381 + $0x18] sm:$0xff]
      %v429 = vld [vmem:[%s381 + $0x20] sm:$0xff]
      %v430 = vld [vmem:[%s381 + $0x28] sm:$0xff]
      %v431 = vld [vmem:[%s381 + $0x30] sm:$0xff]
      %v432 = vld [vmem:[%s381 + $0x38] sm:$0xff]
      %v433 = vld [vmem:[%s381 + $0x40] sm:$0xff]
      %v434 = vld [vmem:[%s381 + $0x48] sm:$0xff]
      %v435 = vld [vmem:[%s381 + $0x50] sm:$0xff]
      %v436 = vld [vmem:[%s381 + $0x58] sm:$0xff]
      %v437 = vld [vmem:[%s381 + $0x60] sm:$0xff]
      %v438 = vld [vmem:[%s381 + $0x68] sm:$0xff]
      %v439 = vld [vmem:[%s381 + $0x70] sm:$0xff]
      %v440 = vld [vmem:[%s381 + $0x78] sm:$0xff]
      %v441 = vld [vmem:[%s381 + $0x80] sm:$0xff]
      %v442 = vld [vmem:[%s381 + $0x88] sm:$0xff]
      %v443 = vld [vmem:[%s381 + $0x90] sm:$0xff]
      %v444 = vld [vmem:[%s381 + $0x98] sm:$0xff]
      %v445 = vld [vmem:[%s381 + $0xa0] sm:$0xff]
      %v446 = vld [vmem:[%s381 + $0xa8] sm:$0xff]
      %v447 = vld [vmem:[%s381 + $0xb0] sm:$0xff]
      %v448 = vld [vmem:[%s381 + $0xb8] sm:$0xff]
      %v449 = vld [vmem:[%s3] sm:$0xff]
      %v450 = vld [vmem:[%s3 + $0x8] sm:$0xff]
      %v451 = vld [vmem:[%s3 + $0x10] sm:$0xff]
      %v452 = vld [vmem:[%s3 + $0x18] sm:$0xff]
      %v453 = vld [vmem:[%s4] sm:$0x1]
      %v455 = vlaneseq
      %v456 = vshrl.u32 %v455, 7
      %v457 = vsub.s32 0, %v456
      %v458 = vrot.slane %v453, %v457
      %vm460 = vcmask 261120
      %v462 = vsel %vm460, %v425, 0
      %v465 = vsel %vm460, %v426, 0
      %v468 = vsel %vm460, %v427, 0
      %v471 = vsel %vm460, %v428, 0
      %v474 = vsel %vm460, %v429, 0
      %v477 = vsel %vm460, %v430, 0
      %v480 = vsel %vm460, %v431, 0
      %v483 = vsel %vm460, %v432, 0
      %v486 = vsel %vm460, %v433, 0
      %v489 = vsel %vm460, %v434, 0
      %v492 = vsel %vm460, %v435, 0
      %v495 = vsel %vm460, %v436, 0
      %v498 = vsel %vm460, %v437, 0
      %v501 = vsel %vm460, %v438, 0
      %v504 = vsel %vm460, %v439, 0
      %v507 = vsel %vm460, %v440, 0
      %v510 = vsel %vm460, %v441, 0
      %v513 = vsel %vm460, %v442, 0
      %v516 = vsel %vm460, %v443, 0
      %v519 = vsel %vm460, %v444, 0
      %v522 = vsel %vm460, %v445, 0
      %v525 = vsel %vm460, %v446, 0
      %v528 = vsel %vm460, %v447, 0
      %v531 = vsel %vm460, %v448, 0
      %533 = vmatprep.subr.mxu0 0.0
      %534 = vmatpush1.msra.mxu0 %v449
      %535 = vmatprep.subr.mxu0 0.0
      %536 = vmatpush1.msra.mxu0 %v450
      %537 = vmatprep.subr.mxu0 0.0
      %538 = vmatpush1.msra.mxu0 %v451
      %539 = vmatprep.subr.mxu0 0.0
      %540 = vmatpush1.msra.mxu0 %v452
      %541 = vmatprep.subr.mxu0 0.0
      %542 = vmatpush1.msra.mxu0 0.0
      %543 = vmatprep.subr.mxu0 0.0
      %544 = vmatpush1.msra.mxu0 0.0
      %545 = vmatprep.subr.mxu0 0.0
      %546 = vmatpush1.msra.mxu0 0.0
      %547 = vmatprep.subr.mxu0 0.0
      %548 = vmatpush1.msra.mxu0 0.0
      %549 = vmatprep.subr.mxu0 0.0
      %550 = vmatpush1.msra.mxu0 0.0
      %551 = vmatprep.subr.mxu0 0.0
      %552 = vmatpush1.msra.mxu0 0.0
      %553 = vmatprep.subr.mxu0 0.0
      %554 = vmatpush1.msra.mxu0 0.0
      %555 = vmatprep.subr.mxu0 0.0
      %556 = vmatpush1.msra.mxu0 0.0
      %557 = vmatprep.subr.mxu0 0.0
      %558 = vmatpush1.msra.mxu0 0.0
      %559 = vmatprep.subr.mxu0 0.0
      %560 = vmatpush1.msra.mxu0 0.0
      %561 = vmatprep.subr.mxu0 0.0
      %562 = vmatpush1.msra.mxu0 0.0
      %563 = vmatprep.subr.mxu0 0.0
      %564 = vmatpush1.msra.mxu0 0.0
      %565 = vmatprep.subr.mxu0 0.0
      %566 = vmatpush1.msra.mxu0 0.0
      %567 = vmatprep.subr.mxu0 0.0
      %568 = vmatpush1.msra.mxu0 0.0
      %569 = vmatprep.subr.mxu0 0.0
      %570 = vmatpush1.msra.mxu0 0.0
      %571 = vmatprep.subr.mxu0 0.0
      %572 = vmatpush1.msra.mxu0 0.0
      %573 = vmatprep.subr.mxu0 0.0
      %574 = vmatpush1.msra.mxu0 0.0
      %575 = vmatprep.subr.mxu0 0.0
      %576 = vmatpush1.msra.mxu0 0.0
      %577 = vmatprep.subr.mxu0 0.0
      %578 = vmatpush1.msra.mxu0 0.0
      %579 = vmatprep.subr.mxu0 0.0
      %580 = vmatpush1.msra.mxu0 0.0
      %581 = vmatprep.subr.mxu0 0.0
      %582 = vmatpush1.msra.mxu0 0.0
      %583 = vmatprep.subr.mxu0 0.0
      %584 = vmatpush1.msra.mxu0 0.0
      %585 = vmatprep.subr.mxu0 0.0
      %586 = vmatpush1.msra.mxu0 0.0
      %587 = vmatprep.subr.mxu0 0.0
      %588 = vmatpush1.msra.mxu0 0.0
      %589 = vmatprep.subr.mxu0 0.0
      %590 = vmatpush1.msra.mxu0 0.0
      %591 = vmatprep.subr.mxu0 0.0
      %592 = vmatpush1.msra.mxu0 0.0
      %593 = vmatprep.subr.mxu0 0.0
      %594 = vmatpush1.msra.mxu0 0.0
      %595 = vmatprep.subr.mxu0 0.0
      %596 = vmatpush1.msra.mxu0 0.0
      %597 = vmatprep.mubr.f32.mxu0 0.0
      %598 = vmatmul.mubr.f32.gmra.mrb[0].mxu0 %v462
      %v599 = vpop.f32.mrb[0].mxu0
      %v600 = vadd.f32 %v458, %v599
      %v601 = vpop.f32.mrb[0].mxu0
      %602 = vmatprep.mubr.f32.mxu0 0.0
      %603 = vmatmul.mubr.f32.gmra.mrb[0].mxu0 %v465
      %v604 = vpop.f32.mrb[0].mxu0
      %v605 = vadd.f32 %v458, %v604
      %v606 = vpop.f32.mrb[0].mxu0
      %607 = vmatprep.mubr.f32.mxu0 0.0
      %608 = vmatmul.mubr.f32.gmra.mrb[0].mxu0 %v468
      %v609 = vpop.f32.mrb[0].mxu0
      %v610 = vadd.f32 %v458, %v609
      %v611 = vpop.f32.mrb[0].mxu0
      %612 = vmatprep.mubr.f32.mxu0 0.0
      %613 = vmatmul.mubr.f32.gmra.mrb[0].mxu0 %v471
      %v614 = vpop.f32.mrb[0].mxu0
      %v615 = vadd.f32 %v458, %v614
      %v616 = vpop.f32.mrb[0].mxu0
      %617 = vmatprep.mubr.f32.mxu0 0.0
      %618 = vmatmul.mubr.f32.gmra.mrb[0].mxu0 %v474
      %v619 = vpop.f32.mrb[0].mxu0
      %v620 = vadd.f32 %v458, %v619
      %v621 = vpop.f32.mrb[0].mxu0
      %622 = vmatprep.mubr.f32.mxu0 0.0
      %623 = vmatmul.mubr.f32.gmra.mrb[0].mxu0 %v477
      %v624 = vpop.f32.mrb[0].mxu0
      %v625 = vadd.f32 %v458, %v624
      %v626 = vpop.f32.mrb[0].mxu0
      %627 = vmatprep.mubr.f32.mxu0 0.0
      %628 = vmatmul.mubr.f32.gmra.mrb[0].mxu0 %v480
      %v629 = vpop.f32.mrb[0].mxu0
      %v630 = vadd.f32 %v458, %v629
      %v631 = vpop.f32.mrb[0].mxu0
      %632 = vmatprep.mubr.f32.mxu0 0.0
      %633 = vmatmul.mubr.f32.gmra.mrb[0].mxu0 %v483
      %v634 = vpop.f32.mrb[0].mxu0
      %v635 = vadd.f32 %v458, %v634
      %v636 = vpop.f32.mrb[0].mxu0
      %637 = vmatprep.mubr.f32.mxu0 0.0
      %638 = vmatmul.mubr.f32.gmra.mrb[0].mxu0 %v486
      %v639 = vpop.f32.mrb[0].mxu0
      %v640 = vadd.f32 %v458, %v639
      %v641 = vpop.f32.mrb[0].mxu0
      %642 = vmatprep.mubr.f32.mxu0 0.0
      %643 = vmatmul.mubr.f32.gmra.mrb[0].mxu0 %v489
      %v644 = vpop.f32.mrb[0].mxu0
      %v645 = vadd.f32 %v458, %v644
      %v646 = vpop.f32.mrb[0].mxu0
      %647 = vmatprep.mubr.f32.mxu0 0.0
      %648 = vmatmul.mubr.f32.gmra.mrb[0].mxu0 %v492
      %v649 = vpop.f32.mrb[0].mxu0
      %v650 = vadd.f32 %v458, %v649
      %v651 = vpop.f32.mrb[0].mxu0
      %652 = vmatprep.mubr.f32.mxu0 0.0
      %653 = vmatmul.mubr.f32.gmra.mrb[0].mxu0 %v495
      %v654 = vpop.f32.mrb[0].mxu0
      %v655 = vadd.f32 %v458, %v654
      %v656 = vpop.f32.mrb[0].mxu0
      %657 = vmatprep.mubr.f32.mxu0 0.0
      %658 = vmatmul.mubr.f32.gmra.mrb[0].mxu0 %v498
      %v659 = vpop.f32.mrb[0].mxu0
      %v660 = vadd.f32 %v458, %v659
      %v661 = vpop.f32.mrb[0].mxu0
      %662 = vmatprep.mubr.f32.mxu0 0.0
      %663 = vmatmul.mubr.f32.gmra.mrb[0].mxu0 %v501
      %v664 = vpop.f32.mrb[0].mxu0
      %v665 = vadd.f32 %v458, %v664
      %v666 = vpop.f32.mrb[0].mxu0
      %667 = vmatprep.mubr.f32.mxu0 0.0
      %668 = vmatmul.mubr.f32.gmra.mrb[0].mxu0 %v504
      %v669 = vpop.f32.mrb[0].mxu0
      %v670 = vadd.f32 %v458, %v669
      %v671 = vpop.f32.mrb[0].mxu0
      %672 = vmatprep.mubr.f32.mxu0 0.0
      %673 = vmatmul.mubr.f32.gmra.mrb[0].mxu0 %v507
      %v674 = vpop.f32.mrb[0].mxu0
      %v675 = vadd.f32 %v458, %v674
      %v676 = vpop.f32.mrb[0].mxu0
      %677 = vmatprep.mubr.f32.mxu0 0.0
      %678 = vmatmul.mubr.f32.gmra.mrb[0].mxu0 %v510
      %v679 = vpop.f32.mrb[0].mxu0
      %v680 = vadd.f32 %v458, %v679
      %v681 = vpop.f32.mrb[0].mxu0
      %682 = vmatprep.mubr.f32.mxu0 0.0
      %683 = vmatmul.mubr.f32.gmra.mrb[0].mxu0 %v513
      %v684 = vpop.f32.mrb[0].mxu0
      %v685 = vadd.f32 %v458, %v684
      %v686 = vpop.f32.mrb[0].mxu0
      %687 = vmatprep.mubr.f32.mxu0 0.0
      %688 = vmatmul.mubr.f32.gmra.mrb[0].mxu0 %v516
      %v689 = vpop.f32.mrb[0].mxu0
      %v690 = vadd.f32 %v458, %v689
      %v691 = vpop.f32.mrb[0].mxu0
      %692 = vmatprep.mubr.f32.mxu0 0.0
      %693 = vmatmul.mubr.f32.gmra.mrb[0].mxu0 %v519
      %v694 = vpop.f32.mrb[0].mxu0
      %v695 = vadd.f32 %v458, %v694
      %v696 = vpop.f32.mrb[0].mxu0
      %697 = vmatprep.mubr.f32.mxu0 0.0
      %698 = vmatmul.mubr.f32.gmra.mrb[0].mxu0 %v522
      %v699 = vpop.f32.mrb[0].mxu0
      %v700 = vadd.f32 %v458, %v699
      %v701 = vpop.f32.mrb[0].mxu0
      %702 = vmatprep.mubr.f32.mxu0 0.0
      %703 = vmatmul.mubr.f32.gmra.mrb[0].mxu0 %v525
      %v704 = vpop.f32.mrb[0].mxu0
      %v705 = vadd.f32 %v458, %v704
      %v706 = vpop.f32.mrb[0].mxu0
      %707 = vmatprep.mubr.f32.mxu0 0.0
      %708 = vmatmul.mubr.f32.gmra.mrb[0].mxu0 %v528
      %v709 = vpop.f32.mrb[0].mxu0
      %v710 = vadd.f32 %v458, %v709
      %v711 = vpop.f32.mrb[0].mxu0
      %712 = vmatprep.mubr.f32.mxu0 0.0
      %713 = vmatmul.mubr.f32.gmra.mrb[0].mxu0 %v531
      %v714 = vpop.f32.mrb[0].mxu0
      %v715 = vadd.f32 %v458, %v714
      %v716 = vpop.f32.mrb[0].mxu0
      %717 = vdwg.mxu0
      %v718 = vld [vmem:[%s1] sm:$0xff]
      %v719 = vld [vmem:[%s1 + $0x8] sm:$0xff]
      %v720 = vld [vmem:[%s1 + $0x10] sm:$0xff]
      %v721 = vld [vmem:[%s1 + $0x18] sm:$0xff]
      %v722 = vld [vmem:[%s1 + $0x20] sm:$0xff]
      %v723 = vld [vmem:[%s1 + $0x28] sm:$0xff]
      %v724 = vld [vmem:[%s1 + $0x30] sm:$0xff]
      %v725 = vld [vmem:[%s1 + $0x38] sm:$0xff]
      %v726 = vld [vmem:[%s1 + $0x40] sm:$0xff]
      %v727 = vld [vmem:[%s1 + $0x48] sm:$0xff]
      %v728 = vld [vmem:[%s1 + $0x50] sm:$0xff]
      %v729 = vld [vmem:[%s1 + $0x58] sm:$0xff]
      %v730 = vld [vmem:[%s1 + $0x60] sm:$0xff]
      %v731 = vld [vmem:[%s1 + $0x68] sm:$0xff]
      %v732 = vld [vmem:[%s1 + $0x70] sm:$0xff]
      %v733 = vld [vmem:[%s1 + $0x78] sm:$0xff]
      %v734 = vld [vmem:[%s1 + $0x80] sm:$0xff]
      %v735 = vld [vmem:[%s1 + $0x88] sm:$0xff]
      %v736 = vld [vmem:[%s1 + $0x90] sm:$0xff]
      %v737 = vld [vmem:[%s1 + $0x98] sm:$0xff]
      %v738 = vld [vmem:[%s1 + $0xa0] sm:$0xff]
      %v739 = vld [vmem:[%s1 + $0xa8] sm:$0xff]
      %v740 = vld [vmem:[%s1 + $0xb0] sm:$0xff]
      %v741 = vld [vmem:[%s1 + $0xb8] sm:$0xff]
      %743 = vset.pattern.permute.xlu0 0
      %744 = vperm.xlu0 %743, %v718
      %v745 = vpop.permute.xlu0 %744
      %748 = vset.pattern.permute.xlu0 0
      %749 = vperm.xlu0 %748, %v719
      %v750 = vpop.permute.xlu0 %749
      %753 = vset.pattern.permute.xlu0 0
      %754 = vperm.xlu0 %753, %v720
      %v755 = vpop.permute.xlu0 %754
      %758 = vset.pattern.permute.xlu0 0
      %759 = vperm.xlu0 %758, %v721
      %v760 = vpop.permute.xlu0 %759
      %763 = vset.pattern.permute.xlu0 0
      %764 = vperm.xlu0 %763, %v722
      %v765 = vpop.permute.xlu0 %764
      %768 = vset.pattern.permute.xlu0 0
      %769 = vperm.xlu0 %768, %v723
      %v770 = vpop.permute.xlu0 %769
      %773 = vset.pattern.permute.xlu0 0
      %774 = vperm.xlu0 %773, %v724
      %v775 = vpop.permute.xlu0 %774
      %778 = vset.pattern.permute.xlu0 0
      %779 = vperm.xlu0 %778, %v725
      %v780 = vpop.permute.xlu0 %779
      %783 = vset.pattern.permute.xlu0 0
      %784 = vperm.xlu0 %783, %v726
      %v785 = vpop.permute.xlu0 %784
      %788 = vset.pattern.permute.xlu0 0
      %789 = vperm.xlu0 %788, %v727
      %v790 = vpop.permute.xlu0 %789
      %793 = vset.pattern.permute.xlu0 0
      %794 = vperm.xlu0 %793, %v728
      %v795 = vpop.permute.xlu0 %794
      %798 = vset.pattern.permute.xlu0 0
      %799 = vperm.xlu0 %798, %v729
      %v800 = vpop.permute.xlu0 %799
      %803 = vset.pattern.permute.xlu0 0
      %804 = vperm.xlu0 %803, %v730
      %v805 = vpop.permute.xlu0 %804
      %808 = vset.pattern.permute.xlu0 0
      %809 = vperm.xlu0 %808, %v731
      %v810 = vpop.permute.xlu0 %809
      %813 = vset.pattern.permute.xlu0 0
      %814 = vperm.xlu0 %813, %v732
      %v815 = vpop.permute.xlu0 %814
      %818 = vset.pattern.permute.xlu0 0
      %819 = vperm.xlu0 %818, %v733
      %v820 = vpop.permute.xlu0 %819
      %823 = vset.pattern.permute.xlu0 0
      %824 = vperm.xlu0 %823, %v734
      %v825 = vpop.permute.xlu0 %824
      %828 = vset.pattern.permute.xlu0 0
      %829 = vperm.xlu0 %828, %v735
      %v830 = vpop.permute.xlu0 %829
      %833 = vset.pattern.permute.xlu0 0
      %834 = vperm.xlu0 %833, %v736
      %v835 = vpop.permute.xlu0 %834
      %838 = vset.pattern.permute.xlu0 0
      %839 = vperm.xlu0 %838, %v737
      %v840 = vpop.permute.xlu0 %839
      %843 = vset.pattern.permute.xlu0 0
      %844 = vperm.xlu0 %843, %v738
      %v845 = vpop.permute.xlu0 %844
      %848 = vset.pattern.permute.xlu0 0
      %849 = vperm.xlu0 %848, %v739
      %v850 = vpop.permute.xlu0 %849
      %853 = vset.pattern.permute.xlu0 0
      %854 = vperm.xlu0 %853, %v740
      %v855 = vpop.permute.xlu0 %854
      %858 = vset.pattern.permute.xlu0 0
      %859 = vperm.xlu0 %858, %v741
      %v860 = vpop.permute.xlu0 %859
      %v862 = vmul.f32 %v600, %v745
      %v863 = vmul.f32 %v605, %v750
      %v864 = vmul.f32 %v610, %v755
      %v865 = vmul.f32 %v615, %v760
      %v866 = vmul.f32 %v620, %v765
      %v867 = vmul.f32 %v625, %v770
      %v868 = vmul.f32 %v630, %v775
      %v869 = vmul.f32 %v635, %v780
      %v870 = vmul.f32 %v640, %v785
      %v871 = vmul.f32 %v645, %v790
      %v872 = vmul.f32 %v650, %v795
      %v873 = vmul.f32 %v655, %v800
      %v874 = vmul.f32 %v660, %v805
      %v875 = vmul.f32 %v665, %v810
      %v876 = vmul.f32 %v670, %v815
      %v877 = vmul.f32 %v675, %v820
      %v878 = vmul.f32 %v680, %v825
      %v879 = vmul.f32 %v685, %v830
      %v880 = vmul.f32 %v690, %v835
      %v881 = vmul.f32 %v695, %v840
      %v882 = vmul.f32 %v700, %v845
      %v883 = vmul.f32 %v705, %v850
      %v884 = vmul.f32 %v710, %v855
      %v885 = vmul.f32 %v715, %v860
      %886 = vst.msk [vmem:[#allocation2 + $0x38] sm:$0xff] %vm387, %v862
      %887 = vst.msk [vmem:[#allocation2 + $0x40] sm:$0xff] %vm387, %v863
      %888 = vst.msk [vmem:[#allocation2 + $0x48] sm:$0xff] %vm387, %v864
      %889 = vst.msk [vmem:[#allocation2 + $0x50] sm:$0xff] %vm387, %v865
      %890 = vst.msk [vmem:[#allocation2 + $0x58] sm:$0xff] %vm387, %v866
      %891 = vst.msk [vmem:[#allocation2 + $0x60] sm:$0xff] %vm387, %v867
      %892 = vst.msk [vmem:[#allocation2 + $0x68] sm:$0xff] %vm387, %v868
      %893 = vst.msk [vmem:[#allocation2 + $0x70] sm:$0xff] %vm387, %v869
      %894 = vst.msk [vmem:[#allocation2 + $0x78] sm:$0xff] %vm387, %v870
      %895 = vst.msk [vmem:[#allocation2 + $0x80] sm:$0xff] %vm387, %v871
      %896 = vst.msk [vmem:[#allocation2 + $0x88] sm:$0xff] %vm387, %v872
      %897 = vst.msk [vmem:[#allocation2 + $0x90] sm:$0xff] %vm387, %v873
      %898 = vst.msk [vmem:[#allocation2 + $0x98] sm:$0xff] %vm387, %v874
      %899 = vst.msk [vmem:[#allocation2 + $0xa0] sm:$0xff] %vm387, %v875
      %900 = vst.msk [vmem:[#allocation2 + $0xa8] sm:$0xff] %vm387, %v876
      %901 = vst.msk [vmem:[#allocation2 + $0xb0] sm:$0xff] %vm387, %v877
      %902 = vst.msk [vmem:[#allocation2 + $0xb8] sm:$0xff] %vm387, %v878
      %903 = vst.msk [vmem:[#allocation2 + $0xc0] sm:$0xff] %vm387, %v879
      %904 = vst.msk [vmem:[#allocation2 + $0xc8] sm:$0xff] %vm387, %v880
      %905 = vst.msk [vmem:[#allocation2 + $0xd0] sm:$0xff] %vm387, %v881
      %906 = vst.msk [vmem:[#allocation2 + $0xd8] sm:$0xff] %vm387, %v882
      %907 = vst.msk [vmem:[#allocation2 + $0xe0] sm:$0xff] %vm387, %v883
      %908 = vst.msk [vmem:[#allocation2 + $0xe8] sm:$0xff] %vm387, %v884
      %909 = vst.msk [vmem:[#allocation2 + $0xf0] sm:$0xff] %vm387, %v885
      %v910 = vld [vmem:[#allocation2] sm:$0xff]
      %v911 = vld [vmem:[#allocation2 + $0x8] sm:$0xff]
      %v912 = vld [vmem:[#allocation2 + $0x10] sm:$0xff]
      %v913 = vld [vmem:[#allocation2 + $0x18] sm:$0xff]
      %v914 = vld [vmem:[#allocation2 + $0x20] sm:$0xff]
      %v915 = vld [vmem:[#allocation2 + $0x28] sm:$0xff]
      %v916 = vld [vmem:[#allocation2 + $0x30] sm:$0xff]
      %v917 = vld [vmem:[#allocation2 + $0x38] sm:$0xff]
      %v918 = vld [vmem:[#allocation2 + $0x40] sm:$0xff]
      %v919 = vld [vmem:[#allocation2 + $0x48] sm:$0xff]
      %v920 = vld [vmem:[#allocation2 + $0x50] sm:$0xff]
      %v921 = vld [vmem:[#allocation2 + $0x58] sm:$0xff]
      %v922 = vld [vmem:[#allocation2 + $0x60] sm:$0xff]
      %v923 = vld [vmem:[#allocation2 + $0x68] sm:$0xff]
      %v924 = vld [vmem:[#allocation2 + $0x70] sm:$0xff]
      %v925 = vld [vmem:[#allocation2 + $0x78] sm:$0xff]
      %v926 = vld [vmem:[#allocation2 + $0x80] sm:$0xff]
      %v927 = vld [vmem:[#allocation2 + $0x88] sm:$0xff]
      %v928 = vld [vmem:[#allocation2 + $0x90] sm:$0xff]
      %v929 = vld [vmem:[#allocation2 + $0x98] sm:$0xff]
      %v930 = vld [vmem:[#allocation2 + $0xa0] sm:$0xff]
      %v931 = vld [vmem:[#allocation2 + $0xa8] sm:$0xff]
      %v932 = vld [vmem:[#allocation2 + $0xb0] sm:$0xff]
      %v933 = vld [vmem:[#allocation2 + $0xb8] sm:$0xff]
      %v934 = vld [vmem:[#allocation2 + $0xc0] sm:$0xff]
      %v935 = vld [vmem:[#allocation2 + $0xc8] sm:$0xff]
      %v936 = vld [vmem:[#allocation2 + $0xd0] sm:$0xff]
      %v937 = vld [vmem:[#allocation2 + $0xd8] sm:$0xff]
      %v938 = vld [vmem:[#allocation2 + $0xe0] sm:$0xff]
      %v939 = vld [vmem:[#allocation2 + $0xe8] sm:$0xff]
      %v940 = vld [vmem:[#allocation2 + $0xf0] sm:$0xff]
      %v941 = vld [vmem:[#allocation2 + $0xf8] sm:$0xff]
      %v942 = vld [vmem:[#allocation2 + $0x100] sm:$0xff]
      %v943 = vld [vmem:[#allocation2 + $0x108] sm:$0xff]
      %v944 = vld [vmem:[#allocation2 + $0x110] sm:$0xff]
      %v945 = vld [vmem:[#allocation2 + $0x118] sm:$0xff]
      %v946 = vld [vmem:[#allocation2 + $0x120] sm:$0xff]
      %v947 = vld [vmem:[#allocation2 + $0x128] sm:$0xff]
      %v948 = vld [vmem:[%s5] sm:$0xff]
      %v949 = vld [vmem:[%s5 + $0x8] sm:$0xff]
      %v950 = vld [vmem:[%s5 + $0x10] sm:$0xff]
      %v951 = vld [vmem:[%s5 + $0x18] sm:$0xff]
      %v952 = vld [vmem:[%s5 + $0x20] sm:$0xff]
      %v953 = vld [vmem:[%s5 + $0x28] sm:$0xff]
      %v954 = vld [vmem:[%s5 + $0x30] sm:$0xff]
      %v955 = vld [vmem:[%s5 + $0x38] sm:$0xff]
      %v956 = vld [vmem:[%s5 + $0x40] sm:$0xff]
      %v957 = vld [vmem:[%s5 + $0x48] sm:$0xff]
      %v958 = vld [vmem:[%s5 + $0x50] sm:$0xff]
      %v959 = vld [vmem:[%s5 + $0x58] sm:$0xff]
      %v960 = vld [vmem:[%s5 + $0x60] sm:$0xff]
      %v961 = vld [vmem:[%s5 + $0x68] sm:$0xff]
      %v962 = vld [vmem:[%s5 + $0x70] sm:$0xff]
      %v963 = vld [vmem:[%s5 + $0x78] sm:$0xff]
      %v965 = vsel %vm387, %v910, 0
      %v968 = vsel %vm387, %v911, 0
      %v971 = vsel %vm387, %v912, 0
      %v974 = vsel %vm387, %v913, 0
      %v977 = vsel %vm387, %v914, 0
      %v980 = vsel %vm387, %v915, 0
      %v983 = vsel %vm387, %v916, 0
      %v986 = vsel %vm387, %v917, 0
      %v989 = vsel %vm387, %v918, 0
      %v992 = vsel %vm387, %v919, 0
      %v995 = vsel %vm387, %v920, 0
      %v998 = vsel %vm387, %v921, 0
      %v1001 = vsel %vm387, %v922, 0
      %v1004 = vsel %vm387, %v923, 0
      %v1007 = vsel %vm387, %v924, 0
      %v1010 = vsel %vm387, %v925, 0
      %v1013 = vsel %vm387, %v926, 0
      %v1016 = vsel %vm387, %v927, 0
      %v1019 = vsel %vm387, %v928, 0
      %v1022 = vsel %vm387, %v929, 0
      %v1025 = vsel %vm387, %v930, 0
      %v1028 = vsel %vm387, %v931, 0
      %v1031 = vsel %vm387, %v932, 0
      %v1034 = vsel %vm387, %v933, 0
      %v1037 = vsel %vm387, %v934, 0
      %v1040 = vsel %vm387, %v935, 0
      %v1043 = vsel %vm387, %v936, 0
      %v1046 = vsel %vm387, %v937, 0
      %v1049 = vsel %vm387, %v938, 0
      %v1052 = vsel %vm387, %v939, 0
      %v1055 = vsel %vm387, %v940, 0
      %v1058 = vsel %vm387, %v941, 0
      %v1061 = vsel %vm387, %v942, 0
      %v1064 = vsel %vm387, %v943, 0
      %v1067 = vsel %vm387, %v944, 0
      %v1070 = vsel %vm387, %v945, 0
      %v1073 = vsel %vm387, %v946, 0
      %v1076 = vsel %vm387, %v947, 0
      %1078 = vmatprep.subr.mxu0 %v949
      %1079 = vmatpush1.msra.mxu0 %v948
      %1080 = vmatprep.subr.mxu0 %v951
      %1081 = vmatpush1.msra.mxu0 %v950
      %1082 = vmatprep.subr.mxu0 %v953
      %1083 = vmatpush1.msra.mxu0 %v952
      %1084 = vmatprep.subr.mxu0 %v955
      %1085 = vmatpush1.msra.mxu0 %v954
      %1086 = vmatprep.subr.mxu0 %v957
      %1087 = vmatpush1.msra.mxu0 %v956
      %1088 = vmatprep.subr.mxu0 %v959
      %1089 = vmatpush1.msra.mxu0 %v958
      %1090 = vmatprep.subr.mxu0 %v961
      %1091 = vmatpush1.msra.mxu0 %v960
      %1092 = vmatprep.subr.mxu0 %v963
      %1093 = vmatpush1.msra.mxu0 %v962
      %1094 = vmatprep.subr.mxu0 0.0
      %1095 = vmatpush1.msra.mxu0 0.0
      %1096 = vmatprep.subr.mxu0 0.0
      %1097 = vmatpush1.msra.mxu0 0.0
      %1098 = vmatprep.subr.mxu0 0.0
      %1099 = vmatpush1.msra.mxu0 0.0
      %1100 = vmatprep.subr.mxu0 0.0
      %1101 = vmatpush1.msra.mxu0 0.0
      %1102 = vmatprep.subr.mxu0 0.0
      %1103 = vmatpush1.msra.mxu0 0.0
      %1104 = vmatprep.subr.mxu0 0.0
      %1105 = vmatpush1.msra.mxu0 0.0
      %1106 = vmatprep.subr.mxu0 0.0
      %1107 = vmatpush1.msra.mxu0 0.0
      %1108 = vmatprep.subr.mxu0 0.0
      %1109 = vmatpush1.msra.mxu0 0.0
      %1110 = vmatprep.subr.mxu0 0.0
      %1111 = vmatpush1.msra.mxu0 0.0
      %1112 = vmatprep.subr.mxu0 0.0
      %1113 = vmatpush1.msra.mxu0 0.0
      %1114 = vmatprep.subr.mxu0 0.0
      %1115 = vmatpush1.msra.mxu0 0.0
      %1116 = vmatprep.subr.mxu0 0.0
      %1117 = vmatpush1.msra.mxu0 0.0
      %1118 = vmatprep.subr.mxu0 0.0
      %1119 = vmatpush1.msra.mxu0 0.0
      %1120 = vmatprep.subr.mxu0 0.0
      %1121 = vmatpush1.msra.mxu0 0.0
      %1122 = vmatprep.subr.mxu0 0.0
      %1123 = vmatpush1.msra.mxu0 0.0
      %1124 = vmatprep.subr.mxu0 0.0
      %1125 = vmatpush1.msra.mxu0 0.0
      %1126 = vmatprep.subr.mxu0 0.0
      %1127 = vmatpush1.msra.mxu0 0.0
      %1128 = vmatprep.subr.mxu0 0.0
      %1129 = vmatpush1.msra.mxu0 0.0
      %1130 = vmatprep.subr.mxu0 0.0
      %1131 = vmatpush1.msra.mxu0 0.0
      %1132 = vmatprep.subr.mxu0 0.0
      %1133 = vmatpush1.msra.mxu0 0.0
      %1134 = vmatprep.subr.mxu0 0.0
      %1135 = vmatpush1.msra.mxu0 0.0
      %1136 = vmatprep.subr.mxu0 0.0
      %1137 = vmatpush1.msra.mxu0 0.0
      %1138 = vmatprep.subr.mxu0 0.0
      %1139 = vmatpush1.msra.mxu0 0.0
      %1140 = vmatprep.subr.mxu0 0.0
      %1141 = vmatpush1.msra.mxu0 0.0
      %1142 = vmatprep.mubr.f32.mxu0 0.0
      %1143 = vmatmul.mubr.f32.gmra.mrb[0].mxu0 %v965
      %v1144 = vpop.f32.mrb[0].mxu0
      %v1145 = vadd.f32 0.0, %v1144
      %v1146 = vpop.f32.mrb[0].mxu0
      %v1147 = vadd.f32 0.0, %v1146
      %1148 = vmatprep.mubr.f32.mxu0 0.0
      %1149 = vmatmul.mubr.f32.gmra.mrb[0].mxu0 %v968
      %v1150 = vpop.f32.mrb[0].mxu0
      %v1151 = vadd.f32 0.0, %v1150
      %v1152 = vpop.f32.mrb[0].mxu0
      %v1153 = vadd.f32 0.0, %v1152
      %1154 = vmatprep.mubr.f32.mxu0 0.0
      %1155 = vmatmul.mubr.f32.gmra.mrb[0].mxu0 %v971
      %v1156 = vpop.f32.mrb[0].mxu0
      %v1157 = vadd.f32 0.0, %v1156
      %v1158 = vpop.f32.mrb[0].mxu0
      %v1159 = vadd.f32 0.0, %v1158
      %1160 = vmatprep.mubr.f32.mxu0 0.0
      %1161 = vmatmul.mubr.f32.gmra.mrb[0].mxu0 %v974
      %v1162 = vpop.f32.mrb[0].mxu0
      %v1163 = vadd.f32 0.0, %v1162
      %v1164 = vpop.f32.mrb[0].mxu0
      %v1165 = vadd.f32 0.0, %v1164
      %1166 = vmatprep.mubr.f32.mxu0 0.0
      %1167 = vmatmul.mubr.f32.gmra.mrb[0].mxu0 %v977
      %v1168 = vpop.f32.mrb[0].mxu0
      %v1169 = vadd.f32 0.0, %v1168
      %v1170 = vpop.f32.mrb[0].mxu0
      %v1171 = vadd.f32 0.0, %v1170
      %1172 = vmatprep.mubr.f32.mxu0 0.0
      %1173 = vmatmul.mubr.f32.gmra.mrb[0].mxu0 %v980
      %v1174 = vpop.f32.mrb[0].mxu0
      %v1175 = vadd.f32 0.0, %v1174
      %v1176 = vpop.f32.mrb[0].mxu0
      %v1177 = vadd.f32 0.0, %v1176
      %1178 = vmatprep.mubr.f32.mxu0 0.0
      %1179 = vmatmul.mubr.f32.gmra.mrb[0].mxu0 %v983
      %v1180 = vpop.f32.mrb[0].mxu0
      %v1181 = vadd.f32 0.0, %v1180
      %v1182 = vpop.f32.mrb[0].mxu0
      %v1183 = vadd.f32 0.0, %v1182
      %1184 = vmatprep.mubr.f32.mxu0 0.0
      %1185 = vmatmul.mubr.f32.gmra.mrb[0].mxu0 %v986
      %v1186 = vpop.f32.mrb[0].mxu0
      %v1187 = vadd.f32 0.0, %v1186
      %v1188 = vpop.f32.mrb[0].mxu0
      %v1189 = vadd.f32 0.0, %v1188
      %1190 = vmatprep.mubr.f32.mxu0 0.0
      %1191 = vmatmul.mubr.f32.gmra.mrb[0].mxu0 %v989
      %v1192 = vpop.f32.mrb[0].mxu0
      %v1193 = vadd.f32 0.0, %v1192
      %v1194 = vpop.f32.mrb[0].mxu0
      %v1195 = vadd.f32 0.0, %v1194
      %1196 = vmatprep.mubr.f32.mxu0 0.0
      %1197 = vmatmul.mubr.f32.gmra.mrb[0].mxu0 %v992
      %v1198 = vpop.f32.mrb[0].mxu0
      %v1199 = vadd.f32 0.0, %v1198
      %v1200 = vpop.f32.mrb[0].mxu0
      %v1201 = vadd.f32 0.0, %v1200
      %1202 = vmatprep.mubr.f32.mxu0 0.0
      %1203 = vmatmul.mubr.f32.gmra.mrb[0].mxu0 %v995
      %v1204 = vpop.f32.mrb[0].mxu0
      %v1205 = vadd.f32 0.0, %v1204
      %v1206 = vpop.f32.mrb[0].mxu0
      %v1207 = vadd.f32 0.0, %v1206
      %1208 = vmatprep.mubr.f32.mxu0 0.0
      %1209 = vmatmul.mubr.f32.gmra.mrb[0].mxu0 %v998
      %v1210 = vpop.f32.mrb[0].mxu0
      %v1211 = vadd.f32 0.0, %v1210
      %v1212 = vpop.f32.mrb[0].mxu0
      %v1213 = vadd.f32 0.0, %v1212
      %1214 = vmatprep.mubr.f32.mxu0 0.0
      %1215 = vmatmul.mubr.f32.gmra.mrb[0].mxu0 %v1001
      %v1216 = vpop.f32.mrb[0].mxu0
      %v1217 = vadd.f32 0.0, %v1216
      %v1218 = vpop.f32.mrb[0].mxu0
      %v1219 = vadd.f32 0.0, %v1218
      %1220 = vmatprep.mubr.f32.mxu0 0.0
      %1221 = vmatmul.mubr.f32.gmra.mrb[0].mxu0 %v1004
      %v1222 = vpop.f32.mrb[0].mxu0
      %v1223 = vadd.f32 0.0, %v1222
      %v1224 = vpop.f32.mrb[0].mxu0
      %v1225 = vadd.f32 0.0, %v1224
      %1226 = vmatprep.mubr.f32.mxu0 0.0
      %1227 = vmatmul.mubr.f32.gmra.mrb[0].mxu0 %v1007
      %v1228 = vpop.f32.mrb[0].mxu0
      %v1229 = vadd.f32 0.0, %v1228
      %v1230 = vpop.f32.mrb[0].mxu0
      %v1231 = vadd.f32 0.0, %v1230
      %1232 = vmatprep.mubr.f32.mxu0 0.0
      %1233 = vmatmul.mubr.f32.gmra.mrb[0].mxu0 %v1010
      %v1234 = vpop.f32.mrb[0].mxu0
      %v1235 = vadd.f32 0.0, %v1234
      %v1236 = vpop.f32.mrb[0].mxu0
      %v1237 = vadd.f32 0.0, %v1236
      %1238 = vmatprep.mubr.f32.mxu0 0.0
      %1239 = vmatmul.mubr.f32.gmra.mrb[0].mxu0 %v1013
      %v1240 = vpop.f32.mrb[0].mxu0
      %v1241 = vadd.f32 0.0, %v1240
      %v1242 = vpop.f32.mrb[0].mxu0
      %v1243 = vadd.f32 0.0, %v1242
      %1244 = vmatprep.mubr.f32.mxu0 0.0
      %1245 = vmatmul.mubr.f32.gmra.mrb[0].mxu0 %v1016
      %v1246 = vpop.f32.mrb[0].mxu0
      %v1247 = vadd.f32 0.0, %v1246
      %v1248 = vpop.f32.mrb[0].mxu0
      %v1249 = vadd.f32 0.0, %v1248
      %1250 = vmatprep.mubr.f32.mxu0 0.0
      %1251 = vmatmul.mubr.f32.gmra.mrb[0].mxu0 %v1019
      %v1252 = vpop.f32.mrb[0].mxu0
      %v1253 = vadd.f32 0.0, %v1252
      %v1254 = vpop.f32.mrb[0].mxu0
      %v1255 = vadd.f32 0.0, %v1254
      %1256 = vmatprep.mubr.f32.mxu0 0.0
      %1257 = vmatmul.mubr.f32.gmra.mrb[0].mxu0 %v1022
      %v1258 = vpop.f32.mrb[0].mxu0
      %v1259 = vadd.f32 0.0, %v1258
      %v1260 = vpop.f32.mrb[0].mxu0
      %v1261 = vadd.f32 0.0, %v1260
      %1262 = vmatprep.mubr.f32.mxu0 0.0
      %1263 = vmatmul.mubr.f32.gmra.mrb[0].mxu0 %v1025
      %v1264 = vpop.f32.mrb[0].mxu0
      %v1265 = vadd.f32 0.0, %v1264
      %v1266 = vpop.f32.mrb[0].mxu0
      %v1267 = vadd.f32 0.0, %v1266
      %1268 = vmatprep.mubr.f32.mxu0 0.0
      %1269 = vmatmul.mubr.f32.gmra.mrb[0].mxu0 %v1028
      %v1270 = vpop.f32.mrb[0].mxu0
      %v1271 = vadd.f32 0.0, %v1270
      %v1272 = vpop.f32.mrb[0].mxu0
      %v1273 = vadd.f32 0.0, %v1272
      %1274 = vmatprep.mubr.f32.mxu0 0.0
      %1275 = vmatmul.mubr.f32.gmra.mrb[0].mxu0 %v1031
      %v1276 = vpop.f32.mrb[0].mxu0
      %v1277 = vadd.f32 0.0, %v1276
      %v1278 = vpop.f32.mrb[0].mxu0
      %v1279 = vadd.f32 0.0, %v1278
      %1280 = vmatprep.mubr.f32.mxu0 0.0
      %1281 = vmatmul.mubr.f32.gmra.mrb[0].mxu0 %v1034
      %v1282 = vpop.f32.mrb[0].mxu0
      %v1283 = vadd.f32 0.0, %v1282
      %v1284 = vpop.f32.mrb[0].mxu0
      %v1285 = vadd.f32 0.0, %v1284
      %1286 = vmatprep.mubr.f32.mxu0 0.0
      %1287 = vmatmul.mubr.f32.gmra.mrb[0].mxu0 %v1037
      %v1288 = vpop.f32.mrb[0].mxu0
      %v1289 = vadd.f32 0.0, %v1288
      %v1290 = vpop.f32.mrb[0].mxu0
      %v1291 = vadd.f32 0.0, %v1290
      %1292 = vmatprep.mubr.f32.mxu0 0.0
      %1293 = vmatmul.mubr.f32.gmra.mrb[0].mxu0 %v1040
      %v1294 = vpop.f32.mrb[0].mxu0
      %v1295 = vadd.f32 0.0, %v1294
      %v1296 = vpop.f32.mrb[0].mxu0
      %v1297 = vadd.f32 0.0, %v1296
      %1298 = vmatprep.mubr.f32.mxu0 0.0
      %1299 = vmatmul.mubr.f32.gmra.mrb[0].mxu0 %v1043
      %v1300 = vpop.f32.mrb[0].mxu0
      %v1301 = vadd.f32 0.0, %v1300
      %v1302 = vpop.f32.mrb[0].mxu0
      %v1303 = vadd.f32 0.0, %v1302
      %1304 = vmatprep.mubr.f32.mxu0 0.0
      %1305 = vmatmul.mubr.f32.gmra.mrb[0].mxu0 %v1046
      %v1306 = vpop.f32.mrb[0].mxu0
      %v1307 = vadd.f32 0.0, %v1306
      %v1308 = vpop.f32.mrb[0].mxu0
      %v1309 = vadd.f32 0.0, %v1308
      %1310 = vmatprep.mubr.f32.mxu0 0.0
      %1311 = vmatmul.mubr.f32.gmra.mrb[0].mxu0 %v1049
      %v1312 = vpop.f32.mrb[0].mxu0
      %v1313 = vadd.f32 0.0, %v1312
      %v1314 = vpop.f32.mrb[0].mxu0
      %v1315 = vadd.f32 0.0, %v1314
      %1316 = vmatprep.mubr.f32.mxu0 0.0
      %1317 = vmatmul.mubr.f32.gmra.mrb[0].mxu0 %v1052
      %v1318 = vpop.f32.mrb[0].mxu0
      %v1319 = vadd.f32 0.0, %v1318
      %v1320 = vpop.f32.mrb[0].mxu0
      %v1321 = vadd.f32 0.0, %v1320
      %1322 = vmatprep.mubr.f32.mxu0 0.0
      %1323 = vmatmul.mubr.f32.gmra.mrb[0].mxu0 %v1055
      %v1324 = vpop.f32.mrb[0].mxu0
      %v1325 = vadd.f32 0.0, %v1324
      %v1326 = vpop.f32.mrb[0].mxu0
      %v1327 = vadd.f32 0.0, %v1326
      %1328 = vmatprep.mubr.f32.mxu0 0.0
      %1329 = vmatmul.mubr.f32.gmra.mrb[0].mxu0 %v1058
      %v1330 = vpop.f32.mrb[0].mxu0
      %v1331 = vadd.f32 0.0, %v1330
      %v1332 = vpop.f32.mrb[0].mxu0
      %v1333 = vadd.f32 0.0, %v1332
      %1334 = vmatprep.mubr.f32.mxu0 0.0
      %1335 = vmatmul.mubr.f32.gmra.mrb[0].mxu0 %v1061
      %v1336 = vpop.f32.mrb[0].mxu0
      %v1337 = vadd.f32 0.0, %v1336
      %v1338 = vpop.f32.mrb[0].mxu0
      %v1339 = vadd.f32 0.0, %v1338
      %1340 = vmatprep.mubr.f32.mxu0 0.0
      %1341 = vmatmul.mubr.f32.gmra.mrb[0].mxu0 %v1064
      %v1342 = vpop.f32.mrb[0].mxu0
      %v1343 = vadd.f32 0.0, %v1342
      %v1344 = vpop.f32.mrb[0].mxu0
      %v1345 = vadd.f32 0.0, %v1344
      %1346 = vmatprep.mubr.f32.mxu0 0.0
      %1347 = vmatmul.mubr.f32.gmra.mrb[0].mxu0 %v1067
      %v1348 = vpop.f32.mrb[0].mxu0
      %v1349 = vadd.f32 0.0, %v1348
      %v1350 = vpop.f32.mrb[0].mxu0
      %v1351 = vadd.f32 0.0, %v1350
      %1352 = vmatprep.mubr.f32.mxu0 0.0
      %1353 = vmatmul.mubr.f32.gmra.mrb[0].mxu0 %v1070
      %v1354 = vpop.f32.mrb[0].mxu0
      %v1355 = vadd.f32 0.0, %v1354
      %v1356 = vpop.f32.mrb[0].mxu0
      %v1357 = vadd.f32 0.0, %v1356
      %1358 = vmatprep.mubr.f32.mxu0 0.0
      %1359 = vmatmul.mubr.f32.gmra.mrb[0].mxu0 %v1073
      %v1360 = vpop.f32.mrb[0].mxu0
      %v1361 = vadd.f32 0.0, %v1360
      %v1362 = vpop.f32.mrb[0].mxu0
      %v1363 = vadd.f32 0.0, %v1362
      %1364 = vmatprep.mubr.f32.mxu0 0.0
      %1365 = vmatmul.mubr.f32.gmra.mrb[0].mxu0 %v1076
      %v1366 = vpop.f32.mrb[0].mxu0
      %v1367 = vadd.f32 0.0, %v1366
      %v1368 = vpop.f32.mrb[0].mxu0
      %v1369 = vadd.f32 0.0, %v1368
      %1370 = vdwg.mxu0
      %1371 = vst [vmem:[#allocation5] sm:$0xff] %v1145
      %1372 = vst.msk [vmem:[#allocation5 + $0x8] sm:$0xff] %vm402, %v1147
      %1373 = vst [vmem:[#allocation5 + $0x28] sm:$0xff] %v1151
      %1374 = vst.msk [vmem:[#allocation5 + $0x30] sm:$0xff] %vm402, %v1153
      %1375 = vst [vmem:[#allocation5 + $0x50] sm:$0xff] %v1157
      %1376 = vst.msk [vmem:[#allocation5 + $0x58] sm:$0xff] %vm402, %v1159
      %1377 = vst [vmem:[#allocation5 + $0x78] sm:$0xff] %v1163
      %1378 = vst.msk [vmem:[#allocation5 + $0x80] sm:$0xff] %vm402, %v1165
      %1379 = vst [vmem:[#allocation5 + $0xa0] sm:$0xff] %v1169
      %1380 = vst.msk [vmem:[#allocation5 + $0xa8] sm:$0xff] %vm402, %v1171
      %1381 = vst [vmem:[#allocation5 + $0xc8] sm:$0xff] %v1175
      %1382 = vst.msk [vmem:[#allocation5 + $0xd0] sm:$0xff] %vm402, %v1177
      %1383 = vst [vmem:[#allocation5 + $0xf0] sm:$0xff] %v1181
      %1384 = vst.msk [vmem:[#allocation5 + $0xf8] sm:$0xff] %vm402, %v1183
      %1385 = vst [vmem:[#allocation5 + $0x118] sm:$0xff] %v1187
      %1386 = vst.msk [vmem:[#allocation5 + $0x120] sm:$0xff] %vm402, %v1189
      %1387 = vst [vmem:[#allocation5 + $0x140] sm:$0xff] %v1193
      %1388 = vst.msk [vmem:[#allocation5 + $0x148] sm:$0xff] %vm402, %v1195
      %1389 = vst [vmem:[#allocation5 + $0x168] sm:$0xff] %v1199
      %1390 = vst.msk [vmem:[#allocation5 + $0x170] sm:$0xff] %vm402, %v1201
      %1391 = vst [vmem:[#allocation5 + $0x190] sm:$0xff] %v1205
      %1392 = vst.msk [vmem:[#allocation5 + $0x198] sm:$0xff] %vm402, %v1207
      %1393 = vst [vmem:[#allocation5 + $0x1b8] sm:$0xff] %v1211
      %1394 = vst.msk [vmem:[#allocation5 + $0x1c0] sm:$0xff] %vm402, %v1213
      %1395 = vst [vmem:[#allocation5 + $0x1e0] sm:$0xff] %v1217
      %1396 = vst.msk [vmem:[#allocation5 + $0x1e8] sm:$0xff] %vm402, %v1219
      %1397 = vst [vmem:[#allocation5 + $0x208] sm:$0xff] %v1223
      %1398 = vst.msk [vmem:[#allocation5 + $0x210] sm:$0xff] %vm402, %v1225
      %1399 = vst [vmem:[#allocation5 + $0x230] sm:$0xff] %v1229
      %1400 = vst.msk [vmem:[#allocation5 + $0x238] sm:$0xff] %vm402, %v1231
      %1401 = vst [vmem:[#allocation5 + $0x258] sm:$0xff] %v1235
      %1402 = vst.msk [vmem:[#allocation5 + $0x260] sm:$0xff] %vm402, %v1237
      %1403 = vst [vmem:[#allocation5 + $0x280] sm:$0xff] %v1241
      %1404 = vst.msk [vmem:[#allocation5 + $0x288] sm:$0xff] %vm402, %v1243
      %1405 = vst [vmem:[#allocation5 + $0x2a8] sm:$0xff] %v1247
      %1406 = vst.msk [vmem:[#allocation5 + $0x2b0] sm:$0xff] %vm402, %v1249
      %1407 = vst [vmem:[#allocation5 + $0x2d0] sm:$0xff] %v1253
      %1408 = vst.msk [vmem:[#allocation5 + $0x2d8] sm:$0xff] %vm402, %v1255
      %1409 = vst [vmem:[#allocation5 + $0x2f8] sm:$0xff] %v1259
      %1410 = vst.msk [vmem:[#allocation5 + $0x300] sm:$0xff] %vm402, %v1261
      %1411 = vst [vmem:[#allocation5 + $0x320] sm:$0xff] %v1265
      %1412 = vst.msk [vmem:[#allocation5 + $0x328] sm:$0xff] %vm402, %v1267
      %1413 = vst [vmem:[#allocation5 + $0x348] sm:$0xff] %v1271
      %1414 = vst.msk [vmem:[#allocation5 + $0x350] sm:$0xff] %vm402, %v1273
      %1415 = vst [vmem:[#allocation5 + $0x370] sm:$0xff] %v1277
      %1416 = vst.msk [vmem:[#allocation5 + $0x378] sm:$0xff] %vm402, %v1279
      %1417 = vst [vmem:[#allocation5 + $0x398] sm:$0xff] %v1283
      %1418 = vst.msk [vmem:[#allocation5 + $0x3a0] sm:$0xff] %vm402, %v1285
      %1419 = vst [vmem:[#allocation5 + $0x3c0] sm:$0xff] %v1289
      %1420 = vst.msk [vmem:[#allocation5 + $0x3c8] sm:$0xff] %vm402, %v1291
      %1421 = vst [vmem:[#allocation5 + $0x3e8] sm:$0xff] %v1295
      %1422 = vst.msk [vmem:[#allocation5 + $0x3f0] sm:$0xff] %vm402, %v1297
      %1423 = vst [vmem:[#allocation5 + $0x410] sm:$0xff] %v1301
      %1424 = vst.msk [vmem:[#allocation5 + $0x418] sm:$0xff] %vm402, %v1303
      %1425 = vst [vmem:[#allocation5 + $0x438] sm:$0xff] %v1307
      %1426 = vst.msk [vmem:[#allocation5 + $0x440] sm:$0xff] %vm402, %v1309
      %1427 = vst [vmem:[#allocation5 + $0x460] sm:$0xff] %v1313
      %1428 = vst.msk [vmem:[#allocation5 + $0x468] sm:$0xff] %vm402, %v1315
      %1429 = vst [vmem:[#allocation5 + $0x488] sm:$0xff] %v1319
      %1430 = vst.msk [vmem:[#allocation5 + $0x490] sm:$0xff] %vm402, %v1321
      %1431 = vst [vmem:[#allocation5 + $0x4b0] sm:$0xff] %v1325
      %1432 = vst.msk [vmem:[#allocation5 + $0x4b8] sm:$0xff] %vm402, %v1327
      %1433 = vst [vmem:[#allocation5 + $0x4d8] sm:$0xff] %v1331
      %1434 = vst.msk [vmem:[#allocation5 + $0x4e0] sm:$0xff] %vm402, %v1333
      %1435 = vst [vmem:[#allocation5 + $0x500] sm:$0xff] %v1337
      %1436 = vst.msk [vmem:[#allocation5 + $0x508] sm:$0xff] %vm402, %v1339
      %1437 = vst [vmem:[#allocation5 + $0x528] sm:$0xff] %v1343
      %1438 = vst.msk [vmem:[#allocation5 + $0x530] sm:$0xff] %vm402, %v1345
      %1439 = vst [vmem:[#allocation5 + $0x550] sm:$0xff] %v1349
      %1440 = vst.msk [vmem:[#allocation5 + $0x558] sm:$0xff] %vm402, %v1351
      %1441 = vst [vmem:[#allocation5 + $0x578] sm:$0xff] %v1355
      %1442 = vst.msk [vmem:[#allocation5 + $0x580] sm:$0xff] %vm402, %v1357
      %1443 = vst [vmem:[#allocation5 + $0x5a0] sm:$0xff] %v1361
      %1444 = vst.msk [vmem:[#allocation5 + $0x5a8] sm:$0xff] %vm402, %v1363
      %1445 = vst [vmem:[#allocation5 + $0x5c8] sm:$0xff] %v1367
      %1446 = vst.msk [vmem:[#allocation5 + $0x5d0] sm:$0xff] %vm402, %v1369
      %v1447 = vld [vmem:[#allocation5] sm:$0xc0]
      %v1448 = vld [vmem:[#allocation5 + $0x28] sm:$0xff]
      %v1449 = vld [vmem:[#allocation5 + $0x50] sm:$0xff]
      %v1450 = vld [vmem:[#allocation5 + $0x78] sm:$0xff]
      %v1451 = vld [vmem:[#allocation5 + $0xa0] sm:$0xff]
      %v1452 = vld [vmem:[#allocation5 + $0xc8] sm:$0xff]
      %v1453 = vld [vmem:[#allocation5 + $0xf0] sm:$0xff]
      %v1454 = vld [vmem:[#allocation5 + $0x118] sm:$0xff]
      %v1455 = vld [vmem:[#allocation5 + $0x140] sm:$0xff]
      %v1456 = vld [vmem:[#allocation5 + $0x168] sm:$0xff]
      %v1457 = vld [vmem:[#allocation5 + $0x190] sm:$0xff]
      %v1458 = vld [vmem:[#allocation5 + $0x1b8] sm:$0xff]
      %v1459 = vld [vmem:[#allocation5 + $0x1e0] sm:$0xff]
      %v1460 = vld [vmem:[#allocation5 + $0x208] sm:$0xff]
      %v1461 = vld [vmem:[#allocation5 + $0x230] sm:$0xff]
      %v1462 = vld [vmem:[#allocation5 + $0x258] sm:$0xff]
      %v1463 = vld [vmem:[#allocation5 + $0x280] sm:$0xff]
      %v1464 = vld [vmem:[#allocation5 + $0x2a8] sm:$0xff]
      %v1465 = vld [vmem:[#allocation5 + $0x2d0] sm:$0xff]
      %v1466 = vld [vmem:[#allocation5 + $0x2f8] sm:$0xff]
      %v1467 = vld [vmem:[#allocation5 + $0x320] sm:$0xff]
      %v1468 = vld [vmem:[#allocation5 + $0x348] sm:$0xff]
      %v1469 = vld [vmem:[#allocation5 + $0x370] sm:$0xff]
      %v1470 = vld [vmem:[#allocation5 + $0x398] sm:$0xff]
      %v1471 = vld [vmem:[#allocation5 + $0x3c0] sm:$0xff]
      %v1472 = vld [vmem:[#allocation5 + $0x3e8] sm:$0xff]
      %v1473 = vld [vmem:[#allocation5 + $0x410] sm:$0xff]
      %v1474 = vld [vmem:[#allocation5 + $0x438] sm:$0xff]
      %v1475 = vld [vmem:[#allocation5 + $0x460] sm:$0xff]
      %v1476 = vld [vmem:[#allocation5 + $0x488] sm:$0xff]
      %v1477 = vld [vmem:[#allocation5 + $0x4b0] sm:$0x3f]
      %v1478 = vld [vmem:[#allocation5] sm:$0x80]
      %v1479 = vld [vmem:[#allocation5 + $0x4b0] sm:$0x7f]
      %vm1511 = vcmask 1046528
      %v1512 = vrot.slane %v1478, 1
      %v1513 = vrot.slane %v1448, 1
      %v1514 = vsel %vm1511, %v1512, %v1513
      %v1515 = vrot.slane %v1449, 1
      %v1516 = vsel %vm1511, %v1513, %v1515
      %v1517 = vrot.slane %v1450, 1
      %v1518 = vsel %vm1511, %v1515, %v1517
      %v1519 = vrot.slane %v1451, 1
      %v1520 = vsel %vm1511, %v1517, %v1519
      %v1521 = vrot.slane %v1452, 1
      %v1522 = vsel %vm1511, %v1519, %v1521
      %v1523 = vrot.slane %v1453, 1
      %v1524 = vsel %vm1511, %v1521, %v1523
      %v1525 = vrot.slane %v1454, 1
      %v1526 = vsel %vm1511, %v1523, %v1525
      %v1527 = vrot.slane %v1455, 1
      %v1528 = vsel %vm1511, %v1525, %v1527
      %v1529 = vrot.slane %v1456, 1
      %v1530 = vsel %vm1511, %v1527, %v1529
      %v1531 = vrot.slane %v1457, 1
      %v1532 = vsel %vm1511, %v1529, %v1531
      %v1533 = vrot.slane %v1458, 1
      %v1534 = vsel %vm1511, %v1531, %v1533
      %v1535 = vrot.slane %v1459, 1
      %v1536 = vsel %vm1511, %v1533, %v1535
      %v1537 = vrot.slane %v1460, 1
      %v1538 = vsel %vm1511, %v1535, %v1537
      %v1539 = vrot.slane %v1461, 1
      %v1540 = vsel %vm1511, %v1537, %v1539
      %v1541 = vrot.slane %v1462, 1
      %v1542 = vsel %vm1511, %v1539, %v1541
      %v1543 = vrot.slane %v1463, 1
      %v1544 = vsel %vm1511, %v1541, %v1543
      %v1545 = vrot.slane %v1464, 1
      %v1546 = vsel %vm1511, %v1543, %v1545
      %v1547 = vrot.slane %v1465, 1
      %v1548 = vsel %vm1511, %v1545, %v1547
      %v1549 = vrot.slane %v1466, 1
      %v1550 = vsel %vm1511, %v1547, %v1549
      %v1551 = vrot.slane %v1467, 1
      %v1552 = vsel %vm1511, %v1549, %v1551
      %v1553 = vrot.slane %v1468, 1
      %v1554 = vsel %vm1511, %v1551, %v1553
      %v1555 = vrot.slane %v1469, 1
      %v1556 = vsel %vm1511, %v1553, %v1555
      %v1557 = vrot.slane %v1470, 1
      %v1558 = vsel %vm1511, %v1555, %v1557
      %v1559 = vrot.slane %v1471, 1
      %v1560 = vsel %vm1511, %v1557, %v1559
      %v1561 = vrot.slane %v1472, 1
      %v1562 = vsel %vm1511, %v1559, %v1561
      %v1563 = vrot.slane %v1473, 1
      %v1564 = vsel %vm1511, %v1561, %v1563
      %v1565 = vrot.slane %v1474, 1
      %v1566 = vsel %vm1511, %v1563, %v1565
      %v1567 = vrot.slane %v1475, 1
      %v1568 = vsel %vm1511, %v1565, %v1567
      %v1569 = vrot.slane %v1476, 1
      %v1570 = vsel %vm1511, %v1567, %v1569
      %v1571 = vrot.slane %v1479, 1
      %v1572 = vsel %vm1511, %v1569, %v1571
      %1573 = vrot.lane.b32.xlu0 %v1514, 112
      %v1574 = vpop.permute.xlu0 %1573
      %1575 = vrot.lane.b32.xlu0 %v1516, 112
      %v1576 = vpop.permute.xlu0 %1575
      %1577 = vrot.lane.b32.xlu0 %v1518, 112
      %v1578 = vpop.permute.xlu0 %1577
      %1579 = vrot.lane.b32.xlu0 %v1520, 112
      %v1580 = vpop.permute.xlu0 %1579
      %1581 = vrot.lane.b32.xlu0 %v1522, 112
      %v1582 = vpop.permute.xlu0 %1581
      %1583 = vrot.lane.b32.xlu0 %v1524, 112
      %v1584 = vpop.permute.xlu0 %1583
      %1585 = vrot.lane.b32.xlu0 %v1526, 112
      %v1586 = vpop.permute.xlu0 %1585
      %1587 = vrot.lane.b32.xlu0 %v1528, 112
      %v1588 = vpop.permute.xlu0 %1587
      %1589 = vrot.lane.b32.xlu0 %v1530, 112
      %v1590 = vpop.permute.xlu0 %1589
      %1591 = vrot.lane.b32.xlu0 %v1532, 112
      %v1592 = vpop.permute.xlu0 %1591
      %1593 = vrot.lane.b32.xlu0 %v1534, 112
      %v1594 = vpop.permute.xlu0 %1593
      %1595 = vrot.lane.b32.xlu0 %v1536, 112
      %v1596 = vpop.permute.xlu0 %1595
      %1597 = vrot.lane.b32.xlu0 %v1538, 112
      %v1598 = vpop.permute.xlu0 %1597
      %1599 = vrot.lane.b32.xlu0 %v1540, 112
      %v1600 = vpop.permute.xlu0 %1599
      %1601 = vrot.lane.b32.xlu0 %v1542, 112
      %v1602 = vpop.permute.xlu0 %1601
      %1603 = vrot.lane.b32.xlu0 %v1544, 112
      %v1604 = vpop.permute.xlu0 %1603
      %1605 = vrot.lane.b32.xlu0 %v1546, 112
      %v1606 = vpop.permute.xlu0 %1605
      %1607 = vrot.lane.b32.xlu0 %v1548, 112
      %v1608 = vpop.permute.xlu0 %1607
      %1609 = vrot.lane.b32.xlu0 %v1550, 112
      %v1610 = vpop.permute.xlu0 %1609
      %1611 = vrot.lane.b32.xlu0 %v1552, 112
      %v1612 = vpop.permute.xlu0 %1611
      %1613 = vrot.lane.b32.xlu0 %v1554, 112
      %v1614 = vpop.permute.xlu0 %1613
      %1615 = vrot.lane.b32.xlu0 %v1556, 112
      %v1616 = vpop.permute.xlu0 %1615
      %1617 = vrot.lane.b32.xlu0 %v1558, 112
      %v1618 = vpop.permute.xlu0 %1617
      %1619 = vrot.lane.b32.xlu0 %v1560, 112
      %v1620 = vpop.permute.xlu0 %1619
      %1621 = vrot.lane.b32.xlu0 %v1562, 112
      %v1622 = vpop.permute.xlu0 %1621
      %1623 = vrot.lane.b32.xlu0 %v1564, 112
      %v1624 = vpop.permute.xlu0 %1623
      %1625 = vrot.lane.b32.xlu0 %v1566, 112
      %v1626 = vpop.permute.xlu0 %1625
      %1627 = vrot.lane.b32.xlu0 %v1568, 112
      %v1628 = vpop.permute.xlu0 %1627
      %1629 = vrot.lane.b32.xlu0 %v1570, 112
      %v1630 = vpop.permute.xlu0 %1629
      %1631 = vrot.lane.b32.xlu0 %v1572, 112
      %v1632 = vpop.permute.xlu0 %1631
      %1633 = vrot.lane.b32.xlu0 %v1571, 112
      %v1634 = vpop.permute.xlu0 %1633
      %v1666 = vadd.f32 %v1447, %v1574
      %v1667 = vadd.f32 %v1448, %v1576
      %v1668 = vadd.f32 %v1449, %v1578
      %v1669 = vadd.f32 %v1450, %v1580
      %v1670 = vadd.f32 %v1451, %v1582
      %v1671 = vadd.f32 %v1452, %v1584
      %v1672 = vadd.f32 %v1453, %v1586
      %v1673 = vadd.f32 %v1454, %v1588
      %v1674 = vadd.f32 %v1455, %v1590
      %v1675 = vadd.f32 %v1456, %v1592
      %v1676 = vadd.f32 %v1457, %v1594
      %v1677 = vadd.f32 %v1458, %v1596
      %v1678 = vadd.f32 %v1459, %v1598
      %v1679 = vadd.f32 %v1460, %v1600
      %v1680 = vadd.f32 %v1461, %v1602
      %v1681 = vadd.f32 %v1462, %v1604
      %v1682 = vadd.f32 %v1463, %v1606
      %v1683 = vadd.f32 %v1464, %v1608
      %v1684 = vadd.f32 %v1465, %v1610
      %v1685 = vadd.f32 %v1466, %v1612
      %v1686 = vadd.f32 %v1467, %v1614
      %v1687 = vadd.f32 %v1468, %v1616
      %v1688 = vadd.f32 %v1469, %v1618
      %v1689 = vadd.f32 %v1470, %v1620
      %v1690 = vadd.f32 %v1471, %v1622
      %v1691 = vadd.f32 %v1472, %v1624
      %v1692 = vadd.f32 %v1473, %v1626
      %v1693 = vadd.f32 %v1474, %v1628
      %v1694 = vadd.f32 %v1475, %v1630
      %v1695 = vadd.f32 %v1476, %v1632
      %v1696 = vadd.f32 %v1477, %v1634
      %v1697 = vld [vmem:[#allocation5 + $0x4b0] sm:$0xff]
      %vm1699 = vcmask 1045504
      %v1700 = vrot.slane %v1448, 2
      %v1701 = vrot.slane %v1449, 2
      %v1702 = vsel %vm1699, %v1700, %v1701
      %v1703 = vrot.slane %v1450, 2
      %v1704 = vsel %vm1699, %v1701, %v1703
      %v1705 = vrot.slane %v1451, 2
      %v1706 = vsel %vm1699, %v1703, %v1705
      %v1707 = vrot.slane %v1452, 2
      %v1708 = vsel %vm1699, %v1705, %v1707
      %v1709 = vrot.slane %v1453, 2
      %v1710 = vsel %vm1699, %v1707, %v1709
      %v1711 = vrot.slane %v1454, 2
      %v1712 = vsel %vm1699, %v1709, %v1711
      %v1713 = vrot.slane %v1455, 2
      %v1714 = vsel %vm1699, %v1711, %v1713
      %v1715 = vrot.slane %v1456, 2
      %v1716 = vsel %vm1699, %v1713, %v1715
      %v1717 = vrot.slane %v1457, 2
      %v1718 = vsel %vm1699, %v1715, %v1717
      %v1719 = vrot.slane %v1458, 2
      %v1720 = vsel %vm1699, %v1717, %v1719
      %v1721 = vrot.slane %v1459, 2
      %v1722 = vsel %vm1699, %v1719, %v1721
      %v1723 = vrot.slane %v1460, 2
      %v1724 = vsel %vm1699, %v1721, %v1723
      %v1725 = vrot.slane %v1461, 2
      %v1726 = vsel %vm1699, %v1723, %v1725
      %v1727 = vrot.slane %v1462, 2
      %v1728 = vsel %vm1699, %v1725, %v1727
      %v1729 = vrot.slane %v1463, 2
      %v1730 = vsel %vm1699, %v1727, %v1729
      %v1731 = vrot.slane %v1464, 2
      %v1732 = vsel %vm1699, %v1729, %v1731
      %v1733 = vrot.slane %v1465, 2
      %v1734 = vsel %vm1699, %v1731, %v1733
      %v1735 = vrot.slane %v1466, 2
      %v1736 = vsel %vm1699, %v1733, %v1735
      %v1737 = vrot.slane %v1467, 2
      %v1738 = vsel %vm1699, %v1735, %v1737
      %v1739 = vrot.slane %v1468, 2
      %v1740 = vsel %vm1699, %v1737, %v1739
      %v1741 = vrot.slane %v1469, 2
      %v1742 = vsel %vm1699, %v1739, %v1741
      %v1743 = vrot.slane %v1470, 2
      %v1744 = vsel %vm1699, %v1741, %v1743
      %v1745 = vrot.slane %v1471, 2
      %v1746 = vsel %vm1699, %v1743, %v1745
      %v1747 = vrot.slane %v1472, 2
      %v1748 = vsel %vm1699, %v1745, %v1747
      %v1749 = vrot.slane %v1473, 2
      %v1750 = vsel %vm1699, %v1747, %v1749
      %v1751 = vrot.slane %v1474, 2
      %v1752 = vsel %vm1699, %v1749, %v1751
      %v1753 = vrot.slane %v1475, 2
      %v1754 = vsel %vm1699, %v1751, %v1753
      %v1755 = vrot.slane %v1476, 2
      %v1756 = vsel %vm1699, %v1753, %v1755
      %v1757 = vrot.slane %v1697, 2
      %v1758 = vsel %vm1699, %v1755, %v1757
      %1759 = vrot.lane.b32.xlu0 %v1700, 96
      %v1760 = vpop.permute.xlu0 %1759
      %1761 = vrot.lane.b32.xlu0 %v1702, 96
      %v1762 = vpop.permute.xlu0 %1761
      %1763 = vrot.lane.b32.xlu0 %v1704, 96
      %v1764 = vpop.permute.xlu0 %1763
      %1765 = vrot.lane.b32.xlu0 %v1706, 96
      %v1766 = vpop.permute.xlu0 %1765
      %1767 = vrot.lane.b32.xlu0 %v1708, 96
      %v1768 = vpop.permute.xlu0 %1767
      %1769 = vrot.lane.b32.xlu0 %v1710, 96
      %v1770 = vpop.permute.xlu0 %1769
      %1771 = vrot.lane.b32.xlu0 %v1712, 96
      %v1772 = vpop.permute.xlu0 %1771
      %1773 = vrot.lane.b32.xlu0 %v1714, 96
      %v1774 = vpop.permute.xlu0 %1773
      %1775 = vrot.lane.b32.xlu0 %v1716, 96
      %v1776 = vpop.permute.xlu0 %1775
      %1777 = vrot.lane.b32.xlu0 %v1718, 96
      %v1778 = vpop.permute.xlu0 %1777
      %1779 = vrot.lane.b32.xlu0 %v1720, 96
      %v1780 = vpop.permute.xlu0 %1779
      %1781 = vrot.lane.b32.xlu0 %v1722, 96
      %v1782 = vpop.permute.xlu0 %1781
      %1783 = vrot.lane.b32.xlu0 %v1724, 96
      %v1784 = vpop.permute.xlu0 %1783
      %1785 = vrot.lane.b32.xlu0 %v1726, 96
      %v1786 = vpop.permute.xlu0 %1785
      %1787 = vrot.lane.b32.xlu0 %v1728, 96
      %v1788 = vpop.permute.xlu0 %1787
      %1789 = vrot.lane.b32.xlu0 %v1730, 96
      %v1790 = vpop.permute.xlu0 %1789
      %1791 = vrot.lane.b32.xlu0 %v1732, 96
      %v1792 = vpop.permute.xlu0 %1791
      %1793 = vrot.lane.b32.xlu0 %v1734, 96
      %v1794 = vpop.permute.xlu0 %1793
      %1795 = vrot.lane.b32.xlu0 %v1736, 96
      %v1796 = vpop.permute.xlu0 %1795
      %1797 = vrot.lane.b32.xlu0 %v1738, 96
      %v1798 = vpop.permute.xlu0 %1797
      %1799 = vrot.lane.b32.xlu0 %v1740, 96
      %v1800 = vpop.permute.xlu0 %1799
      %1801 = vrot.lane.b32.xlu0 %v1742, 96
      %v1802 = vpop.permute.xlu0 %1801
      %1803 = vrot.lane.b32.xlu0 %v1744, 96
      %v1804 = vpop.permute.xlu0 %1803
      %1805 = vrot.lane.b32.xlu0 %v1746, 96
      %v1806 = vpop.permute.xlu0 %1805
      %1807 = vrot.lane.b32.xlu0 %v1748, 96
      %v1808 = vpop.permute.xlu0 %1807
      %1809 = vrot.lane.b32.xlu0 %v1750, 96
      %v1810 = vpop.permute.xlu0 %1809
      %1811 = vrot.lane.b32.xlu0 %v1752, 96
      %v1812 = vpop.permute.xlu0 %1811
      %1813 = vrot.lane.b32.xlu0 %v1754, 96
      %v1814 = vpop.permute.xlu0 %1813
      %1815 = vrot.lane.b32.xlu0 %v1756, 96
      %v1816 = vpop.permute.xlu0 %1815
      %1817 = vrot.lane.b32.xlu0 %v1758, 96
      %v1818 = vpop.permute.xlu0 %1817
      %1819 = vrot.lane.b32.xlu0 %v1757, 96
      %v1820 = vpop.permute.xlu0 %1819
      %v1852 = vadd.f32 %v1666, %v1760
      %v1853 = vadd.f32 %v1667, %v1762
      %v1854 = vadd.f32 %v1668, %v1764
      %v1855 = vadd.f32 %v1669, %v1766
      %v1856 = vadd.f32 %v1670, %v1768
      %v1857 = vadd.f32 %v1671, %v1770
      %v1858 = vadd.f32 %v1672, %v1772
      %v1859 = vadd.f32 %v1673, %v1774
      %v1860 = vadd.f32 %v1674, %v1776
      %v1861 = vadd.f32 %v1675, %v1778
      %v1862 = vadd.f32 %v1676, %v1780
      %v1863 = vadd.f32 %v1677, %v1782
      %v1864 = vadd.f32 %v1678, %v1784
      %v1865 = vadd.f32 %v1679, %v1786
      %v1866 = vadd.f32 %v1680, %v1788
      %v1867 = vadd.f32 %v1681, %v1790
      %v1868 = vadd.f32 %v1682, %v1792
      %v1869 = vadd.f32 %v1683, %v1794
      %v1870 = vadd.f32 %v1684, %v1796
      %v1871 = vadd.f32 %v1685, %v1798
      %v1872 = vadd.f32 %v1686, %v1800
      %v1873 = vadd.f32 %v1687, %v1802
      %v1874 = vadd.f32 %v1688, %v1804
      %v1875 = vadd.f32 %v1689, %v1806
      %v1876 = vadd.f32 %v1690, %v1808
      %v1877 = vadd.f32 %v1691, %v1810
      %v1878 = vadd.f32 %v1692, %v1812
      %v1879 = vadd.f32 %v1693, %v1814
      %v1880 = vadd.f32 %v1694, %v1816
      %v1881 = vadd.f32 %v1695, %v1818
      %v1882 = vadd.f32 %v1696, %v1820
      %v1883 = vld [vmem:[#allocation5 + $0x78] sm:$0xc0]
      %v1884 = vld [vmem:[#allocation5 + $0x4d8] sm:$0xff]
      %v1885 = vld [vmem:[#allocation5 + $0x500] sm:$0xff]
      %v1886 = vld [vmem:[#allocation5 + $0x528] sm:$0x3f]
      %1891 = vrot.lane.b32.xlu0 %v1883, 80
      %v1892 = vpop.permute.xlu0 %1891
      %1893 = vrot.lane.b32.xlu0 %v1451, 80
      %v1894 = vpop.permute.xlu0 %1893
      %1895 = vrot.lane.b32.xlu0 %v1452, 80
      %v1896 = vpop.permute.xlu0 %1895
      %1897 = vrot.lane.b32.xlu0 %v1453, 80
      %v1898 = vpop.permute.xlu0 %1897
      %1899 = vrot.lane.b32.xlu0 %v1454, 80
      %v1900 = vpop.permute.xlu0 %1899
      %1901 = vrot.lane.b32.xlu0 %v1455, 80
      %v1902 = vpop.permute.xlu0 %1901
      %1903 = vrot.lane.b32.xlu0 %v1456, 80
      %v1904 = vpop.permute.xlu0 %1903
      %1905 = vrot.lane.b32.xlu0 %v1457, 80
      %v1906 = vpop.permute.xlu0 %1905
      %1907 = vrot.lane.b32.xlu0 %v1458, 80
      %v1908 = vpop.permute.xlu0 %1907
      %1909 = vrot.lane.b32.xlu0 %v1459, 80
      %v1910 = vpop.permute.xlu0 %1909
      %1911 = vrot.lane.b32.xlu0 %v1460, 80
      %v1912 = vpop.permute.xlu0 %1911
      %1913 = vrot.lane.b32.xlu0 %v1461, 80
      %v1914 = vpop.permute.xlu0 %1913
      %1915 = vrot.lane.b32.xlu0 %v1462, 80
      %v1916 = vpop.permute.xlu0 %1915
      %1917 = vrot.lane.b32.xlu0 %v1463, 80
      %v1918 = vpop.permute.xlu0 %1917
      %1919 = vrot.lane.b32.xlu0 %v1464, 80
      %v1920 = vpop.permute.xlu0 %1919
      %1921 = vrot.lane.b32.xlu0 %v1465, 80
      %v1922 = vpop.permute.xlu0 %1921
      %1923 = vrot.lane.b32.xlu0 %v1466, 80
      %v1924 = vpop.permute.xlu0 %1923
      %1925 = vrot.lane.b32.xlu0 %v1467, 80
      %v1926 = vpop.permute.xlu0 %1925
      %1927 = vrot.lane.b32.xlu0 %v1468, 80
      %v1928 = vpop.permute.xlu0 %1927
      %1929 = vrot.lane.b32.xlu0 %v1469, 80
      %v1930 = vpop.permute.xlu0 %1929
      %1931 = vrot.lane.b32.xlu0 %v1470, 80
      %v1932 = vpop.permute.xlu0 %1931
      %1933 = vrot.lane.b32.xlu0 %v1471, 80
      %v1934 = vpop.permute.xlu0 %1933
      %1935 = vrot.lane.b32.xlu0 %v1472, 80
      %v1936 = vpop.permute.xlu0 %1935
      %1937 = vrot.lane.b32.xlu0 %v1473, 80
      %v1938 = vpop.permute.xlu0 %1937
      %1939 = vrot.lane.b32.xlu0 %v1474, 80
      %v1940 = vpop.permute.xlu0 %1939
      %1941 = vrot.lane.b32.xlu0 %v1475, 80
      %v1942 = vpop.permute.xlu0 %1941
      %1943 = vrot.lane.b32.xlu0 %v1476, 80
      %v1944 = vpop.permute.xlu0 %1943
      %1945 = vrot.lane.b32.xlu0 %v1697, 80
      %v1946 = vpop.permute.xlu0 %1945
      %1947 = vrot.lane.b32.xlu0 %v1884, 80
      %v1948 = vpop.permute.xlu0 %1947
      %1949 = vrot.lane.b32.xlu0 %v1885, 80
      %v1950 = vpop.permute.xlu0 %1949
      %1951 = vrot.lane.b32.xlu0 %v1886, 80
      %v1952 = vpop.permute.xlu0 %1951
      %v1984 = vadd.f32 %v1852, %v1892
      %v1985 = vadd.f32 %v1853, %v1894
      %v1986 = vadd.f32 %v1854, %v1896
      %v1987 = vadd.f32 %v1855, %v1898
      %v1988 = vadd.f32 %v1856, %v1900
      %v1989 = vadd.f32 %v1857, %v1902
      %v1990 = vadd.f32 %v1858, %v1904
      %v1991 = vadd.f32 %v1859, %v1906
      %v1992 = vadd.f32 %v1860, %v1908
      %v1993 = vadd.f32 %v1861, %v1910
      %v1994 = vadd.f32 %v1862, %v1912
      %v1995 = vadd.f32 %v1863, %v1914
      %v1996 = vadd.f32 %v1864, %v1916
      %v1997 = vadd.f32 %v1865, %v1918
      %v1998 = vadd.f32 %v1866, %v1920
      %v1999 = vadd.f32 %v1867, %v1922
      %v2000 = vadd.f32 %v1868, %v1924
      %v2001 = vadd.f32 %v1869, %v1926
      %v2002 = vadd.f32 %v1870, %v1928
      %v2003 = vadd.f32 %v1871, %v1930
      %v2004 = vadd.f32 %v1872, %v1932
      %v2005 = vadd.f32 %v1873, %v1934
      %v2006 = vadd.f32 %v1874, %v1936
      %v2007 = vadd.f32 %v1875, %v1938
      %v2008 = vadd.f32 %v1876, %v1940
      %v2009 = vadd.f32 %v1877, %v1942
      %v2010 = vadd.f32 %v1878, %v1944
      %v2011 = vadd.f32 %v1879, %v1946
      %v2012 = vadd.f32 %v1880, %v1948
      %v2013 = vadd.f32 %v1881, %v1950
      %v2014 = vadd.f32 %v1882, %v1952
      %v2015 = vld [vmem:[#allocation5 + $0x78] sm:$0x80]
      %v2016 = vld [vmem:[#allocation5 + $0x528] sm:$0x7f]
      %v2019 = vrot.slane %v2015, 1
      %v2020 = vsel %vm1511, %v2019, %v1519
      %v2021 = vrot.slane %v1697, 1
      %v2022 = vsel %vm1511, %v1569, %v2021
      %v2023 = vrot.slane %v1884, 1
      %v2024 = vsel %vm1511, %v2021, %v2023
      %v2025 = vrot.slane %v1885, 1
      %v2026 = vsel %vm1511, %v2023, %v2025
      %v2027 = vrot.slane %v2016, 1
      %v2028 = vsel %vm1511, %v2025, %v2027
      %2029 = vrot.lane.b32.xlu0 %v2020, 64
      %v2030 = vpop.permute.xlu0 %2029
      %2031 = vrot.lane.b32.xlu0 %v1522, 64
      %v2032 = vpop.permute.xlu0 %2031
      %2033 = vrot.lane.b32.xlu0 %v1524, 64
      %v2034 = vpop.permute.xlu0 %2033
      %2035 = vrot.lane.b32.xlu0 %v1526, 64
      %v2036 = vpop.permute.xlu0 %2035
      %2037 = vrot.lane.b32.xlu0 %v1528, 64
      %v2038 = vpop.permute.xlu0 %2037
      %2039 = vrot.lane.b32.xlu0 %v1530, 64
      %v2040 = vpop.permute.xlu0 %2039
      %2041 = vrot.lane.b32.xlu0 %v1532, 64
      %v2042 = vpop.permute.xlu0 %2041
      %2043 = vrot.lane.b32.xlu0 %v1534, 64
      %v2044 = vpop.permute.xlu0 %2043
      %2045 = vrot.lane.b32.xlu0 %v1536, 64
      %v2046 = vpop.permute.xlu0 %2045
      %2047 = vrot.lane.b32.xlu0 %v1538, 64
      %v2048 = vpop.permute.xlu0 %2047
      %2049 = vrot.lane.b32.xlu0 %v1540, 64
      %v2050 = vpop.permute.xlu0 %2049
      %2051 = vrot.lane.b32.xlu0 %v1542, 64
      %v2052 = vpop.permute.xlu0 %2051
      %2053 = vrot.lane.b32.xlu0 %v1544, 64
      %v2054 = vpop.permute.xlu0 %2053
      %2055 = vrot.lane.b32.xlu0 %v1546, 64
      %v2056 = vpop.permute.xlu0 %2055
      %2057 = vrot.lane.b32.xlu0 %v1548, 64
      %v2058 = vpop.permute.xlu0 %2057
      %2059 = vrot.lane.b32.xlu0 %v1550, 64
      %v2060 = vpop.permute.xlu0 %2059
      %2061 = vrot.lane.b32.xlu0 %v1552, 64
      %v2062 = vpop.permute.xlu0 %2061
      %2063 = vrot.lane.b32.xlu0 %v1554, 64
      %v2064 = vpop.permute.xlu0 %2063
      %2065 = vrot.lane.b32.xlu0 %v1556, 64
      %v2066 = vpop.permute.xlu0 %2065
      %2067 = vrot.lane.b32.xlu0 %v1558, 64
      %v2068 = vpop.permute.xlu0 %2067
      %2069 = vrot.lane.b32.xlu0 %v1560, 64
      %v2070 = vpop.permute.xlu0 %2069
      %2071 = vrot.lane.b32.xlu0 %v1562, 64
      %v2072 = vpop.permute.xlu0 %2071
      %2073 = vrot.lane.b32.xlu0 %v1564, 64
      %v2074 = vpop.permute.xlu0 %2073
      %2075 = vrot.lane.b32.xlu0 %v1566, 64
      %v2076 = vpop.permute.xlu0 %2075
      %2077 = vrot.lane.b32.xlu0 %v1568, 64
      %v2078 = vpop.permute.xlu0 %2077
      %2079 = vrot.lane.b32.xlu0 %v1570, 64
      %v2080 = vpop.permute.xlu0 %2079
      %2081 = vrot.lane.b32.xlu0 %v2022, 64
      %v2082 = vpop.permute.xlu0 %2081
      %2083 = vrot.lane.b32.xlu0 %v2024, 64
      %v2084 = vpop.permute.xlu0 %2083
      %2085 = vrot.lane.b32.xlu0 %v2026, 64
      %v2086 = vpop.permute.xlu0 %2085
      %2087 = vrot.lane.b32.xlu0 %v2028, 64
      %v2088 = vpop.permute.xlu0 %2087
      %2089 = vrot.lane.b32.xlu0 %v2027, 64
      %v2090 = vpop.permute.xlu0 %2089
      %v2122 = vadd.f32 %v1984, %v2030
      %v2123 = vadd.f32 %v1985, %v2032
      %v2124 = vadd.f32 %v1986, %v2034
      %v2125 = vadd.f32 %v1987, %v2036
      %v2126 = vadd.f32 %v1988, %v2038
      %v2127 = vadd.f32 %v1989, %v2040
      %v2128 = vadd.f32 %v1990, %v2042
      %v2129 = vadd.f32 %v1991, %v2044
      %v2130 = vadd.f32 %v1992, %v2046
      %v2131 = vadd.f32 %v1993, %v2048
      %v2132 = vadd.f32 %v1994, %v2050
      %v2133 = vadd.f32 %v1995, %v2052
      %v2134 = vadd.f32 %v1996, %v2054
      %v2135 = vadd.f32 %v1997, %v2056
      %v2136 = vadd.f32 %v1998, %v2058
      %v2137 = vadd.f32 %v1999, %v2060
      %v2138 = vadd.f32 %v2000, %v2062
      %v2139 = vadd.f32 %v2001, %v2064
      %v2140 = vadd.f32 %v2002, %v2066
      %v2141 = vadd.f32 %v2003, %v2068
      %v2142 = vadd.f32 %v2004, %v2070
      %v2143 = vadd.f32 %v2005, %v2072
      %v2144 = vadd.f32 %v2006, %v2074
      %v2145 = vadd.f32 %v2007, %v2076
      %v2146 = vadd.f32 %v2008, %v2078
      %v2147 = vadd.f32 %v2009, %v2080
      %v2148 = vadd.f32 %v2010, %v2082
      %v2149 = vadd.f32 %v2011, %v2084
      %v2150 = vadd.f32 %v2012, %v2086
      %v2151 = vadd.f32 %v2013, %v2088
      %v2152 = vadd.f32 %v2014, %v2090
      %v2153 = vld [vmem:[#allocation5 + $0x528] sm:$0xff]
      %v2155 = vrot.slane %v1884, 2
      %v2156 = vsel %vm1699, %v1757, %v2155
      %v2157 = vrot.slane %v1885, 2
      %v2158 = vsel %vm1699, %v2155, %v2157
      %v2159 = vrot.slane %v2153, 2
      %v2160 = vsel %vm1699, %v2157, %v2159
      %2161 = vrot.lane.b32.xlu0 %v1705, 48
      %v2162 = vpop.permute.xlu0 %2161
      %2163 = vrot.lane.b32.xlu0 %v1708, 48
      %v2164 = vpop.permute.xlu0 %2163
      %2165 = vrot.lane.b32.xlu0 %v1710, 48
      %v2166 = vpop.permute.xlu0 %2165
      %2167 = vrot.lane.b32.xlu0 %v1712, 48
      %v2168 = vpop.permute.xlu0 %2167
      %2169 = vrot.lane.b32.xlu0 %v1714, 48
      %v2170 = vpop.permute.xlu0 %2169
      %2171 = vrot.lane.b32.xlu0 %v1716, 48
      %v2172 = vpop.permute.xlu0 %2171
      %2173 = vrot.lane.b32.xlu0 %v1718, 48
      %v2174 = vpop.permute.xlu0 %2173
      %2175 = vrot.lane.b32.xlu0 %v1720, 48
      %v2176 = vpop.permute.xlu0 %2175
      %2177 = vrot.lane.b32.xlu0 %v1722, 48
      %v2178 = vpop.permute.xlu0 %2177
      %2179 = vrot.lane.b32.xlu0 %v1724, 48
      %v2180 = vpop.permute.xlu0 %2179
      %2181 = vrot.lane.b32.xlu0 %v1726, 48
      %v2182 = vpop.permute.xlu0 %2181
      %2183 = vrot.lane.b32.xlu0 %v1728, 48
      %v2184 = vpop.permute.xlu0 %2183
      %2185 = vrot.lane.b32.xlu0 %v1730, 48
      %v2186 = vpop.permute.xlu0 %2185
      %2187 = vrot.lane.b32.xlu0 %v1732, 48
      %v2188 = vpop.permute.xlu0 %2187
      %2189 = vrot.lane.b32.xlu0 %v1734, 48
      %v2190 = vpop.permute.xlu0 %2189
      %2191 = vrot.lane.b32.xlu0 %v1736, 48
      %v2192 = vpop.permute.xlu0 %2191
      %2193 = vrot.lane.b32.xlu0 %v1738, 48
      %v2194 = vpop.permute.xlu0 %2193
      %2195 = vrot.lane.b32.xlu0 %v1740, 48
      %v2196 = vpop.permute.xlu0 %2195
      %2197 = vrot.lane.b32.xlu0 %v1742, 48
      %v2198 = vpop.permute.xlu0 %2197
      %2199 = vrot.lane.b32.xlu0 %v1744, 48
      %v2200 = vpop.permute.xlu0 %2199
      %2201 = vrot.lane.b32.xlu0 %v1746, 48
      %v2202 = vpop.permute.xlu0 %2201
      %2203 = vrot.lane.b32.xlu0 %v1748, 48
      %v2204 = vpop.permute.xlu0 %2203
      %2205 = vrot.lane.b32.xlu0 %v1750, 48
      %v2206 = vpop.permute.xlu0 %2205
      %2207 = vrot.lane.b32.xlu0 %v1752, 48
      %v2208 = vpop.permute.xlu0 %2207
      %2209 = vrot.lane.b32.xlu0 %v1754, 48
      %v2210 = vpop.permute.xlu0 %2209
      %2211 = vrot.lane.b32.xlu0 %v1756, 48
      %v2212 = vpop.permute.xlu0 %2211
      %2213 = vrot.lane.b32.xlu0 %v1758, 48
      %v2214 = vpop.permute.xlu0 %2213
      %2215 = vrot.lane.b32.xlu0 %v2156, 48
      %v2216 = vpop.permute.xlu0 %2215
      %2217 = vrot.lane.b32.xlu0 %v2158, 48
      %v2218 = vpop.permute.xlu0 %2217
      %2219 = vrot.lane.b32.xlu0 %v2160, 48
      %v2220 = vpop.permute.xlu0 %2219
      %2221 = vrot.lane.b32.xlu0 %v2159, 48
      %v2222 = vpop.permute.xlu0 %2221
      %v2254 = vadd.f32 %v2122, %v2162
      %v2255 = vadd.f32 %v2123, %v2164
      %v2256 = vadd.f32 %v2124, %v2166
      %v2257 = vadd.f32 %v2125, %v2168
      %v2258 = vadd.f32 %v2126, %v2170
      %v2259 = vadd.f32 %v2127, %v2172
      %v2260 = vadd.f32 %v2128, %v2174
      %v2261 = vadd.f32 %v2129, %v2176
      %v2262 = vadd.f32 %v2130, %v2178
      %v2263 = vadd.f32 %v2131, %v2180
      %v2264 = vadd.f32 %v2132, %v2182
      %v2265 = vadd.f32 %v2133, %v2184
      %v2266 = vadd.f32 %v2134, %v2186
      %v2267 = vadd.f32 %v2135, %v2188
      %v2268 = vadd.f32 %v2136, %v2190
      %v2269 = vadd.f32 %v2137, %v2192
      %v2270 = vadd.f32 %v2138, %v2194
      %v2271 = vadd.f32 %v2139, %v2196
      %v2272 = vadd.f32 %v2140, %v2198
      %v2273 = vadd.f32 %v2141, %v2200
      %v2274 = vadd.f32 %v2142, %v2202
      %v2275 = vadd.f32 %v2143, %v2204
      %v2276 = vadd.f32 %v2144, %v2206
      %v2277 = vadd.f32 %v2145, %v2208
      %v2278 = vadd.f32 %v2146, %v2210
      %v2279 = vadd.f32 %v2147, %v2212
      %v2280 = vadd.f32 %v2148, %v2214
      %v2281 = vadd.f32 %v2149, %v2216
      %v2282 = vadd.f32 %v2150, %v2218
      %v2283 = vadd.f32 %v2151, %v2220
      %v2284 = vadd.f32 %v2152, %v2222
      %v2285 = vld [vmem:[#allocation5 + $0xf0] sm:$0xc0]
      %v2286 = vld [vmem:[#allocation5 + $0x550] sm:$0xff]
      %v2287 = vld [vmem:[#allocation5 + $0x578] sm:$0xff]
      %v2288 = vld [vmem:[#allocation5 + $0x5a0] sm:$0x3f]
      %2293 = vrot.lane.b32.xlu0 %v2285, 32
      %v2294 = vpop.permute.xlu0 %2293
      %2295 = vrot.lane.b32.xlu0 %v1454, 32
      %v2296 = vpop.permute.xlu0 %2295
      %2297 = vrot.lane.b32.xlu0 %v1455, 32
      %v2298 = vpop.permute.xlu0 %2297
      %2299 = vrot.lane.b32.xlu0 %v1456, 32
      %v2300 = vpop.permute.xlu0 %2299
      %2301 = vrot.lane.b32.xlu0 %v1457, 32
      %v2302 = vpop.permute.xlu0 %2301
      %2303 = vrot.lane.b32.xlu0 %v1458, 32
      %v2304 = vpop.permute.xlu0 %2303
      %2305 = vrot.lane.b32.xlu0 %v1459, 32
      %v2306 = vpop.permute.xlu0 %2305
      %2307 = vrot.lane.b32.xlu0 %v1460, 32
      %v2308 = vpop.permute.xlu0 %2307
      %2309 = vrot.lane.b32.xlu0 %v1461, 32
      %v2310 = vpop.permute.xlu0 %2309
      %2311 = vrot.lane.b32.xlu0 %v1462, 32
      %v2312 = vpop.permute.xlu0 %2311
      %2313 = vrot.lane.b32.xlu0 %v1463, 32
      %v2314 = vpop.permute.xlu0 %2313
      %2315 = vrot.lane.b32.xlu0 %v1464, 32
      %v2316 = vpop.permute.xlu0 %2315
      %2317 = vrot.lane.b32.xlu0 %v1465, 32
      %v2318 = vpop.permute.xlu0 %2317
      %2319 = vrot.lane.b32.xlu0 %v1466, 32
      %v2320 = vpop.permute.xlu0 %2319
      %2321 = vrot.lane.b32.xlu0 %v1467, 32
      %v2322 = vpop.permute.xlu0 %2321
      %2323 = vrot.lane.b32.xlu0 %v1468, 32
      %v2324 = vpop.permute.xlu0 %2323
      %2325 = vrot.lane.b32.xlu0 %v1469, 32
      %v2326 = vpop.permute.xlu0 %2325
      %2327 = vrot.lane.b32.xlu0 %v1470, 32
      %v2328 = vpop.permute.xlu0 %2327
      %2329 = vrot.lane.b32.xlu0 %v1471, 32
      %v2330 = vpop.permute.xlu0 %2329
      %2331 = vrot.lane.b32.xlu0 %v1472, 32
      %v2332 = vpop.permute.xlu0 %2331
      %2333 = vrot.lane.b32.xlu0 %v1473, 32
      %v2334 = vpop.permute.xlu0 %2333
      %2335 = vrot.lane.b32.xlu0 %v1474, 32
      %v2336 = vpop.permute.xlu0 %2335
      %2337 = vrot.lane.b32.xlu0 %v1475, 32
      %v2338 = vpop.permute.xlu0 %2337
      %2339 = vrot.lane.b32.xlu0 %v1476, 32
      %v2340 = vpop.permute.xlu0 %2339
      %2341 = vrot.lane.b32.xlu0 %v1697, 32
      %v2342 = vpop.permute.xlu0 %2341
      %2343 = vrot.lane.b32.xlu0 %v1884, 32
      %v2344 = vpop.permute.xlu0 %2343
      %2345 = vrot.lane.b32.xlu0 %v1885, 32
      %v2346 = vpop.permute.xlu0 %2345
      %2347 = vrot.lane.b32.xlu0 %v2153, 32
      %v2348 = vpop.permute.xlu0 %2347
      %2349 = vrot.lane.b32.xlu0 %v2286, 32
      %v2350 = vpop.permute.xlu0 %2349
      %2351 = vrot.lane.b32.xlu0 %v2287, 32
      %v2352 = vpop.permute.xlu0 %2351
      %2353 = vrot.lane.b32.xlu0 %v2288, 32
      %v2354 = vpop.permute.xlu0 %2353
      %v2386 = vadd.f32 %v2254, %v2294
      %v2387 = vadd.f32 %v2255, %v2296
      %v2388 = vadd.f32 %v2256, %v2298
      %v2389 = vadd.f32 %v2257, %v2300
      %v2390 = vadd.f32 %v2258, %v2302
      %v2391 = vadd.f32 %v2259, %v2304
      %v2392 = vadd.f32 %v2260, %v2306
      %v2393 = vadd.f32 %v2261, %v2308
      %v2394 = vadd.f32 %v2262, %v2310
      %v2395 = vadd.f32 %v2263, %v2312
      %v2396 = vadd.f32 %v2264, %v2314
      %v2397 = vadd.f32 %v2265, %v2316
      %v2398 = vadd.f32 %v2266, %v2318
      %v2399 = vadd.f32 %v2267, %v2320
      %v2400 = vadd.f32 %v2268, %v2322
      %v2401 = vadd.f32 %v2269, %v2324
      %v2402 = vadd.f32 %v2270, %v2326
      %v2403 = vadd.f32 %v2271, %v2328
      %v2404 = vadd.f32 %v2272, %v2330
      %v2405 = vadd.f32 %v2273, %v2332
      %v2406 = vadd.f32 %v2274, %v2334
      %v2407 = vadd.f32 %v2275, %v2336
      %v2408 = vadd.f32 %v2276, %v2338
      %v2409 = vadd.f32 %v2277, %v2340
      %v2410 = vadd.f32 %v2278, %v2342
      %v2411 = vadd.f32 %v2279, %v2344
      %v2412 = vadd.f32 %v2280, %v2346
      %v2413 = vadd.f32 %v2281, %v2348
      %v2414 = vadd.f32 %v2282, %v2350
      %v2415 = vadd.f32 %v2283, %v2352
      %v2416 = vadd.f32 %v2284, %v2354
      %v2417 = vld [vmem:[#allocation5 + $0xf0] sm:$0x80]
      %v2418 = vld [vmem:[#allocation5 + $0x5a0] sm:$0x7f]
      %v2421 = vrot.slane %v2417, 1
      %v2422 = vsel %vm1511, %v2421, %v1525
      %v2423 = vrot.slane %v2153, 1
      %v2424 = vsel %vm1511, %v2025, %v2423
      %v2425 = vrot.slane %v2286, 1
      %v2426 = vsel %vm1511, %v2423, %v2425
      %v2427 = vrot.slane %v2287, 1
      %v2428 = vsel %vm1511, %v2425, %v2427
      %v2429 = vrot.slane %v2418, 1
      %v2430 = vsel %vm1511, %v2427, %v2429
      %2431 = vrot.lane.b32.xlu0 %v2422, 16
      %v2432 = vpop.permute.xlu0 %2431
      %2433 = vrot.lane.b32.xlu0 %v1528, 16
      %v2434 = vpop.permute.xlu0 %2433
      %2435 = vrot.lane.b32.xlu0 %v1530, 16
      %v2436 = vpop.permute.xlu0 %2435
      %2437 = vrot.lane.b32.xlu0 %v1532, 16
      %v2438 = vpop.permute.xlu0 %2437
      %2439 = vrot.lane.b32.xlu0 %v1534, 16
      %v2440 = vpop.permute.xlu0 %2439
      %2441 = vrot.lane.b32.xlu0 %v1536, 16
      %v2442 = vpop.permute.xlu0 %2441
      %2443 = vrot.lane.b32.xlu0 %v1538, 16
      %v2444 = vpop.permute.xlu0 %2443
      %2445 = vrot.lane.b32.xlu0 %v1540, 16
      %v2446 = vpop.permute.xlu0 %2445
      %2447 = vrot.lane.b32.xlu0 %v1542, 16
      %v2448 = vpop.permute.xlu0 %2447
      %2449 = vrot.lane.b32.xlu0 %v1544, 16
      %v2450 = vpop.permute.xlu0 %2449
      %2451 = vrot.lane.b32.xlu0 %v1546, 16
      %v2452 = vpop.permute.xlu0 %2451
      %2453 = vrot.lane.b32.xlu0 %v1548, 16
      %v2454 = vpop.permute.xlu0 %2453
      %2455 = vrot.lane.b32.xlu0 %v1550, 16
      %v2456 = vpop.permute.xlu0 %2455
      %2457 = vrot.lane.b32.xlu0 %v1552, 16
      %v2458 = vpop.permute.xlu0 %2457
      %2459 = vrot.lane.b32.xlu0 %v1554, 16
      %v2460 = vpop.permute.xlu0 %2459
      %2461 = vrot.lane.b32.xlu0 %v1556, 16
      %v2462 = vpop.permute.xlu0 %2461
      %2463 = vrot.lane.b32.xlu0 %v1558, 16
      %v2464 = vpop.permute.xlu0 %2463
      %2465 = vrot.lane.b32.xlu0 %v1560, 16
      %v2466 = vpop.permute.xlu0 %2465
      %2467 = vrot.lane.b32.xlu0 %v1562, 16
      %v2468 = vpop.permute.xlu0 %2467
      %2469 = vrot.lane.b32.xlu0 %v1564, 16
      %v2470 = vpop.permute.xlu0 %2469
      %2471 = vrot.lane.b32.xlu0 %v1566, 16
      %v2472 = vpop.permute.xlu0 %2471
      %2473 = vrot.lane.b32.xlu0 %v1568, 16
      %v2474 = vpop.permute.xlu0 %2473
      %2475 = vrot.lane.b32.xlu0 %v1570, 16
      %v2476 = vpop.permute.xlu0 %2475
      %2477 = vrot.lane.b32.xlu0 %v2022, 16
      %v2478 = vpop.permute.xlu0 %2477
      %2479 = vrot.lane.b32.xlu0 %v2024, 16
      %v2480 = vpop.permute.xlu0 %2479
      %2481 = vrot.lane.b32.xlu0 %v2026, 16
      %v2482 = vpop.permute.xlu0 %2481
      %2483 = vrot.lane.b32.xlu0 %v2424, 16
      %v2484 = vpop.permute.xlu0 %2483
      %2485 = vrot.lane.b32.xlu0 %v2426, 16
      %v2486 = vpop.permute.xlu0 %2485
      %2487 = vrot.lane.b32.xlu0 %v2428, 16
      %v2488 = vpop.permute.xlu0 %2487
      %2489 = vrot.lane.b32.xlu0 %v2430, 16
      %v2490 = vpop.permute.xlu0 %2489
      %2491 = vrot.lane.b32.xlu0 %v2429, 16
      %v2492 = vpop.permute.xlu0 %2491
      %v2524 = vadd.f32 %v2386, %v2432
      %v2525 = vadd.f32 %v2387, %v2434
      %v2526 = vadd.f32 %v2388, %v2436
      %v2527 = vadd.f32 %v2389, %v2438
      %v2528 = vadd.f32 %v2390, %v2440
      %v2529 = vadd.f32 %v2391, %v2442
      %v2530 = vadd.f32 %v2392, %v2444
      %v2531 = vadd.f32 %v2393, %v2446
      %v2532 = vadd.f32 %v2394, %v2448
      %v2533 = vadd.f32 %v2395, %v2450
      %v2534 = vadd.f32 %v2396, %v2452
      %v2535 = vadd.f32 %v2397, %v2454
      %v2536 = vadd.f32 %v2398, %v2456
      %v2537 = vadd.f32 %v2399, %v2458
      %v2538 = vadd.f32 %v2400, %v2460
      %v2539 = vadd.f32 %v2401, %v2462
      %v2540 = vadd.f32 %v2402, %v2464
      %v2541 = vadd.f32 %v2403, %v2466
      %v2542 = vadd.f32 %v2404, %v2468
      %v2543 = vadd.f32 %v2405, %v2470
      %v2544 = vadd.f32 %v2406, %v2472
      %v2545 = vadd.f32 %v2407, %v2474
      %v2546 = vadd.f32 %v2408, %v2476
      %v2547 = vadd.f32 %v2409, %v2478
      %v2548 = vadd.f32 %v2410, %v2480
      %v2549 = vadd.f32 %v2411, %v2482
      %v2550 = vadd.f32 %v2412, %v2484
      %v2551 = vadd.f32 %v2413, %v2486
      %v2552 = vadd.f32 %v2414, %v2488
      %v2553 = vadd.f32 %v2415, %v2490
      %v2554 = vadd.f32 %v2416, %v2492
      %v2555 = vld [vmem:[#allocation5 + $0x120] sm:$0xff]
      %v2556 = vld [vmem:[#allocation5 + $0x148] sm:$0xff]
      %v2557 = vld [vmem:[#allocation5 + $0x170] sm:$0xff]
      %v2558 = vld [vmem:[#allocation5 + $0x198] sm:$0xff]
      %v2559 = vld [vmem:[#allocation5 + $0x1c0] sm:$0xff]
      %v2560 = vld [vmem:[#allocation5 + $0x1e8] sm:$0xff]
      %v2561 = vld [vmem:[#allocation5 + $0x210] sm:$0xff]
      %v2562 = vld [vmem:[#allocation5 + $0x238] sm:$0xff]
      %v2563 = vld [vmem:[#allocation5 + $0x260] sm:$0xff]
      %v2564 = vld [vmem:[#allocation5 + $0x288] sm:$0xff]
      %v2565 = vld [vmem:[#allocation5 + $0x2b0] sm:$0xff]
      %v2566 = vld [vmem:[#allocation5 + $0x2d8] sm:$0xff]
      %v2567 = vld [vmem:[#allocation5 + $0x300] sm:$0xff]
      %v2568 = vld [vmem:[#allocation5 + $0x328] sm:$0xff]
      %v2569 = vld [vmem:[#allocation5 + $0x350] sm:$0xff]
      %v2570 = vld [vmem:[#allocation5 + $0x378] sm:$0xff]
      %v2571 = vld [vmem:[#allocation5 + $0x3a0] sm:$0xff]
      %v2572 = vld [vmem:[#allocation5 + $0x3c8] sm:$0xff]
      %v2573 = vld [vmem:[#allocation5 + $0x3f0] sm:$0xff]
      %v2574 = vld [vmem:[#allocation5 + $0x418] sm:$0xff]
      %v2575 = vld [vmem:[#allocation5 + $0x440] sm:$0xff]
      %v2576 = vld [vmem:[#allocation5 + $0x468] sm:$0xff]
      %v2577 = vld [vmem:[#allocation5 + $0x490] sm:$0xff]
      %v2578 = vld [vmem:[#allocation5 + $0x4b8] sm:$0xff]
      %v2579 = vld [vmem:[#allocation5 + $0x4e0] sm:$0xff]
      %v2580 = vld [vmem:[#allocation5 + $0x508] sm:$0xff]
      %v2581 = vld [vmem:[#allocation5 + $0x530] sm:$0xff]
      %v2582 = vld [vmem:[#allocation5 + $0x558] sm:$0xff]
      %v2583 = vld [vmem:[#allocation5 + $0x580] sm:$0xff]
      %v2584 = vld [vmem:[#allocation5 + $0x5a8] sm:$0xff]
      %v2615 = vrot.slane %v2555, 2
      %v2616 = vrot.slane %v2556, 2
      %v2617 = vsel %vm1699, %v2615, %v2616
      %v2618 = vrot.slane %v2557, 2
      %v2619 = vsel %vm1699, %v2616, %v2618
      %v2620 = vrot.slane %v2558, 2
      %v2621 = vsel %vm1699, %v2618, %v2620
      %v2622 = vrot.slane %v2559, 2
      %v2623 = vsel %vm1699, %v2620, %v2622
      %v2624 = vrot.slane %v2560, 2
      %v2625 = vsel %vm1699, %v2622, %v2624
      %v2626 = vrot.slane %v2561, 2
      %v2627 = vsel %vm1699, %v2624, %v2626
      %v2628 = vrot.slane %v2562, 2
      %v2629 = vsel %vm1699, %v2626, %v2628
      %v2630 = vrot.slane %v2563, 2
      %v2631 = vsel %vm1699, %v2628, %v2630
      %v2632 = vrot.slane %v2564, 2
      %v2633 = vsel %vm1699, %v2630, %v2632
      %v2634 = vrot.slane %v2565, 2
      %v2635 = vsel %vm1699, %v2632, %v2634
      %v2636 = vrot.slane %v2566, 2
      %v2637 = vsel %vm1699, %v2634, %v2636
      %v2638 = vrot.slane %v2567, 2
      %v2639 = vsel %vm1699, %v2636, %v2638
      %v2640 = vrot.slane %v2568, 2
      %v2641 = vsel %vm1699, %v2638, %v2640
      %v2642 = vrot.slane %v2569, 2
      %v2643 = vsel %vm1699, %v2640, %v2642
      %v2644 = vrot.slane %v2570, 2
      %v2645 = vsel %vm1699, %v2642, %v2644
      %v2646 = vrot.slane %v2571, 2
      %v2647 = vsel %vm1699, %v2644, %v2646
      %v2648 = vrot.slane %v2572, 2
      %v2649 = vsel %vm1699, %v2646, %v2648
      %v2650 = vrot.slane %v2573, 2
      %v2651 = vsel %vm1699, %v2648, %v2650
      %v2652 = vrot.slane %v2574, 2
      %v2653 = vsel %vm1699, %v2650, %v2652
      %v2654 = vrot.slane %v2575, 2
      %v2655 = vsel %vm1699, %v2652, %v2654
      %v2656 = vrot.slane %v2576, 2
      %v2657 = vsel %vm1699, %v2654, %v2656
      %v2658 = vrot.slane %v2577, 2
      %v2659 = vsel %vm1699, %v2656, %v2658
      %v2660 = vrot.slane %v2578, 2
      %v2661 = vsel %vm1699, %v2658, %v2660
      %v2662 = vrot.slane %v2579, 2
      %v2663 = vsel %vm1699, %v2660, %v2662
      %v2664 = vrot.slane %v2580, 2
      %v2665 = vsel %vm1699, %v2662, %v2664
      %v2666 = vrot.slane %v2581, 2
      %v2667 = vsel %vm1699, %v2664, %v2666
      %v2668 = vrot.slane %v2582, 2
      %v2669 = vsel %vm1699, %v2666, %v2668
      %v2670 = vrot.slane %v2583, 2
      %v2671 = vsel %vm1699, %v2668, %v2670
      %v2672 = vrot.slane %v2584, 2
      %v2673 = vsel %vm1699, %v2670, %v2672
      %v2705 = vadd.f32 %v2524, %v2615
      %v2706 = vadd.f32 %v2525, %v2617
      %v2707 = vadd.f32 %v2526, %v2619
      %v2708 = vadd.f32 %v2527, %v2621
      %v2709 = vadd.f32 %v2528, %v2623
      %v2710 = vadd.f32 %v2529, %v2625
      %v2711 = vadd.f32 %v2530, %v2627
      %v2712 = vadd.f32 %v2531, %v2629
      %v2713 = vadd.f32 %v2532, %v2631
      %v2714 = vadd.f32 %v2533, %v2633
      %v2715 = vadd.f32 %v2534, %v2635
      %v2716 = vadd.f32 %v2535, %v2637
      %v2717 = vadd.f32 %v2536, %v2639
      %v2718 = vadd.f32 %v2537, %v2641
      %v2719 = vadd.f32 %v2538, %v2643
      %v2720 = vadd.f32 %v2539, %v2645
      %v2721 = vadd.f32 %v2540, %v2647
      %v2722 = vadd.f32 %v2541, %v2649
      %v2723 = vadd.f32 %v2542, %v2651
      %v2724 = vadd.f32 %v2543, %v2653
      %v2725 = vadd.f32 %v2544, %v2655
      %v2726 = vadd.f32 %v2545, %v2657
      %v2727 = vadd.f32 %v2546, %v2659
      %v2728 = vadd.f32 %v2547, %v2661
      %v2729 = vadd.f32 %v2548, %v2663
      %v2730 = vadd.f32 %v2549, %v2665
      %v2731 = vadd.f32 %v2550, %v2667
      %v2732 = vadd.f32 %v2551, %v2669
      %v2733 = vadd.f32 %v2552, %v2671
      %v2734 = vadd.f32 %v2553, %v2673
      %v2735 = vadd.f32 %v2554, %v2672
      %v2736 = vld [vmem:[%s6] sm:$0x1]
      %v2738 = vlaneseq
      %v2739 = vshrl.u32 %v2738, 7
      %v2740 = vsub.s32 0, %v2739
      %v2741 = vrot.slane %v2736, %v2740
      %v2743 = vadd.f32 %v2705, %v2741
      %v2744 = vadd.f32 %v2706, %v2741
      %v2745 = vadd.f32 %v2707, %v2741
      %v2746 = vadd.f32 %v2708, %v2741
      %v2747 = vadd.f32 %v2709, %v2741
      %v2748 = vadd.f32 %v2710, %v2741
      %v2749 = vadd.f32 %v2711, %v2741
      %v2750 = vadd.f32 %v2712, %v2741
      %v2751 = vadd.f32 %v2713, %v2741
      %v2752 = vadd.f32 %v2714, %v2741
      %v2753 = vadd.f32 %v2715, %v2741
      %v2754 = vadd.f32 %v2716, %v2741
      %v2755 = vadd.f32 %v2717, %v2741
      %v2756 = vadd.f32 %v2718, %v2741
      %v2757 = vadd.f32 %v2719, %v2741
      %v2758 = vadd.f32 %v2720, %v2741
      %v2759 = vadd.f32 %v2721, %v2741
      %v2760 = vadd.f32 %v2722, %v2741
      %v2761 = vadd.f32 %v2723, %v2741
      %v2762 = vadd.f32 %v2724, %v2741
      %v2763 = vadd.f32 %v2725, %v2741
      %v2764 = vadd.f32 %v2726, %v2741
      %v2765 = vadd.f32 %v2727, %v2741
      %v2766 = vadd.f32 %v2728, %v2741
      %v2767 = vadd.f32 %v2729, %v2741
      %v2768 = vadd.f32 %v2730, %v2741
      %v2769 = vadd.f32 %v2731, %v2741
      %v2770 = vadd.f32 %v2732, %v2741
      %v2771 = vadd.f32 %v2733, %v2741
      %v2772 = vadd.f32 %v2734, %v2741
      %v2773 = vadd.f32 %v2735, %v2741
      %v2774 = vadd.f32 %v2743, 3.0
      %v2775 = vadd.f32 %v2744, 3.0
      %v2776 = vadd.f32 %v2745, 3.0
      %v2777 = vadd.f32 %v2746, 3.0
      %v2778 = vadd.f32 %v2747, 3.0
      %v2779 = vadd.f32 %v2748, 3.0
      %v2780 = vadd.f32 %v2749, 3.0
      %v2781 = vadd.f32 %v2750, 3.0
      %v2782 = vadd.f32 %v2751, 3.0
      %v2783 = vadd.f32 %v2752, 3.0
      %v2784 = vadd.f32 %v2753, 3.0
      %v2785 = vadd.f32 %v2754, 3.0
      %v2786 = vadd.f32 %v2755, 3.0
      %v2787 = vadd.f32 %v2756, 3.0
      %v2788 = vadd.f32 %v2757, 3.0
      %v2789 = vadd.f32 %v2758, 3.0
      %v2790 = vadd.f32 %v2759, 3.0
      %v2791 = vadd.f32 %v2760, 3.0
      %v2792 = vadd.f32 %v2761, 3.0
      %v2793 = vadd.f32 %v2762, 3.0
      %v2794 = vadd.f32 %v2763, 3.0
      %v2795 = vadd.f32 %v2764, 3.0
      %v2796 = vadd.f32 %v2765, 3.0
      %v2797 = vadd.f32 %v2766, 3.0
      %v2798 = vadd.f32 %v2767, 3.0
      %v2799 = vadd.f32 %v2768, 3.0
      %v2800 = vadd.f32 %v2769, 3.0
      %v2801 = vadd.f32 %v2770, 3.0
      %v2802 = vadd.f32 %v2771, 3.0
      %v2803 = vadd.f32 %v2772, 3.0
      %v2804 = vadd.f32 %v2773, 3.0
      %v2805 = vmax.f32 %v2774, 0.0
      %v2806 = vmax.f32 %v2775, 0.0
      %v2807 = vmax.f32 %v2776, 0.0
      %v2808 = vmax.f32 %v2777, 0.0
      %v2809 = vmax.f32 %v2778, 0.0
      %v2810 = vmax.f32 %v2779, 0.0
      %v2811 = vmax.f32 %v2780, 0.0
      %v2812 = vmax.f32 %v2781, 0.0
      %v2813 = vmax.f32 %v2782, 0.0
      %v2814 = vmax.f32 %v2783, 0.0
      %v2815 = vmax.f32 %v2784, 0.0
      %v2816 = vmax.f32 %v2785, 0.0
      %v2817 = vmax.f32 %v2786, 0.0
      %v2818 = vmax.f32 %v2787, 0.0
      %v2819 = vmax.f32 %v2788, 0.0
      %v2820 = vmax.f32 %v2789, 0.0
      %v2821 = vmax.f32 %v2790, 0.0
      %v2822 = vmax.f32 %v2791, 0.0
      %v2823 = vmax.f32 %v2792, 0.0
      %v2824 = vmax.f32 %v2793, 0.0
      %v2825 = vmax.f32 %v2794, 0.0
      %v2826 = vmax.f32 %v2795, 0.0
      %v2827 = vmax.f32 %v2796, 0.0
      %v2828 = vmax.f32 %v2797, 0.0
      %v2829 = vmax.f32 %v2798, 0.0
      %v2830 = vmax.f32 %v2799, 0.0
      %v2831 = vmax.f32 %v2800, 0.0
      %v2832 = vmax.f32 %v2801, 0.0
      %v2833 = vmax.f32 %v2802, 0.0
      %v2834 = vmax.f32 %v2803, 0.0
      %v2835 = vmax.f32 %v2804, 0.0
      %v2836 = vmin.f32 %v2805, 6.0
      %v2837 = vmin.f32 %v2806, 6.0
      %v2838 = vmin.f32 %v2807, 6.0
      %v2839 = vmin.f32 %v2808, 6.0
      %v2840 = vmin.f32 %v2809, 6.0
      %v2841 = vmin.f32 %v2810, 6.0
      %v2842 = vmin.f32 %v2811, 6.0
      %v2843 = vmin.f32 %v2812, 6.0
      %v2844 = vmin.f32 %v2813, 6.0
      %v2845 = vmin.f32 %v2814, 6.0
      %v2846 = vmin.f32 %v2815, 6.0
      %v2847 = vmin.f32 %v2816, 6.0
      %v2848 = vmin.f32 %v2817, 6.0
      %v2849 = vmin.f32 %v2818, 6.0
      %v2850 = vmin.f32 %v2819, 6.0
      %v2851 = vmin.f32 %v2820, 6.0
      %v2852 = vmin.f32 %v2821, 6.0
      %v2853 = vmin.f32 %v2822, 6.0
      %v2854 = vmin.f32 %v2823, 6.0
      %v2855 = vmin.f32 %v2824, 6.0
      %v2856 = vmin.f32 %v2825, 6.0
      %v2857 = vmin.f32 %v2826, 6.0
      %v2858 = vmin.f32 %v2827, 6.0
      %v2859 = vmin.f32 %v2828, 6.0
      %v2860 = vmin.f32 %v2829, 6.0
      %v2861 = vmin.f32 %v2830, 6.0
      %v2862 = vmin.f32 %v2831, 6.0
      %v2863 = vmin.f32 %v2832, 6.0
      %v2864 = vmin.f32 %v2833, 6.0
      %v2865 = vmin.f32 %v2834, 6.0
      %v2866 = vmin.f32 %v2835, 6.0
      %v2867 = vmul.f32 %v2836, 0.16666667
      %v2868 = vmul.f32 %v2837, 0.16666667
      %v2869 = vmul.f32 %v2838, 0.16666667
      %v2870 = vmul.f32 %v2839, 0.16666667
      %v2871 = vmul.f32 %v2840, 0.16666667
      %v2872 = vmul.f32 %v2841, 0.16666667
      %v2873 = vmul.f32 %v2842, 0.16666667
      %v2874 = vmul.f32 %v2843, 0.16666667
      %v2875 = vmul.f32 %v2844, 0.16666667
      %v2876 = vmul.f32 %v2845, 0.16666667
      %v2877 = vmul.f32 %v2846, 0.16666667
      %v2878 = vmul.f32 %v2847, 0.16666667
      %v2879 = vmul.f32 %v2848, 0.16666667
      %v2880 = vmul.f32 %v2849, 0.16666667
      %v2881 = vmul.f32 %v2850, 0.16666667
      %v2882 = vmul.f32 %v2851, 0.16666667
      %v2883 = vmul.f32 %v2852, 0.16666667
      %v2884 = vmul.f32 %v2853, 0.16666667
      %v2885 = vmul.f32 %v2854, 0.16666667
      %v2886 = vmul.f32 %v2855, 0.16666667
      %v2887 = vmul.f32 %v2856, 0.16666667
      %v2888 = vmul.f32 %v2857, 0.16666667
      %v2889 = vmul.f32 %v2858, 0.16666667
      %v2890 = vmul.f32 %v2859, 0.16666667
      %v2891 = vmul.f32 %v2860, 0.16666667
      %v2892 = vmul.f32 %v2861, 0.16666667
      %v2893 = vmul.f32 %v2862, 0.16666667
      %v2894 = vmul.f32 %v2863, 0.16666667
      %v2895 = vmul.f32 %v2864, 0.16666667
      %v2896 = vmul.f32 %v2865, 0.16666667
      %v2897 = vmul.f32 %v2866, 0.16666667
      %v2898 = vld [vmem:[%s2] sm:$0xff]
      %v2899 = vld [vmem:[%s2 + $0x8] sm:$0xff]
      %v2900 = vld [vmem:[%s2 + $0x10] sm:$0xff]
      %v2901 = vld [vmem:[%s2 + $0x18] sm:$0xff]
      %v2902 = vld [vmem:[%s2 + $0x20] sm:$0xff]
      %v2903 = vld [vmem:[%s2 + $0x28] sm:$0xff]
      %v2904 = vld [vmem:[%s2 + $0x30] sm:$0xff]
      %v2905 = vld [vmem:[%s2 + $0x38] sm:$0xff]
      %v2906 = vld [vmem:[%s2 + $0x40] sm:$0xff]
      %v2907 = vld [vmem:[%s2 + $0x48] sm:$0xff]
      %v2908 = vld [vmem:[%s2 + $0x50] sm:$0xff]
      %v2909 = vld [vmem:[%s2 + $0x58] sm:$0xff]
      %v2910 = vld [vmem:[%s2 + $0x60] sm:$0xff]
      %v2911 = vld [vmem:[%s2 + $0x68] sm:$0xff]
      %v2912 = vld [vmem:[%s2 + $0x70] sm:$0xff]
      %v2913 = vld [vmem:[%s2 + $0x78] sm:$0xff]
      %v2914 = vld [vmem:[%s2 + $0x80] sm:$0xff]
      %v2915 = vld [vmem:[%s2 + $0x88] sm:$0xff]
      %v2916 = vld [vmem:[%s2 + $0x90] sm:$0xff]
      %v2917 = vld [vmem:[%s2 + $0x98] sm:$0xff]
      %v2918 = vld [vmem:[%s2 + $0xa0] sm:$0xff]
      %v2919 = vld [vmem:[%s2 + $0xa8] sm:$0xff]
      %v2920 = vld [vmem:[%s2 + $0xb0] sm:$0xff]
      %v2921 = vld [vmem:[%s2 + $0xb8] sm:$0xff]
      %v2922 = vld [vmem:[%s2 + $0xc0] sm:$0xff]
      %v2923 = vld [vmem:[%s2 + $0xc8] sm:$0xff]
      %v2924 = vld [vmem:[%s2 + $0xd0] sm:$0xff]
      %v2925 = vld [vmem:[%s2 + $0xd8] sm:$0xff]
      %v2926 = vld [vmem:[%s2 + $0xe0] sm:$0xff]
      %v2927 = vld [vmem:[%s2 + $0xe8] sm:$0xff]
      %2929 = vset.pattern.permute.xlu0 0
      %2930 = vperm.xlu0 %2929, %v2898
      %v2931 = vpop.permute.xlu0 %2930
      %2933 = vset.pattern.permute.xlu0 0
      %2934 = vperm.xlu0 %2933, %v2899
      %v2935 = vpop.permute.xlu0 %2934
      %2937 = vset.pattern.permute.xlu0 0
      %2938 = vperm.xlu0 %2937, %v2900
      %v2939 = vpop.permute.xlu0 %2938
      %2941 = vset.pattern.permute.xlu0 0
      %2942 = vperm.xlu0 %2941, %v2901
      %v2943 = vpop.permute.xlu0 %2942
      %2945 = vset.pattern.permute.xlu0 0
      %2946 = vperm.xlu0 %2945, %v2902
      %v2947 = vpop.permute.xlu0 %2946
      %2949 = vset.pattern.permute.xlu0 0
      %2950 = vperm.xlu0 %2949, %v2903
      %v2951 = vpop.permute.xlu0 %2950
      %2953 = vset.pattern.permute.xlu0 0
      %2954 = vperm.xlu0 %2953, %v2904
      %v2955 = vpop.permute.xlu0 %2954
      %2957 = vset.pattern.permute.xlu0 0
      %2958 = vperm.xlu0 %2957, %v2905
      %v2959 = vpop.permute.xlu0 %2958
      %2961 = vset.pattern.permute.xlu0 0
      %2962 = vperm.xlu0 %2961, %v2906
      %v2963 = vpop.permute.xlu0 %2962
      %2965 = vset.pattern.permute.xlu0 0
      %2966 = vperm.xlu0 %2965, %v2907
      %v2967 = vpop.permute.xlu0 %2966
      %2969 = vset.pattern.permute.xlu0 0
      %2970 = vperm.xlu0 %2969, %v2908
      %v2971 = vpop.permute.xlu0 %2970
      %2973 = vset.pattern.permute.xlu0 0
      %2974 = vperm.xlu0 %2973, %v2909
      %v2975 = vpop.permute.xlu0 %2974
      %2977 = vset.pattern.permute.xlu0 0
      %2978 = vperm.xlu0 %2977, %v2910
      %v2979 = vpop.permute.xlu0 %2978
      %2981 = vset.pattern.permute.xlu0 0
      %2982 = vperm.xlu0 %2981, %v2911
      %v2983 = vpop.permute.xlu0 %2982
      %2985 = vset.pattern.permute.xlu0 0
      %2986 = vperm.xlu0 %2985, %v2912
      %v2987 = vpop.permute.xlu0 %2986
      %2989 = vset.pattern.permute.xlu0 0
      %2990 = vperm.xlu0 %2989, %v2913
      %v2991 = vpop.permute.xlu0 %2990
      %2993 = vset.pattern.permute.xlu0 0
      %2994 = vperm.xlu0 %2993, %v2914
      %v2995 = vpop.permute.xlu0 %2994
      %2997 = vset.pattern.permute.xlu0 0
      %2998 = vperm.xlu0 %2997, %v2915
      %v2999 = vpop.permute.xlu0 %2998
      %3001 = vset.pattern.permute.xlu0 0
      %3002 = vperm.xlu0 %3001, %v2916
      %v3003 = vpop.permute.xlu0 %3002
      %3005 = vset.pattern.permute.xlu0 0
      %3006 = vperm.xlu0 %3005, %v2917
      %v3007 = vpop.permute.xlu0 %3006
      %3009 = vset.pattern.permute.xlu0 0
      %3010 = vperm.xlu0 %3009, %v2918
      %v3011 = vpop.permute.xlu0 %3010
      %3013 = vset.pattern.permute.xlu0 0
      %3014 = vperm.xlu0 %3013, %v2919
      %v3015 = vpop.permute.xlu0 %3014
      %3017 = vset.pattern.permute.xlu0 0
      %3018 = vperm.xlu0 %3017, %v2920
      %v3019 = vpop.permute.xlu0 %3018
      %3021 = vset.pattern.permute.xlu0 0
      %3022 = vperm.xlu0 %3021, %v2921
      %v3023 = vpop.permute.xlu0 %3022
      %3025 = vset.pattern.permute.xlu0 0
      %3026 = vperm.xlu0 %3025, %v2922
      %v3027 = vpop.permute.xlu0 %3026
      %3029 = vset.pattern.permute.xlu0 0
      %3030 = vperm.xlu0 %3029, %v2923
      %v3031 = vpop.permute.xlu0 %3030
      %3033 = vset.pattern.permute.xlu0 0
      %3034 = vperm.xlu0 %3033, %v2924
      %v3035 = vpop.permute.xlu0 %3034
      %3037 = vset.pattern.permute.xlu0 0
      %3038 = vperm.xlu0 %3037, %v2925
      %v3039 = vpop.permute.xlu0 %3038
      %3041 = vset.pattern.permute.xlu0 0
      %3042 = vperm.xlu0 %3041, %v2926
      %v3043 = vpop.permute.xlu0 %3042
      %3045 = vset.pattern.permute.xlu0 0
      %3046 = vperm.xlu0 %3045, %v2927
      %v3047 = vpop.permute.xlu0 %3046
      %v3048 = vrot.slane %v2931, 2
      %v3049 = vrot.slane %v2935, 2
      %v3050 = vsel %vm1699, %v3048, %v3049
      %v3051 = vrot.slane %v2939, 2
      %v3052 = vsel %vm1699, %v3049, %v3051
      %v3053 = vrot.slane %v2943, 2
      %v3054 = vsel %vm1699, %v3051, %v3053
      %v3055 = vrot.slane %v2947, 2
      %v3056 = vsel %vm1699, %v3053, %v3055
      %v3057 = vrot.slane %v2951, 2
      %v3058 = vsel %vm1699, %v3055, %v3057
      %v3059 = vrot.slane %v2955, 2
      %v3060 = vsel %vm1699, %v3057, %v3059
      %v3061 = vrot.slane %v2959, 2
      %v3062 = vsel %vm1699, %v3059, %v3061
      %v3063 = vrot.slane %v2963, 2
      %v3064 = vsel %vm1699, %v3061, %v3063
      %v3065 = vrot.slane %v2967, 2
      %v3066 = vsel %vm1699, %v3063, %v3065
      %v3067 = vrot.slane %v2971, 2
      %v3068 = vsel %vm1699, %v3065, %v3067
      %v3069 = vrot.slane %v2975, 2
      %v3070 = vsel %vm1699, %v3067, %v3069
      %v3071 = vrot.slane %v2979, 2
      %v3072 = vsel %vm1699, %v3069, %v3071
      %v3073 = vrot.slane %v2983, 2
      %v3074 = vsel %vm1699, %v3071, %v3073
      %v3075 = vrot.slane %v2987, 2
      %v3076 = vsel %vm1699, %v3073, %v3075
      %v3077 = vrot.slane %v2991, 2
      %v3078 = vsel %vm1699, %v3075, %v3077
      %v3079 = vrot.slane %v2995, 2
      %v3080 = vsel %vm1699, %v3077, %v3079
      %v3081 = vrot.slane %v2999, 2
      %v3082 = vsel %vm1699, %v3079, %v3081
      %v3083 = vrot.slane %v3003, 2
      %v3084 = vsel %vm1699, %v3081, %v3083
      %v3085 = vrot.slane %v3007, 2
      %v3086 = vsel %vm1699, %v3083, %v3085
      %v3087 = vrot.slane %v3011, 2
      %v3088 = vsel %vm1699, %v3085, %v3087
      %v3089 = vrot.slane %v3015, 2
      %v3090 = vsel %vm1699, %v3087, %v3089
      %v3091 = vrot.slane %v3019, 2
      %v3092 = vsel %vm1699, %v3089, %v3091
      %v3093 = vrot.slane %v3023, 2
      %v3094 = vsel %vm1699, %v3091, %v3093
      %v3095 = vrot.slane %v3027, 2
      %v3096 = vsel %vm1699, %v3093, %v3095
      %v3097 = vrot.slane %v3031, 2
      %v3098 = vsel %vm1699, %v3095, %v3097
      %v3099 = vrot.slane %v3035, 2
      %v3100 = vsel %vm1699, %v3097, %v3099
      %v3101 = vrot.slane %v3039, 2
      %v3102 = vsel %vm1699, %v3099, %v3101
      %v3103 = vrot.slane %v3043, 2
      %v3104 = vsel %vm1699, %v3101, %v3103
      %v3105 = vrot.slane %v3047, 2
      %v3106 = vsel %vm1699, %v3103, %v3105
      %v3138 = vmul.f32 %v2867, %v3048
      %v3139 = vmul.f32 %v2868, %v3050
      %v3140 = vmul.f32 %v2869, %v3052
      %v3141 = vmul.f32 %v2870, %v3054
      %v3142 = vmul.f32 %v2871, %v3056
      %v3143 = vmul.f32 %v2872, %v3058
      %v3144 = vmul.f32 %v2873, %v3060
      %v3145 = vmul.f32 %v2874, %v3062
      %v3146 = vmul.f32 %v2875, %v3064
      %v3147 = vmul.f32 %v2876, %v3066
      %v3148 = vmul.f32 %v2877, %v3068
      %v3149 = vmul.f32 %v2878, %v3070
      %v3150 = vmul.f32 %v2879, %v3072
      %v3151 = vmul.f32 %v2880, %v3074
      %v3152 = vmul.f32 %v2881, %v3076
      %v3153 = vmul.f32 %v2882, %v3078
      %v3154 = vmul.f32 %v2883, %v3080
      %v3155 = vmul.f32 %v2884, %v3082
      %v3156 = vmul.f32 %v2885, %v3084
      %v3157 = vmul.f32 %v2886, %v3086
      %v3158 = vmul.f32 %v2887, %v3088
      %v3159 = vmul.f32 %v2888, %v3090
      %v3160 = vmul.f32 %v2889, %v3092
      %v3161 = vmul.f32 %v2890, %v3094
      %v3162 = vmul.f32 %v2891, %v3096
      %v3163 = vmul.f32 %v2892, %v3098
      %v3164 = vmul.f32 %v2893, %v3100
      %v3165 = vmul.f32 %v2894, %v3102
      %v3166 = vmul.f32 %v2895, %v3104
      %v3167 = vmul.f32 %v2896, %v3106
      %v3168 = vmul.f32 %v2897, %v3105
      %vm3169 = vcmask 130054
      %3170 = vst.msk [vmem:[#allocation3 + $0x1a] sm:$0xc0] %vm3169, %v3138
      %3171 = vst.msk [vmem:[#allocation3 + $0x22] sm:$0xff] %vm402, %v3139
      %3172 = vst.msk [vmem:[#allocation3 + $0x2a] sm:$0xff] %vm402, %v3140
      %3173 = vst.msk [vmem:[#allocation3 + $0x32] sm:$0xff] %vm402, %v3141
      %3174 = vst.msk [vmem:[#allocation3 + $0x3a] sm:$0xff] %vm402, %v3142
      %3175 = vst.msk [vmem:[#allocation3 + $0x42] sm:$0xff] %vm402, %v3143
      %3176 = vst.msk [vmem:[#allocation3 + $0x4a] sm:$0xff] %vm402, %v3144
      %3177 = vst.msk [vmem:[#allocation3 + $0x52] sm:$0xff] %vm402, %v3145
      %3178 = vst.msk [vmem:[#allocation3 + $0x5a] sm:$0xff] %vm402, %v3146
      %3179 = vst.msk [vmem:[#allocation3 + $0x62] sm:$0xff] %vm402, %v3147
      %3180 = vst.msk [vmem:[#allocation3 + $0x6a] sm:$0xff] %vm402, %v3148
      %3181 = vst.msk [vmem:[#allocation3 + $0x72] sm:$0xff] %vm402, %v3149
      %3182 = vst.msk [vmem:[#allocation3 + $0x7a] sm:$0xff] %vm402, %v3150
      %3183 = vst.msk [vmem:[#allocation3 + $0x82] sm:$0xff] %vm402, %v3151
      %3184 = vst.msk [vmem:[#allocation3 + $0x8a] sm:$0xff] %vm402, %v3152
      %3185 = vst.msk [vmem:[#allocation3 + $0x92] sm:$0xff] %vm402, %v3153
      %3186 = vst.msk [vmem:[#allocation3 + $0x9a] sm:$0xff] %vm402, %v3154
      %3187 = vst.msk [vmem:[#allocation3 + $0xa2] sm:$0xff] %vm402, %v3155
      %3188 = vst.msk [vmem:[#allocation3 + $0xaa] sm:$0xff] %vm402, %v3156
      %3189 = vst.msk [vmem:[#allocation3 + $0xb2] sm:$0xff] %vm402, %v3157
      %3190 = vst.msk [vmem:[#allocation3 + $0xba] sm:$0xff] %vm402, %v3158
      %3191 = vst.msk [vmem:[#allocation3 + $0xc2] sm:$0xff] %vm402, %v3159
      %3192 = vst.msk [vmem:[#allocation3 + $0xca] sm:$0xff] %vm402, %v3160
      %3193 = vst.msk [vmem:[#allocation3 + $0xd2] sm:$0xff] %vm402, %v3161
      %3194 = vst.msk [vmem:[#allocation3 + $0xda] sm:$0xff] %vm402, %v3162
      %3195 = vst.msk [vmem:[#allocation3 + $0xe2] sm:$0xff] %vm402, %v3163
      %3196 = vst.msk [vmem:[#allocation3 + $0xea] sm:$0xff] %vm402, %v3164
      %3197 = vst.msk [vmem:[#allocation3 + $0xf2] sm:$0xff] %vm402, %v3165
      %3198 = vst.msk [vmem:[#allocation3 + $0xfa] sm:$0xff] %vm402, %v3166
      %3199 = vst.msk [vmem:[#allocation3 + $0x102] sm:$0xff] %vm402, %v3167
      %vm3200 = vcmask 128000
      %3201 = vst.msk [vmem:[#allocation3 + $0x10a] sm:$0x3f] %vm3200, %v3168
      %v3202 = vld [vmem:[#allocation3] sm:$0xff]
      %v3203 = vld [vmem:[#allocation3 + $0x8] sm:$0xff]
      %v3204 = vld [vmem:[#allocation3 + $0x10] sm:$0xff]
      %v3205 = vld [vmem:[#allocation3 + $0x18] sm:$0xff]
      %v3206 = vld [vmem:[#allocation3 + $0x20] sm:$0xff]
      %v3207 = vld [vmem:[#allocation3 + $0x28] sm:$0xff]
      %v3208 = vld [vmem:[#allocation3 + $0x30] sm:$0xff]
      %v3209 = vld [vmem:[#allocation3 + $0x38] sm:$0xff]
      %v3210 = vld [vmem:[#allocation3 + $0x40] sm:$0xff]
      %v3211 = vld [vmem:[#allocation3 + $0x48] sm:$0xff]
      %v3212 = vld [vmem:[#allocation3 + $0x50] sm:$0xff]
      %v3213 = vld [vmem:[#allocation3 + $0x58] sm:$0xff]
      %v3214 = vld [vmem:[#allocation3 + $0x60] sm:$0xff]
      %v3215 = vld [vmem:[#allocation3 + $0x68] sm:$0xff]
      %v3216 = vld [vmem:[#allocation3 + $0x70] sm:$0xff]
      %v3217 = vld [vmem:[#allocation3 + $0x78] sm:$0xff]
      %v3218 = vld [vmem:[#allocation3 + $0x80] sm:$0xff]
      %v3219 = vld [vmem:[#allocation3 + $0x88] sm:$0xff]
      %v3220 = vld [vmem:[#allocation3 + $0x90] sm:$0xff]
      %v3221 = vld [vmem:[#allocation3 + $0x98] sm:$0xff]
      %v3222 = vld [vmem:[#allocation3 + $0xa0] sm:$0xff]
      %v3223 = vld [vmem:[#allocation3 + $0xa8] sm:$0xff]
      %v3224 = vld [vmem:[#allocation3 + $0xb0] sm:$0xff]
      %v3225 = vld [vmem:[#allocation3 + $0xb8] sm:$0xff]
      %v3226 = vld [vmem:[#allocation3 + $0xc0] sm:$0xff]
      %v3227 = vld [vmem:[#allocation3 + $0xc8] sm:$0xff]
      %v3228 = vld [vmem:[#allocation3 + $0xd0] sm:$0xff]
      %v3229 = vld [vmem:[#allocation3 + $0xd8] sm:$0xff]
      %v3230 = vld [vmem:[#allocation3 + $0xe0] sm:$0xff]
      %v3231 = vld [vmem:[#allocation3 + $0xe8] sm:$0xff]
      %v3232 = vld [vmem:[#allocation3 + $0xf0] sm:$0xff]
      %v3233 = vld [vmem:[#allocation3 + $0xf8] sm:$0xff]
      %v3234 = vld [vmem:[#allocation3 + $0x100] sm:$0xff]
      %v3235 = vld [vmem:[#allocation3 + $0x108] sm:$0xff]
      %v3236 = vld [vmem:[#allocation3 + $0x110] sm:$0xff]
      %v3237 = vld [vmem:[#allocation3 + $0x118] sm:$0xff]
      %v3238 = vld [vmem:[#allocation3 + $0x120] sm:$0xff]
      %v3239 = vld [vmem:[#allocation3 + $0x128] sm:$0xff]
      %v3240 = vld [vmem:[%s7] sm:$0xff]
      %v3241 = vld [vmem:[%s7 + $0x8] sm:$0xff]
      %v3242 = vld [vmem:[%s7 + $0x10] sm:$0xff]
      %v3243 = vld [vmem:[%s7 + $0x18] sm:$0xff]
      %v3244 = vld [vmem:[%s7 + $0x20] sm:$0xff]
      %v3245 = vld [vmem:[%s7 + $0x28] sm:$0xff]
      %v3246 = vld [vmem:[%s7 + $0x30] sm:$0xff]
      %v3247 = vld [vmem:[%s7 + $0x38] sm:$0xff]
      %v3248 = vld [vmem:[%s7 + $0x40] sm:$0xff]
      %v3249 = vld [vmem:[%s7 + $0x48] sm:$0xff]
      %v3251 = vsel %vm402, %v3202, 0
      %v3254 = vsel %vm402, %v3203, 0
      %v3257 = vsel %vm402, %v3204, 0
      %v3260 = vsel %vm402, %v3205, 0
      %v3263 = vsel %vm402, %v3206, 0
      %v3266 = vsel %vm402, %v3207, 0
      %v3269 = vsel %vm402, %v3208, 0
      %v3272 = vsel %vm402, %v3209, 0
      %v3275 = vsel %vm402, %v3210, 0
      %v3278 = vsel %vm402, %v3211, 0
      %v3281 = vsel %vm402, %v3212, 0
      %v3284 = vsel %vm402, %v3213, 0
      %v3287 = vsel %vm402, %v3214, 0
      %v3290 = vsel %vm402, %v3215, 0
      %v3293 = vsel %vm402, %v3216, 0
      %v3296 = vsel %vm402, %v3217, 0
      %v3299 = vsel %vm402, %v3218, 0
      %v3302 = vsel %vm402, %v3219, 0
      %v3305 = vsel %vm402, %v3220, 0
      %v3308 = vsel %vm402, %v3221, 0
      %v3311 = vsel %vm402, %v3222, 0
      %v3314 = vsel %vm402, %v3223, 0
      %v3317 = vsel %vm402, %v3224, 0
      %v3320 = vsel %vm402, %v3225, 0
      %v3323 = vsel %vm402, %v3226, 0
      %v3326 = vsel %vm402, %v3227, 0
      %v3329 = vsel %vm402, %v3228, 0
      %v3332 = vsel %vm402, %v3229, 0
      %v3335 = vsel %vm402, %v3230, 0
      %v3338 = vsel %vm402, %v3231, 0
      %v3341 = vsel %vm402, %v3232, 0
      %v3344 = vsel %vm402, %v3233, 0
      %v3347 = vsel %vm402, %v3234, 0
      %v3350 = vsel %vm402, %v3235, 0
      %v3353 = vsel %vm402, %v3236, 0
      %v3356 = vsel %vm402, %v3237, 0
      %v3359 = vsel %vm402, %v3238, 0
      %v3362 = vsel %vm402, %v3239, 0
      %3364 = vmatprep.subr.mxu0 %v3241
      %3365 = vmatpush1.msra.mxu0 %v3240
      %3366 = vmatprep.subr.mxu0 %v3246
      %3367 = vmatpush1.msra.mxu0 %v3245
      %3368 = vmatprep.subr.mxu0 0.0
      %3369 = vmatpush1.msra.mxu0 0.0
      %3370 = vmatprep.subr.mxu0 0.0
      %3371 = vmatpush1.msra.mxu0 0.0
      %3372 = vmatprep.subr.mxu0 0.0
      %3373 = vmatpush1.msra.mxu0 0.0
      %3374 = vmatprep.subr.mxu0 0.0
      %3375 = vmatpush1.msra.mxu0 0.0
      %3376 = vmatprep.subr.mxu0 0.0
      %3377 = vmatpush1.msra.mxu0 0.0
      %3378 = vmatprep.subr.mxu0 0.0
      %3379 = vmatpush1.msra.mxu0 0.0
      %3380 = vmatprep.subr.mxu0 0.0
      %3381 = vmatpush1.msra.mxu0 0.0
      %3382 = vmatprep.subr.mxu0 0.0
      %3383 = vmatpush1.msra.mxu0 0.0
      %3384 = vmatprep.subr.mxu0 0.0
      %3385 = vmatpush1.msra.mxu0 0.0
      %3386 = vmatprep.subr.mxu0 0.0
      %3387 = vmatpush1.msra.mxu0 0.0
      %3388 = vmatprep.subr.mxu0 0.0
      %3389 = vmatpush1.msra.mxu0 0.0
      %3390 = vmatprep.subr.mxu0 0.0
      %3391 = vmatpush1.msra.mxu0 0.0
      %3392 = vmatprep.subr.mxu0 0.0
      %3393 = vmatpush1.msra.mxu0 0.0
      %3394 = vmatprep.subr.mxu0 0.0
      %3395 = vmatpush1.msra.mxu0 0.0
      %3396 = vmatprep.subr.mxu0 0.0
      %3397 = vmatpush1.msra.mxu0 0.0
      %3398 = vmatprep.subr.mxu0 0.0
      %3399 = vmatpush1.msra.mxu0 0.0
      %3400 = vmatprep.subr.mxu0 0.0
      %3401 = vmatpush1.msra.mxu0 0.0
      %3402 = vmatprep.subr.mxu0 0.0
      %3403 = vmatpush1.msra.mxu0 0.0
      %3404 = vmatprep.subr.mxu0 0.0
      %3405 = vmatpush1.msra.mxu0 0.0
      %3406 = vmatprep.subr.mxu0 0.0
      %3407 = vmatpush1.msra.mxu0 0.0
      %3408 = vmatprep.subr.mxu0 0.0
      %3409 = vmatpush1.msra.mxu0 0.0
      %3410 = vmatprep.subr.mxu0 0.0
      %3411 = vmatpush1.msra.mxu0 0.0
      %3412 = vmatprep.subr.mxu0 0.0
      %3413 = vmatpush1.msra.mxu0 0.0
      %3414 = vmatprep.subr.mxu0 0.0
      %3415 = vmatpush1.msra.mxu0 0.0
      %3416 = vmatprep.subr.mxu0 0.0
      %3417 = vmatpush1.msra.mxu0 0.0
      %3418 = vmatprep.subr.mxu0 0.0
      %3419 = vmatpush1.msra.mxu0 0.0
      %3420 = vmatprep.subr.mxu0 0.0
      %3421 = vmatpush1.msra.mxu0 0.0
      %3422 = vmatprep.subr.mxu0 0.0
      %3423 = vmatpush1.msra.mxu0 0.0
      %3424 = vmatprep.subr.mxu0 0.0
      %3425 = vmatpush1.msra.mxu0 0.0
      %3426 = vmatprep.subr.mxu0 0.0
      %3427 = vmatpush1.msra.mxu0 0.0
      %3428 = vmatprep.mubr.f32.mxu0 0.0
      %3429 = vmatmul.mubr.f32.gmra.mrb[0].mxu0 %v3251
      %v3430 = vpop.f32.mrb[0].mxu0
      %v3431 = vadd.f32 0.0, %v3430
      %v3432 = vpop.f32.mrb[0].mxu0
      %v3433 = vadd.f32 0.0, %v3432
      %3434 = vmatprep.mubr.f32.mxu0 0.0
      %3435 = vmatmul.mubr.f32.gmra.mrb[0].mxu0 %v3254
      %v3436 = vpop.f32.mrb[0].mxu0
      %v3437 = vadd.f32 0.0, %v3436
      %v3438 = vpop.f32.mrb[0].mxu0
      %v3439 = vadd.f32 0.0, %v3438
      %3440 = vmatprep.mubr.f32.mxu0 0.0
      %3441 = vmatmul.mubr.f32.gmra.mrb[0].mxu0 %v3257
      %v3442 = vpop.f32.mrb[0].mxu0
      %v3443 = vadd.f32 0.0, %v3442
      %v3444 = vpop.f32.mrb[0].mxu0
      %v3445 = vadd.f32 0.0, %v3444
      %3446 = vmatprep.mubr.f32.mxu0 0.0
      %3447 = vmatmul.mubr.f32.gmra.mrb[0].mxu0 %v3260
      %v3448 = vpop.f32.mrb[0].mxu0
      %v3449 = vadd.f32 0.0, %v3448
      %v3450 = vpop.f32.mrb[0].mxu0
      %v3451 = vadd.f32 0.0, %v3450
      %3452 = vmatprep.mubr.f32.mxu0 0.0
      %3453 = vmatmul.mubr.f32.gmra.mrb[0].mxu0 %v3263
      %v3454 = vpop.f32.mrb[0].mxu0
      %v3455 = vadd.f32 0.0, %v3454
      %v3456 = vpop.f32.mrb[0].mxu0
      %v3457 = vadd.f32 0.0, %v3456
      %3458 = vmatprep.mubr.f32.mxu0 0.0
      %3459 = vmatmul.mubr.f32.gmra.mrb[0].mxu0 %v3266
      %v3460 = vpop.f32.mrb[0].mxu0
      %v3461 = vadd.f32 0.0, %v3460
      %v3462 = vpop.f32.mrb[0].mxu0
      %v3463 = vadd.f32 0.0, %v3462
      %3464 = vmatprep.mubr.f32.mxu0 0.0
      %3465 = vmatmul.mubr.f32.gmra.mrb[0].mxu0 %v3269
      %v3466 = vpop.f32.mrb[0].mxu0
      %v3467 = vadd.f32 0.0, %v3466
      %v3468 = vpop.f32.mrb[0].mxu0
      %v3469 = vadd.f32 0.0, %v3468
      %3470 = vmatprep.mubr.f32.mxu0 0.0
      %3471 = vmatmul.mubr.f32.gmra.mrb[0].mxu0 %v3272
      %v3472 = vpop.f32.mrb[0].mxu0
      %v3473 = vadd.f32 0.0, %v3472
      %v3474 = vpop.f32.mrb[0].mxu0
      %v3475 = vadd.f32 0.0, %v3474
      %3476 = vmatprep.mubr.f32.mxu0 0.0
      %3477 = vmatmul.mubr.f32.gmra.mrb[0].mxu0 %v3275
      %v3478 = vpop.f32.mrb[0].mxu0
      %v3479 = vadd.f32 0.0, %v3478
      %v3480 = vpop.f32.mrb[0].mxu0
      %v3481 = vadd.f32 0.0, %v3480
      %3482 = vmatprep.mubr.f32.mxu0 0.0
      %3483 = vmatmul.mubr.f32.gmra.mrb[0].mxu0 %v3278
      %v3484 = vpop.f32.mrb[0].mxu0
      %v3485 = vadd.f32 0.0, %v3484
      %v3486 = vpop.f32.mrb[0].mxu0
      %v3487 = vadd.f32 0.0, %v3486
      %3488 = vmatprep.mubr.f32.mxu0 0.0
      %3489 = vmatmul.mubr.f32.gmra.mrb[0].mxu0 %v3281
      %v3490 = vpop.f32.mrb[0].mxu0
      %v3491 = vadd.f32 0.0, %v3490
      %v3492 = vpop.f32.mrb[0].mxu0
      %v3493 = vadd.f32 0.0, %v3492
      %3494 = vmatprep.mubr.f32.mxu0 0.0
      %3495 = vmatmul.mubr.f32.gmra.mrb[0].mxu0 %v3284
      %v3496 = vpop.f32.mrb[0].mxu0
      %v3497 = vadd.f32 0.0, %v3496
      %v3498 = vpop.f32.mrb[0].mxu0
      %v3499 = vadd.f32 0.0, %v3498
      %3500 = vmatprep.mubr.f32.mxu0 0.0
      %3501 = vmatmul.mubr.f32.gmra.mrb[0].mxu0 %v3287
      %v3502 = vpop.f32.mrb[0].mxu0
      %v3503 = vadd.f32 0.0, %v3502
      %v3504 = vpop.f32.mrb[0].mxu0
      %v3505 = vadd.f32 0.0, %v3504
      %3506 = vmatprep.mubr.f32.mxu0 0.0
      %3507 = vmatmul.mubr.f32.gmra.mrb[0].mxu0 %v3290
      %v3508 = vpop.f32.mrb[0].mxu0
      %v3509 = vadd.f32 0.0, %v3508
      %v3510 = vpop.f32.mrb[0].mxu0
      %v3511 = vadd.f32 0.0, %v3510
      %3512 = vmatprep.mubr.f32.mxu0 0.0
      %3513 = vmatmul.mubr.f32.gmra.mrb[0].mxu0 %v3293
      %v3514 = vpop.f32.mrb[0].mxu0
      %v3515 = vadd.f32 0.0, %v3514
      %v3516 = vpop.f32.mrb[0].mxu0
      %v3517 = vadd.f32 0.0, %v3516
      %3518 = vmatprep.mubr.f32.mxu0 0.0
      %3519 = vmatmul.mubr.f32.gmra.mrb[0].mxu0 %v3296
      %v3520 = vpop.f32.mrb[0].mxu0
      %v3521 = vadd.f32 0.0, %v3520
      %v3522 = vpop.f32.mrb[0].mxu0
      %v3523 = vadd.f32 0.0, %v3522
      %3524 = vmatprep.mubr.f32.mxu0 0.0
      %3525 = vmatmul.mubr.f32.gmra.mrb[0].mxu0 %v3299
      %v3526 = vpop.f32.mrb[0].mxu0
      %v3527 = vadd.f32 0.0, %v3526
      %v3528 = vpop.f32.mrb[0].mxu0
      %v3529 = vadd.f32 0.0, %v3528
      %3530 = vmatprep.mubr.f32.mxu0 0.0
      %3531 = vmatmul.mubr.f32.gmra.mrb[0].mxu0 %v3302
      %v3532 = vpop.f32.mrb[0].mxu0
      %v3533 = vadd.f32 0.0, %v3532
      %v3534 = vpop.f32.mrb[0].mxu0
      %v3535 = vadd.f32 0.0, %v3534
      %3536 = vmatprep.mubr.f32.mxu0 0.0
      %3537 = vmatmul.mubr.f32.gmra.mrb[0].mxu0 %v3305
      %v3538 = vpop.f32.mrb[0].mxu0
      %v3539 = vadd.f32 0.0, %v3538
      %v3540 = vpop.f32.mrb[0].mxu0
      %v3541 = vadd.f32 0.0, %v3540
      %3542 = vmatprep.mubr.f32.mxu0 0.0
      %3543 = vmatmul.mubr.f32.gmra.mrb[0].mxu0 %v3308
      %v3544 = vpop.f32.mrb[0].mxu0
      %v3545 = vadd.f32 0.0, %v3544
      %v3546 = vpop.f32.mrb[0].mxu0
      %v3547 = vadd.f32 0.0, %v3546
      %3548 = vmatprep.mubr.f32.mxu0 0.0
      %3549 = vmatmul.mubr.f32.gmra.mrb[0].mxu0 %v3311
      %v3550 = vpop.f32.mrb[0].mxu0
      %v3551 = vadd.f32 0.0, %v3550
      %v3552 = vpop.f32.mrb[0].mxu0
      %v3553 = vadd.f32 0.0, %v3552
      %3554 = vmatprep.mubr.f32.mxu0 0.0
      %3555 = vmatmul.mubr.f32.gmra.mrb[0].mxu0 %v3314
      %v3556 = vpop.f32.mrb[0].mxu0
      %v3557 = vadd.f32 0.0, %v3556
      %v3558 = vpop.f32.mrb[0].mxu0
      %v3559 = vadd.f32 0.0, %v3558
      %3560 = vmatprep.mubr.f32.mxu0 0.0
      %3561 = vmatmul.mubr.f32.gmra.mrb[0].mxu0 %v3317
      %v3562 = vpop.f32.mrb[0].mxu0
      %v3563 = vadd.f32 0.0, %v3562
      %v3564 = vpop.f32.mrb[0].mxu0
      %v3565 = vadd.f32 0.0, %v3564
      %3566 = vmatprep.mubr.f32.mxu0 0.0
      %3567 = vmatmul.mubr.f32.gmra.mrb[0].mxu0 %v3320
      %v3568 = vpop.f32.mrb[0].mxu0
      %v3569 = vadd.f32 0.0, %v3568
      %v3570 = vpop.f32.mrb[0].mxu0
      %v3571 = vadd.f32 0.0, %v3570
      %3572 = vmatprep.mubr.f32.mxu0 0.0
      %3573 = vmatmul.mubr.f32.gmra.mrb[0].mxu0 %v3323
      %v3574 = vpop.f32.mrb[0].mxu0
      %v3575 = vadd.f32 0.0, %v3574
      %v3576 = vpop.f32.mrb[0].mxu0
      %v3577 = vadd.f32 0.0, %v3576
      %3578 = vmatprep.mubr.f32.mxu0 0.0
      %3579 = vmatmul.mubr.f32.gmra.mrb[0].mxu0 %v3326
      %v3580 = vpop.f32.mrb[0].mxu0
      %v3581 = vadd.f32 0.0, %v3580
      %v3582 = vpop.f32.mrb[0].mxu0
      %v3583 = vadd.f32 0.0, %v3582
      %3584 = vmatprep.mubr.f32.mxu0 0.0
      %3585 = vmatmul.mubr.f32.gmra.mrb[0].mxu0 %v3329
      %v3586 = vpop.f32.mrb[0].mxu0
      %v3587 = vadd.f32 0.0, %v3586
      %v3588 = vpop.f32.mrb[0].mxu0
      %v3589 = vadd.f32 0.0, %v3588
      %3590 = vmatprep.mubr.f32.mxu0 0.0
      %3591 = vmatmul.mubr.f32.gmra.mrb[0].mxu0 %v3332
      %v3592 = vpop.f32.mrb[0].mxu0
      %v3593 = vadd.f32 0.0, %v3592
      %v3594 = vpop.f32.mrb[0].mxu0
      %v3595 = vadd.f32 0.0, %v3594
      %3596 = vmatprep.mubr.f32.mxu0 0.0
      %3597 = vmatmul.mubr.f32.gmra.mrb[0].mxu0 %v3335
      %v3598 = vpop.f32.mrb[0].mxu0
      %v3599 = vadd.f32 0.0, %v3598
      %v3600 = vpop.f32.mrb[0].mxu0
      %v3601 = vadd.f32 0.0, %v3600
      %3602 = vmatprep.mubr.f32.mxu0 0.0
      %3603 = vmatmul.mubr.f32.gmra.mrb[0].mxu0 %v3338
      %v3604 = vpop.f32.mrb[0].mxu0
      %v3605 = vadd.f32 0.0, %v3604
      %v3606 = vpop.f32.mrb[0].mxu0
      %v3607 = vadd.f32 0.0, %v3606
      %3608 = vmatprep.mubr.f32.mxu0 0.0
      %3609 = vmatmul.mubr.f32.gmra.mrb[0].mxu0 %v3341
      %v3610 = vpop.f32.mrb[0].mxu0
      %v3611 = vadd.f32 0.0, %v3610
      %v3612 = vpop.f32.mrb[0].mxu0
      %v3613 = vadd.f32 0.0, %v3612
      %3614 = vmatprep.mubr.f32.mxu0 0.0
      %3615 = vmatmul.mubr.f32.gmra.mrb[0].mxu0 %v3344
      %v3616 = vpop.f32.mrb[0].mxu0
      %v3617 = vadd.f32 0.0, %v3616
      %v3618 = vpop.f32.mrb[0].mxu0
      %v3619 = vadd.f32 0.0, %v3618
      %3620 = vmatprep.mubr.f32.mxu0 0.0
      %3621 = vmatmul.mubr.f32.gmra.mrb[0].mxu0 %v3347
      %v3622 = vpop.f32.mrb[0].mxu0
      %v3623 = vadd.f32 0.0, %v3622
      %v3624 = vpop.f32.mrb[0].mxu0
      %v3625 = vadd.f32 0.0, %v3624
      %3626 = vmatprep.mubr.f32.mxu0 0.0
      %3627 = vmatmul.mubr.f32.gmra.mrb[0].mxu0 %v3350
      %v3628 = vpop.f32.mrb[0].mxu0
      %v3629 = vadd.f32 0.0, %v3628
      %v3630 = vpop.f32.mrb[0].mxu0
      %v3631 = vadd.f32 0.0, %v3630
      %3632 = vmatprep.mubr.f32.mxu0 0.0
      %3633 = vmatmul.mubr.f32.gmra.mrb[0].mxu0 %v3353
      %v3634 = vpop.f32.mrb[0].mxu0
      %v3635 = vadd.f32 0.0, %v3634
      %v3636 = vpop.f32.mrb[0].mxu0
      %v3637 = vadd.f32 0.0, %v3636
      %3638 = vmatprep.mubr.f32.mxu0 0.0
      %3639 = vmatmul.mubr.f32.gmra.mrb[0].mxu0 %v3356
      %v3640 = vpop.f32.mrb[0].mxu0
      %v3641 = vadd.f32 0.0, %v3640
      %v3642 = vpop.f32.mrb[0].mxu0
      %v3643 = vadd.f32 0.0, %v3642
      %3644 = vmatprep.mubr.f32.mxu0 0.0
      %3645 = vmatmul.mubr.f32.gmra.mrb[0].mxu0 %v3359
      %v3646 = vpop.f32.mrb[0].mxu0
      %v3647 = vadd.f32 0.0, %v3646
      %v3648 = vpop.f32.mrb[0].mxu0
      %v3649 = vadd.f32 0.0, %v3648
      %3650 = vmatprep.mubr.f32.mxu0 0.0
      %3651 = vmatmul.mubr.f32.gmra.mrb[0].mxu0 %v3362
      %v3652 = vpop.f32.mrb[0].mxu0
      %v3653 = vadd.f32 0.0, %v3652
      %v3654 = vpop.f32.mrb[0].mxu0
      %v3655 = vadd.f32 0.0, %v3654
      %3656 = vdwg.mxu0
      %3657 = vmatprep.subr.mxu0 %v3243
      %3658 = vmatpush1.msra.mxu0 %v3242
      %3659 = vmatprep.subr.mxu0 %v3248
      %3660 = vmatpush1.msra.mxu0 %v3247
      %3661 = vmatprep.subr.mxu0 0.0
      %3662 = vmatpush1.msra.mxu0 0.0
      %3663 = vmatprep.subr.mxu0 0.0
      %3664 = vmatpush1.msra.mxu0 0.0
      %3665 = vmatprep.subr.mxu0 0.0
      %3666 = vmatpush1.msra.mxu0 0.0
      %3667 = vmatprep.subr.mxu0 0.0
      %3668 = vmatpush1.msra.mxu0 0.0
      %3669 = vmatprep.subr.mxu0 0.0
      %3670 = vmatpush1.msra.mxu0 0.0
      %3671 = vmatprep.subr.mxu0 0.0
      %3672 = vmatpush1.msra.mxu0 0.0
      %3673 = vmatprep.subr.mxu0 0.0
      %3674 = vmatpush1.msra.mxu0 0.0
      %3675 = vmatprep.subr.mxu0 0.0
      %3676 = vmatpush1.msra.mxu0 0.0
      %3677 = vmatprep.subr.mxu0 0.0
      %3678 = vmatpush1.msra.mxu0 0.0
      %3679 = vmatprep.subr.mxu0 0.0
      %3680 = vmatpush1.msra.mxu0 0.0
      %3681 = vmatprep.subr.mxu0 0.0
      %3682 = vmatpush1.msra.mxu0 0.0
      %3683 = vmatprep.subr.mxu0 0.0
      %3684 = vmatpush1.msra.mxu0 0.0
      %3685 = vmatprep.subr.mxu0 0.0
      %3686 = vmatpush1.msra.mxu0 0.0
      %3687 = vmatprep.subr.mxu0 0.0
      %3688 = vmatpush1.msra.mxu0 0.0
      %3689 = vmatprep.subr.mxu0 0.0
      %3690 = vmatpush1.msra.mxu0 0.0
      %3691 = vmatprep.subr.mxu0 0.0
      %3692 = vmatpush1.msra.mxu0 0.0
      %3693 = vmatprep.subr.mxu0 0.0
      %3694 = vmatpush1.msra.mxu0 0.0
      %3695 = vmatprep.subr.mxu0 0.0
      %3696 = vmatpush1.msra.mxu0 0.0
      %3697 = vmatprep.subr.mxu0 0.0
      %3698 = vmatpush1.msra.mxu0 0.0
      %3699 = vmatprep.subr.mxu0 0.0
      %3700 = vmatpush1.msra.mxu0 0.0
      %3701 = vmatprep.subr.mxu0 0.0
      %3702 = vmatpush1.msra.mxu0 0.0
      %3703 = vmatprep.subr.mxu0 0.0
      %3704 = vmatpush1.msra.mxu0 0.0
      %3705 = vmatprep.subr.mxu0 0.0
      %3706 = vmatpush1.msra.mxu0 0.0
      %3707 = vmatprep.subr.mxu0 0.0
      %3708 = vmatpush1.msra.mxu0 0.0
      %3709 = vmatprep.subr.mxu0 0.0
      %3710 = vmatpush1.msra.mxu0 0.0
      %3711 = vmatprep.subr.mxu0 0.0
      %3712 = vmatpush1.msra.mxu0 0.0
      %3713 = vmatprep.subr.mxu0 0.0
      %3714 = vmatpush1.msra.mxu0 0.0
      %3715 = vmatprep.subr.mxu0 0.0
      %3716 = vmatpush1.msra.mxu0 0.0
      %3717 = vmatprep.subr.mxu0 0.0
      %3718 = vmatpush1.msra.mxu0 0.0
      %3719 = vmatprep.subr.mxu0 0.0
      %3720 = vmatpush1.msra.mxu0 0.0
      %3721 = vmatprep.mubr.f32.mxu0 0.0
      %3722 = vmatmul.mubr.f32.gmra.mrb[0].mxu0 %v3251
      %v3723 = vpop.f32.mrb[0].mxu0
      %v3724 = vadd.f32 0.0, %v3723
      %v3725 = vpop.f32.mrb[0].mxu0
      %v3726 = vadd.f32 0.0, %v3725
      %3727 = vmatprep.mubr.f32.mxu0 0.0
      %3728 = vmatmul.mubr.f32.gmra.mrb[0].mxu0 %v3254
      %v3729 = vpop.f32.mrb[0].mxu0
      %v3730 = vadd.f32 0.0, %v3729
      %v3731 = vpop.f32.mrb[0].mxu0
      %v3732 = vadd.f32 0.0, %v3731
      %3733 = vmatprep.mubr.f32.mxu0 0.0
      %3734 = vmatmul.mubr.f32.gmra.mrb[0].mxu0 %v3257
      %v3735 = vpop.f32.mrb[0].mxu0
      %v3736 = vadd.f32 0.0, %v3735
      %v3737 = vpop.f32.mrb[0].mxu0
      %v3738 = vadd.f32 0.0, %v3737
      %3739 = vmatprep.mubr.f32.mxu0 0.0
      %3740 = vmatmul.mubr.f32.gmra.mrb[0].mxu0 %v3260
      %v3741 = vpop.f32.mrb[0].mxu0
      %v3742 = vadd.f32 0.0, %v3741
      %v3743 = vpop.f32.mrb[0].mxu0
      %v3744 = vadd.f32 0.0, %v3743
      %3745 = vmatprep.mubr.f32.mxu0 0.0
      %3746 = vmatmul.mubr.f32.gmra.mrb[0].mxu0 %v3263
      %v3747 = vpop.f32.mrb[0].mxu0
      %v3748 = vadd.f32 0.0, %v3747
      %v3749 = vpop.f32.mrb[0].mxu0
      %v3750 = vadd.f32 0.0, %v3749
      %3751 = vmatprep.mubr.f32.mxu0 0.0
      %3752 = vmatmul.mubr.f32.gmra.mrb[0].mxu0 %v3266
      %v3753 = vpop.f32.mrb[0].mxu0
      %v3754 = vadd.f32 0.0, %v3753
      %v3755 = vpop.f32.mrb[0].mxu0
      %v3756 = vadd.f32 0.0, %v3755
      %3757 = vmatprep.mubr.f32.mxu0 0.0
      %3758 = vmatmul.mubr.f32.gmra.mrb[0].mxu0 %v3269
      %v3759 = vpop.f32.mrb[0].mxu0
      %v3760 = vadd.f32 0.0, %v3759
      %v3761 = vpop.f32.mrb[0].mxu0
      %v3762 = vadd.f32 0.0, %v3761
      %3763 = vmatprep.mubr.f32.mxu0 0.0
      %3764 = vmatmul.mubr.f32.gmra.mrb[0].mxu0 %v3272
      %v3765 = vpop.f32.mrb[0].mxu0
      %v3766 = vadd.f32 0.0, %v3765
      %v3767 = vpop.f32.mrb[0].mxu0
      %v3768 = vadd.f32 0.0, %v3767
      %3769 = vmatprep.mubr.f32.mxu0 0.0
      %3770 = vmatmul.mubr.f32.gmra.mrb[0].mxu0 %v3275
      %v3771 = vpop.f32.mrb[0].mxu0
      %v3772 = vadd.f32 0.0, %v3771
      %v3773 = vpop.f32.mrb[0].mxu0
      %v3774 = vadd.f32 0.0, %v3773
      %3775 = vmatprep.mubr.f32.mxu0 0.0
      %3776 = vmatmul.mubr.f32.gmra.mrb[0].mxu0 %v3278
      %v3777 = vpop.f32.mrb[0].mxu0
      %v3778 = vadd.f32 0.0, %v3777
      %v3779 = vpop.f32.mrb[0].mxu0
      %v3780 = vadd.f32 0.0, %v3779
      %3781 = vmatprep.mubr.f32.mxu0 0.0
      %3782 = vmatmul.mubr.f32.gmra.mrb[0].mxu0 %v3281
      %v3783 = vpop.f32.mrb[0].mxu0
      %v3784 = vadd.f32 0.0, %v3783
      %v3785 = vpop.f32.mrb[0].mxu0
      %v3786 = vadd.f32 0.0, %v3785
      %3787 = vmatprep.mubr.f32.mxu0 0.0
      %3788 = vmatmul.mubr.f32.gmra.mrb[0].mxu0 %v3284
      %v3789 = vpop.f32.mrb[0].mxu0
      %v3790 = vadd.f32 0.0, %v3789
      %v3791 = vpop.f32.mrb[0].mxu0
      %v3792 = vadd.f32 0.0, %v3791
      %3793 = vmatprep.mubr.f32.mxu0 0.0
      %3794 = vmatmul.mubr.f32.gmra.mrb[0].mxu0 %v3287
      %v3795 = vpop.f32.mrb[0].mxu0
      %v3796 = vadd.f32 0.0, %v3795
      %v3797 = vpop.f32.mrb[0].mxu0
      %v3798 = vadd.f32 0.0, %v3797
      %3799 = vmatprep.mubr.f32.mxu0 0.0
      %3800 = vmatmul.mubr.f32.gmra.mrb[0].mxu0 %v3290
      %v3801 = vpop.f32.mrb[0].mxu0
      %v3802 = vadd.f32 0.0, %v3801
      %v3803 = vpop.f32.mrb[0].mxu0
      %v3804 = vadd.f32 0.0, %v3803
      %3805 = vmatprep.mubr.f32.mxu0 0.0
      %3806 = vmatmul.mubr.f32.gmra.mrb[0].mxu0 %v3293
      %v3807 = vpop.f32.mrb[0].mxu0
      %v3808 = vadd.f32 0.0, %v3807
      %v3809 = vpop.f32.mrb[0].mxu0
      %v3810 = vadd.f32 0.0, %v3809
      %3811 = vmatprep.mubr.f32.mxu0 0.0
      %3812 = vmatmul.mubr.f32.gmra.mrb[0].mxu0 %v3296
      %v3813 = vpop.f32.mrb[0].mxu0
      %v3814 = vadd.f32 0.0, %v3813
      %v3815 = vpop.f32.mrb[0].mxu0
      %v3816 = vadd.f32 0.0, %v3815
      %3817 = vmatprep.mubr.f32.mxu0 0.0
      %3818 = vmatmul.mubr.f32.gmra.mrb[0].mxu0 %v3299
      %v3819 = vpop.f32.mrb[0].mxu0
      %v3820 = vadd.f32 0.0, %v3819
      %v3821 = vpop.f32.mrb[0].mxu0
      %v3822 = vadd.f32 0.0, %v3821
      %3823 = vmatprep.mubr.f32.mxu0 0.0
      %3824 = vmatmul.mubr.f32.gmra.mrb[0].mxu0 %v3302
      %v3825 = vpop.f32.mrb[0].mxu0
      %v3826 = vadd.f32 0.0, %v3825
      %v3827 = vpop.f32.mrb[0].mxu0
      %v3828 = vadd.f32 0.0, %v3827
      %3829 = vmatprep.mubr.f32.mxu0 0.0
      %3830 = vmatmul.mubr.f32.gmra.mrb[0].mxu0 %v3305
      %v3831 = vpop.f32.mrb[0].mxu0
      %v3832 = vadd.f32 0.0, %v3831
      %v3833 = vpop.f32.mrb[0].mxu0
      %v3834 = vadd.f32 0.0, %v3833
      %3835 = vmatprep.mubr.f32.mxu0 0.0
      %3836 = vmatmul.mubr.f32.gmra.mrb[0].mxu0 %v3308
      %v3837 = vpop.f32.mrb[0].mxu0
      %v3838 = vadd.f32 0.0, %v3837
      %v3839 = vpop.f32.mrb[0].mxu0
      %v3840 = vadd.f32 0.0, %v3839
      %3841 = vmatprep.mubr.f32.mxu0 0.0
      %3842 = vmatmul.mubr.f32.gmra.mrb[0].mxu0 %v3311
      %v3843 = vpop.f32.mrb[0].mxu0
      %v3844 = vadd.f32 0.0, %v3843
      %v3845 = vpop.f32.mrb[0].mxu0
      %v3846 = vadd.f32 0.0, %v3845
      %3847 = vmatprep.mubr.f32.mxu0 0.0
      %3848 = vmatmul.mubr.f32.gmra.mrb[0].mxu0 %v3314
      %v3849 = vpop.f32.mrb[0].mxu0
      %v3850 = vadd.f32 0.0, %v3849
      %v3851 = vpop.f32.mrb[0].mxu0
      %v3852 = vadd.f32 0.0, %v3851
      %3853 = vmatprep.mubr.f32.mxu0 0.0
      %3854 = vmatmul.mubr.f32.gmra.mrb[0].mxu0 %v3317
      %v3855 = vpop.f32.mrb[0].mxu0
      %v3856 = vadd.f32 0.0, %v3855
      %v3857 = vpop.f32.mrb[0].mxu0
      %v3858 = vadd.f32 0.0, %v3857
      %3859 = vmatprep.mubr.f32.mxu0 0.0
      %3860 = vmatmul.mubr.f32.gmra.mrb[0].mxu0 %v3320
      %v3861 = vpop.f32.mrb[0].mxu0
      %v3862 = vadd.f32 0.0, %v3861
      %v3863 = vpop.f32.mrb[0].mxu0
      %v3864 = vadd.f32 0.0, %v3863
      %3865 = vmatprep.mubr.f32.mxu0 0.0
      %3866 = vmatmul.mubr.f32.gmra.mrb[0].mxu0 %v3323
      %v3867 = vpop.f32.mrb[0].mxu0
      %v3868 = vadd.f32 0.0, %v3867
      %v3869 = vpop.f32.mrb[0].mxu0
      %v3870 = vadd.f32 0.0, %v3869
      %3871 = vmatprep.mubr.f32.mxu0 0.0
      %3872 = vmatmul.mubr.f32.gmra.mrb[0].mxu0 %v3326
      %v3873 = vpop.f32.mrb[0].mxu0
      %v3874 = vadd.f32 0.0, %v3873
      %v3875 = vpop.f32.mrb[0].mxu0
      %v3876 = vadd.f32 0.0, %v3875
      %3877 = vmatprep.mubr.f32.mxu0 0.0
      %3878 = vmatmul.mubr.f32.gmra.mrb[0].mxu0 %v3329
      %v3879 = vpop.f32.mrb[0].mxu0
      %v3880 = vadd.f32 0.0, %v3879
      %v3881 = vpop.f32.mrb[0].mxu0
      %v3882 = vadd.f32 0.0, %v3881
      %3883 = vmatprep.mubr.f32.mxu0 0.0
      %3884 = vmatmul.mubr.f32.gmra.mrb[0].mxu0 %v3332
      %v3885 = vpop.f32.mrb[0].mxu0
      %v3886 = vadd.f32 0.0, %v3885
      %v3887 = vpop.f32.mrb[0].mxu0
      %v3888 = vadd.f32 0.0, %v3887
      %3889 = vmatprep.mubr.f32.mxu0 0.0
      %3890 = vmatmul.mubr.f32.gmra.mrb[0].mxu0 %v3335
      %v3891 = vpop.f32.mrb[0].mxu0
      %v3892 = vadd.f32 0.0, %v3891
      %v3893 = vpop.f32.mrb[0].mxu0
      %v3894 = vadd.f32 0.0, %v3893
      %3895 = vmatprep.mubr.f32.mxu0 0.0
      %3896 = vmatmul.mubr.f32.gmra.mrb[0].mxu0 %v3338
      %v3897 = vpop.f32.mrb[0].mxu0
      %v3898 = vadd.f32 0.0, %v3897
      %v3899 = vpop.f32.mrb[0].mxu0
      %v3900 = vadd.f32 0.0, %v3899
      %3901 = vmatprep.mubr.f32.mxu0 0.0
      %3902 = vmatmul.mubr.f32.gmra.mrb[0].mxu0 %v3341
      %v3903 = vpop.f32.mrb[0].mxu0
      %v3904 = vadd.f32 0.0, %v3903
      %v3905 = vpop.f32.mrb[0].mxu0
      %v3906 = vadd.f32 0.0, %v3905
      %3907 = vmatprep.mubr.f32.mxu0 0.0
      %3908 = vmatmul.mubr.f32.gmra.mrb[0].mxu0 %v3344
      %v3909 = vpop.f32.mrb[0].mxu0
      %v3910 = vadd.f32 0.0, %v3909
      %v3911 = vpop.f32.mrb[0].mxu0
      %v3912 = vadd.f32 0.0, %v3911
      %3913 = vmatprep.mubr.f32.mxu0 0.0
      %3914 = vmatmul.mubr.f32.gmra.mrb[0].mxu0 %v3347
      %v3915 = vpop.f32.mrb[0].mxu0
      %v3916 = vadd.f32 0.0, %v3915
      %v3917 = vpop.f32.mrb[0].mxu0
      %v3918 = vadd.f32 0.0, %v3917
      %3919 = vmatprep.mubr.f32.mxu0 0.0
      %3920 = vmatmul.mubr.f32.gmra.mrb[0].mxu0 %v3350
      %v3921 = vpop.f32.mrb[0].mxu0
      %v3922 = vadd.f32 0.0, %v3921
      %v3923 = vpop.f32.mrb[0].mxu0
      %v3924 = vadd.f32 0.0, %v3923
      %3925 = vmatprep.mubr.f32.mxu0 0.0
      %3926 = vmatmul.mubr.f32.gmra.mrb[0].mxu0 %v3353
      %v3927 = vpop.f32.mrb[0].mxu0
      %v3928 = vadd.f32 0.0, %v3927
      %v3929 = vpop.f32.mrb[0].mxu0
      %v3930 = vadd.f32 0.0, %v3929
      %3931 = vmatprep.mubr.f32.mxu0 0.0
      %3932 = vmatmul.mubr.f32.gmra.mrb[0].mxu0 %v3356
      %v3933 = vpop.f32.mrb[0].mxu0
      %v3934 = vadd.f32 0.0, %v3933
      %v3935 = vpop.f32.mrb[0].mxu0
      %v3936 = vadd.f32 0.0, %v3935
      %3937 = vmatprep.mubr.f32.mxu0 0.0
      %3938 = vmatmul.mubr.f32.gmra.mrb[0].mxu0 %v3359
      %v3939 = vpop.f32.mrb[0].mxu0
      %v3940 = vadd.f32 0.0, %v3939
      %v3941 = vpop.f32.mrb[0].mxu0
      %v3942 = vadd.f32 0.0, %v3941
      %3943 = vmatprep.mubr.f32.mxu0 0.0
      %3944 = vmatmul.mubr.f32.gmra.mrb[0].mxu0 %v3362
      %v3945 = vpop.f32.mrb[0].mxu0
      %v3946 = vadd.f32 0.0, %v3945
      %v3947 = vpop.f32.mrb[0].mxu0
      %v3948 = vadd.f32 0.0, %v3947
      %3949 = vdwg.mxu0
      %3950 = vmatprep.subr.mxu0 0.0
      %3951 = vmatpush1.msra.mxu0 %v3244
      %3952 = vmatprep.subr.mxu0 0.0
      %3953 = vmatpush1.msra.mxu0 %v3249
      %3954 = vmatprep.subr.mxu0 0.0
      %3955 = vmatpush1.msra.mxu0 0.0
      %3956 = vmatprep.subr.mxu0 0.0
      %3957 = vmatpush1.msra.mxu0 0.0
      %3958 = vmatprep.subr.mxu0 0.0
      %3959 = vmatpush1.msra.mxu0 0.0
      %3960 = vmatprep.subr.mxu0 0.0
      %3961 = vmatpush1.msra.mxu0 0.0
      %3962 = vmatprep.subr.mxu0 0.0
      %3963 = vmatpush1.msra.mxu0 0.0
      %3964 = vmatprep.subr.mxu0 0.0
      %3965 = vmatpush1.msra.mxu0 0.0
      %3966 = vmatprep.subr.mxu0 0.0
      %3967 = vmatpush1.msra.mxu0 0.0
      %3968 = vmatprep.subr.mxu0 0.0
      %3969 = vmatpush1.msra.mxu0 0.0
      %3970 = vmatprep.subr.mxu0 0.0
      %3971 = vmatpush1.msra.mxu0 0.0
      %3972 = vmatprep.subr.mxu0 0.0
      %3973 = vmatpush1.msra.mxu0 0.0
      %3974 = vmatprep.subr.mxu0 0.0
      %3975 = vmatpush1.msra.mxu0 0.0
      %3976 = vmatprep.subr.mxu0 0.0
      %3977 = vmatpush1.msra.mxu0 0.0
      %3978 = vmatprep.subr.mxu0 0.0
      %3979 = vmatpush1.msra.mxu0 0.0
      %3980 = vmatprep.subr.mxu0 0.0
      %3981 = vmatpush1.msra.mxu0 0.0
      %3982 = vmatprep.subr.mxu0 0.0
      %3983 = vmatpush1.msra.mxu0 0.0
      %3984 = vmatprep.subr.mxu0 0.0
      %3985 = vmatpush1.msra.mxu0 0.0
      %3986 = vmatprep.subr.mxu0 0.0
      %3987 = vmatpush1.msra.mxu0 0.0
      %3988 = vmatprep.subr.mxu0 0.0
      %3989 = vmatpush1.msra.mxu0 0.0
      %3990 = vmatprep.subr.mxu0 0.0
      %3991 = vmatpush1.msra.mxu0 0.0
      %3992 = vmatprep.subr.mxu0 0.0
      %3993 = vmatpush1.msra.mxu0 0.0
      %3994 = vmatprep.subr.mxu0 0.0
      %3995 = vmatpush1.msra.mxu0 0.0
      %3996 = vmatprep.subr.mxu0 0.0
      %3997 = vmatpush1.msra.mxu0 0.0
      %3998 = vmatprep.subr.mxu0 0.0
      %3999 = vmatpush1.msra.mxu0 0.0
      %4000 = vmatprep.subr.mxu0 0.0
      %4001 = vmatpush1.msra.mxu0 0.0
      %4002 = vmatprep.subr.mxu0 0.0
      %4003 = vmatpush1.msra.mxu0 0.0
      %4004 = vmatprep.subr.mxu0 0.0
      %4005 = vmatpush1.msra.mxu0 0.0
      %4006 = vmatprep.subr.mxu0 0.0
      %4007 = vmatpush1.msra.mxu0 0.0
      %4008 = vmatprep.subr.mxu0 0.0
      %4009 = vmatpush1.msra.mxu0 0.0
      %4010 = vmatprep.subr.mxu0 0.0
      %4011 = vmatpush1.msra.mxu0 0.0
      %4012 = vmatprep.subr.mxu0 0.0
      %4013 = vmatpush1.msra.mxu0 0.0
      %4014 = vmatprep.mubr.f32.mxu0 0.0
      %4015 = vmatmul.mubr.f32.gmra.mrb[0].mxu0 %v3251
      %v4016 = vpop.f32.mrb[0].mxu0
      %v4017 = vadd.f32 0.0, %v4016
      %v4018 = vpop.f32.mrb[0].mxu0
      %4019 = vmatprep.mubr.f32.mxu0 0.0
      %4020 = vmatmul.mubr.f32.gmra.mrb[0].mxu0 %v3254
      %v4021 = vpop.f32.mrb[0].mxu0
      %v4022 = vadd.f32 0.0, %v4021
      %v4023 = vpop.f32.mrb[0].mxu0
      %4024 = vmatprep.mubr.f32.mxu0 0.0
      %4025 = vmatmul.mubr.f32.gmra.mrb[0].mxu0 %v3257
      %v4026 = vpop.f32.mrb[0].mxu0
      %v4027 = vadd.f32 0.0, %v4026
      %v4028 = vpop.f32.mrb[0].mxu0
      %4029 = vmatprep.mubr.f32.mxu0 0.0
      %4030 = vmatmul.mubr.f32.gmra.mrb[0].mxu0 %v3260
      %v4031 = vpop.f32.mrb[0].mxu0
      %v4032 = vadd.f32 0.0, %v4031
      %v4033 = vpop.f32.mrb[0].mxu0
      %4034 = vmatprep.mubr.f32.mxu0 0.0
      %4035 = vmatmul.mubr.f32.gmra.mrb[0].mxu0 %v3263
      %v4036 = vpop.f32.mrb[0].mxu0
      %v4037 = vadd.f32 0.0, %v4036
      %v4038 = vpop.f32.mrb[0].mxu0
      %4039 = vmatprep.mubr.f32.mxu0 0.0
      %4040 = vmatmul.mubr.f32.gmra.mrb[0].mxu0 %v3266
      %v4041 = vpop.f32.mrb[0].mxu0
      %v4042 = vadd.f32 0.0, %v4041
      %v4043 = vpop.f32.mrb[0].mxu0
      %4044 = vmatprep.mubr.f32.mxu0 0.0
      %4045 = vmatmul.mubr.f32.gmra.mrb[0].mxu0 %v3269
      %v4046 = vpop.f32.mrb[0].mxu0
      %v4047 = vadd.f32 0.0, %v4046
      %v4048 = vpop.f32.mrb[0].mxu0
      %4049 = vmatprep.mubr.f32.mxu0 0.0
      %4050 = vmatmul.mubr.f32.gmra.mrb[0].mxu0 %v3272
      %v4051 = vpop.f32.mrb[0].mxu0
      %v4052 = vadd.f32 0.0, %v4051
      %v4053 = vpop.f32.mrb[0].mxu0
      %4054 = vmatprep.mubr.f32.mxu0 0.0
      %4055 = vmatmul.mubr.f32.gmra.mrb[0].mxu0 %v3275
      %v4056 = vpop.f32.mrb[0].mxu0
      %v4057 = vadd.f32 0.0, %v4056
      %v4058 = vpop.f32.mrb[0].mxu0
      %4059 = vmatprep.mubr.f32.mxu0 0.0
      %4060 = vmatmul.mubr.f32.gmra.mrb[0].mxu0 %v3278
      %v4061 = vpop.f32.mrb[0].mxu0
      %v4062 = vadd.f32 0.0, %v4061
      %v4063 = vpop.f32.mrb[0].mxu0
      %4064 = vmatprep.mubr.f32.mxu0 0.0
      %4065 = vmatmul.mubr.f32.gmra.mrb[0].mxu0 %v3281
      %v4066 = vpop.f32.mrb[0].mxu0
      %v4067 = vadd.f32 0.0, %v4066
      %v4068 = vpop.f32.mrb[0].mxu0
      %4069 = vmatprep.mubr.f32.mxu0 0.0
      %4070 = vmatmul.mubr.f32.gmra.mrb[0].mxu0 %v3284
      %v4071 = vpop.f32.mrb[0].mxu0
      %v4072 = vadd.f32 0.0, %v4071
      %v4073 = vpop.f32.mrb[0].mxu0
      %4074 = vmatprep.mubr.f32.mxu0 0.0
      %4075 = vmatmul.mubr.f32.gmra.mrb[0].mxu0 %v3287
      %v4076 = vpop.f32.mrb[0].mxu0
      %v4077 = vadd.f32 0.0, %v4076
      %v4078 = vpop.f32.mrb[0].mxu0
      %4079 = vmatprep.mubr.f32.mxu0 0.0
      %4080 = vmatmul.mubr.f32.gmra.mrb[0].mxu0 %v3290
      %v4081 = vpop.f32.mrb[0].mxu0
      %v4082 = vadd.f32 0.0, %v4081
      %v4083 = vpop.f32.mrb[0].mxu0
      %4084 = vmatprep.mubr.f32.mxu0 0.0
      %4085 = vmatmul.mubr.f32.gmra.mrb[0].mxu0 %v3293
      %v4086 = vpop.f32.mrb[0].mxu0
      %v4087 = vadd.f32 0.0, %v4086
      %v4088 = vpop.f32.mrb[0].mxu0
      %4089 = vmatprep.mubr.f32.mxu0 0.0
      %4090 = vmatmul.mubr.f32.gmra.mrb[0].mxu0 %v3296
      %v4091 = vpop.f32.mrb[0].mxu0
      %v4092 = vadd.f32 0.0, %v4091
      %v4093 = vpop.f32.mrb[0].mxu0
      %4094 = vmatprep.mubr.f32.mxu0 0.0
      %4095 = vmatmul.mubr.f32.gmra.mrb[0].mxu0 %v3299
      %v4096 = vpop.f32.mrb[0].mxu0
      %v4097 = vadd.f32 0.0, %v4096
      %v4098 = vpop.f32.mrb[0].mxu0
      %4099 = vmatprep.mubr.f32.mxu0 0.0
      %4100 = vmatmul.mubr.f32.gmra.mrb[0].mxu0 %v3302
      %v4101 = vpop.f32.mrb[0].mxu0
      %v4102 = vadd.f32 0.0, %v4101
      %v4103 = vpop.f32.mrb[0].mxu0
      %4104 = vmatprep.mubr.f32.mxu0 0.0
      %4105 = vmatmul.mubr.f32.gmra.mrb[0].mxu0 %v3305
      %v4106 = vpop.f32.mrb[0].mxu0
      %v4107 = vadd.f32 0.0, %v4106
      %v4108 = vpop.f32.mrb[0].mxu0
      %4109 = vmatprep.mubr.f32.mxu0 0.0
      %4110 = vmatmul.mubr.f32.gmra.mrb[0].mxu0 %v3308
      %v4111 = vpop.f32.mrb[0].mxu0
      %v4112 = vadd.f32 0.0, %v4111
      %v4113 = vpop.f32.mrb[0].mxu0
      %4114 = vmatprep.mubr.f32.mxu0 0.0
      %4115 = vmatmul.mubr.f32.gmra.mrb[0].mxu0 %v3311
      %v4116 = vpop.f32.mrb[0].mxu0
      %v4117 = vadd.f32 0.0, %v4116
      %v4118 = vpop.f32.mrb[0].mxu0
      %4119 = vmatprep.mubr.f32.mxu0 0.0
      %4120 = vmatmul.mubr.f32.gmra.mrb[0].mxu0 %v3314
      %v4121 = vpop.f32.mrb[0].mxu0
      %v4122 = vadd.f32 0.0, %v4121
      %v4123 = vpop.f32.mrb[0].mxu0
      %4124 = vmatprep.mubr.f32.mxu0 0.0
      %4125 = vmatmul.mubr.f32.gmra.mrb[0].mxu0 %v3317
      %v4126 = vpop.f32.mrb[0].mxu0
      %v4127 = vadd.f32 0.0, %v4126
      %v4128 = vpop.f32.mrb[0].mxu0
      %4129 = vmatprep.mubr.f32.mxu0 0.0
      %4130 = vmatmul.mubr.f32.gmra.mrb[0].mxu0 %v3320
      %v4131 = vpop.f32.mrb[0].mxu0
      %v4132 = vadd.f32 0.0, %v4131
      %v4133 = vpop.f32.mrb[0].mxu0
      %4134 = vmatprep.mubr.f32.mxu0 0.0
      %4135 = vmatmul.mubr.f32.gmra.mrb[0].mxu0 %v3323
      %v4136 = vpop.f32.mrb[0].mxu0
      %v4137 = vadd.f32 0.0, %v4136
      %v4138 = vpop.f32.mrb[0].mxu0
      %4139 = vmatprep.mubr.f32.mxu0 0.0
      %4140 = vmatmul.mubr.f32.gmra.mrb[0].mxu0 %v3326
      %v4141 = vpop.f32.mrb[0].mxu0
      %v4142 = vadd.f32 0.0, %v4141
      %v4143 = vpop.f32.mrb[0].mxu0
      %4144 = vmatprep.mubr.f32.mxu0 0.0
      %4145 = vmatmul.mubr.f32.gmra.mrb[0].mxu0 %v3329
      %v4146 = vpop.f32.mrb[0].mxu0
      %v4147 = vadd.f32 0.0, %v4146
      %v4148 = vpop.f32.mrb[0].mxu0
      %4149 = vmatprep.mubr.f32.mxu0 0.0
      %4150 = vmatmul.mubr.f32.gmra.mrb[0].mxu0 %v3332
      %v4151 = vpop.f32.mrb[0].mxu0
      %v4152 = vadd.f32 0.0, %v4151
      %v4153 = vpop.f32.mrb[0].mxu0
      %4154 = vmatprep.mubr.f32.mxu0 0.0
      %4155 = vmatmul.mubr.f32.gmra.mrb[0].mxu0 %v3335
      %v4156 = vpop.f32.mrb[0].mxu0
      %v4157 = vadd.f32 0.0, %v4156
      %v4158 = vpop.f32.mrb[0].mxu0
      %4159 = vmatprep.mubr.f32.mxu0 0.0
      %4160 = vmatmul.mubr.f32.gmra.mrb[0].mxu0 %v3338
      %v4161 = vpop.f32.mrb[0].mxu0
      %v4162 = vadd.f32 0.0, %v4161
      %v4163 = vpop.f32.mrb[0].mxu0
      %4164 = vmatprep.mubr.f32.mxu0 0.0
      %4165 = vmatmul.mubr.f32.gmra.mrb[0].mxu0 %v3341
      %v4166 = vpop.f32.mrb[0].mxu0
      %v4167 = vadd.f32 0.0, %v4166
      %v4168 = vpop.f32.mrb[0].mxu0
      %4169 = vmatprep.mubr.f32.mxu0 0.0
      %4170 = vmatmul.mubr.f32.gmra.mrb[0].mxu0 %v3344
      %v4171 = vpop.f32.mrb[0].mxu0
      %v4172 = vadd.f32 0.0, %v4171
      %v4173 = vpop.f32.mrb[0].mxu0
      %4174 = vmatprep.mubr.f32.mxu0 0.0
      %4175 = vmatmul.mubr.f32.gmra.mrb[0].mxu0 %v3347
      %v4176 = vpop.f32.mrb[0].mxu0
      %v4177 = vadd.f32 0.0, %v4176
      %v4178 = vpop.f32.mrb[0].mxu0
      %4179 = vmatprep.mubr.f32.mxu0 0.0
      %4180 = vmatmul.mubr.f32.gmra.mrb[0].mxu0 %v3350
      %v4181 = vpop.f32.mrb[0].mxu0
      %v4182 = vadd.f32 0.0, %v4181
      %v4183 = vpop.f32.mrb[0].mxu0
      %4184 = vmatprep.mubr.f32.mxu0 0.0
      %4185 = vmatmul.mubr.f32.gmra.mrb[0].mxu0 %v3353
      %v4186 = vpop.f32.mrb[0].mxu0
      %v4187 = vadd.f32 0.0, %v4186
      %v4188 = vpop.f32.mrb[0].mxu0
      %4189 = vmatprep.mubr.f32.mxu0 0.0
      %4190 = vmatmul.mubr.f32.gmra.mrb[0].mxu0 %v3356
      %v4191 = vpop.f32.mrb[0].mxu0
      %v4192 = vadd.f32 0.0, %v4191
      %v4193 = vpop.f32.mrb[0].mxu0
      %4194 = vmatprep.mubr.f32.mxu0 0.0
      %4195 = vmatmul.mubr.f32.gmra.mrb[0].mxu0 %v3359
      %v4196 = vpop.f32.mrb[0].mxu0
      %v4197 = vadd.f32 0.0, %v4196
      %v4198 = vpop.f32.mrb[0].mxu0
      %4199 = vmatprep.mubr.f32.mxu0 0.0
      %4200 = vmatmul.mubr.f32.gmra.mrb[0].mxu0 %v3362
      %v4201 = vpop.f32.mrb[0].mxu0
      %v4202 = vadd.f32 0.0, %v4201
      %v4203 = vpop.f32.mrb[0].mxu0
      %4204 = vdwg.mxu0
      %4205 = vst [vmem:[#allocation5] sm:$0xff] %v3431
      %4206 = vst [vmem:[#allocation5 + $0x8] sm:$0xff] %v3433
      %4207 = vst [vmem:[#allocation5 + $0x10] sm:$0xff] %v3724
      %4208 = vst [vmem:[#allocation5 + $0x18] sm:$0xff] %v3726
      %4209 = vst.msk [vmem:[#allocation5 + $0x20] sm:$0xff] %vm387, %v4017
      %4210 = vst [vmem:[#allocation5 + $0x28] sm:$0xff] %v3437
      %4211 = vst [vmem:[#allocation5 + $0x30] sm:$0xff] %v3439
      %4212 = vst [vmem:[#allocation5 + $0x38] sm:$0xff] %v3730
      %4213 = vst [vmem:[#allocation5 + $0x40] sm:$0xff] %v3732
      %4214 = vst.msk [vmem:[#allocation5 + $0x48] sm:$0xff] %vm387, %v4022
      %4215 = vst [vmem:[#allocation5 + $0x50] sm:$0xff] %v3443
      %4216 = vst [vmem:[#allocation5 + $0x58] sm:$0xff] %v3445
      %4217 = vst [vmem:[#allocation5 + $0x60] sm:$0xff] %v3736
      %4218 = vst [vmem:[#allocation5 + $0x68] sm:$0xff] %v3738
      %4219 = vst.msk [vmem:[#allocation5 + $0x70] sm:$0xff] %vm387, %v4027
      %4220 = vst [vmem:[#allocation5 + $0x78] sm:$0xff] %v3449
      %4221 = vst [vmem:[#allocation5 + $0x80] sm:$0xff] %v3451
      %4222 = vst [vmem:[#allocation5 + $0x88] sm:$0xff] %v3742
      %4223 = vst [vmem:[#allocation5 + $0x90] sm:$0xff] %v3744
      %4224 = vst.msk [vmem:[#allocation5 + $0x98] sm:$0xff] %vm387, %v4032
      %4225 = vst [vmem:[#allocation5 + $0xa0] sm:$0xff] %v3455
      %4226 = vst [vmem:[#allocation5 + $0xa8] sm:$0xff] %v3457
      %4227 = vst [vmem:[#allocation5 + $0xb0] sm:$0xff] %v3748
      %4228 = vst [vmem:[#allocation5 + $0xb8] sm:$0xff] %v3750
      %4229 = vst.msk [vmem:[#allocation5 + $0xc0] sm:$0xff] %vm387, %v4037
      %4230 = vst [vmem:[#allocation5 + $0xc8] sm:$0xff] %v3461
      %4231 = vst [vmem:[#allocation5 + $0xd0] sm:$0xff] %v3463
      %4232 = vst [vmem:[#allocation5 + $0xd8] sm:$0xff] %v3754
      %4233 = vst [vmem:[#allocation5 + $0xe0] sm:$0xff] %v3756
      %4234 = vst.msk [vmem:[#allocation5 + $0xe8] sm:$0xff] %vm387, %v4042
      %4235 = vst [vmem:[#allocation5 + $0xf0] sm:$0xff] %v3467
      %4236 = vst [vmem:[#allocation5 + $0xf8] sm:$0xff] %v3469
      %4237 = vst [vmem:[#allocation5 + $0x100] sm:$0xff] %v3760
      %4238 = vst [vmem:[#allocation5 + $0x108] sm:$0xff] %v3762
      %4239 = vst.msk [vmem:[#allocation5 + $0x110] sm:$0xff] %vm387, %v4047
      %4240 = vst [vmem:[#allocation5 + $0x118] sm:$0xff] %v3473
      %4241 = vst [vmem:[#allocation5 + $0x120] sm:$0xff] %v3475
      %4242 = vst [vmem:[#allocation5 + $0x128] sm:$0xff] %v3766
      %4243 = vst [vmem:[#allocation5 + $0x130] sm:$0xff] %v3768
      %4244 = vst.msk [vmem:[#allocation5 + $0x138] sm:$0xff] %vm387, %v4052
      %4245 = vst [vmem:[#allocation5 + $0x140] sm:$0xff] %v3479
      %4246 = vst [vmem:[#allocation5 + $0x148] sm:$0xff] %v3481
      %4247 = vst [vmem:[#allocation5 + $0x150] sm:$0xff] %v3772
      %4248 = vst [vmem:[#allocation5 + $0x158] sm:$0xff] %v3774
      %4249 = vst.msk [vmem:[#allocation5 + $0x160] sm:$0xff] %vm387, %v4057
      %4250 = vst [vmem:[#allocation5 + $0x168] sm:$0xff] %v3485
      %4251 = vst [vmem:[#allocation5 + $0x170] sm:$0xff] %v3487
      %4252 = vst [vmem:[#allocation5 + $0x178] sm:$0xff] %v3778
      %4253 = vst [vmem:[#allocation5 + $0x180] sm:$0xff] %v3780
      %4254 = vst.msk [vmem:[#allocation5 + $0x188] sm:$0xff] %vm387, %v4062
      %4255 = vst [vmem:[#allocation5 + $0x190] sm:$0xff] %v3491
      %4256 = vst [vmem:[#allocation5 + $0x198] sm:$0xff] %v3493
      %4257 = vst [vmem:[#allocation5 + $0x1a0] sm:$0xff] %v3784
      %4258 = vst [vmem:[#allocation5 + $0x1a8] sm:$0xff] %v3786
      %4259 = vst.msk [vmem:[#allocation5 + $0x1b0] sm:$0xff] %vm387, %v4067
      %4260 = vst [vmem:[#allocation5 + $0x1b8] sm:$0xff] %v3497
      %4261 = vst [vmem:[#allocation5 + $0x1c0] sm:$0xff] %v3499
      %4262 = vst [vmem:[#allocation5 + $0x1c8] sm:$0xff] %v3790
      %4263 = vst [vmem:[#allocation5 + $0x1d0] sm:$0xff] %v3792
      %4264 = vst.msk [vmem:[#allocation5 + $0x1d8] sm:$0xff] %vm387, %v4072
      %4265 = vst [vmem:[#allocation5 + $0x1e0] sm:$0xff] %v3503
      %4266 = vst [vmem:[#allocation5 + $0x1e8] sm:$0xff] %v3505
      %4267 = vst [vmem:[#allocation5 + $0x1f0] sm:$0xff] %v3796
      %4268 = vst [vmem:[#allocation5 + $0x1f8] sm:$0xff] %v3798
      %4269 = vst.msk [vmem:[#allocation5 + $0x200] sm:$0xff] %vm387, %v4077
      %4270 = vst [vmem:[#allocation5 + $0x208] sm:$0xff] %v3509
      %4271 = vst [vmem:[#allocation5 + $0x210] sm:$0xff] %v3511
      %4272 = vst [vmem:[#allocation5 + $0x218] sm:$0xff] %v3802
      %4273 = vst [vmem:[#allocation5 + $0x220] sm:$0xff] %v3804
      %4274 = vst.msk [vmem:[#allocation5 + $0x228] sm:$0xff] %vm387, %v4082
      %4275 = vst [vmem:[#allocation5 + $0x230] sm:$0xff] %v3515
      %4276 = vst [vmem:[#allocation5 + $0x238] sm:$0xff] %v3517
      %4277 = vst [vmem:[#allocation5 + $0x240] sm:$0xff] %v3808
      %4278 = vst [vmem:[#allocation5 + $0x248] sm:$0xff] %v3810
      %4279 = vst.msk [vmem:[#allocation5 + $0x250] sm:$0xff] %vm387, %v4087
      %4280 = vst [vmem:[#allocation5 + $0x258] sm:$0xff] %v3521
      %4281 = vst [vmem:[#allocation5 + $0x260] sm:$0xff] %v3523
      %4282 = vst [vmem:[#allocation5 + $0x268] sm:$0xff] %v3814
      %4283 = vst [vmem:[#allocation5 + $0x270] sm:$0xff] %v3816
      %4284 = vst.msk [vmem:[#allocation5 + $0x278] sm:$0xff] %vm387, %v4092
      %4285 = vst [vmem:[#allocation5 + $0x280] sm:$0xff] %v3527
      %4286 = vst [vmem:[#allocation5 + $0x288] sm:$0xff] %v3529
      %4287 = vst [vmem:[#allocation5 + $0x290] sm:$0xff] %v3820
      %4288 = vst [vmem:[#allocation5 + $0x298] sm:$0xff] %v3822
      %4289 = vst.msk [vmem:[#allocation5 + $0x2a0] sm:$0xff] %vm387, %v4097
      %4290 = vst [vmem:[#allocation5 + $0x2a8] sm:$0xff] %v3533
      %4291 = vst [vmem:[#allocation5 + $0x2b0] sm:$0xff] %v3535
      %4292 = vst [vmem:[#allocation5 + $0x2b8] sm:$0xff] %v3826
      %4293 = vst [vmem:[#allocation5 + $0x2c0] sm:$0xff] %v3828
      %4294 = vst.msk [vmem:[#allocation5 + $0x2c8] sm:$0xff] %vm387, %v4102
      %4295 = vst [vmem:[#allocation5 + $0x2d0] sm:$0xff] %v3539
      %4296 = vst [vmem:[#allocation5 + $0x2d8] sm:$0xff] %v3541
      %4297 = vst [vmem:[#allocation5 + $0x2e0] sm:$0xff] %v3832
      %4298 = vst [vmem:[#allocation5 + $0x2e8] sm:$0xff] %v3834
      %4299 = vst.msk [vmem:[#allocation5 + $0x2f0] sm:$0xff] %vm387, %v4107
      %4300 = vst [vmem:[#allocation5 + $0x2f8] sm:$0xff] %v3545
      %4301 = vst [vmem:[#allocation5 + $0x300] sm:$0xff] %v3547
      %4302 = vst [vmem:[#allocation5 + $0x308] sm:$0xff] %v3838
      %4303 = vst [vmem:[#allocation5 + $0x310] sm:$0xff] %v3840
      %4304 = vst.msk [vmem:[#allocation5 + $0x318] sm:$0xff] %vm387, %v4112
      %4305 = vst [vmem:[#allocation5 + $0x320] sm:$0xff] %v3551
      %4306 = vst [vmem:[#allocation5 + $0x328] sm:$0xff] %v3553
      %4307 = vst [vmem:[#allocation5 + $0x330] sm:$0xff] %v3844
      %4308 = vst [vmem:[#allocation5 + $0x338] sm:$0xff] %v3846
      %4309 = vst.msk [vmem:[#allocation5 + $0x340] sm:$0xff] %vm387, %v4117
      %4310 = vst [vmem:[#allocation5 + $0x348] sm:$0xff] %v3557
      %4311 = vst [vmem:[#allocation5 + $0x350] sm:$0xff] %v3559
      %4312 = vst [vmem:[#allocation5 + $0x358] sm:$0xff] %v3850
      %4313 = vst [vmem:[#allocation5 + $0x360] sm:$0xff] %v3852
      %4314 = vst.msk [vmem:[#allocation5 + $0x368] sm:$0xff] %vm387, %v4122
      %4315 = vst [vmem:[#allocation5 + $0x370] sm:$0xff] %v3563
      %4316 = vst [vmem:[#allocation5 + $0x378] sm:$0xff] %v3565
      %4317 = vst [vmem:[#allocation5 + $0x380] sm:$0xff] %v3856
      %4318 = vst [vmem:[#allocation5 + $0x388] sm:$0xff] %v3858
      %4319 = vst.msk [vmem:[#allocation5 + $0x390] sm:$0xff] %vm387, %v4127
      %4320 = vst [vmem:[#allocation5 + $0x398] sm:$0xff] %v3569
      %4321 = vst [vmem:[#allocation5 + $0x3a0] sm:$0xff] %v3571
      %4322 = vst [vmem:[#allocation5 + $0x3a8] sm:$0xff] %v3862
      %4323 = vst [vmem:[#allocation5 + $0x3b0] sm:$0xff] %v3864
      %4324 = vst.msk [vmem:[#allocation5 + $0x3b8] sm:$0xff] %vm387, %v4132
      %4325 = vst [vmem:[#allocation5 + $0x3c0] sm:$0xff] %v3575
      %4326 = vst [vmem:[#allocation5 + $0x3c8] sm:$0xff] %v3577
      %4327 = vst [vmem:[#allocation5 + $0x3d0] sm:$0xff] %v3868
      %4328 = vst [vmem:[#allocation5 + $0x3d8] sm:$0xff] %v3870
      %4329 = vst.msk [vmem:[#allocation5 + $0x3e0] sm:$0xff] %vm387, %v4137
      %4330 = vst [vmem:[#allocation5 + $0x3e8] sm:$0xff] %v3581
      %4331 = vst [vmem:[#allocation5 + $0x3f0] sm:$0xff] %v3583
      %4332 = vst [vmem:[#allocation5 + $0x3f8] sm:$0xff] %v3874
      %4333 = vst [vmem:[#allocation5 + $0x400] sm:$0xff] %v3876
      %4334 = vst.msk [vmem:[#allocation5 + $0x408] sm:$0xff] %vm387, %v4142
      %4335 = vst [vmem:[#allocation5 + $0x410] sm:$0xff] %v3587
      %4336 = vst [vmem:[#allocation5 + $0x418] sm:$0xff] %v3589
      %4337 = vst [vmem:[#allocation5 + $0x420] sm:$0xff] %v3880
      %4338 = vst [vmem:[#allocation5 + $0x428] sm:$0xff] %v3882
      %4339 = vst.msk [vmem:[#allocation5 + $0x430] sm:$0xff] %vm387, %v4147
      %4340 = vst [vmem:[#allocation5 + $0x438] sm:$0xff] %v3593
      %4341 = vst [vmem:[#allocation5 + $0x440] sm:$0xff] %v3595
      %4342 = vst [vmem:[#allocation5 + $0x448] sm:$0xff] %v3886
      %4343 = vst [vmem:[#allocation5 + $0x450] sm:$0xff] %v3888
      %4344 = vst.msk [vmem:[#allocation5 + $0x458] sm:$0xff] %vm387, %v4152
      %4345 = vst [vmem:[#allocation5 + $0x460] sm:$0xff] %v3599
      %4346 = vst [vmem:[#allocation5 + $0x468] sm:$0xff] %v3601
      %4347 = vst [vmem:[#allocation5 + $0x470] sm:$0xff] %v3892
      %4348 = vst [vmem:[#allocation5 + $0x478] sm:$0xff] %v3894
      %4349 = vst.msk [vmem:[#allocation5 + $0x480] sm:$0xff] %vm387, %v4157
      %4350 = vst [vmem:[#allocation5 + $0x488] sm:$0xff] %v3605
      %4351 = vst [vmem:[#allocation5 + $0x490] sm:$0xff] %v3607
      %4352 = vst [vmem:[#allocation5 + $0x498] sm:$0xff] %v3898
      %4353 = vst [vmem:[#allocation5 + $0x4a0] sm:$0xff] %v3900
      %4354 = vst.msk [vmem:[#allocation5 + $0x4a8] sm:$0xff] %vm387, %v4162
      %4355 = vst [vmem:[#allocation5 + $0x4b0] sm:$0xff] %v3611
      %4356 = vst [vmem:[#allocation5 + $0x4b8] sm:$0xff] %v3613
      %4357 = vst [vmem:[#allocation5 + $0x4c0] sm:$0xff] %v3904
      %4358 = vst [vmem:[#allocation5 + $0x4c8] sm:$0xff] %v3906
      %4359 = vst.msk [vmem:[#allocation5 + $0x4d0] sm:$0xff] %vm387, %v4167
      %4360 = vst [vmem:[#allocation5 + $0x4d8] sm:$0xff] %v3617
      %4361 = vst [vmem:[#allocation5 + $0x4e0] sm:$0xff] %v3619
      %4362 = vst [vmem:[#allocation5 + $0x4e8] sm:$0xff] %v3910
      %4363 = vst [vmem:[#allocation5 + $0x4f0] sm:$0xff] %v3912
      %4364 = vst.msk [vmem:[#allocation5 + $0x4f8] sm:$0xff] %vm387, %v4172
      %4365 = vst [vmem:[#allocation5 + $0x500] sm:$0xff] %v3623
      %4366 = vst [vmem:[#allocation5 + $0x508] sm:$0xff] %v3625
      %4367 = vst [vmem:[#allocation5 + $0x510] sm:$0xff] %v3916
      %4368 = vst [vmem:[#allocation5 + $0x518] sm:$0xff] %v3918
      %4369 = vst.msk [vmem:[#allocation5 + $0x520] sm:$0xff] %vm387, %v4177
      %4370 = vst [vmem:[#allocation5 + $0x528] sm:$0xff] %v3629
      %4371 = vst [vmem:[#allocation5 + $0x530] sm:$0xff] %v3631
      %4372 = vst [vmem:[#allocation5 + $0x538] sm:$0xff] %v3922
      %4373 = vst [vmem:[#allocation5 + $0x540] sm:$0xff] %v3924
      %4374 = vst.msk [vmem:[#allocation5 + $0x548] sm:$0xff] %vm387, %v4182
      %4375 = vst [vmem:[#allocation5 + $0x550] sm:$0xff] %v3635
      %4376 = vst [vmem:[#allocation5 + $0x558] sm:$0xff] %v3637
      %4377 = vst [vmem:[#allocation5 + $0x560] sm:$0xff] %v3928
      %4378 = vst [vmem:[#allocation5 + $0x568] sm:$0xff] %v3930
      %4379 = vst.msk [vmem:[#allocation5 + $0x570] sm:$0xff] %vm387, %v4187
      %4380 = vst [vmem:[#allocation5 + $0x578] sm:$0xff] %v3641
      %4381 = vst [vmem:[#allocation5 + $0x580] sm:$0xff] %v3643
      %4382 = vst [vmem:[#allocation5 + $0x588] sm:$0xff] %v3934
      %4383 = vst [vmem:[#allocation5 + $0x590] sm:$0xff] %v3936
      %4384 = vst.msk [vmem:[#allocation5 + $0x598] sm:$0xff] %vm387, %v4192
      %4385 = vst [vmem:[#allocation5 + $0x5a0] sm:$0xff] %v3647
      %4386 = vst [vmem:[#allocation5 + $0x5a8] sm:$0xff] %v3649
      %4387 = vst [vmem:[#allocation5 + $0x5b0] sm:$0xff] %v3940
      %4388 = vst [vmem:[#allocation5 + $0x5b8] sm:$0xff] %v3942
      %4389 = vst.msk [vmem:[#allocation5 + $0x5c0] sm:$0xff] %vm387, %v4197
      %4390 = vst [vmem:[#allocation5 + $0x5c8] sm:$0xff] %v3653
      %4391 = vst [vmem:[#allocation5 + $0x5d0] sm:$0xff] %v3655
      %4392 = vst [vmem:[#allocation5 + $0x5d8] sm:$0xff] %v3946
      %4393 = vst [vmem:[#allocation5 + $0x5e0] sm:$0xff] %v3948
      %4394 = vst.msk [vmem:[#allocation5 + $0x5e8] sm:$0xff] %vm387, %v4202
      %v4395 = vld [vmem:[#allocation5] sm:$0x80]
      %v4396 = vld [vmem:[#allocation5 + $0x28] sm:$0xff]
      %v4397 = vld [vmem:[#allocation5 + $0x50] sm:$0xff]
      %v4398 = vld [vmem:[#allocation5 + $0x78] sm:$0xff]
      %v4399 = vld [vmem:[#allocation5 + $0xa0] sm:$0xff]
      %v4400 = vld [vmem:[#allocation5 + $0xc8] sm:$0xff]
      %v4401 = vld [vmem:[#allocation5 + $0xf0] sm:$0xff]
      %v4402 = vld [vmem:[#allocation5 + $0x118] sm:$0xff]
      %v4403 = vld [vmem:[#allocation5 + $0x140] sm:$0xff]
      %v4404 = vld [vmem:[#allocation5 + $0x168] sm:$0xff]
      %v4405 = vld [vmem:[#allocation5 + $0x190] sm:$0xff]
      %v4406 = vld [vmem:[#allocation5 + $0x1b8] sm:$0xff]
      %v4407 = vld [vmem:[#allocation5 + $0x1e0] sm:$0xff]
      %v4408 = vld [vmem:[#allocation5 + $0x208] sm:$0xff]
      %v4409 = vld [vmem:[#allocation5 + $0x230] sm:$0xff]
      %v4410 = vld [vmem:[#allocation5 + $0x258] sm:$0xff]
      %v4411 = vld [vmem:[#allocation5 + $0x280] sm:$0xff]
      %v4412 = vld [vmem:[#allocation5 + $0x2a8] sm:$0xff]
      %v4413 = vld [vmem:[#allocation5 + $0x2d0] sm:$0xff]
      %v4414 = vld [vmem:[#allocation5 + $0x2f8] sm:$0xff]
      %v4415 = vld [vmem:[#allocation5 + $0x320] sm:$0xff]
      %v4416 = vld [vmem:[#allocation5 + $0x348] sm:$0xff]
      %v4417 = vld [vmem:[#allocation5 + $0x370] sm:$0xff]
      %v4418 = vld [vmem:[#allocation5 + $0x398] sm:$0xff]
      %v4419 = vld [vmem:[#allocation5 + $0x3c0] sm:$0xff]
      %v4420 = vld [vmem:[#allocation5 + $0x3e8] sm:$0xff]
      %v4421 = vld [vmem:[#allocation5 + $0x410] sm:$0xff]
      %v4422 = vld [vmem:[#allocation5 + $0x438] sm:$0xff]
      %v4423 = vld [vmem:[#allocation5 + $0x460] sm:$0xff]
      %v4424 = vld [vmem:[#allocation5 + $0x488] sm:$0xff]
      %v4425 = vld [vmem:[#allocation5 + $0x4b0] sm:$0x7f]
      %v4426 = vld [vmem:[#allocation5 + $0x4b0] sm:$0xff]
      %v4457 = vrot.slane %v4396, 1
      %v4458 = vrot.slane %v4397, 1
      %v4459 = vsel %vm1511, %v4457, %v4458
      %v4460 = vrot.slane %v4398, 1
      %v4461 = vsel %vm1511, %v4458, %v4460
      %v4462 = vrot.slane %v4399, 1
      %v4463 = vsel %vm1511, %v4460, %v4462
      %v4464 = vrot.slane %v4400, 1
      %v4465 = vsel %vm1511, %v4462, %v4464
      %v4466 = vrot.slane %v4401, 1
      %v4467 = vsel %vm1511, %v4464, %v4466
      %v4468 = vrot.slane %v4402, 1
      %v4469 = vsel %vm1511, %v4466, %v4468
      %v4470 = vrot.slane %v4403, 1
      %v4471 = vsel %vm1511, %v4468, %v4470
      %v4472 = vrot.slane %v4404, 1
      %v4473 = vsel %vm1511, %v4470, %v4472
      %v4474 = vrot.slane %v4405, 1
      %v4475 = vsel %vm1511, %v4472, %v4474
      %v4476 = vrot.slane %v4406, 1
      %v4477 = vsel %vm1511, %v4474, %v4476
      %v4478 = vrot.slane %v4407, 1
      %v4479 = vsel %vm1511, %v4476, %v4478
      %v4480 = vrot.slane %v4408, 1
      %v4481 = vsel %vm1511, %v4478, %v4480
      %v4482 = vrot.slane %v4409, 1
      %v4483 = vsel %vm1511, %v4480, %v4482
      %v4484 = vrot.slane %v4410, 1
      %v4485 = vsel %vm1511, %v4482, %v4484
      %v4486 = vrot.slane %v4411, 1
      %v4487 = vsel %vm1511, %v4484, %v4486
      %v4488 = vrot.slane %v4412, 1
      %v4489 = vsel %vm1511, %v4486, %v4488
      %v4490 = vrot.slane %v4413, 1
      %v4491 = vsel %vm1511, %v4488, %v4490
      %v4492 = vrot.slane %v4414, 1
      %v4493 = vsel %vm1511, %v4490, %v4492
      %v4494 = vrot.slane %v4415, 1
      %v4495 = vsel %vm1511, %v4492, %v4494
      %v4496 = vrot.slane %v4416, 1
      %v4497 = vsel %vm1511, %v4494, %v4496
      %v4498 = vrot.slane %v4417, 1
      %v4499 = vsel %vm1511, %v4496, %v4498
      %v4500 = vrot.slane %v4418, 1
      %v4501 = vsel %vm1511, %v4498, %v4500
      %v4502 = vrot.slane %v4419, 1
      %v4503 = vsel %vm1511, %v4500, %v4502
      %v4504 = vrot.slane %v4420, 1
      %v4505 = vsel %vm1511, %v4502, %v4504
      %v4506 = vrot.slane %v4421, 1
      %v4507 = vsel %vm1511, %v4504, %v4506
      %v4508 = vrot.slane %v4422, 1
      %v4509 = vsel %vm1511, %v4506, %v4508
      %v4510 = vrot.slane %v4423, 1
      %v4511 = vsel %vm1511, %v4508, %v4510
      %v4512 = vrot.slane %v4424, 1
      %v4513 = vsel %vm1511, %v4510, %v4512
      %v4514 = vrot.slane %v4426, 1
      %v4515 = vsel %vm1511, %v4512, %v4514
      %4516 = vrot.lane.b32.xlu0 %v4457, 64
      %v4517 = vpop.permute.xlu0 %4516
      %4518 = vrot.lane.b32.xlu0 %v4459, 64
      %v4519 = vpop.permute.xlu0 %4518
      %4520 = vrot.lane.b32.xlu0 %v4461, 64
      %v4521 = vpop.permute.xlu0 %4520
      %4522 = vrot.lane.b32.xlu0 %v4463, 64
      %v4523 = vpop.permute.xlu0 %4522
      %4524 = vrot.lane.b32.xlu0 %v4465, 64
      %v4525 = vpop.permute.xlu0 %4524
      %4526 = vrot.lane.b32.xlu0 %v4467, 64
      %v4527 = vpop.permute.xlu0 %4526
      %4528 = vrot.lane.b32.xlu0 %v4469, 64
      %v4529 = vpop.permute.xlu0 %4528
      %4530 = vrot.lane.b32.xlu0 %v4471, 64
      %v4531 = vpop.permute.xlu0 %4530
      %4532 = vrot.lane.b32.xlu0 %v4473, 64
      %v4533 = vpop.permute.xlu0 %4532
      %4534 = vrot.lane.b32.xlu0 %v4475, 64
      %v4535 = vpop.permute.xlu0 %4534
      %4536 = vrot.lane.b32.xlu0 %v4477, 64
      %v4537 = vpop.permute.xlu0 %4536
      %4538 = vrot.lane.b32.xlu0 %v4479, 64
      %v4539 = vpop.permute.xlu0 %4538
      %4540 = vrot.lane.b32.xlu0 %v4481, 64
      %v4541 = vpop.permute.xlu0 %4540
      %4542 = vrot.lane.b32.xlu0 %v4483, 64
      %v4543 = vpop.permute.xlu0 %4542
      %4544 = vrot.lane.b32.xlu0 %v4485, 64
      %v4545 = vpop.permute.xlu0 %4544
      %4546 = vrot.lane.b32.xlu0 %v4487, 64
      %v4547 = vpop.permute.xlu0 %4546
      %4548 = vrot.lane.b32.xlu0 %v4489, 64
      %v4549 = vpop.permute.xlu0 %4548
      %4550 = vrot.lane.b32.xlu0 %v4491, 64
      %v4551 = vpop.permute.xlu0 %4550
      %4552 = vrot.lane.b32.xlu0 %v4493, 64
      %v4553 = vpop.permute.xlu0 %4552
      %4554 = vrot.lane.b32.xlu0 %v4495, 64
      %v4555 = vpop.permute.xlu0 %4554
      %4556 = vrot.lane.b32.xlu0 %v4497, 64
      %v4557 = vpop.permute.xlu0 %4556
      %4558 = vrot.lane.b32.xlu0 %v4499, 64
      %v4559 = vpop.permute.xlu0 %4558
      %4560 = vrot.lane.b32.xlu0 %v4501, 64
      %v4561 = vpop.permute.xlu0 %4560
      %4562 = vrot.lane.b32.xlu0 %v4503, 64
      %v4563 = vpop.permute.xlu0 %4562
      %4564 = vrot.lane.b32.xlu0 %v4505, 64
      %v4565 = vpop.permute.xlu0 %4564
      %4566 = vrot.lane.b32.xlu0 %v4507, 64
      %v4567 = vpop.permute.xlu0 %4566
      %4568 = vrot.lane.b32.xlu0 %v4509, 64
      %v4569 = vpop.permute.xlu0 %4568
      %4570 = vrot.lane.b32.xlu0 %v4511, 64
      %v4571 = vpop.permute.xlu0 %4570
      %4572 = vrot.lane.b32.xlu0 %v4513, 64
      %v4573 = vpop.permute.xlu0 %4572
      %4574 = vrot.lane.b32.xlu0 %v4515, 64
      %v4575 = vpop.permute.xlu0 %4574
      %4576 = vrot.lane.b32.xlu0 %v4514, 64
      %v4577 = vpop.permute.xlu0 %4576
      %v4609 = vadd.f32 %v4395, %v4517
      %v4610 = vadd.f32 %v4396, %v4519
      %v4611 = vadd.f32 %v4397, %v4521
      %v4612 = vadd.f32 %v4398, %v4523
      %v4613 = vadd.f32 %v4399, %v4525
      %v4614 = vadd.f32 %v4400, %v4527
      %v4615 = vadd.f32 %v4401, %v4529
      %v4616 = vadd.f32 %v4402, %v4531
      %v4617 = vadd.f32 %v4403, %v4533
      %v4618 = vadd.f32 %v4404, %v4535
      %v4619 = vadd.f32 %v4405, %v4537
      %v4620 = vadd.f32 %v4406, %v4539
      %v4621 = vadd.f32 %v4407, %v4541
      %v4622 = vadd.f32 %v4408, %v4543
      %v4623 = vadd.f32 %v4409, %v4545
      %v4624 = vadd.f32 %v4410, %v4547
      %v4625 = vadd.f32 %v4411, %v4549
      %v4626 = vadd.f32 %v4412, %v4551
      %v4627 = vadd.f32 %v4413, %v4553
      %v4628 = vadd.f32 %v4414, %v4555
      %v4629 = vadd.f32 %v4415, %v4557
      %v4630 = vadd.f32 %v4416, %v4559
      %v4631 = vadd.f32 %v4417, %v4561
      %v4632 = vadd.f32 %v4418, %v4563
      %v4633 = vadd.f32 %v4419, %v4565
      %v4634 = vadd.f32 %v4420, %v4567
      %v4635 = vadd.f32 %v4421, %v4569
      %v4636 = vadd.f32 %v4422, %v4571
      %v4637 = vadd.f32 %v4423, %v4573
      %v4638 = vadd.f32 %v4424, %v4575
      %v4639 = vadd.f32 %v4425, %v4577
      %v4640 = vld [vmem:[#allocation5 + $0x30] sm:$0xfe]
      %v4641 = vld [vmem:[#allocation5 + $0x58] sm:$0xff]
      %v4642 = vld [vmem:[#allocation5 + $0x80] sm:$0xff]
      %v4643 = vld [vmem:[#allocation5 + $0xa8] sm:$0xff]
      %v4644 = vld [vmem:[#allocation5 + $0xd0] sm:$0xff]
      %v4645 = vld [vmem:[#allocation5 + $0xf8] sm:$0xff]
      %v4646 = vld [vmem:[#allocation5 + $0x120] sm:$0xff]
      %v4647 = vld [vmem:[#allocation5 + $0x148] sm:$0xff]
      %v4648 = vld [vmem:[#allocation5 + $0x170] sm:$0xff]
      %v4649 = vld [vmem:[#allocation5 + $0x198] sm:$0xff]
      %v4650 = vld [vmem:[#allocation5 + $0x1c0] sm:$0xff]
      %v4651 = vld [vmem:[#allocation5 + $0x1e8] sm:$0xff]
      %v4652 = vld [vmem:[#allocation5 + $0x210] sm:$0xff]
      %v4653 = vld [vmem:[#allocation5 + $0x238] sm:$0xff]
      %v4654 = vld [vmem:[#allocation5 + $0x260] sm:$0xff]
      %v4655 = vld [vmem:[#allocation5 + $0x288] sm:$0xff]
      %v4656 = vld [vmem:[#allocation5 + $0x2b0] sm:$0xff]
      %v4657 = vld [vmem:[#allocation5 + $0x2d8] sm:$0xff]
      %v4658 = vld [vmem:[#allocation5 + $0x300] sm:$0xff]
      %v4659 = vld [vmem:[#allocation5 + $0x328] sm:$0xff]
      %v4660 = vld [vmem:[#allocation5 + $0x350] sm:$0xff]
      %v4661 = vld [vmem:[#allocation5 + $0x378] sm:$0xff]
      %v4662 = vld [vmem:[#allocation5 + $0x3a0] sm:$0xff]
      %v4663 = vld [vmem:[#allocation5 + $0x3c8] sm:$0xff]
      %v4664 = vld [vmem:[#allocation5 + $0x3f0] sm:$0xff]
      %v4665 = vld [vmem:[#allocation5 + $0x418] sm:$0xff]
      %v4666 = vld [vmem:[#allocation5 + $0x440] sm:$0xff]
      %v4667 = vld [vmem:[#allocation5 + $0x468] sm:$0xff]
      %v4668 = vld [vmem:[#allocation5 + $0x490] sm:$0xff]
      %v4669 = vld [vmem:[#allocation5 + $0x4b8] sm:$0xff]
      %v4670 = vld [vmem:[#allocation5 + $0x4e0] sm:$0x1]
      %v4702 = vrot.slane %v4640, 2
      %v4703 = vrot.slane %v4641, 2
      %v4704 = vsel %vm1699, %v4702, %v4703
      %v4705 = vrot.slane %v4642, 2
      %v4706 = vsel %vm1699, %v4703, %v4705
      %v4707 = vrot.slane %v4643, 2
      %v4708 = vsel %vm1699, %v4705, %v4707
      %v4709 = vrot.slane %v4644, 2
      %v4710 = vsel %vm1699, %v4707, %v4709
      %v4711 = vrot.slane %v4645, 2
      %v4712 = vsel %vm1699, %v4709, %v4711
      %v4713 = vrot.slane %v4646, 2
      %v4714 = vsel %vm1699, %v4711, %v4713
      %v4715 = vrot.slane %v4647, 2
      %v4716 = vsel %vm1699, %v4713, %v4715
      %v4717 = vrot.slane %v4648, 2
      %v4718 = vsel %vm1699, %v4715, %v4717
      %v4719 = vrot.slane %v4649, 2
      %v4720 = vsel %vm1699, %v4717, %v4719
      %v4721 = vrot.slane %v4650, 2
      %v4722 = vsel %vm1699, %v4719, %v4721
      %v4723 = vrot.slane %v4651, 2
      %v4724 = vsel %vm1699, %v4721, %v4723
      %v4725 = vrot.slane %v4652, 2
      %v4726 = vsel %vm1699, %v4723, %v4725
      %v4727 = vrot.slane %v4653, 2
      %v4728 = vsel %vm1699, %v4725, %v4727
      %v4729 = vrot.slane %v4654, 2
      %v4730 = vsel %vm1699, %v4727, %v4729
      %v4731 = vrot.slane %v4655, 2
      %v4732 = vsel %vm1699, %v4729, %v4731
      %v4733 = vrot.slane %v4656, 2
      %v4734 = vsel %vm1699, %v4731, %v4733
      %v4735 = vrot.slane %v4657, 2
      %v4736 = vsel %vm1699, %v4733, %v4735
      %v4737 = vrot.slane %v4658, 2
      %v4738 = vsel %vm1699, %v4735, %v4737
      %v4739 = vrot.slane %v4659, 2
      %v4740 = vsel %vm1699, %v4737, %v4739
      %v4741 = vrot.slane %v4660, 2
      %v4742 = vsel %vm1699, %v4739, %v4741
      %v4743 = vrot.slane %v4661, 2
      %v4744 = vsel %vm1699, %v4741, %v4743
      %v4745 = vrot.slane %v4662, 2
      %v4746 = vsel %vm1699, %v4743, %v4745
      %v4747 = vrot.slane %v4663, 2
      %v4748 = vsel %vm1699, %v4745, %v4747
      %v4749 = vrot.slane %v4664, 2
      %v4750 = vsel %vm1699, %v4747, %v4749
      %v4751 = vrot.slane %v4665, 2
      %v4752 = vsel %vm1699, %v4749, %v4751
      %v4753 = vrot.slane %v4666, 2
      %v4754 = vsel %vm1699, %v4751, %v4753
      %v4755 = vrot.slane %v4667, 2
      %v4756 = vsel %vm1699, %v4753, %v4755
      %v4757 = vrot.slane %v4668, 2
      %v4758 = vsel %vm1699, %v4755, %v4757
      %v4759 = vrot.slane %v4669, 2
      %v4760 = vsel %vm1699, %v4757, %v4759
      %v4761 = vrot.slane %v4670, 2
      %v4762 = vsel %vm1699, %v4759, %v4761
      %v4794 = vadd.f32 %v4609, %v4702
      %v4795 = vadd.f32 %v4610, %v4704
      %v4796 = vadd.f32 %v4611, %v4706
      %v4797 = vadd.f32 %v4612, %v4708
      %v4798 = vadd.f32 %v4613, %v4710
      %v4799 = vadd.f32 %v4614, %v4712
      %v4800 = vadd.f32 %v4615, %v4714
      %v4801 = vadd.f32 %v4616, %v4716
      %v4802 = vadd.f32 %v4617, %v4718
      %v4803 = vadd.f32 %v4618, %v4720
      %v4804 = vadd.f32 %v4619, %v4722
      %v4805 = vadd.f32 %v4620, %v4724
      %v4806 = vadd.f32 %v4621, %v4726
      %v4807 = vadd.f32 %v4622, %v4728
      %v4808 = vadd.f32 %v4623, %v4730
      %v4809 = vadd.f32 %v4624, %v4732
      %v4810 = vadd.f32 %v4625, %v4734
      %v4811 = vadd.f32 %v4626, %v4736
      %v4812 = vadd.f32 %v4627, %v4738
      %v4813 = vadd.f32 %v4628, %v4740
      %v4814 = vadd.f32 %v4629, %v4742
      %v4815 = vadd.f32 %v4630, %v4744
      %v4816 = vadd.f32 %v4631, %v4746
      %v4817 = vadd.f32 %v4632, %v4748
      %v4818 = vadd.f32 %v4633, %v4750
      %v4819 = vadd.f32 %v4634, %v4752
      %v4820 = vadd.f32 %v4635, %v4754
      %v4821 = vadd.f32 %v4636, %v4756
      %v4822 = vadd.f32 %v4637, %v4758
      %v4823 = vadd.f32 %v4638, %v4760
      %v4824 = vadd.f32 %v4639, %v4762
      %v4825 = vld [vmem:[#allocation5 + $0x80] sm:$0x80]
      %v4826 = vld [vmem:[#allocation5 + $0x4e0] sm:$0xff]
      %v4827 = vld [vmem:[#allocation5 + $0x508] sm:$0xff]
      %v4828 = vld [vmem:[#allocation5 + $0x530] sm:$0x7f]
      %4833 = vrot.lane.b32.xlu0 %v4825, 64
      %v4834 = vpop.permute.xlu0 %4833
      %4835 = vrot.lane.b32.xlu0 %v4643, 64
      %v4836 = vpop.permute.xlu0 %4835
      %4837 = vrot.lane.b32.xlu0 %v4644, 64
      %v4838 = vpop.permute.xlu0 %4837
      %4839 = vrot.lane.b32.xlu0 %v4645, 64
      %v4840 = vpop.permute.xlu0 %4839
      %4841 = vrot.lane.b32.xlu0 %v4646, 64
      %v4842 = vpop.permute.xlu0 %4841
      %4843 = vrot.lane.b32.xlu0 %v4647, 64
      %v4844 = vpop.permute.xlu0 %4843
      %4845 = vrot.lane.b32.xlu0 %v4648, 64
      %v4846 = vpop.permute.xlu0 %4845
      %4847 = vrot.lane.b32.xlu0 %v4649, 64
      %v4848 = vpop.permute.xlu0 %4847
      %4849 = vrot.lane.b32.xlu0 %v4650, 64
      %v4850 = vpop.permute.xlu0 %4849
      %4851 = vrot.lane.b32.xlu0 %v4651, 64
      %v4852 = vpop.permute.xlu0 %4851
      %4853 = vrot.lane.b32.xlu0 %v4652, 64
      %v4854 = vpop.permute.xlu0 %4853
      %4855 = vrot.lane.b32.xlu0 %v4653, 64
      %v4856 = vpop.permute.xlu0 %4855
      %4857 = vrot.lane.b32.xlu0 %v4654, 64
      %v4858 = vpop.permute.xlu0 %4857
      %4859 = vrot.lane.b32.xlu0 %v4655, 64
      %v4860 = vpop.permute.xlu0 %4859
      %4861 = vrot.lane.b32.xlu0 %v4656, 64
      %v4862 = vpop.permute.xlu0 %4861
      %4863 = vrot.lane.b32.xlu0 %v4657, 64
      %v4864 = vpop.permute.xlu0 %4863
      %4865 = vrot.lane.b32.xlu0 %v4658, 64
      %v4866 = vpop.permute.xlu0 %4865
      %4867 = vrot.lane.b32.xlu0 %v4659, 64
      %v4868 = vpop.permute.xlu0 %4867
      %4869 = vrot.lane.b32.xlu0 %v4660, 64
      %v4870 = vpop.permute.xlu0 %4869
      %4871 = vrot.lane.b32.xlu0 %v4661, 64
      %v4872 = vpop.permute.xlu0 %4871
      %4873 = vrot.lane.b32.xlu0 %v4662, 64
      %v4874 = vpop.permute.xlu0 %4873
      %4875 = vrot.lane.b32.xlu0 %v4663, 64
      %v4876 = vpop.permute.xlu0 %4875
      %4877 = vrot.lane.b32.xlu0 %v4664, 64
      %v4878 = vpop.permute.xlu0 %4877
      %4879 = vrot.lane.b32.xlu0 %v4665, 64
      %v4880 = vpop.permute.xlu0 %4879
      %4881 = vrot.lane.b32.xlu0 %v4666, 64
      %v4882 = vpop.permute.xlu0 %4881
      %4883 = vrot.lane.b32.xlu0 %v4667, 64
      %v4884 = vpop.permute.xlu0 %4883
      %4885 = vrot.lane.b32.xlu0 %v4668, 64
      %v4886 = vpop.permute.xlu0 %4885
      %4887 = vrot.lane.b32.xlu0 %v4669, 64
      %v4888 = vpop.permute.xlu0 %4887
      %4889 = vrot.lane.b32.xlu0 %v4826, 64
      %v4890 = vpop.permute.xlu0 %4889
      %4891 = vrot.lane.b32.xlu0 %v4827, 64
      %v4892 = vpop.permute.xlu0 %4891
      %4893 = vrot.lane.b32.xlu0 %v4828, 64
      %v4894 = vpop.permute.xlu0 %4893
      %v4926 = vadd.f32 %v4794, %v4834
      %v4927 = vadd.f32 %v4795, %v4836
      %v4928 = vadd.f32 %v4796, %v4838
      %v4929 = vadd.f32 %v4797, %v4840
      %v4930 = vadd.f32 %v4798, %v4842
      %v4931 = vadd.f32 %v4799, %v4844
      %v4932 = vadd.f32 %v4800, %v4846
      %v4933 = vadd.f32 %v4801, %v4848
      %v4934 = vadd.f32 %v4802, %v4850
      %v4935 = vadd.f32 %v4803, %v4852
      %v4936 = vadd.f32 %v4804, %v4854
      %v4937 = vadd.f32 %v4805, %v4856
      %v4938 = vadd.f32 %v4806, %v4858
      %v4939 = vadd.f32 %v4807, %v4860
      %v4940 = vadd.f32 %v4808, %v4862
      %v4941 = vadd.f32 %v4809, %v4864
      %v4942 = vadd.f32 %v4810, %v4866
      %v4943 = vadd.f32 %v4811, %v4868
      %v4944 = vadd.f32 %v4812, %v4870
      %v4945 = vadd.f32 %v4813, %v4872
      %v4946 = vadd.f32 %v4814, %v4874
      %v4947 = vadd.f32 %v4815, %v4876
      %v4948 = vadd.f32 %v4816, %v4878
      %v4949 = vadd.f32 %v4817, %v4880
      %v4950 = vadd.f32 %v4818, %v4882
      %v4951 = vadd.f32 %v4819, %v4884
      %v4952 = vadd.f32 %v4820, %v4886
      %v4953 = vadd.f32 %v4821, %v4888
      %v4954 = vadd.f32 %v4822, %v4890
      %v4955 = vadd.f32 %v4823, %v4892
      %v4956 = vadd.f32 %v4824, %v4894
      %v4957 = vld [vmem:[#allocation5 + $0xb0] sm:$0xff]
      %v4958 = vld [vmem:[#allocation5 + $0xd8] sm:$0xff]
      %v4959 = vld [vmem:[#allocation5 + $0x100] sm:$0xff]
      %v4960 = vld [vmem:[#allocation5 + $0x128] sm:$0xff]
      %v4961 = vld [vmem:[#allocation5 + $0x150] sm:$0xff]
      %v4962 = vld [vmem:[#allocation5 + $0x178] sm:$0xff]
      %v4963 = vld [vmem:[#allocation5 + $0x1a0] sm:$0xff]
      %v4964 = vld [vmem:[#allocation5 + $0x1c8] sm:$0xff]
      %v4965 = vld [vmem:[#allocation5 + $0x1f0] sm:$0xff]
      %v4966 = vld [vmem:[#allocation5 + $0x218] sm:$0xff]
      %v4967 = vld [vmem:[#allocation5 + $0x240] sm:$0xff]
      %v4968 = vld [vmem:[#allocation5 + $0x268] sm:$0xff]
      %v4969 = vld [vmem:[#allocation5 + $0x290] sm:$0xff]
      %v4970 = vld [vmem:[#allocation5 + $0x2b8] sm:$0xff]
      %v4971 = vld [vmem:[#allocation5 + $0x2e0] sm:$0xff]
      %v4972 = vld [vmem:[#allocation5 + $0x308] sm:$0xff]
      %v4973 = vld [vmem:[#allocation5 + $0x330] sm:$0xff]
      %v4974 = vld [vmem:[#allocation5 + $0x358] sm:$0xff]
      %v4975 = vld [vmem:[#allocation5 + $0x380] sm:$0xff]
      %v4976 = vld [vmem:[#allocation5 + $0x3a8] sm:$0xff]
      %v4977 = vld [vmem:[#allocation5 + $0x3d0] sm:$0xff]
      %v4978 = vld [vmem:[#allocation5 + $0x3f8] sm:$0xff]
      %v4979 = vld [vmem:[#allocation5 + $0x420] sm:$0xff]
      %v4980 = vld [vmem:[#allocation5 + $0x448] sm:$0xff]
      %v4981 = vld [vmem:[#allocation5 + $0x470] sm:$0xff]
      %v4982 = vld [vmem:[#allocation5 + $0x498] sm:$0xff]
      %v4983 = vld [vmem:[#allocation5 + $0x4c0] sm:$0xff]
      %v4984 = vld [vmem:[#allocation5 + $0x4e8] sm:$0xff]
      %v4985 = vld [vmem:[#allocation5 + $0x510] sm:$0xff]
      %v4986 = vld [vmem:[#allocation5 + $0x538] sm:$0xff]
      %v5017 = vrot.slane %v4957, 1
      %v5018 = vrot.slane %v4958, 1
      %v5019 = vsel %vm1511, %v5017, %v5018
      %v5020 = vrot.slane %v4959, 1
      %v5021 = vsel %vm1511, %v5018, %v5020
      %v5022 = vrot.slane %v4960, 1
      %v5023 = vsel %vm1511, %v5020, %v5022
      %v5024 = vrot.slane %v4961, 1
      %v5025 = vsel %vm1511, %v5022, %v5024
      %v5026 = vrot.slane %v4962, 1
      %v5027 = vsel %vm1511, %v5024, %v5026
      %v5028 = vrot.slane %v4963, 1
      %v5029 = vsel %vm1511, %v5026, %v5028
      %v5030 = vrot.slane %v4964, 1
      %v5031 = vsel %vm1511, %v5028, %v5030
      %v5032 = vrot.slane %v4965, 1
      %v5033 = vsel %vm1511, %v5030, %v5032
      %v5034 = vrot.slane %v4966, 1
      %v5035 = vsel %vm1511, %v5032, %v5034
      %v5036 = vrot.slane %v4967, 1
      %v5037 = vsel %vm1511, %v5034, %v5036
      %v5038 = vrot.slane %v4968, 1
      %v5039 = vsel %vm1511, %v5036, %v5038
      %v5040 = vrot.slane %v4969, 1
      %v5041 = vsel %vm1511, %v5038, %v5040
      %v5042 = vrot.slane %v4970, 1
      %v5043 = vsel %vm1511, %v5040, %v5042
      %v5044 = vrot.slane %v4971, 1
      %v5045 = vsel %vm1511, %v5042, %v5044
      %v5046 = vrot.slane %v4972, 1
      %v5047 = vsel %vm1511, %v5044, %v5046
      %v5048 = vrot.slane %v4973, 1
      %v5049 = vsel %vm1511, %v5046, %v5048
      %v5050 = vrot.slane %v4974, 1
      %v5051 = vsel %vm1511, %v5048, %v5050
      %v5052 = vrot.slane %v4975, 1
      %v5053 = vsel %vm1511, %v5050, %v5052
      %v5054 = vrot.slane %v4976, 1
      %v5055 = vsel %vm1511, %v5052, %v5054
      %v5056 = vrot.slane %v4977, 1
      %v5057 = vsel %vm1511, %v5054, %v5056
      %v5058 = vrot.slane %v4978, 1
      %v5059 = vsel %vm1511, %v5056, %v5058
      %v5060 = vrot.slane %v4979, 1
      %v5061 = vsel %vm1511, %v5058, %v5060
      %v5062 = vrot.slane %v4980, 1
      %v5063 = vsel %vm1511, %v5060, %v5062
      %v5064 = vrot.slane %v4981, 1
      %v5065 = vsel %vm1511, %v5062, %v5064
      %v5066 = vrot.slane %v4982, 1
      %v5067 = vsel %vm1511, %v5064, %v5066
      %v5068 = vrot.slane %v4983, 1
      %v5069 = vsel %vm1511, %v5066, %v5068
      %v5070 = vrot.slane %v4984, 1
      %v5071 = vsel %vm1511, %v5068, %v5070
      %v5072 = vrot.slane %v4985, 1
      %v5073 = vsel %vm1511, %v5070, %v5072
      %v5074 = vrot.slane %v4986, 1
      %v5075 = vsel %vm1511, %v5072, %v5074
      %v5107 = vadd.f32 %v4926, %v5017
      %v5108 = vadd.f32 %v4927, %v5019
      %v5109 = vadd.f32 %v4928, %v5021
      %v5110 = vadd.f32 %v4929, %v5023
      %v5111 = vadd.f32 %v4930, %v5025
      %v5112 = vadd.f32 %v4931, %v5027
      %v5113 = vadd.f32 %v4932, %v5029
      %v5114 = vadd.f32 %v4933, %v5031
      %v5115 = vadd.f32 %v4934, %v5033
      %v5116 = vadd.f32 %v4935, %v5035
      %v5117 = vadd.f32 %v4936, %v5037
      %v5118 = vadd.f32 %v4937, %v5039
      %v5119 = vadd.f32 %v4938, %v5041
      %v5120 = vadd.f32 %v4939, %v5043
      %v5121 = vadd.f32 %v4940, %v5045
      %v5122 = vadd.f32 %v4941, %v5047
      %v5123 = vadd.f32 %v4942, %v5049
      %v5124 = vadd.f32 %v4943, %v5051
      %v5125 = vadd.f32 %v4944, %v5053
      %v5126 = vadd.f32 %v4945, %v5055
      %v5127 = vadd.f32 %v4946, %v5057
      %v5128 = vadd.f32 %v4947, %v5059
      %v5129 = vadd.f32 %v4948, %v5061
      %v5130 = vadd.f32 %v4949, %v5063
      %v5131 = vadd.f32 %v4950, %v5065
      %v5132 = vadd.f32 %v4951, %v5067
      %v5133 = vadd.f32 %v4952, %v5069
      %v5134 = vadd.f32 %v4953, %v5071
      %v5135 = vadd.f32 %v4954, %v5073
      %v5136 = vadd.f32 %v4955, %v5075
      %v5137 = vadd.f32 %v4956, %v5074
      %v5138 = vld [vmem:[#allocation5 + $0xb0] sm:$0xfe]
      %v5139 = vld [vmem:[#allocation5 + $0x560] sm:$0x1]
      %v5142 = vrot.slane %v5138, 2
      %v5143 = vrot.slane %v4958, 2
      %v5144 = vsel %vm1699, %v5142, %v5143
      %v5145 = vrot.slane %v4959, 2
      %v5146 = vsel %vm1699, %v5143, %v5145
      %v5147 = vrot.slane %v4960, 2
      %v5148 = vsel %vm1699, %v5145, %v5147
      %v5149 = vrot.slane %v4961, 2
      %v5150 = vsel %vm1699, %v5147, %v5149
      %v5151 = vrot.slane %v4962, 2
      %v5152 = vsel %vm1699, %v5149, %v5151
      %v5153 = vrot.slane %v4963, 2
      %v5154 = vsel %vm1699, %v5151, %v5153
      %v5155 = vrot.slane %v4964, 2
      %v5156 = vsel %vm1699, %v5153, %v5155
      %v5157 = vrot.slane %v4965, 2
      %v5158 = vsel %vm1699, %v5155, %v5157
      %v5159 = vrot.slane %v4966, 2
      %v5160 = vsel %vm1699, %v5157, %v5159
      %v5161 = vrot.slane %v4967, 2
      %v5162 = vsel %vm1699, %v5159, %v5161
      %v5163 = vrot.slane %v4968, 2
      %v5164 = vsel %vm1699, %v5161, %v5163
      %v5165 = vrot.slane %v4969, 2
      %v5166 = vsel %vm1699, %v5163, %v5165
      %v5167 = vrot.slane %v4970, 2
      %v5168 = vsel %vm1699, %v5165, %v5167
      %v5169 = vrot.slane %v4971, 2
      %v5170 = vsel %vm1699, %v5167, %v5169
      %v5171 = vrot.slane %v4972, 2
      %v5172 = vsel %vm1699, %v5169, %v5171
      %v5173 = vrot.slane %v4973, 2
      %v5174 = vsel %vm1699, %v5171, %v5173
      %v5175 = vrot.slane %v4974, 2
      %v5176 = vsel %vm1699, %v5173, %v5175
      %v5177 = vrot.slane %v4975, 2
      %v5178 = vsel %vm1699, %v5175, %v5177
      %v5179 = vrot.slane %v4976, 2
      %v5180 = vsel %vm1699, %v5177, %v5179
      %v5181 = vrot.slane %v4977, 2
      %v5182 = vsel %vm1699, %v5179, %v5181
      %v5183 = vrot.slane %v4978, 2
      %v5184 = vsel %vm1699, %v5181, %v5183
      %v5185 = vrot.slane %v4979, 2
      %v5186 = vsel %vm1699, %v5183, %v5185
      %v5187 = vrot.slane %v4980, 2
      %v5188 = vsel %vm1699, %v5185, %v5187
      %v5189 = vrot.slane %v4981, 2
      %v5190 = vsel %vm1699, %v5187, %v5189
      %v5191 = vrot.slane %v4982, 2
      %v5192 = vsel %vm1699, %v5189, %v5191
      %v5193 = vrot.slane %v4983, 2
      %v5194 = vsel %vm1699, %v5191, %v5193
      %v5195 = vrot.slane %v4984, 2
      %v5196 = vsel %vm1699, %v5193, %v5195
      %v5197 = vrot.slane %v4985, 2
      %v5198 = vsel %vm1699, %v5195, %v5197
      %v5199 = vrot.slane %v4986, 2
      %v5200 = vsel %vm1699, %v5197, %v5199
      %v5201 = vrot.slane %v5139, 2
      %v5202 = vsel %vm1699, %v5199, %v5201
      %5203 = vrot.lane.b32.xlu0 %v5142, 64
      %v5204 = vpop.permute.xlu0 %5203
      %5205 = vrot.lane.b32.xlu0 %v5144, 64
      %v5206 = vpop.permute.xlu0 %5205
      %5207 = vrot.lane.b32.xlu0 %v5146, 64
      %v5208 = vpop.permute.xlu0 %5207
      %5209 = vrot.lane.b32.xlu0 %v5148, 64
      %v5210 = vpop.permute.xlu0 %5209
      %5211 = vrot.lane.b32.xlu0 %v5150, 64
      %v5212 = vpop.permute.xlu0 %5211
      %5213 = vrot.lane.b32.xlu0 %v5152, 64
      %v5214 = vpop.permute.xlu0 %5213
      %5215 = vrot.lane.b32.xlu0 %v5154, 64
      %v5216 = vpop.permute.xlu0 %5215
      %5217 = vrot.lane.b32.xlu0 %v5156, 64
      %v5218 = vpop.permute.xlu0 %5217
      %5219 = vrot.lane.b32.xlu0 %v5158, 64
      %v5220 = vpop.permute.xlu0 %5219
      %5221 = vrot.lane.b32.xlu0 %v5160, 64
      %v5222 = vpop.permute.xlu0 %5221
      %5223 = vrot.lane.b32.xlu0 %v5162, 64
      %v5224 = vpop.permute.xlu0 %5223
      %5225 = vrot.lane.b32.xlu0 %v5164, 64
      %v5226 = vpop.permute.xlu0 %5225
      %5227 = vrot.lane.b32.xlu0 %v5166, 64
      %v5228 = vpop.permute.xlu0 %5227
      %5229 = vrot.lane.b32.xlu0 %v5168, 64
      %v5230 = vpop.permute.xlu0 %5229
      %5231 = vrot.lane.b32.xlu0 %v5170, 64
      %v5232 = vpop.permute.xlu0 %5231
      %5233 = vrot.lane.b32.xlu0 %v5172, 64
      %v5234 = vpop.permute.xlu0 %5233
      %5235 = vrot.lane.b32.xlu0 %v5174, 64
      %v5236 = vpop.permute.xlu0 %5235
      %5237 = vrot.lane.b32.xlu0 %v5176, 64
      %v5238 = vpop.permute.xlu0 %5237
      %5239 = vrot.lane.b32.xlu0 %v5178, 64
      %v5240 = vpop.permute.xlu0 %5239
      %5241 = vrot.lane.b32.xlu0 %v5180, 64
      %v5242 = vpop.permute.xlu0 %5241
      %5243 = vrot.lane.b32.xlu0 %v5182, 64
      %v5244 = vpop.permute.xlu0 %5243
      %5245 = vrot.lane.b32.xlu0 %v5184, 64
      %v5246 = vpop.permute.xlu0 %5245
      %5247 = vrot.lane.b32.xlu0 %v5186, 64
      %v5248 = vpop.permute.xlu0 %5247
      %5249 = vrot.lane.b32.xlu0 %v5188, 64
      %v5250 = vpop.permute.xlu0 %5249
      %5251 = vrot.lane.b32.xlu0 %v5190, 64
      %v5252 = vpop.permute.xlu0 %5251
      %5253 = vrot.lane.b32.xlu0 %v5192, 64
      %v5254 = vpop.permute.xlu0 %5253
      %5255 = vrot.lane.b32.xlu0 %v5194, 64
      %v5256 = vpop.permute.xlu0 %5255
      %5257 = vrot.lane.b32.xlu0 %v5196, 64
      %v5258 = vpop.permute.xlu0 %5257
      %5259 = vrot.lane.b32.xlu0 %v5198, 64
      %v5260 = vpop.permute.xlu0 %5259
      %5261 = vrot.lane.b32.xlu0 %v5200, 64
      %v5262 = vpop.permute.xlu0 %5261
      %5263 = vrot.lane.b32.xlu0 %v5202, 64
      %v5264 = vpop.permute.xlu0 %5263
      %v5296 = vadd.f32 %v5107, %v5204
      %v5297 = vadd.f32 %v5108, %v5206
      %v5298 = vadd.f32 %v5109, %v5208
      %v5299 = vadd.f32 %v5110, %v5210
      %v5300 = vadd.f32 %v5111, %v5212
      %v5301 = vadd.f32 %v5112, %v5214
      %v5302 = vadd.f32 %v5113, %v5216
      %v5303 = vadd.f32 %v5114, %v5218
      %v5304 = vadd.f32 %v5115, %v5220
      %v5305 = vadd.f32 %v5116, %v5222
      %v5306 = vadd.f32 %v5117, %v5224
      %v5307 = vadd.f32 %v5118, %v5226
      %v5308 = vadd.f32 %v5119, %v5228
      %v5309 = vadd.f32 %v5120, %v5230
      %v5310 = vadd.f32 %v5121, %v5232
      %v5311 = vadd.f32 %v5122, %v5234
      %v5312 = vadd.f32 %v5123, %v5236
      %v5313 = vadd.f32 %v5124, %v5238
      %v5314 = vadd.f32 %v5125, %v5240
      %v5315 = vadd.f32 %v5126, %v5242
      %v5316 = vadd.f32 %v5127, %v5244
      %v5317 = vadd.f32 %v5128, %v5246
      %v5318 = vadd.f32 %v5129, %v5248
      %v5319 = vadd.f32 %v5130, %v5250
      %v5320 = vadd.f32 %v5131, %v5252
      %v5321 = vadd.f32 %v5132, %v5254
      %v5322 = vadd.f32 %v5133, %v5256
      %v5323 = vadd.f32 %v5134, %v5258
      %v5324 = vadd.f32 %v5135, %v5260
      %v5325 = vadd.f32 %v5136, %v5262
      %v5326 = vadd.f32 %v5137, %v5264
      %v5327 = vld [vmem:[#allocation5 + $0x108] sm:$0x80]
      %v5328 = vld [vmem:[#allocation5 + $0x130] sm:$0xff]
      %v5329 = vld [vmem:[#allocation5 + $0x158] sm:$0xff]
      %v5330 = vld [vmem:[#allocation5 + $0x180] sm:$0xff]
      %v5331 = vld [vmem:[#allocation5 + $0x1a8] sm:$0xff]
      %v5332 = vld [vmem:[#allocation5 + $0x1d0] sm:$0xff]
      %v5333 = vld [vmem:[#allocation5 + $0x1f8] sm:$0xff]
      %v5334 = vld [vmem:[#allocation5 + $0x220] sm:$0xff]
      %v5335 = vld [vmem:[#allocation5 + $0x248] sm:$0xff]
      %v5336 = vld [vmem:[#allocation5 + $0x270] sm:$0xff]
      %v5337 = vld [vmem:[#allocation5 + $0x298] sm:$0xff]
      %v5338 = vld [vmem:[#allocation5 + $0x2c0] sm:$0xff]
      %v5339 = vld [vmem:[#allocation5 + $0x2e8] sm:$0xff]
      %v5340 = vld [vmem:[#allocation5 + $0x310] sm:$0xff]
      %v5341 = vld [vmem:[#allocation5 + $0x338] sm:$0xff]
      %v5342 = vld [vmem:[#allocation5 + $0x360] sm:$0xff]
      %v5343 = vld [vmem:[#allocation5 + $0x388] sm:$0xff]
      %v5344 = vld [vmem:[#allocation5 + $0x3b0] sm:$0xff]
      %v5345 = vld [vmem:[#allocation5 + $0x3d8] sm:$0xff]
      %v5346 = vld [vmem:[#allocation5 + $0x400] sm:$0xff]
      %v5347 = vld [vmem:[#allocation5 + $0x428] sm:$0xff]
      %v5348 = vld [vmem:[#allocation5 + $0x450] sm:$0xff]
      %v5349 = vld [vmem:[#allocation5 + $0x478] sm:$0xff]
      %v5350 = vld [vmem:[#allocation5 + $0x4a0] sm:$0xff]
      %v5351 = vld [vmem:[#allocation5 + $0x4c8] sm:$0xff]
      %v5352 = vld [vmem:[#allocation5 + $0x4f0] sm:$0xff]
      %v5353 = vld [vmem:[#allocation5 + $0x518] sm:$0xff]
      %v5354 = vld [vmem:[#allocation5 + $0x540] sm:$0xff]
      %v5355 = vld [vmem:[#allocation5 + $0x568] sm:$0xff]
      %v5356 = vld [vmem:[#allocation5 + $0x590] sm:$0xff]
      %v5357 = vld [vmem:[#allocation5 + $0x5b8] sm:$0x7f]
      %v5358 = vadd.f32 %v5296, %v5327
      %v5359 = vadd.f32 %v5297, %v5328
      %v5360 = vadd.f32 %v5298, %v5329
      %v5361 = vadd.f32 %v5299, %v5330
      %v5362 = vadd.f32 %v5300, %v5331
      %v5363 = vadd.f32 %v5301, %v5332
      %v5364 = vadd.f32 %v5302, %v5333
      %v5365 = vadd.f32 %v5303, %v5334
      %v5366 = vadd.f32 %v5304, %v5335
      %v5367 = vadd.f32 %v5305, %v5336
      %v5368 = vadd.f32 %v5306, %v5337
      %v5369 = vadd.f32 %v5307, %v5338
      %v5370 = vadd.f32 %v5308, %v5339
      %v5371 = vadd.f32 %v5309, %v5340
      %v5372 = vadd.f32 %v5310, %v5341
      %v5373 = vadd.f32 %v5311, %v5342
      %v5374 = vadd.f32 %v5312, %v5343
      %v5375 = vadd.f32 %v5313, %v5344
      %v5376 = vadd.f32 %v5314, %v5345
      %v5377 = vadd.f32 %v5315, %v5346
      %v5378 = vadd.f32 %v5316, %v5347
      %v5379 = vadd.f32 %v5317, %v5348
      %v5380 = vadd.f32 %v5318, %v5349
      %v5381 = vadd.f32 %v5319, %v5350
      %v5382 = vadd.f32 %v5320, %v5351
      %v5383 = vadd.f32 %v5321, %v5352
      %v5384 = vadd.f32 %v5322, %v5353
      %v5385 = vadd.f32 %v5323, %v5354
      %v5386 = vadd.f32 %v5324, %v5355
      %v5387 = vadd.f32 %v5325, %v5356
      %v5388 = vadd.f32 %v5326, %v5357
      %v5389 = vld [vmem:[#allocation5 + $0x5b8] sm:$0xff]
      %v5420 = vrot.slane %v5328, 1
      %v5421 = vrot.slane %v5329, 1
      %v5422 = vsel %vm1511, %v5420, %v5421
      %v5423 = vrot.slane %v5330, 1
      %v5424 = vsel %vm1511, %v5421, %v5423
      %v5425 = vrot.slane %v5331, 1
      %v5426 = vsel %vm1511, %v5423, %v5425
      %v5427 = vrot.slane %v5332, 1
      %v5428 = vsel %vm1511, %v5425, %v5427
      %v5429 = vrot.slane %v5333, 1
      %v5430 = vsel %vm1511, %v5427, %v5429
      %v5431 = vrot.slane %v5334, 1
      %v5432 = vsel %vm1511, %v5429, %v5431
      %v5433 = vrot.slane %v5335, 1
      %v5434 = vsel %vm1511, %v5431, %v5433
      %v5435 = vrot.slane %v5336, 1
      %v5436 = vsel %vm1511, %v5433, %v5435
      %v5437 = vrot.slane %v5337, 1
      %v5438 = vsel %vm1511, %v5435, %v5437
      %v5439 = vrot.slane %v5338, 1
      %v5440 = vsel %vm1511, %v5437, %v5439
      %v5441 = vrot.slane %v5339, 1
      %v5442 = vsel %vm1511, %v5439, %v5441
      %v5443 = vrot.slane %v5340, 1
      %v5444 = vsel %vm1511, %v5441, %v5443
      %v5445 = vrot.slane %v5341, 1
      %v5446 = vsel %vm1511, %v5443, %v5445
      %v5447 = vrot.slane %v5342, 1
      %v5448 = vsel %vm1511, %v5445, %v5447
      %v5449 = vrot.slane %v5343, 1
      %v5450 = vsel %vm1511, %v5447, %v5449
      %v5451 = vrot.slane %v5344, 1
      %v5452 = vsel %vm1511, %v5449, %v5451
      %v5453 = vrot.slane %v5345, 1
      %v5454 = vsel %vm1511, %v5451, %v5453
      %v5455 = vrot.slane %v5346, 1
      %v5456 = vsel %vm1511, %v5453, %v5455
      %v5457 = vrot.slane %v5347, 1
      %v5458 = vsel %vm1511, %v5455, %v5457
      %v5459 = vrot.slane %v5348, 1
      %v5460 = vsel %vm1511, %v5457, %v5459
      %v5461 = vrot.slane %v5349, 1
      %v5462 = vsel %vm1511, %v5459, %v5461
      %v5463 = vrot.slane %v5350, 1
      %v5464 = vsel %vm1511, %v5461, %v5463
      %v5465 = vrot.slane %v5351, 1
      %v5466 = vsel %vm1511, %v5463, %v5465
      %v5467 = vrot.slane %v5352, 1
      %v5468 = vsel %vm1511, %v5465, %v5467
      %v5469 = vrot.slane %v5353, 1
      %v5470 = vsel %vm1511, %v5467, %v5469
      %v5471 = vrot.slane %v5354, 1
      %v5472 = vsel %vm1511, %v5469, %v5471
      %v5473 = vrot.slane %v5355, 1
      %v5474 = vsel %vm1511, %v5471, %v5473
      %v5475 = vrot.slane %v5356, 1
      %v5476 = vsel %vm1511, %v5473, %v5475
      %v5477 = vrot.slane %v5389, 1
      %v5478 = vsel %vm1511, %v5475, %v5477
      %5479 = vrot.lane.b32.xlu0 %v5420, 64
      %v5480 = vpop.permute.xlu0 %5479
      %5481 = vrot.lane.b32.xlu0 %v5422, 64
      %v5482 = vpop.permute.xlu0 %5481
      %5483 = vrot.lane.b32.xlu0 %v5424, 64
      %v5484 = vpop.permute.xlu0 %5483
      %5485 = vrot.lane.b32.xlu0 %v5426, 64
      %v5486 = vpop.permute.xlu0 %5485
      %5487 = vrot.lane.b32.xlu0 %v5428, 64
      %v5488 = vpop.permute.xlu0 %5487
      %5489 = vrot.lane.b32.xlu0 %v5430, 64
      %v5490 = vpop.permute.xlu0 %5489
      %5491 = vrot.lane.b32.xlu0 %v5432, 64
      %v5492 = vpop.permute.xlu0 %5491
      %5493 = vrot.lane.b32.xlu0 %v5434, 64
      %v5494 = vpop.permute.xlu0 %5493
      %5495 = vrot.lane.b32.xlu0 %v5436, 64
      %v5496 = vpop.permute.xlu0 %5495
      %5497 = vrot.lane.b32.xlu0 %v5438, 64
      %v5498 = vpop.permute.xlu0 %5497
      %5499 = vrot.lane.b32.xlu0 %v5440, 64
      %v5500 = vpop.permute.xlu0 %5499
      %5501 = vrot.lane.b32.xlu0 %v5442, 64
      %v5502 = vpop.permute.xlu0 %5501
      %5503 = vrot.lane.b32.xlu0 %v5444, 64
      %v5504 = vpop.permute.xlu0 %5503
      %5505 = vrot.lane.b32.xlu0 %v5446, 64
      %v5506 = vpop.permute.xlu0 %5505
      %5507 = vrot.lane.b32.xlu0 %v5448, 64
      %v5508 = vpop.permute.xlu0 %5507
      %5509 = vrot.lane.b32.xlu0 %v5450, 64
      %v5510 = vpop.permute.xlu0 %5509
      %5511 = vrot.lane.b32.xlu0 %v5452, 64
      %v5512 = vpop.permute.xlu0 %5511
      %5513 = vrot.lane.b32.xlu0 %v5454, 64
      %v5514 = vpop.permute.xlu0 %5513
      %5515 = vrot.lane.b32.xlu0 %v5456, 64
      %v5516 = vpop.permute.xlu0 %5515
      %5517 = vrot.lane.b32.xlu0 %v5458, 64
      %v5518 = vpop.permute.xlu0 %5517
      %5519 = vrot.lane.b32.xlu0 %v5460, 64
      %v5520 = vpop.permute.xlu0 %5519
      %5521 = vrot.lane.b32.xlu0 %v5462, 64
      %v5522 = vpop.permute.xlu0 %5521
      %5523 = vrot.lane.b32.xlu0 %v5464, 64
      %v5524 = vpop.permute.xlu0 %5523
      %5525 = vrot.lane.b32.xlu0 %v5466, 64
      %v5526 = vpop.permute.xlu0 %5525
      %5527 = vrot.lane.b32.xlu0 %v5468, 64
      %v5528 = vpop.permute.xlu0 %5527
      %5529 = vrot.lane.b32.xlu0 %v5470, 64
      %v5530 = vpop.permute.xlu0 %5529
      %5531 = vrot.lane.b32.xlu0 %v5472, 64
      %v5532 = vpop.permute.xlu0 %5531
      %5533 = vrot.lane.b32.xlu0 %v5474, 64
      %v5534 = vpop.permute.xlu0 %5533
      %5535 = vrot.lane.b32.xlu0 %v5476, 64
      %v5536 = vpop.permute.xlu0 %5535
      %5537 = vrot.lane.b32.xlu0 %v5478, 64
      %v5538 = vpop.permute.xlu0 %5537
      %5539 = vrot.lane.b32.xlu0 %v5477, 64
      %v5540 = vpop.permute.xlu0 %5539
      %v5572 = vadd.f32 %v5358, %v5480
      %v5573 = vadd.f32 %v5359, %v5482
      %v5574 = vadd.f32 %v5360, %v5484
      %v5575 = vadd.f32 %v5361, %v5486
      %v5576 = vadd.f32 %v5362, %v5488
      %v5577 = vadd.f32 %v5363, %v5490
      %v5578 = vadd.f32 %v5364, %v5492
      %v5579 = vadd.f32 %v5365, %v5494
      %v5580 = vadd.f32 %v5366, %v5496
      %v5581 = vadd.f32 %v5367, %v5498
      %v5582 = vadd.f32 %v5368, %v5500
      %v5583 = vadd.f32 %v5369, %v5502
      %v5584 = vadd.f32 %v5370, %v5504
      %v5585 = vadd.f32 %v5371, %v5506
      %v5586 = vadd.f32 %v5372, %v5508
      %v5587 = vadd.f32 %v5373, %v5510
      %v5588 = vadd.f32 %v5374, %v5512
      %v5589 = vadd.f32 %v5375, %v5514
      %v5590 = vadd.f32 %v5376, %v5516
      %v5591 = vadd.f32 %v5377, %v5518
      %v5592 = vadd.f32 %v5378, %v5520
      %v5593 = vadd.f32 %v5379, %v5522
      %v5594 = vadd.f32 %v5380, %v5524
      %v5595 = vadd.f32 %v5381, %v5526
      %v5596 = vadd.f32 %v5382, %v5528
      %v5597 = vadd.f32 %v5383, %v5530
      %v5598 = vadd.f32 %v5384, %v5532
      %v5599 = vadd.f32 %v5385, %v5534
      %v5600 = vadd.f32 %v5386, %v5536
      %v5601 = vadd.f32 %v5387, %v5538
      %v5602 = vadd.f32 %v5388, %v5540
      %v5603 = vld [vmem:[#allocation5 + $0x138] sm:$0xfe]
      %v5604 = vld [vmem:[#allocation5 + $0x160] sm:$0xff]
      %v5605 = vld [vmem:[#allocation5 + $0x188] sm:$0xff]
      %v5606 = vld [vmem:[#allocation5 + $0x1b0] sm:$0xff]
      %v5607 = vld [vmem:[#allocation5 + $0x1d8] sm:$0xff]
      %v5608 = vld [vmem:[#allocation5 + $0x200] sm:$0xff]
      %v5609 = vld [vmem:[#allocation5 + $0x228] sm:$0xff]
      %v5610 = vld [vmem:[#allocation5 + $0x250] sm:$0xff]
      %v5611 = vld [vmem:[#allocation5 + $0x278] sm:$0xff]
      %v5612 = vld [vmem:[#allocation5 + $0x2a0] sm:$0xff]
      %v5613 = vld [vmem:[#allocation5 + $0x2c8] sm:$0xff]
      %v5614 = vld [vmem:[#allocation5 + $0x2f0] sm:$0xff]
      %v5615 = vld [vmem:[#allocation5 + $0x318] sm:$0xff]
      %v5616 = vld [vmem:[#allocation5 + $0x340] sm:$0xff]
      %v5617 = vld [vmem:[#allocation5 + $0x368] sm:$0xff]
      %v5618 = vld [vmem:[#allocation5 + $0x390] sm:$0xff]
      %v5619 = vld [vmem:[#allocation5 + $0x3b8] sm:$0xff]
      %v5620 = vld [vmem:[#allocation5 + $0x3e0] sm:$0xff]
      %v5621 = vld [vmem:[#allocation5 + $0x408] sm:$0xff]
      %v5622 = vld [vmem:[#allocation5 + $0x430] sm:$0xff]
      %v5623 = vld [vmem:[#allocation5 + $0x458] sm:$0xff]
      %v5624 = vld [vmem:[#allocation5 + $0x480] sm:$0xff]
      %v5625 = vld [vmem:[#allocation5 + $0x4a8] sm:$0xff]
      %v5626 = vld [vmem:[#allocation5 + $0x4d0] sm:$0xff]
      %v5627 = vld [vmem:[#allocation5 + $0x4f8] sm:$0xff]
      %v5628 = vld [vmem:[#allocation5 + $0x520] sm:$0xff]
      %v5629 = vld [vmem:[#allocation5 + $0x548] sm:$0xff]
      %v5630 = vld [vmem:[#allocation5 + $0x570] sm:$0xff]
      %v5631 = vld [vmem:[#allocation5 + $0x598] sm:$0xff]
      %v5632 = vld [vmem:[#allocation5 + $0x5c0] sm:$0xff]
      %v5633 = vld [vmem:[#allocation5 + $0x5e8] sm:$0x1]
      %v5665 = vrot.slane %v5603, 2
      %v5666 = vrot.slane %v5604, 2
      %v5667 = vsel %vm1699, %v5665, %v5666
      %v5668 = vrot.slane %v5605, 2
      %v5669 = vsel %vm1699, %v5666, %v5668
      %v5670 = vrot.slane %v5606, 2
      %v5671 = vsel %vm1699, %v5668, %v5670
      %v5672 = vrot.slane %v5607, 2
      %v5673 = vsel %vm1699, %v5670, %v5672
      %v5674 = vrot.slane %v5608, 2
      %v5675 = vsel %vm1699, %v5672, %v5674
      %v5676 = vrot.slane %v5609, 2
      %v5677 = vsel %vm1699, %v5674, %v5676
      %v5678 = vrot.slane %v5610, 2
      %v5679 = vsel %vm1699, %v5676, %v5678
      %v5680 = vrot.slane %v5611, 2
      %v5681 = vsel %vm1699, %v5678, %v5680
      %v5682 = vrot.slane %v5612, 2
      %v5683 = vsel %vm1699, %v5680, %v5682
      %v5684 = vrot.slane %v5613, 2
      %v5685 = vsel %vm1699, %v5682, %v5684
      %v5686 = vrot.slane %v5614, 2
      %v5687 = vsel %vm1699, %v5684, %v5686
      %v5688 = vrot.slane %v5615, 2
      %v5689 = vsel %vm1699, %v5686, %v5688
      %v5690 = vrot.slane %v5616, 2
      %v5691 = vsel %vm1699, %v5688, %v5690
      %v5692 = vrot.slane %v5617, 2
      %v5693 = vsel %vm1699, %v5690, %v5692
      %v5694 = vrot.slane %v5618, 2
      %v5695 = vsel %vm1699, %v5692, %v5694
      %v5696 = vrot.slane %v5619, 2
      %v5697 = vsel %vm1699, %v5694, %v5696
      %v5698 = vrot.slane %v5620, 2
      %v5699 = vsel %vm1699, %v5696, %v5698
      %v5700 = vrot.slane %v5621, 2
      %v5701 = vsel %vm1699, %v5698, %v5700
      %v5702 = vrot.slane %v5622, 2
      %v5703 = vsel %vm1699, %v5700, %v5702
      %v5704 = vrot.slane %v5623, 2
      %v5705 = vsel %vm1699, %v5702, %v5704
      %v5706 = vrot.slane %v5624, 2
      %v5707 = vsel %vm1699, %v5704, %v5706
      %v5708 = vrot.slane %v5625, 2
      %v5709 = vsel %vm1699, %v5706, %v5708
      %v5710 = vrot.slane %v5626, 2
      %v5711 = vsel %vm1699, %v5708, %v5710
      %v5712 = vrot.slane %v5627, 2
      %v5713 = vsel %vm1699, %v5710, %v5712
      %v5714 = vrot.slane %v5628, 2
      %v5715 = vsel %vm1699, %v5712, %v5714
      %v5716 = vrot.slane %v5629, 2
      %v5717 = vsel %vm1699, %v5714, %v5716
      %v5718 = vrot.slane %v5630, 2
      %v5719 = vsel %vm1699, %v5716, %v5718
      %v5720 = vrot.slane %v5631, 2
      %v5721 = vsel %vm1699, %v5718, %v5720
      %v5722 = vrot.slane %v5632, 2
      %v5723 = vsel %vm1699, %v5720, %v5722
      %v5724 = vrot.slane %v5633, 2
      %v5725 = vsel %vm1699, %v5722, %v5724
      %v5757 = vadd.f32 %v5572, %v5665
      %v5758 = vadd.f32 %v5573, %v5667
      %v5759 = vadd.f32 %v5574, %v5669
      %v5760 = vadd.f32 %v5575, %v5671
      %v5761 = vadd.f32 %v5576, %v5673
      %v5762 = vadd.f32 %v5577, %v5675
      %v5763 = vadd.f32 %v5578, %v5677
      %v5764 = vadd.f32 %v5579, %v5679
      %v5765 = vadd.f32 %v5580, %v5681
      %v5766 = vadd.f32 %v5581, %v5683
      %v5767 = vadd.f32 %v5582, %v5685
      %v5768 = vadd.f32 %v5583, %v5687
      %v5769 = vadd.f32 %v5584, %v5689
      %v5770 = vadd.f32 %v5585, %v5691
      %v5771 = vadd.f32 %v5586, %v5693
      %v5772 = vadd.f32 %v5587, %v5695
      %v5773 = vadd.f32 %v5588, %v5697
      %v5774 = vadd.f32 %v5589, %v5699
      %v5775 = vadd.f32 %v5590, %v5701
      %v5776 = vadd.f32 %v5591, %v5703
      %v5777 = vadd.f32 %v5592, %v5705
      %v5778 = vadd.f32 %v5593, %v5707
      %v5779 = vadd.f32 %v5594, %v5709
      %v5780 = vadd.f32 %v5595, %v5711
      %v5781 = vadd.f32 %v5596, %v5713
      %v5782 = vadd.f32 %v5597, %v5715
      %v5783 = vadd.f32 %v5598, %v5717
      %v5784 = vadd.f32 %v5599, %v5719
      %v5785 = vadd.f32 %v5600, %v5721
      %v5786 = vadd.f32 %v5601, %v5723
      %v5787 = vadd.f32 %v5602, %v5725
      %v5788 = vld [vmem:[%s8] sm:$0x1]
      %v5790 = vlaneseq
      %v5791 = vshrl.u32 %v5790, 7
      %v5792 = vsub.s32 0, %v5791
      %v5793 = vrot.slane %v5788, %v5792
      %v5795 = vadd.f32 %v5757, %v5793
      %v5796 = vadd.f32 %v5758, %v5793
      %v5797 = vadd.f32 %v5759, %v5793
      %v5798 = vadd.f32 %v5760, %v5793
      %v5799 = vadd.f32 %v5761, %v5793
      %v5800 = vadd.f32 %v5762, %v5793
      %v5801 = vadd.f32 %v5763, %v5793
      %v5802 = vadd.f32 %v5764, %v5793
      %v5803 = vadd.f32 %v5765, %v5793
      %v5804 = vadd.f32 %v5766, %v5793
      %v5805 = vadd.f32 %v5767, %v5793
      %v5806 = vadd.f32 %v5768, %v5793
      %v5807 = vadd.f32 %v5769, %v5793
      %v5808 = vadd.f32 %v5770, %v5793
      %v5809 = vadd.f32 %v5771, %v5793
      %v5810 = vadd.f32 %v5772, %v5793
      %v5811 = vadd.f32 %v5773, %v5793
      %v5812 = vadd.f32 %v5774, %v5793
      %v5813 = vadd.f32 %v5775, %v5793
      %v5814 = vadd.f32 %v5776, %v5793
      %v5815 = vadd.f32 %v5777, %v5793
      %v5816 = vadd.f32 %v5778, %v5793
      %v5817 = vadd.f32 %v5779, %v5793
      %v5818 = vadd.f32 %v5780, %v5793
      %v5819 = vadd.f32 %v5781, %v5793
      %v5820 = vadd.f32 %v5782, %v5793
      %v5821 = vadd.f32 %v5783, %v5793
      %v5822 = vadd.f32 %v5784, %v5793
      %v5823 = vadd.f32 %v5785, %v5793
      %v5824 = vadd.f32 %v5786, %v5793
      %v5825 = vadd.f32 %v5787, %v5793
      %v5826 = vadd.f32 %v5795, 3.0
      %v5827 = vadd.f32 %v5796, 3.0
      %v5828 = vadd.f32 %v5797, 3.0
      %v5829 = vadd.f32 %v5798, 3.0
      %v5830 = vadd.f32 %v5799, 3.0
      %v5831 = vadd.f32 %v5800, 3.0
      %v5832 = vadd.f32 %v5801, 3.0
      %v5833 = vadd.f32 %v5802, 3.0
      %v5834 = vadd.f32 %v5803, 3.0
      %v5835 = vadd.f32 %v5804, 3.0
      %v5836 = vadd.f32 %v5805, 3.0
      %v5837 = vadd.f32 %v5806, 3.0
      %v5838 = vadd.f32 %v5807, 3.0
      %v5839 = vadd.f32 %v5808, 3.0
      %v5840 = vadd.f32 %v5809, 3.0
      %v5841 = vadd.f32 %v5810, 3.0
      %v5842 = vadd.f32 %v5811, 3.0
      %v5843 = vadd.f32 %v5812, 3.0
      %v5844 = vadd.f32 %v5813, 3.0
      %v5845 = vadd.f32 %v5814, 3.0
      %v5846 = vadd.f32 %v5815, 3.0
      %v5847 = vadd.f32 %v5816, 3.0
      %v5848 = vadd.f32 %v5817, 3.0
      %v5849 = vadd.f32 %v5818, 3.0
      %v5850 = vadd.f32 %v5819, 3.0
      %v5851 = vadd.f32 %v5820, 3.0
      %v5852 = vadd.f32 %v5821, 3.0
      %v5853 = vadd.f32 %v5822, 3.0
      %v5854 = vadd.f32 %v5823, 3.0
      %v5855 = vadd.f32 %v5824, 3.0
      %v5856 = vadd.f32 %v5825, 3.0
      %v5857 = vmax.f32 %v5826, 0.0
      %v5858 = vmax.f32 %v5827, 0.0
      %v5859 = vmax.f32 %v5828, 0.0
      %v5860 = vmax.f32 %v5829, 0.0
      %v5861 = vmax.f32 %v5830, 0.0
      %v5862 = vmax.f32 %v5831, 0.0
      %v5863 = vmax.f32 %v5832, 0.0
      %v5864 = vmax.f32 %v5833, 0.0
      %v5865 = vmax.f32 %v5834, 0.0
      %v5866 = vmax.f32 %v5835, 0.0
      %v5867 = vmax.f32 %v5836, 0.0
      %v5868 = vmax.f32 %v5837, 0.0
      %v5869 = vmax.f32 %v5838, 0.0
      %v5870 = vmax.f32 %v5839, 0.0
      %v5871 = vmax.f32 %v5840, 0.0
      %v5872 = vmax.f32 %v5841, 0.0
      %v5873 = vmax.f32 %v5842, 0.0
      %v5874 = vmax.f32 %v5843, 0.0
      %v5875 = vmax.f32 %v5844, 0.0
      %v5876 = vmax.f32 %v5845, 0.0
      %v5877 = vmax.f32 %v5846, 0.0
      %v5878 = vmax.f32 %v5847, 0.0
      %v5879 = vmax.f32 %v5848, 0.0
      %v5880 = vmax.f32 %v5849, 0.0
      %v5881 = vmax.f32 %v5850, 0.0
      %v5882 = vmax.f32 %v5851, 0.0
      %v5883 = vmax.f32 %v5852, 0.0
      %v5884 = vmax.f32 %v5853, 0.0
      %v5885 = vmax.f32 %v5854, 0.0
      %v5886 = vmax.f32 %v5855, 0.0
      %v5887 = vmax.f32 %v5856, 0.0
      %v5888 = vmin.f32 %v5857, 6.0
      %v5889 = vmin.f32 %v5858, 6.0
      %v5890 = vmin.f32 %v5859, 6.0
      %v5891 = vmin.f32 %v5860, 6.0
      %v5892 = vmin.f32 %v5861, 6.0
      %v5893 = vmin.f32 %v5862, 6.0
      %v5894 = vmin.f32 %v5863, 6.0
      %v5895 = vmin.f32 %v5864, 6.0
      %v5896 = vmin.f32 %v5865, 6.0
      %v5897 = vmin.f32 %v5866, 6.0
      %v5898 = vmin.f32 %v5867, 6.0
      %v5899 = vmin.f32 %v5868, 6.0
      %v5900 = vmin.f32 %v5869, 6.0
      %v5901 = vmin.f32 %v5870, 6.0
      %v5902 = vmin.f32 %v5871, 6.0
      %v5903 = vmin.f32 %v5872, 6.0
      %v5904 = vmin.f32 %v5873, 6.0
      %v5905 = vmin.f32 %v5874, 6.0
      %v5906 = vmin.f32 %v5875, 6.0
      %v5907 = vmin.f32 %v5876, 6.0
      %v5908 = vmin.f32 %v5877, 6.0
      %v5909 = vmin.f32 %v5878, 6.0
      %v5910 = vmin.f32 %v5879, 6.0
      %v5911 = vmin.f32 %v5880, 6.0
      %v5912 = vmin.f32 %v5881, 6.0
      %v5913 = vmin.f32 %v5882, 6.0
      %v5914 = vmin.f32 %v5883, 6.0
      %v5915 = vmin.f32 %v5884, 6.0
      %v5916 = vmin.f32 %v5885, 6.0
      %v5917 = vmin.f32 %v5886, 6.0
      %v5918 = vmin.f32 %v5887, 6.0
      %v5919 = vmul.f32 %v5888, 0.16666667
      %v5920 = vmul.f32 %v5889, 0.16666667
      %v5921 = vmul.f32 %v5890, 0.16666667
      %v5922 = vmul.f32 %v5891, 0.16666667
      %v5923 = vmul.f32 %v5892, 0.16666667
      %v5924 = vmul.f32 %v5893, 0.16666667
      %v5925 = vmul.f32 %v5894, 0.16666667
      %v5926 = vmul.f32 %v5895, 0.16666667
      %v5927 = vmul.f32 %v5896, 0.16666667
      %v5928 = vmul.f32 %v5897, 0.16666667
      %v5929 = vmul.f32 %v5898, 0.16666667
      %v5930 = vmul.f32 %v5899, 0.16666667
      %v5931 = vmul.f32 %v5900, 0.16666667
      %v5932 = vmul.f32 %v5901, 0.16666667
      %v5933 = vmul.f32 %v5902, 0.16666667
      %v5934 = vmul.f32 %v5903, 0.16666667
      %v5935 = vmul.f32 %v5904, 0.16666667
      %v5936 = vmul.f32 %v5905, 0.16666667
      %v5937 = vmul.f32 %v5906, 0.16666667
      %v5938 = vmul.f32 %v5907, 0.16666667
      %v5939 = vmul.f32 %v5908, 0.16666667
      %v5940 = vmul.f32 %v5909, 0.16666667
      %v5941 = vmul.f32 %v5910, 0.16666667
      %v5942 = vmul.f32 %v5911, 0.16666667
      %v5943 = vmul.f32 %v5912, 0.16666667
      %v5944 = vmul.f32 %v5913, 0.16666667
      %v5945 = vmul.f32 %v5914, 0.16666667
      %v5946 = vmul.f32 %v5915, 0.16666667
      %v5947 = vmul.f32 %v5916, 0.16666667
      %v5948 = vmul.f32 %v5917, 0.16666667
      %v5949 = vmul.f32 %v5918, 0.16666667
      %v5950 = vld [vmem:[%s2] sm:$0xff]
      %v5951 = vld [vmem:[%s2 + $0x8] sm:$0xff]
      %v5952 = vld [vmem:[%s2 + $0x10] sm:$0xff]
      %v5953 = vld [vmem:[%s2 + $0x18] sm:$0xff]
      %v5954 = vld [vmem:[%s2 + $0x20] sm:$0xff]
      %v5955 = vld [vmem:[%s2 + $0x28] sm:$0xff]
      %v5956 = vld [vmem:[%s2 + $0x30] sm:$0xff]
      %v5957 = vld [vmem:[%s2 + $0x38] sm:$0xff]
      %v5958 = vld [vmem:[%s2 + $0x40] sm:$0xff]
      %v5959 = vld [vmem:[%s2 + $0x48] sm:$0xff]
      %v5960 = vld [vmem:[%s2 + $0x50] sm:$0xff]
      %v5961 = vld [vmem:[%s2 + $0x58] sm:$0xff]
      %v5962 = vld [vmem:[%s2 + $0x60] sm:$0xff]
      %v5963 = vld [vmem:[%s2 + $0x68] sm:$0xff]
      %v5964 = vld [vmem:[%s2 + $0x70] sm:$0xff]
      %v5965 = vld [vmem:[%s2 + $0x78] sm:$0xff]
      %v5966 = vld [vmem:[%s2 + $0x80] sm:$0xff]
      %v5967 = vld [vmem:[%s2 + $0x88] sm:$0xff]
      %v5968 = vld [vmem:[%s2 + $0x90] sm:$0xff]
      %v5969 = vld [vmem:[%s2 + $0x98] sm:$0xff]
      %v5970 = vld [vmem:[%s2 + $0xa0] sm:$0xff]
      %v5971 = vld [vmem:[%s2 + $0xa8] sm:$0xff]
      %v5972 = vld [vmem:[%s2 + $0xb0] sm:$0xff]
      %v5973 = vld [vmem:[%s2 + $0xb8] sm:$0xff]
      %v5974 = vld [vmem:[%s2 + $0xc0] sm:$0xff]
      %v5975 = vld [vmem:[%s2 + $0xc8] sm:$0xff]
      %v5976 = vld [vmem:[%s2 + $0xd0] sm:$0xff]
      %v5977 = vld [vmem:[%s2 + $0xd8] sm:$0xff]
      %v5978 = vld [vmem:[%s2 + $0xe0] sm:$0xff]
      %v5979 = vld [vmem:[%s2 + $0xe8] sm:$0xff]
      %5981 = vset.pattern.permute.xlu0 0
      %5982 = vperm.xlu0 %5981, %v5950
      %v5983 = vpop.permute.xlu0 %5982
      %5985 = vset.pattern.permute.xlu0 0
      %5986 = vperm.xlu0 %5985, %v5951
      %v5987 = vpop.permute.xlu0 %5986
      %5989 = vset.pattern.permute.xlu0 0
      %5990 = vperm.xlu0 %5989, %v5952
      %v5991 = vpop.permute.xlu0 %5990
      %5993 = vset.pattern.permute.xlu0 0
      %5994 = vperm.xlu0 %5993, %v5953
      %v5995 = vpop.permute.xlu0 %5994
      %5997 = vset.pattern.permute.xlu0 0
      %5998 = vperm.xlu0 %5997, %v5954
      %v5999 = vpop.permute.xlu0 %5998
      %6001 = vset.pattern.permute.xlu0 0
      %6002 = vperm.xlu0 %6001, %v5955
      %v6003 = vpop.permute.xlu0 %6002
      %6005 = vset.pattern.permute.xlu0 0
      %6006 = vperm.xlu0 %6005, %v5956
      %v6007 = vpop.permute.xlu0 %6006
      %6009 = vset.pattern.permute.xlu0 0
      %6010 = vperm.xlu0 %6009, %v5957
      %v6011 = vpop.permute.xlu0 %6010
      %6013 = vset.pattern.permute.xlu0 0
      %6014 = vperm.xlu0 %6013, %v5958
      %v6015 = vpop.permute.xlu0 %6014
      %6017 = vset.pattern.permute.xlu0 0
      %6018 = vperm.xlu0 %6017, %v5959
      %v6019 = vpop.permute.xlu0 %6018
      %6021 = vset.pattern.permute.xlu0 0
      %6022 = vperm.xlu0 %6021, %v5960
      %v6023 = vpop.permute.xlu0 %6022
      %6025 = vset.pattern.permute.xlu0 0
      %6026 = vperm.xlu0 %6025, %v5961
      %v6027 = vpop.permute.xlu0 %6026
      %6029 = vset.pattern.permute.xlu0 0
      %6030 = vperm.xlu0 %6029, %v5962
      %v6031 = vpop.permute.xlu0 %6030
      %6033 = vset.pattern.permute.xlu0 0
      %6034 = vperm.xlu0 %6033, %v5963
      %v6035 = vpop.permute.xlu0 %6034
      %6037 = vset.pattern.permute.xlu0 0
      %6038 = vperm.xlu0 %6037, %v5964
      %v6039 = vpop.permute.xlu0 %6038
      %6041 = vset.pattern.permute.xlu0 0
      %6042 = vperm.xlu0 %6041, %v5965
      %v6043 = vpop.permute.xlu0 %6042
      %6045 = vset.pattern.permute.xlu0 0
      %6046 = vperm.xlu0 %6045, %v5966
      %v6047 = vpop.permute.xlu0 %6046
      %6049 = vset.pattern.permute.xlu0 0
      %6050 = vperm.xlu0 %6049, %v5967
      %v6051 = vpop.permute.xlu0 %6050
      %6053 = vset.pattern.permute.xlu0 0
      %6054 = vperm.xlu0 %6053, %v5968
      %v6055 = vpop.permute.xlu0 %6054
      %6057 = vset.pattern.permute.xlu0 0
      %6058 = vperm.xlu0 %6057, %v5969
      %v6059 = vpop.permute.xlu0 %6058
      %6061 = vset.pattern.permute.xlu0 0
      %6062 = vperm.xlu0 %6061, %v5970
      %v6063 = vpop.permute.xlu0 %6062
      %6065 = vset.pattern.permute.xlu0 0
      %6066 = vperm.xlu0 %6065, %v5971
      %v6067 = vpop.permute.xlu0 %6066
      %6069 = vset.pattern.permute.xlu0 0
      %6070 = vperm.xlu0 %6069, %v5972
      %v6071 = vpop.permute.xlu0 %6070
      %6073 = vset.pattern.permute.xlu0 0
      %6074 = vperm.xlu0 %6073, %v5973
      %v6075 = vpop.permute.xlu0 %6074
      %6077 = vset.pattern.permute.xlu0 0
      %6078 = vperm.xlu0 %6077, %v5974
      %v6079 = vpop.permute.xlu0 %6078
      %6081 = vset.pattern.permute.xlu0 0
      %6082 = vperm.xlu0 %6081, %v5975
      %v6083 = vpop.permute.xlu0 %6082
      %6085 = vset.pattern.permute.xlu0 0
      %6086 = vperm.xlu0 %6085, %v5976
      %v6087 = vpop.permute.xlu0 %6086
      %6089 = vset.pattern.permute.xlu0 0
      %6090 = vperm.xlu0 %6089, %v5977
      %v6091 = vpop.permute.xlu0 %6090
      %6093 = vset.pattern.permute.xlu0 0
      %6094 = vperm.xlu0 %6093, %v5978
      %v6095 = vpop.permute.xlu0 %6094
      %6097 = vset.pattern.permute.xlu0 0
      %6098 = vperm.xlu0 %6097, %v5979
      %v6099 = vpop.permute.xlu0 %6098
      %v6100 = vrot.slane %v5983, 1
      %v6101 = vrot.slane %v5987, 1
      %v6102 = vsel %vm1511, %v6100, %v6101
      %v6103 = vrot.slane %v5991, 1
      %v6104 = vsel %vm1511, %v6101, %v6103
      %v6105 = vrot.slane %v5995, 1
      %v6106 = vsel %vm1511, %v6103, %v6105
      %v6107 = vrot.slane %v5999, 1
      %v6108 = vsel %vm1511, %v6105, %v6107
      %v6109 = vrot.slane %v6003, 1
      %v6110 = vsel %vm1511, %v6107, %v6109
      %v6111 = vrot.slane %v6007, 1
      %v6112 = vsel %vm1511, %v6109, %v6111
      %v6113 = vrot.slane %v6011, 1
      %v6114 = vsel %vm1511, %v6111, %v6113
      %v6115 = vrot.slane %v6015, 1
      %v6116 = vsel %vm1511, %v6113, %v6115
      %v6117 = vrot.slane %v6019, 1
      %v6118 = vsel %vm1511, %v6115, %v6117
      %v6119 = vrot.slane %v6023, 1
      %v6120 = vsel %vm1511, %v6117, %v6119
      %v6121 = vrot.slane %v6027, 1
      %v6122 = vsel %vm1511, %v6119, %v6121
      %v6123 = vrot.slane %v6031, 1
      %v6124 = vsel %vm1511, %v6121, %v6123
      %v6125 = vrot.slane %v6035, 1
      %v6126 = vsel %vm1511, %v6123, %v6125
      %v6127 = vrot.slane %v6039, 1
      %v6128 = vsel %vm1511, %v6125, %v6127
      %v6129 = vrot.slane %v6043, 1
      %v6130 = vsel %vm1511, %v6127, %v6129
      %v6131 = vrot.slane %v6047, 1
      %v6132 = vsel %vm1511, %v6129, %v6131
      %v6133 = vrot.slane %v6051, 1
      %v6134 = vsel %vm1511, %v6131, %v6133
      %v6135 = vrot.slane %v6055, 1
      %v6136 = vsel %vm1511, %v6133, %v6135
      %v6137 = vrot.slane %v6059, 1
      %v6138 = vsel %vm1511, %v6135, %v6137
      %v6139 = vrot.slane %v6063, 1
      %v6140 = vsel %vm1511, %v6137, %v6139
      %v6141 = vrot.slane %v6067, 1
      %v6142 = vsel %vm1511, %v6139, %v6141
      %v6143 = vrot.slane %v6071, 1
      %v6144 = vsel %vm1511, %v6141, %v6143
      %v6145 = vrot.slane %v6075, 1
      %v6146 = vsel %vm1511, %v6143, %v6145
      %v6147 = vrot.slane %v6079, 1
      %v6148 = vsel %vm1511, %v6145, %v6147
      %v6149 = vrot.slane %v6083, 1
      %v6150 = vsel %vm1511, %v6147, %v6149
      %v6151 = vrot.slane %v6087, 1
      %v6152 = vsel %vm1511, %v6149, %v6151
      %v6153 = vrot.slane %v6091, 1
      %v6154 = vsel %vm1511, %v6151, %v6153
      %v6155 = vrot.slane %v6095, 1
      %v6156 = vsel %vm1511, %v6153, %v6155
      %v6157 = vrot.slane %v6099, 1
      %v6158 = vsel %vm1511, %v6155, %v6157
      %v6190 = vmul.f32 %v5919, %v6100
      %v6191 = vmul.f32 %v5920, %v6102
      %v6192 = vmul.f32 %v5921, %v6104
      %v6193 = vmul.f32 %v5922, %v6106
      %v6194 = vmul.f32 %v5923, %v6108
      %v6195 = vmul.f32 %v5924, %v6110
      %v6196 = vmul.f32 %v5925, %v6112
      %v6197 = vmul.f32 %v5926, %v6114
      %v6198 = vmul.f32 %v5927, %v6116
      %v6199 = vmul.f32 %v5928, %v6118
      %v6200 = vmul.f32 %v5929, %v6120
      %v6201 = vmul.f32 %v5930, %v6122
      %v6202 = vmul.f32 %v5931, %v6124
      %v6203 = vmul.f32 %v5932, %v6126
      %v6204 = vmul.f32 %v5933, %v6128
      %v6205 = vmul.f32 %v5934, %v6130
      %v6206 = vmul.f32 %v5935, %v6132
      %v6207 = vmul.f32 %v5936, %v6134
      %v6208 = vmul.f32 %v5937, %v6136
      %v6209 = vmul.f32 %v5938, %v6138
      %v6210 = vmul.f32 %v5939, %v6140
      %v6211 = vmul.f32 %v5940, %v6142
      %v6212 = vmul.f32 %v5941, %v6144
      %v6213 = vmul.f32 %v5942, %v6146
      %v6214 = vmul.f32 %v5943, %v6148
      %v6215 = vmul.f32 %v5944, %v6150
      %v6216 = vmul.f32 %v5945, %v6152
      %v6217 = vmul.f32 %v5946, %v6154
      %v6218 = vmul.f32 %v5947, %v6156
      %v6219 = vmul.f32 %v5948, %v6158
      %v6220 = vmul.f32 %v5949, %v6157
      %vm6221 = vcmask 523271
      %6222 = vst.msk [vmem:[#allocation4 + $0x31] sm:$0x80] %vm6221, %v6190
      %6223 = vst.msk [vmem:[#allocation4 + $0x39] sm:$0xff] %vm387, %v6191
      %6224 = vst.msk [vmem:[#allocation4 + $0x41] sm:$0xff] %vm387, %v6192
      %6225 = vst.msk [vmem:[#allocation4 + $0x49] sm:$0xff] %vm387, %v6193
      %6226 = vst.msk [vmem:[#allocation4 + $0x51] sm:$0xff] %vm387, %v6194
      %6227 = vst.msk [vmem:[#allocation4 + $0x59] sm:$0xff] %vm387, %v6195
      %6228 = vst.msk [vmem:[#allocation4 + $0x61] sm:$0xff] %vm387, %v6196
      %6229 = vst.msk [vmem:[#allocation4 + $0x69] sm:$0xff] %vm387, %v6197
      %6230 = vst.msk [vmem:[#allocation4 + $0x71] sm:$0xff] %vm387, %v6198
      %6231 = vst.msk [vmem:[#allocation4 + $0x79] sm:$0xff] %vm387, %v6199
      %6232 = vst.msk [vmem:[#allocation4 + $0x81] sm:$0xff] %vm387, %v6200
      %6233 = vst.msk [vmem:[#allocation4 + $0x89] sm:$0xff] %vm387, %v6201
      %6234 = vst.msk [vmem:[#allocation4 + $0x91] sm:$0xff] %vm387, %v6202
      %6235 = vst.msk [vmem:[#allocation4 + $0x99] sm:$0xff] %vm387, %v6203
      %6236 = vst.msk [vmem:[#allocation4 + $0xa1] sm:$0xff] %vm387, %v6204
      %6237 = vst.msk [vmem:[#allocation4 + $0xa9] sm:$0xff] %vm387, %v6205
      %6238 = vst.msk [vmem:[#allocation4 + $0xb1] sm:$0xff] %vm387, %v6206
      %6239 = vst.msk [vmem:[#allocation4 + $0xb9] sm:$0xff] %vm387, %v6207
      %6240 = vst.msk [vmem:[#allocation4 + $0xc1] sm:$0xff] %vm387, %v6208
      %6241 = vst.msk [vmem:[#allocation4 + $0xc9] sm:$0xff] %vm387, %v6209
      %6242 = vst.msk [vmem:[#allocation4 + $0xd1] sm:$0xff] %vm387, %v6210
      %6243 = vst.msk [vmem:[#allocation4 + $0xd9] sm:$0xff] %vm387, %v6211
      %6244 = vst.msk [vmem:[#allocation4 + $0xe1] sm:$0xff] %vm387, %v6212
      %6245 = vst.msk [vmem:[#allocation4 + $0xe9] sm:$0xff] %vm387, %v6213
      %6246 = vst.msk [vmem:[#allocation4 + $0xf1] sm:$0xff] %vm387, %v6214
      %6247 = vst.msk [vmem:[#allocation4 + $0xf9] sm:$0xff] %vm387, %v6215
      %6248 = vst.msk [vmem:[#allocation4 + $0x101] sm:$0xff] %vm387, %v6216
      %6249 = vst.msk [vmem:[#allocation4 + $0x109] sm:$0xff] %vm387, %v6217
      %6250 = vst.msk [vmem:[#allocation4 + $0x111] sm:$0xff] %vm387, %v6218
      %6251 = vst.msk [vmem:[#allocation4 + $0x119] sm:$0xff] %vm387, %v6219
      %vm6252 = vcmask 522240
      %6253 = vst.msk [vmem:[#allocation4 + $0x121] sm:$0x7f] %vm6252, %v6220
      %v6254 = vld [vmem:[#allocation4] sm:$0xff]
      %v6255 = vld [vmem:[#allocation4 + $0x8] sm:$0xff]
      %v6256 = vld [vmem:[#allocation4 + $0x10] sm:$0xff]
      %v6257 = vld [vmem:[#allocation4 + $0x18] sm:$0xff]
      %v6258 = vld [vmem:[#allocation4 + $0x20] sm:$0xff]
      %v6259 = vld [vmem:[#allocation4 + $0x28] sm:$0xff]
      %v6260 = vld [vmem:[#allocation4 + $0x30] sm:$0xff]
      %v6261 = vld [vmem:[#allocation4 + $0x38] sm:$0xff]
      %v6262 = vld [vmem:[#allocation4 + $0x40] sm:$0xff]
      %v6263 = vld [vmem:[#allocation4 + $0x48] sm:$0xff]
      %v6264 = vld [vmem:[#allocation4 + $0x50] sm:$0xff]
      %v6265 = vld [vmem:[#allocation4 + $0x58] sm:$0xff]
      %v6266 = vld [vmem:[#allocation4 + $0x60] sm:$0xff]
      %v6267 = vld [vmem:[#allocation4 + $0x68] sm:$0xff]
      %v6268 = vld [vmem:[#allocation4 + $0x70] sm:$0xff]
      %v6269 = vld [vmem:[#allocation4 + $0x78] sm:$0xff]
      %v6270 = vld [vmem:[#allocation4 + $0x80] sm:$0xff]
      %v6271 = vld [vmem:[#allocation4 + $0x88] sm:$0xff]
      %v6272 = vld [vmem:[#allocation4 + $0x90] sm:$0xff]
      %v6273 = vld [vmem:[#allocation4 + $0x98] sm:$0xff]
      %v6274 = vld [vmem:[#allocation4 + $0xa0] sm:$0xff]
      %v6275 = vld [vmem:[#allocation4 + $0xa8] sm:$0xff]
      %v6276 = vld [vmem:[#allocation4 + $0xb0] sm:$0xff]
      %v6277 = vld [vmem:[#allocation4 + $0xb8] sm:$0xff]
      %v6278 = vld [vmem:[#allocation4 + $0xc0] sm:$0xff]
      %v6279 = vld [vmem:[#allocation4 + $0xc8] sm:$0xff]
      %v6280 = vld [vmem:[#allocation4 + $0xd0] sm:$0xff]
      %v6281 = vld [vmem:[#allocation4 + $0xd8] sm:$0xff]
      %v6282 = vld [vmem:[#allocation4 + $0xe0] sm:$0xff]
      %v6283 = vld [vmem:[#allocation4 + $0xe8] sm:$0xff]
      %v6284 = vld [vmem:[#allocation4 + $0xf0] sm:$0xff]
      %v6285 = vld [vmem:[#allocation4 + $0xf8] sm:$0xff]
      %v6286 = vld [vmem:[#allocation4 + $0x100] sm:$0xff]
      %v6287 = vld [vmem:[#allocation4 + $0x108] sm:$0xff]
      %v6288 = vld [vmem:[#allocation4 + $0x110] sm:$0xff]
      %v6289 = vld [vmem:[#allocation4 + $0x118] sm:$0xff]
      %v6290 = vld [vmem:[#allocation4 + $0x120] sm:$0xff]
      %v6291 = vld [vmem:[#allocation4 + $0x128] sm:$0xff]
      %v6292 = vld [vmem:[#allocation4 + $0x130] sm:$0xff]
      %v6293 = vld [vmem:[#allocation4 + $0x138] sm:$0xff]
      %v6294 = vld [vmem:[#allocation4 + $0x140] sm:$0xff]
      %v6295 = vld [vmem:[#allocation4 + $0x148] sm:$0xff]
      %v6296 = vld [vmem:[#allocation4 + $0x150] sm:$0xff]
      %v6297 = vld [vmem:[#allocation4 + $0x158] sm:$0xff]
      %v6298 = vld [vmem:[%s9] sm:$0xff]
      %v6299 = vld [vmem:[%s9 + $0x8] sm:$0xff]
      %v6300 = vld [vmem:[%s9 + $0x10] sm:$0xff]
      %v6301 = vld [vmem:[%s9 + $0x18] sm:$0xff]
      %v6302 = vld [vmem:[%s9 + $0x20] sm:$0xff]
      %v6303 = vld [vmem:[%s9 + $0x28] sm:$0xff]
      %v6304 = vld [vmem:[%s9 + $0x30] sm:$0xff]
      %v6305 = vld [vmem:[%s9 + $0x38] sm:$0xff]
      %v6306 = vld [vmem:[%s9 + $0x40] sm:$0xff]
      %v6307 = vld [vmem:[%s9 + $0x48] sm:$0xff]
      %v6308 = vld [vmem:[%s9 + $0x50] sm:$0xff]
      %v6309 = vld [vmem:[%s9 + $0x58] sm:$0xff]
      %v6310 = vld [vmem:[%s9 + $0x60] sm:$0xff]
      %v6311 = vld [vmem:[%s9 + $0x68] sm:$0xff]
      %v6312 = vld [vmem:[%s9 + $0x70] sm:$0xff]
      %v6313 = vld [vmem:[%s9 + $0x78] sm:$0xff]
      %v6315 = vsel %vm387, %v6254, 0
      %v6318 = vsel %vm387, %v6255, 0
      %v6321 = vsel %vm387, %v6256, 0
      %v6324 = vsel %vm387, %v6257, 0
      %v6327 = vsel %vm387, %v6258, 0
      %v6330 = vsel %vm387, %v6259, 0
      %v6333 = vsel %vm387, %v6260, 0
      %v6336 = vsel %vm387, %v6261, 0
      %v6339 = vsel %vm387, %v6262, 0
      %v6342 = vsel %vm387, %v6263, 0
      %v6345 = vsel %vm387, %v6264, 0
      %v6348 = vsel %vm387, %v6265, 0
      %v6351 = vsel %vm387, %v6266, 0
      %v6354 = vsel %vm387, %v6267, 0
      %v6357 = vsel %vm387, %v6268, 0
      %v6360 = vsel %vm387, %v6269, 0
      %v6363 = vsel %vm387, %v6270, 0
      %v6366 = vsel %vm387, %v6271, 0
      %v6369 = vsel %vm387, %v6272, 0
      %v6372 = vsel %vm387, %v6273, 0
      %v6375 = vsel %vm387, %v6274, 0
      %v6378 = vsel %vm387, %v6275, 0
      %v6381 = vsel %vm387, %v6276, 0
      %v6384 = vsel %vm387, %v6277, 0
      %v6387 = vsel %vm387, %v6278, 0
      %v6390 = vsel %vm387, %v6279, 0
      %v6393 = vsel %vm387, %v6280, 0
      %v6396 = vsel %vm387, %v6281, 0
      %v6399 = vsel %vm387, %v6282, 0
      %v6402 = vsel %vm387, %v6283, 0
      %v6405 = vsel %vm387, %v6284, 0
      %v6408 = vsel %vm387, %v6285, 0
      %v6411 = vsel %vm387, %v6286, 0
      %v6414 = vsel %vm387, %v6287, 0
      %v6417 = vsel %vm387, %v6288, 0
      %v6420 = vsel %vm387, %v6289, 0
      %v6423 = vsel %vm387, %v6290, 0
      %v6426 = vsel %vm387, %v6291, 0
      %v6429 = vsel %vm387, %v6292, 0
      %v6432 = vsel %vm387, %v6293, 0
      %v6435 = vsel %vm387, %v6294, 0
      %v6438 = vsel %vm387, %v6295, 0
      %v6441 = vsel %vm387, %v6296, 0
      %v6444 = vsel %vm387, %v6297, 0
      %6446 = vmatprep.subr.mxu0 %v6299
      %6447 = vmatpush1.msra.mxu0 %v6298
      %6448 = vmatprep.subr.mxu0 %v6301
      %6449 = vmatpush1.msra.mxu0 %v6300
      %6450 = vmatprep.subr.mxu0 %v6303
      %6451 = vmatpush1.msra.mxu0 %v6302
      %6452 = vmatprep.subr.mxu0 %v6305
      %6453 = vmatpush1.msra.mxu0 %v6304
      %6454 = vmatprep.subr.mxu0 %v6307
      %6455 = vmatpush1.msra.mxu0 %v6306
      %6456 = vmatprep.subr.mxu0 %v6309
      %6457 = vmatpush1.msra.mxu0 %v6308
      %6458 = vmatprep.subr.mxu0 %v6311
      %6459 = vmatpush1.msra.mxu0 %v6310
      %6460 = vmatprep.subr.mxu0 %v6313
      %6461 = vmatpush1.msra.mxu0 %v6312
      %6462 = vmatprep.subr.mxu0 0.0
      %6463 = vmatpush1.msra.mxu0 0.0
      %6464 = vmatprep.subr.mxu0 0.0
      %6465 = vmatpush1.msra.mxu0 0.0
      %6466 = vmatprep.subr.mxu0 0.0
      %6467 = vmatpush1.msra.mxu0 0.0
      %6468 = vmatprep.subr.mxu0 0.0
      %6469 = vmatpush1.msra.mxu0 0.0
      %6470 = vmatprep.subr.mxu0 0.0
      %6471 = vmatpush1.msra.mxu0 0.0
      %6472 = vmatprep.subr.mxu0 0.0
      %6473 = vmatpush1.msra.mxu0 0.0
      %6474 = vmatprep.subr.mxu0 0.0
      %6475 = vmatpush1.msra.mxu0 0.0
      %6476 = vmatprep.subr.mxu0 0.0
      %6477 = vmatpush1.msra.mxu0 0.0
      %6478 = vmatprep.subr.mxu0 0.0
      %6479 = vmatpush1.msra.mxu0 0.0
      %6480 = vmatprep.subr.mxu0 0.0
      %6481 = vmatpush1.msra.mxu0 0.0
      %6482 = vmatprep.subr.mxu0 0.0
      %6483 = vmatpush1.msra.mxu0 0.0
      %6484 = vmatprep.subr.mxu0 0.0
      %6485 = vmatpush1.msra.mxu0 0.0
      %6486 = vmatprep.subr.mxu0 0.0
      %6487 = vmatpush1.msra.mxu0 0.0
      %6488 = vmatprep.subr.mxu0 0.0
      %6489 = vmatpush1.msra.mxu0 0.0
      %6490 = vmatprep.subr.mxu0 0.0
      %6491 = vmatpush1.msra.mxu0 0.0
      %6492 = vmatprep.subr.mxu0 0.0
      %6493 = vmatpush1.msra.mxu0 0.0
      %6494 = vmatprep.subr.mxu0 0.0
      %6495 = vmatpush1.msra.mxu0 0.0
      %6496 = vmatprep.subr.mxu0 0.0
      %6497 = vmatpush1.msra.mxu0 0.0
      %6498 = vmatprep.subr.mxu0 0.0
      %6499 = vmatpush1.msra.mxu0 0.0
      %6500 = vmatprep.subr.mxu0 0.0
      %6501 = vmatpush1.msra.mxu0 0.0
      %6502 = vmatprep.subr.mxu0 0.0
      %6503 = vmatpush1.msra.mxu0 0.0
      %6504 = vmatprep.subr.mxu0 0.0
      %6505 = vmatpush1.msra.mxu0 0.0
      %6506 = vmatprep.subr.mxu0 0.0
      %6507 = vmatpush1.msra.mxu0 0.0
      %6508 = vmatprep.subr.mxu0 0.0
      %6509 = vmatpush1.msra.mxu0 0.0
      %6510 = vmatprep.mubr.f32.mxu0 0.0
      %6511 = vmatmul.mubr.f32.gmra.mrb[0].mxu0 %v6315
      %v6512 = vpop.f32.mrb[0].mxu0
      %v6513 = vadd.f32 0.0, %v6512
      %v6514 = vpop.f32.mrb[0].mxu0
      %v6515 = vadd.f32 0.0, %v6514
      %6516 = vmatprep.mubr.f32.mxu0 0.0
      %6517 = vmatmul.mubr.f32.gmra.mrb[0].mxu0 %v6318
      %v6518 = vpop.f32.mrb[0].mxu0
      %v6519 = vadd.f32 0.0, %v6518
      %v6520 = vpop.f32.mrb[0].mxu0
      %v6521 = vadd.f32 0.0, %v6520
      %6522 = vmatprep.mubr.f32.mxu0 0.0
      %6523 = vmatmul.mubr.f32.gmra.mrb[0].mxu0 %v6321
      %v6524 = vpop.f32.mrb[0].mxu0
      %v6525 = vadd.f32 0.0, %v6524
      %v6526 = vpop.f32.mrb[0].mxu0
      %v6527 = vadd.f32 0.0, %v6526
      %6528 = vmatprep.mubr.f32.mxu0 0.0
      %6529 = vmatmul.mubr.f32.gmra.mrb[0].mxu0 %v6324
      %v6530 = vpop.f32.mrb[0].mxu0
      %v6531 = vadd.f32 0.0, %v6530
      %v6532 = vpop.f32.mrb[0].mxu0
      %v6533 = vadd.f32 0.0, %v6532
      %6534 = vmatprep.mubr.f32.mxu0 0.0
      %6535 = vmatmul.mubr.f32.gmra.mrb[0].mxu0 %v6327
      %v6536 = vpop.f32.mrb[0].mxu0
      %v6537 = vadd.f32 0.0, %v6536
      %v6538 = vpop.f32.mrb[0].mxu0
      %v6539 = vadd.f32 0.0, %v6538
      %6540 = vmatprep.mubr.f32.mxu0 0.0
      %6541 = vmatmul.mubr.f32.gmra.mrb[0].mxu0 %v6330
      %v6542 = vpop.f32.mrb[0].mxu0
      %v6543 = vadd.f32 0.0, %v6542
      %v6544 = vpop.f32.mrb[0].mxu0
      %v6545 = vadd.f32 0.0, %v6544
      %6546 = vmatprep.mubr.f32.mxu0 0.0
      %6547 = vmatmul.mubr.f32.gmra.mrb[0].mxu0 %v6333
      %v6548 = vpop.f32.mrb[0].mxu0
      %v6549 = vadd.f32 0.0, %v6548
      %v6550 = vpop.f32.mrb[0].mxu0
      %v6551 = vadd.f32 0.0, %v6550
      %6552 = vmatprep.mubr.f32.mxu0 0.0
      %6553 = vmatmul.mubr.f32.gmra.mrb[0].mxu0 %v6336
      %v6554 = vpop.f32.mrb[0].mxu0
      %v6555 = vadd.f32 0.0, %v6554
      %v6556 = vpop.f32.mrb[0].mxu0
      %v6557 = vadd.f32 0.0, %v6556
      %6558 = vmatprep.mubr.f32.mxu0 0.0
      %6559 = vmatmul.mubr.f32.gmra.mrb[0].mxu0 %v6339
      %v6560 = vpop.f32.mrb[0].mxu0
      %v6561 = vadd.f32 0.0, %v6560
      %v6562 = vpop.f32.mrb[0].mxu0
      %v6563 = vadd.f32 0.0, %v6562
      %6564 = vmatprep.mubr.f32.mxu0 0.0
      %6565 = vmatmul.mubr.f32.gmra.mrb[0].mxu0 %v6342
      %v6566 = vpop.f32.mrb[0].mxu0
      %v6567 = vadd.f32 0.0, %v6566
      %v6568 = vpop.f32.mrb[0].mxu0
      %v6569 = vadd.f32 0.0, %v6568
      %6570 = vmatprep.mubr.f32.mxu0 0.0
      %6571 = vmatmul.mubr.f32.gmra.mrb[0].mxu0 %v6345
      %v6572 = vpop.f32.mrb[0].mxu0
      %v6573 = vadd.f32 0.0, %v6572
      %v6574 = vpop.f32.mrb[0].mxu0
      %v6575 = vadd.f32 0.0, %v6574
      %6576 = vmatprep.mubr.f32.mxu0 0.0
      %6577 = vmatmul.mubr.f32.gmra.mrb[0].mxu0 %v6348
      %v6578 = vpop.f32.mrb[0].mxu0
      %v6579 = vadd.f32 0.0, %v6578
      %v6580 = vpop.f32.mrb[0].mxu0
      %v6581 = vadd.f32 0.0, %v6580
      %6582 = vmatprep.mubr.f32.mxu0 0.0
      %6583 = vmatmul.mubr.f32.gmra.mrb[0].mxu0 %v6351
      %v6584 = vpop.f32.mrb[0].mxu0
      %v6585 = vadd.f32 0.0, %v6584
      %v6586 = vpop.f32.mrb[0].mxu0
      %v6587 = vadd.f32 0.0, %v6586
      %6588 = vmatprep.mubr.f32.mxu0 0.0
      %6589 = vmatmul.mubr.f32.gmra.mrb[0].mxu0 %v6354
      %v6590 = vpop.f32.mrb[0].mxu0
      %v6591 = vadd.f32 0.0, %v6590
      %v6592 = vpop.f32.mrb[0].mxu0
      %v6593 = vadd.f32 0.0, %v6592
      %6594 = vmatprep.mubr.f32.mxu0 0.0
      %6595 = vmatmul.mubr.f32.gmra.mrb[0].mxu0 %v6357
      %v6596 = vpop.f32.mrb[0].mxu0
      %v6597 = vadd.f32 0.0, %v6596
      %v6598 = vpop.f32.mrb[0].mxu0
      %v6599 = vadd.f32 0.0, %v6598
      %6600 = vmatprep.mubr.f32.mxu0 0.0
      %6601 = vmatmul.mubr.f32.gmra.mrb[0].mxu0 %v6360
      %v6602 = vpop.f32.mrb[0].mxu0
      %v6603 = vadd.f32 0.0, %v6602
      %v6604 = vpop.f32.mrb[0].mxu0
      %v6605 = vadd.f32 0.0, %v6604
      %6606 = vmatprep.mubr.f32.mxu0 0.0
      %6607 = vmatmul.mubr.f32.gmra.mrb[0].mxu0 %v6363
      %v6608 = vpop.f32.mrb[0].mxu0
      %v6609 = vadd.f32 0.0, %v6608
      %v6610 = vpop.f32.mrb[0].mxu0
      %v6611 = vadd.f32 0.0, %v6610
      %6612 = vmatprep.mubr.f32.mxu0 0.0
      %6613 = vmatmul.mubr.f32.gmra.mrb[0].mxu0 %v6366
      %v6614 = vpop.f32.mrb[0].mxu0
      %v6615 = vadd.f32 0.0, %v6614
      %v6616 = vpop.f32.mrb[0].mxu0
      %v6617 = vadd.f32 0.0, %v6616
      %6618 = vmatprep.mubr.f32.mxu0 0.0
      %6619 = vmatmul.mubr.f32.gmra.mrb[0].mxu0 %v6369
      %v6620 = vpop.f32.mrb[0].mxu0
      %v6621 = vadd.f32 0.0, %v6620
      %v6622 = vpop.f32.mrb[0].mxu0
      %v6623 = vadd.f32 0.0, %v6622
      %6624 = vmatprep.mubr.f32.mxu0 0.0
      %6625 = vmatmul.mubr.f32.gmra.mrb[0].mxu0 %v6372
      %v6626 = vpop.f32.mrb[0].mxu0
      %v6627 = vadd.f32 0.0, %v6626
      %v6628 = vpop.f32.mrb[0].mxu0
      %v6629 = vadd.f32 0.0, %v6628
      %6630 = vmatprep.mubr.f32.mxu0 0.0
      %6631 = vmatmul.mubr.f32.gmra.mrb[0].mxu0 %v6375
      %v6632 = vpop.f32.mrb[0].mxu0
      %v6633 = vadd.f32 0.0, %v6632
      %v6634 = vpop.f32.mrb[0].mxu0
      %v6635 = vadd.f32 0.0, %v6634
      %6636 = vmatprep.mubr.f32.mxu0 0.0
      %6637 = vmatmul.mubr.f32.gmra.mrb[0].mxu0 %v6378
      %v6638 = vpop.f32.mrb[0].mxu0
      %v6639 = vadd.f32 0.0, %v6638
      %v6640 = vpop.f32.mrb[0].mxu0
      %v6641 = vadd.f32 0.0, %v6640
      %6642 = vmatprep.mubr.f32.mxu0 0.0
      %6643 = vmatmul.mubr.f32.gmra.mrb[0].mxu0 %v6381
      %v6644 = vpop.f32.mrb[0].mxu0
      %v6645 = vadd.f32 0.0, %v6644
      %v6646 = vpop.f32.mrb[0].mxu0
      %v6647 = vadd.f32 0.0, %v6646
      %6648 = vmatprep.mubr.f32.mxu0 0.0
      %6649 = vmatmul.mubr.f32.gmra.mrb[0].mxu0 %v6384
      %v6650 = vpop.f32.mrb[0].mxu0
      %v6651 = vadd.f32 0.0, %v6650
      %v6652 = vpop.f32.mrb[0].mxu0
      %v6653 = vadd.f32 0.0, %v6652
      %6654 = vmatprep.mubr.f32.mxu0 0.0
      %6655 = vmatmul.mubr.f32.gmra.mrb[0].mxu0 %v6387
      %v6656 = vpop.f32.mrb[0].mxu0
      %v6657 = vadd.f32 0.0, %v6656
      %v6658 = vpop.f32.mrb[0].mxu0
      %v6659 = vadd.f32 0.0, %v6658
      %6660 = vmatprep.mubr.f32.mxu0 0.0
      %6661 = vmatmul.mubr.f32.gmra.mrb[0].mxu0 %v6390
      %v6662 = vpop.f32.mrb[0].mxu0
      %v6663 = vadd.f32 0.0, %v6662
      %v6664 = vpop.f32.mrb[0].mxu0
      %v6665 = vadd.f32 0.0, %v6664
      %6666 = vmatprep.mubr.f32.mxu0 0.0
      %6667 = vmatmul.mubr.f32.gmra.mrb[0].mxu0 %v6393
      %v6668 = vpop.f32.mrb[0].mxu0
      %v6669 = vadd.f32 0.0, %v6668
      %v6670 = vpop.f32.mrb[0].mxu0
      %v6671 = vadd.f32 0.0, %v6670
      %6672 = vmatprep.mubr.f32.mxu0 0.0
      %6673 = vmatmul.mubr.f32.gmra.mrb[0].mxu0 %v6396
      %v6674 = vpop.f32.mrb[0].mxu0
      %v6675 = vadd.f32 0.0, %v6674
      %v6676 = vpop.f32.mrb[0].mxu0
      %v6677 = vadd.f32 0.0, %v6676
      %6678 = vmatprep.mubr.f32.mxu0 0.0
      %6679 = vmatmul.mubr.f32.gmra.mrb[0].mxu0 %v6399
      %v6680 = vpop.f32.mrb[0].mxu0
      %v6681 = vadd.f32 0.0, %v6680
      %v6682 = vpop.f32.mrb[0].mxu0
      %v6683 = vadd.f32 0.0, %v6682
      %6684 = vmatprep.mubr.f32.mxu0 0.0
      %6685 = vmatmul.mubr.f32.gmra.mrb[0].mxu0 %v6402
      %v6686 = vpop.f32.mrb[0].mxu0
      %v6687 = vadd.f32 0.0, %v6686
      %v6688 = vpop.f32.mrb[0].mxu0
      %v6689 = vadd.f32 0.0, %v6688
      %6690 = vmatprep.mubr.f32.mxu0 0.0
      %6691 = vmatmul.mubr.f32.gmra.mrb[0].mxu0 %v6405
      %v6692 = vpop.f32.mrb[0].mxu0
      %v6693 = vadd.f32 0.0, %v6692
      %v6694 = vpop.f32.mrb[0].mxu0
      %v6695 = vadd.f32 0.0, %v6694
      %6696 = vmatprep.mubr.f32.mxu0 0.0
      %6697 = vmatmul.mubr.f32.gmra.mrb[0].mxu0 %v6408
      %v6698 = vpop.f32.mrb[0].mxu0
      %v6699 = vadd.f32 0.0, %v6698
      %v6700 = vpop.f32.mrb[0].mxu0
      %v6701 = vadd.f32 0.0, %v6700
      %6702 = vmatprep.mubr.f32.mxu0 0.0
      %6703 = vmatmul.mubr.f32.gmra.mrb[0].mxu0 %v6411
      %v6704 = vpop.f32.mrb[0].mxu0
      %v6705 = vadd.f32 0.0, %v6704
      %v6706 = vpop.f32.mrb[0].mxu0
      %v6707 = vadd.f32 0.0, %v6706
      %6708 = vmatprep.mubr.f32.mxu0 0.0
      %6709 = vmatmul.mubr.f32.gmra.mrb[0].mxu0 %v6414
      %v6710 = vpop.f32.mrb[0].mxu0
      %v6711 = vadd.f32 0.0, %v6710
      %v6712 = vpop.f32.mrb[0].mxu0
      %v6713 = vadd.f32 0.0, %v6712
      %6714 = vmatprep.mubr.f32.mxu0 0.0
      %6715 = vmatmul.mubr.f32.gmra.mrb[0].mxu0 %v6417
      %v6716 = vpop.f32.mrb[0].mxu0
      %v6717 = vadd.f32 0.0, %v6716
      %v6718 = vpop.f32.mrb[0].mxu0
      %v6719 = vadd.f32 0.0, %v6718
      %6720 = vmatprep.mubr.f32.mxu0 0.0
      %6721 = vmatmul.mubr.f32.gmra.mrb[0].mxu0 %v6420
      %v6722 = vpop.f32.mrb[0].mxu0
      %v6723 = vadd.f32 0.0, %v6722
      %v6724 = vpop.f32.mrb[0].mxu0
      %v6725 = vadd.f32 0.0, %v6724
      %6726 = vmatprep.mubr.f32.mxu0 0.0
      %6727 = vmatmul.mubr.f32.gmra.mrb[0].mxu0 %v6423
      %v6728 = vpop.f32.mrb[0].mxu0
      %v6729 = vadd.f32 0.0, %v6728
      %v6730 = vpop.f32.mrb[0].mxu0
      %v6731 = vadd.f32 0.0, %v6730
      %6732 = vmatprep.mubr.f32.mxu0 0.0
      %6733 = vmatmul.mubr.f32.gmra.mrb[0].mxu0 %v6426
      %v6734 = vpop.f32.mrb[0].mxu0
      %v6735 = vadd.f32 0.0, %v6734
      %v6736 = vpop.f32.mrb[0].mxu0
      %v6737 = vadd.f32 0.0, %v6736
      %6738 = vmatprep.mubr.f32.mxu0 0.0
      %6739 = vmatmul.mubr.f32.gmra.mrb[0].mxu0 %v6429
      %v6740 = vpop.f32.mrb[0].mxu0
      %v6741 = vadd.f32 0.0, %v6740
      %v6742 = vpop.f32.mrb[0].mxu0
      %v6743 = vadd.f32 0.0, %v6742
      %6744 = vmatprep.mubr.f32.mxu0 0.0
      %6745 = vmatmul.mubr.f32.gmra.mrb[0].mxu0 %v6432
      %v6746 = vpop.f32.mrb[0].mxu0
      %v6747 = vadd.f32 0.0, %v6746
      %v6748 = vpop.f32.mrb[0].mxu0
      %v6749 = vadd.f32 0.0, %v6748
      %6750 = vmatprep.mubr.f32.mxu0 0.0
      %6751 = vmatmul.mubr.f32.gmra.mrb[0].mxu0 %v6435
      %v6752 = vpop.f32.mrb[0].mxu0
      %v6753 = vadd.f32 0.0, %v6752
      %v6754 = vpop.f32.mrb[0].mxu0
      %v6755 = vadd.f32 0.0, %v6754
      %6756 = vmatprep.mubr.f32.mxu0 0.0
      %6757 = vmatmul.mubr.f32.gmra.mrb[0].mxu0 %v6438
      %v6758 = vpop.f32.mrb[0].mxu0
      %v6759 = vadd.f32 0.0, %v6758
      %v6760 = vpop.f32.mrb[0].mxu0
      %v6761 = vadd.f32 0.0, %v6760
      %6762 = vmatprep.mubr.f32.mxu0 0.0
      %6763 = vmatmul.mubr.f32.gmra.mrb[0].mxu0 %v6441
      %v6764 = vpop.f32.mrb[0].mxu0
      %v6765 = vadd.f32 0.0, %v6764
      %v6766 = vpop.f32.mrb[0].mxu0
      %v6767 = vadd.f32 0.0, %v6766
      %6768 = vmatprep.mubr.f32.mxu0 0.0
      %6769 = vmatmul.mubr.f32.gmra.mrb[0].mxu0 %v6444
      %v6770 = vpop.f32.mrb[0].mxu0
      %v6771 = vadd.f32 0.0, %v6770
      %v6772 = vpop.f32.mrb[0].mxu0
      %v6773 = vadd.f32 0.0, %v6772
      %6774 = vdwg.mxu0
      %6775 = vst [vmem:[#allocation5] sm:$0xff] %v6513
      %6776 = vst [vmem:[#allocation5 + $0x8] sm:$0xff] %v6515
      %6777 = vst [vmem:[#allocation5 + $0x28] sm:$0xff] %v6519
      %6778 = vst [vmem:[#allocation5 + $0x30] sm:$0xff] %v6521
      %6779 = vst [vmem:[#allocation5 + $0x50] sm:$0xff] %v6525
      %6780 = vst [vmem:[#allocation5 + $0x58] sm:$0xff] %v6527
      %6781 = vst [vmem:[#allocation5 + $0x78] sm:$0xff] %v6531
      %6782 = vst [vmem:[#allocation5 + $0x80] sm:$0xff] %v6533
      %6783 = vst [vmem:[#allocation5 + $0xa0] sm:$0xff] %v6537
      %6784 = vst [vmem:[#allocation5 + $0xa8] sm:$0xff] %v6539
      %6785 = vst [vmem:[#allocation5 + $0xc8] sm:$0xff] %v6543
      %6786 = vst [vmem:[#allocation5 + $0xd0] sm:$0xff] %v6545
      %6787 = vst [vmem:[#allocation5 + $0xf0] sm:$0xff] %v6549
      %6788 = vst [vmem:[#allocation5 + $0xf8] sm:$0xff] %v6551
      %6789 = vst [vmem:[#allocation5 + $0x118] sm:$0xff] %v6555
      %6790 = vst [vmem:[#allocation5 + $0x120] sm:$0xff] %v6557
      %6791 = vst [vmem:[#allocation5 + $0x140] sm:$0xff] %v6561
      %6792 = vst [vmem:[#allocation5 + $0x148] sm:$0xff] %v6563
      %6793 = vst [vmem:[#allocation5 + $0x168] sm:$0xff] %v6567
      %6794 = vst [vmem:[#allocation5 + $0x170] sm:$0xff] %v6569
      %6795 = vst [vmem:[#allocation5 + $0x190] sm:$0xff] %v6573
      %6796 = vst [vmem:[#allocation5 + $0x198] sm:$0xff] %v6575
      %6797 = vst [vmem:[#allocation5 + $0x1b8] sm:$0xff] %v6579
      %6798 = vst [vmem:[#allocation5 + $0x1c0] sm:$0xff] %v6581
      %6799 = vst [vmem:[#allocation5 + $0x1e0] sm:$0xff] %v6585
      %6800 = vst [vmem:[#allocation5 + $0x1e8] sm:$0xff] %v6587
      %6801 = vst [vmem:[#allocation5 + $0x208] sm:$0xff] %v6591
      %6802 = vst [vmem:[#allocation5 + $0x210] sm:$0xff] %v6593
      %6803 = vst [vmem:[#allocation5 + $0x230] sm:$0xff] %v6597
      %6804 = vst [vmem:[#allocation5 + $0x238] sm:$0xff] %v6599
      %6805 = vst [vmem:[#allocation5 + $0x258] sm:$0xff] %v6603
      %6806 = vst [vmem:[#allocation5 + $0x260] sm:$0xff] %v6605
      %6807 = vst [vmem:[#allocation5 + $0x280] sm:$0xff] %v6609
      %6808 = vst [vmem:[#allocation5 + $0x288] sm:$0xff] %v6611
      %6809 = vst [vmem:[#allocation5 + $0x2a8] sm:$0xff] %v6615
      %6810 = vst [vmem:[#allocation5 + $0x2b0] sm:$0xff] %v6617
      %6811 = vst [vmem:[#allocation5 + $0x2d0] sm:$0xff] %v6621
      %6812 = vst [vmem:[#allocation5 + $0x2d8] sm:$0xff] %v6623
      %6813 = vst [vmem:[#allocation5 + $0x2f8] sm:$0xff] %v6627
      %6814 = vst [vmem:[#allocation5 + $0x300] sm:$0xff] %v6629
      %6815 = vst [vmem:[#allocation5 + $0x320] sm:$0xff] %v6633
      %6816 = vst [vmem:[#allocation5 + $0x328] sm:$0xff] %v6635
      %6817 = vst [vmem:[#allocation5 + $0x348] sm:$0xff] %v6639
      %6818 = vst [vmem:[#allocation5 + $0x350] sm:$0xff] %v6641
      %6819 = vst [vmem:[#allocation5 + $0x370] sm:$0xff] %v6645
      %6820 = vst [vmem:[#allocation5 + $0x378] sm:$0xff] %v6647
      %6821 = vst [vmem:[#allocation5 + $0x398] sm:$0xff] %v6651
      %6822 = vst [vmem:[#allocation5 + $0x3a0] sm:$0xff] %v6653
      %6823 = vst [vmem:[#allocation5 + $0x3c0] sm:$0xff] %v6657
      %6824 = vst [vmem:[#allocation5 + $0x3c8] sm:$0xff] %v6659
      %6825 = vst [vmem:[#allocation5 + $0x3e8] sm:$0xff] %v6663
      %6826 = vst [vmem:[#allocation5 + $0x3f0] sm:$0xff] %v6665
      %6827 = vst [vmem:[#allocation5 + $0x410] sm:$0xff] %v6669
      %6828 = vst [vmem:[#allocation5 + $0x418] sm:$0xff] %v6671
      %6829 = vst [vmem:[#allocation5 + $0x438] sm:$0xff] %v6675
      %6830 = vst [vmem:[#allocation5 + $0x440] sm:$0xff] %v6677
      %6831 = vst [vmem:[#allocation5 + $0x460] sm:$0xff] %v6681
      %6832 = vst [vmem:[#allocation5 + $0x468] sm:$0xff] %v6683
      %6833 = vst [vmem:[#allocation5 + $0x488] sm:$0xff] %v6687
      %6834 = vst [vmem:[#allocation5 + $0x490] sm:$0xff] %v6689
      %6835 = vst [vmem:[#allocation5 + $0x4b0] sm:$0xff] %v6693
      %6836 = vst [vmem:[#allocation5 + $0x4b8] sm:$0xff] %v6695
      %6837 = vst [vmem:[#allocation5 + $0x4d8] sm:$0xff] %v6699
      %6838 = vst [vmem:[#allocation5 + $0x4e0] sm:$0xff] %v6701
      %6839 = vst [vmem:[#allocation5 + $0x500] sm:$0xff] %v6705
      %6840 = vst [vmem:[#allocation5 + $0x508] sm:$0xff] %v6707
      %6841 = vst [vmem:[#allocation5 + $0x528] sm:$0xff] %v6711
      %6842 = vst [vmem:[#allocation5 + $0x530] sm:$0xff] %v6713
      %6843 = vst [vmem:[#allocation5 + $0x550] sm:$0xff] %v6717
      %6844 = vst [vmem:[#allocation5 + $0x558] sm:$0xff] %v6719
      %6845 = vst [vmem:[#allocation5 + $0x578] sm:$0xff] %v6723
      %6846 = vst [vmem:[#allocation5 + $0x580] sm:$0xff] %v6725
      %6847 = vst [vmem:[#allocation5 + $0x5a0] sm:$0xff] %v6729
      %6848 = vst [vmem:[#allocation5 + $0x5a8] sm:$0xff] %v6731
      %6849 = vst [vmem:[#allocation5 + $0x5c8] sm:$0xff] %v6735
      %6850 = vst [vmem:[#allocation5 + $0x5d0] sm:$0xff] %v6737
      %6851 = vst [vmem:[#allocation5 + $0x5f0] sm:$0xff] %v6741
      %6852 = vst [vmem:[#allocation5 + $0x5f8] sm:$0xff] %v6743
      %6853 = vst [vmem:[#allocation5 + $0x618] sm:$0xff] %v6747
      %6854 = vst [vmem:[#allocation5 + $0x620] sm:$0xff] %v6749
      %6855 = vst [vmem:[#allocation5 + $0x640] sm:$0xff] %v6753
      %6856 = vst [vmem:[#allocation5 + $0x648] sm:$0xff] %v6755
      %6857 = vst [vmem:[#allocation5 + $0x668] sm:$0xff] %v6759
      %6858 = vst [vmem:[#allocation5 + $0x670] sm:$0xff] %v6761
      %6859 = vst [vmem:[#allocation5 + $0x690] sm:$0xff] %v6765
      %6860 = vst [vmem:[#allocation5 + $0x698] sm:$0xff] %v6767
      %6861 = vst [vmem:[#allocation5 + $0x6b8] sm:$0xff] %v6771
      %6862 = vst [vmem:[#allocation5 + $0x6c0] sm:$0xff] %v6773
      %v6863 = vld [vmem:[#allocation5] sm:$0xc0]
      %v6864 = vld [vmem:[#allocation5 + $0x28] sm:$0xff]
      %v6865 = vld [vmem:[#allocation5 + $0x50] sm:$0xff]
      %v6866 = vld [vmem:[#allocation5 + $0x78] sm:$0xff]
      %v6867 = vld [vmem:[#allocation5 + $0xa0] sm:$0xff]
      %v6868 = vld [vmem:[#allocation5 + $0xc8] sm:$0xff]
      %v6869 = vld [vmem:[#allocation5 + $0xf0] sm:$0xff]
      %v6870 = vld [vmem:[#allocation5 + $0x118] sm:$0xff]
      %v6871 = vld [vmem:[#allocation5 + $0x140] sm:$0xff]
      %v6872 = vld [vmem:[#allocation5 + $0x168] sm:$0xff]
      %v6873 = vld [vmem:[#allocation5 + $0x190] sm:$0xff]
      %v6874 = vld [vmem:[#allocation5 + $0x1b8] sm:$0xff]
      %v6875 = vld [vmem:[#allocation5 + $0x1e0] sm:$0xff]
      %v6876 = vld [vmem:[#allocation5 + $0x208] sm:$0xff]
      %v6877 = vld [vmem:[#allocation5 + $0x230] sm:$0xff]
      %v6878 = vld [vmem:[#allocation5 + $0x258] sm:$0xff]
      %v6879 = vld [vmem:[#allocation5 + $0x280] sm:$0xff]
      %v6880 = vld [vmem:[#allocation5 + $0x2a8] sm:$0xff]
      %v6881 = vld [vmem:[#allocation5 + $0x2d0] sm:$0xff]
      %v6882 = vld [vmem:[#allocation5 + $0x2f8] sm:$0xff]
      %v6883 = vld [vmem:[#allocation5 + $0x320] sm:$0xff]
      %v6884 = vld [vmem:[#allocation5 + $0x348] sm:$0xff]
      %v6885 = vld [vmem:[#allocation5 + $0x370] sm:$0xff]
      %v6886 = vld [vmem:[#allocation5 + $0x398] sm:$0xff]
      %v6887 = vld [vmem:[#allocation5 + $0x3c0] sm:$0xff]
      %v6888 = vld [vmem:[#allocation5 + $0x3e8] sm:$0xff]
      %v6889 = vld [vmem:[#allocation5 + $0x410] sm:$0xff]
      %v6890 = vld [vmem:[#allocation5 + $0x438] sm:$0xff]
      %v6891 = vld [vmem:[#allocation5 + $0x460] sm:$0xff]
      %v6892 = vld [vmem:[#allocation5 + $0x488] sm:$0xff]
      %v6893 = vld [vmem:[#allocation5 + $0x4b0] sm:$0xff]
      %v6894 = vld [vmem:[#allocation5 + $0x4d8] sm:$0xff]
      %v6895 = vld [vmem:[#allocation5 + $0x500] sm:$0xff]
      %v6896 = vld [vmem:[#allocation5 + $0x528] sm:$0x3f]
      %v6897 = vld [vmem:[#allocation5] sm:$0x80]
      %v6898 = vld [vmem:[#allocation5 + $0x528] sm:$0x7f]
      %v6933 = vrot.slane %v6897, 1
      %v6934 = vrot.slane %v6864, 1
      %v6935 = vsel %vm1511, %v6933, %v6934
      %v6936 = vrot.slane %v6865, 1
      %v6937 = vsel %vm1511, %v6934, %v6936
      %v6938 = vrot.slane %v6866, 1
      %v6939 = vsel %vm1511, %v6936, %v6938
      %v6940 = vrot.slane %v6867, 1
      %v6941 = vsel %vm1511, %v6938, %v6940
      %v6942 = vrot.slane %v6868, 1
      %v6943 = vsel %vm1511, %v6940, %v6942
      %v6944 = vrot.slane %v6869, 1
      %v6945 = vsel %vm1511, %v6942, %v6944
      %v6946 = vrot.slane %v6870, 1
      %v6947 = vsel %vm1511, %v6944, %v6946
      %v6948 = vrot.slane %v6871, 1
      %v6949 = vsel %vm1511, %v6946, %v6948
      %v6950 = vrot.slane %v6872, 1
      %v6951 = vsel %vm1511, %v6948, %v6950
      %v6952 = vrot.slane %v6873, 1
      %v6953 = vsel %vm1511, %v6950, %v6952
      %v6954 = vrot.slane %v6874, 1
      %v6955 = vsel %vm1511, %v6952, %v6954
      %v6956 = vrot.slane %v6875, 1
      %v6957 = vsel %vm1511, %v6954, %v6956
      %v6958 = vrot.slane %v6876, 1
      %v6959 = vsel %vm1511, %v6956, %v6958
      %v6960 = vrot.slane %v6877, 1
      %v6961 = vsel %vm1511, %v6958, %v6960
      %v6962 = vrot.slane %v6878, 1
      %v6963 = vsel %vm1511, %v6960, %v6962
      %v6964 = vrot.slane %v6879, 1
      %v6965 = vsel %vm1511, %v6962, %v6964
      %v6966 = vrot.slane %v6880, 1
      %v6967 = vsel %vm1511, %v6964, %v6966
      %v6968 = vrot.slane %v6881, 1
      %v6969 = vsel %vm1511, %v6966, %v6968
      %v6970 = vrot.slane %v6882, 1
      %v6971 = vsel %vm1511, %v6968, %v6970
      %v6972 = vrot.slane %v6883, 1
      %v6973 = vsel %vm1511, %v6970, %v6972
      %v6974 = vrot.slane %v6884, 1
      %v6975 = vsel %vm1511, %v6972, %v6974
      %v6976 = vrot.slane %v6885, 1
      %v6977 = vsel %vm1511, %v6974, %v6976
      %v6978 = vrot.slane %v6886, 1
      %v6979 = vsel %vm1511, %v6976, %v6978
      %v6980 = vrot.slane %v6887, 1
      %v6981 = vsel %vm1511, %v6978, %v6980
      %v6982 = vrot.slane %v6888, 1
      %v6983 = vsel %vm1511, %v6980, %v6982
      %v6984 = vrot.slane %v6889, 1
      %v6985 = vsel %vm1511, %v6982, %v6984
      %v6986 = vrot.slane %v6890, 1
      %v6987 = vsel %vm1511, %v6984, %v6986
      %v6988 = vrot.slane %v6891, 1
      %v6989 = vsel %vm1511, %v6986, %v6988
      %v6990 = vrot.slane %v6892, 1
      %v6991 = vsel %vm1511, %v6988, %v6990
      %v6992 = vrot.slane %v6893, 1
      %v6993 = vsel %vm1511, %v6990, %v6992
      %v6994 = vrot.slane %v6894, 1
      %v6995 = vsel %vm1511, %v6992, %v6994
      %v6996 = vrot.slane %v6895, 1
      %v6997 = vsel %vm1511, %v6994, %v6996
      %v6998 = vrot.slane %v6898, 1
      %v6999 = vsel %vm1511, %v6996, %v6998
      %7000 = vrot.lane.b32.xlu0 %v6935, 112
      %v7001 = vpop.permute.xlu0 %7000
      %7002 = vrot.lane.b32.xlu0 %v6937, 112
      %v7003 = vpop.permute.xlu0 %7002
      %7004 = vrot.lane.b32.xlu0 %v6939, 112
      %v7005 = vpop.permute.xlu0 %7004
      %7006 = vrot.lane.b32.xlu0 %v6941, 112
      %v7007 = vpop.permute.xlu0 %7006
      %7008 = vrot.lane.b32.xlu0 %v6943, 112
      %v7009 = vpop.permute.xlu0 %7008
      %7010 = vrot.lane.b32.xlu0 %v6945, 112
      %v7011 = vpop.permute.xlu0 %7010
      %7012 = vrot.lane.b32.xlu0 %v6947, 112
      %v7013 = vpop.permute.xlu0 %7012
      %7014 = vrot.lane.b32.xlu0 %v6949, 112
      %v7015 = vpop.permute.xlu0 %7014
      %7016 = vrot.lane.b32.xlu0 %v6951, 112
      %v7017 = vpop.permute.xlu0 %7016
      %7018 = vrot.lane.b32.xlu0 %v6953, 112
      %v7019 = vpop.permute.xlu0 %7018
      %7020 = vrot.lane.b32.xlu0 %v6955, 112
      %v7021 = vpop.permute.xlu0 %7020
      %7022 = vrot.lane.b32.xlu0 %v6957, 112
      %v7023 = vpop.permute.xlu0 %7022
      %7024 = vrot.lane.b32.xlu0 %v6959, 112
      %v7025 = vpop.permute.xlu0 %7024
      %7026 = vrot.lane.b32.xlu0 %v6961, 112
      %v7027 = vpop.permute.xlu0 %7026
      %7028 = vrot.lane.b32.xlu0 %v6963, 112
      %v7029 = vpop.permute.xlu0 %7028
      %7030 = vrot.lane.b32.xlu0 %v6965, 112
      %v7031 = vpop.permute.xlu0 %7030
      %7032 = vrot.lane.b32.xlu0 %v6967, 112
      %v7033 = vpop.permute.xlu0 %7032
      %7034 = vrot.lane.b32.xlu0 %v6969, 112
      %v7035 = vpop.permute.xlu0 %7034
      %7036 = vrot.lane.b32.xlu0 %v6971, 112
      %v7037 = vpop.permute.xlu0 %7036
      %7038 = vrot.lane.b32.xlu0 %v6973, 112
      %v7039 = vpop.permute.xlu0 %7038
      %7040 = vrot.lane.b32.xlu0 %v6975, 112
      %v7041 = vpop.permute.xlu0 %7040
      %7042 = vrot.lane.b32.xlu0 %v6977, 112
      %v7043 = vpop.permute.xlu0 %7042
      %7044 = vrot.lane.b32.xlu0 %v6979, 112
      %v7045 = vpop.permute.xlu0 %7044
      %7046 = vrot.lane.b32.xlu0 %v6981, 112
      %v7047 = vpop.permute.xlu0 %7046
      %7048 = vrot.lane.b32.xlu0 %v6983, 112
      %v7049 = vpop.permute.xlu0 %7048
      %7050 = vrot.lane.b32.xlu0 %v6985, 112
      %v7051 = vpop.permute.xlu0 %7050
      %7052 = vrot.lane.b32.xlu0 %v6987, 112
      %v7053 = vpop.permute.xlu0 %7052
      %7054 = vrot.lane.b32.xlu0 %v6989, 112
      %v7055 = vpop.permute.xlu0 %7054
      %7056 = vrot.lane.b32.xlu0 %v6991, 112
      %v7057 = vpop.permute.xlu0 %7056
      %7058 = vrot.lane.b32.xlu0 %v6993, 112
      %v7059 = vpop.permute.xlu0 %7058
      %7060 = vrot.lane.b32.xlu0 %v6995, 112
      %v7061 = vpop.permute.xlu0 %7060
      %7062 = vrot.lane.b32.xlu0 %v6997, 112
      %v7063 = vpop.permute.xlu0 %7062
      %7064 = vrot.lane.b32.xlu0 %v6999, 112
      %v7065 = vpop.permute.xlu0 %7064
      %7066 = vrot.lane.b32.xlu0 %v6998, 112
      %v7067 = vpop.permute.xlu0 %7066
      %v7102 = vadd.f32 %v6863, %v7001
      %v7103 = vadd.f32 %v6864, %v7003
      %v7104 = vadd.f32 %v6865, %v7005
      %v7105 = vadd.f32 %v6866, %v7007
      %v7106 = vadd.f32 %v6867, %v7009
      %v7107 = vadd.f32 %v6868, %v7011
      %v7108 = vadd.f32 %v6869, %v7013
      %v7109 = vadd.f32 %v6870, %v7015
      %v7110 = vadd.f32 %v6871, %v7017
      %v7111 = vadd.f32 %v6872, %v7019
      %v7112 = vadd.f32 %v6873, %v7021
      %v7113 = vadd.f32 %v6874, %v7023
      %v7114 = vadd.f32 %v6875, %v7025
      %v7115 = vadd.f32 %v6876, %v7027
      %v7116 = vadd.f32 %v6877, %v7029
      %v7117 = vadd.f32 %v6878, %v7031
      %v7118 = vadd.f32 %v6879, %v7033
      %v7119 = vadd.f32 %v6880, %v7035
      %v7120 = vadd.f32 %v6881, %v7037
      %v7121 = vadd.f32 %v6882, %v7039
      %v7122 = vadd.f32 %v6883, %v7041
      %v7123 = vadd.f32 %v6884, %v7043
      %v7124 = vadd.f32 %v6885, %v7045
      %v7125 = vadd.f32 %v6886, %v7047
      %v7126 = vadd.f32 %v6887, %v7049
      %v7127 = vadd.f32 %v6888, %v7051
      %v7128 = vadd.f32 %v6889, %v7053
      %v7129 = vadd.f32 %v6890, %v7055
      %v7130 = vadd.f32 %v6891, %v7057
      %v7131 = vadd.f32 %v6892, %v7059
      %v7132 = vadd.f32 %v6893, %v7061
      %v7133 = vadd.f32 %v6894, %v7063
      %v7134 = vadd.f32 %v6895, %v7065
      %v7135 = vadd.f32 %v6896, %v7067
      %v7136 = vld [vmem:[#allocation5 + $0x528] sm:$0xff]
      %v7138 = vrot.slane %v6864, 2
      %v7139 = vrot.slane %v6865, 2
      %v7140 = vsel %vm1699, %v7138, %v7139
      %v7141 = vrot.slane %v6866, 2
      %v7142 = vsel %vm1699, %v7139, %v7141
      %v7143 = vrot.slane %v6867, 2
      %v7144 = vsel %vm1699, %v7141, %v7143
      %v7145 = vrot.slane %v6868, 2
      %v7146 = vsel %vm1699, %v7143, %v7145
      %v7147 = vrot.slane %v6869, 2
      %v7148 = vsel %vm1699, %v7145, %v7147
      %v7149 = vrot.slane %v6870, 2
      %v7150 = vsel %vm1699, %v7147, %v7149
      %v7151 = vrot.slane %v6871, 2
      %v7152 = vsel %vm1699, %v7149, %v7151
      %v7153 = vrot.slane %v6872, 2
      %v7154 = vsel %vm1699, %v7151, %v7153
      %v7155 = vrot.slane %v6873, 2
      %v7156 = vsel %vm1699, %v7153, %v7155
      %v7157 = vrot.slane %v6874, 2
      %v7158 = vsel %vm1699, %v7155, %v7157
      %v7159 = vrot.slane %v6875, 2
      %v7160 = vsel %vm1699, %v7157, %v7159
      %v7161 = vrot.slane %v6876, 2
      %v7162 = vsel %vm1699, %v7159, %v7161
      %v7163 = vrot.slane %v6877, 2
      %v7164 = vsel %vm1699, %v7161, %v7163
      %v7165 = vrot.slane %v6878, 2
      %v7166 = vsel %vm1699, %v7163, %v7165
      %v7167 = vrot.slane %v6879, 2
      %v7168 = vsel %vm1699, %v7165, %v7167
      %v7169 = vrot.slane %v6880, 2
      %v7170 = vsel %vm1699, %v7167, %v7169
      %v7171 = vrot.slane %v6881, 2
      %v7172 = vsel %vm1699, %v7169, %v7171
      %v7173 = vrot.slane %v6882, 2
      %v7174 = vsel %vm1699, %v7171, %v7173
      %v7175 = vrot.slane %v6883, 2
      %v7176 = vsel %vm1699, %v7173, %v7175
      %v7177 = vrot.slane %v6884, 2
      %v7178 = vsel %vm1699, %v7175, %v7177
      %v7179 = vrot.slane %v6885, 2
      %v7180 = vsel %vm1699, %v7177, %v7179
      %v7181 = vrot.slane %v6886, 2
      %v7182 = vsel %vm1699, %v7179, %v7181
      %v7183 = vrot.slane %v6887, 2
      %v7184 = vsel %vm1699, %v7181, %v7183
      %v7185 = vrot.slane %v6888, 2
      %v7186 = vsel %vm1699, %v7183, %v7185
      %v7187 = vrot.slane %v6889, 2
      %v7188 = vsel %vm1699, %v7185, %v7187
      %v7189 = vrot.slane %v6890, 2
      %v7190 = vsel %vm1699, %v7187, %v7189
      %v7191 = vrot.slane %v6891, 2
      %v7192 = vsel %vm1699, %v7189, %v7191
      %v7193 = vrot.slane %v6892, 2
      %v7194 = vsel %vm1699, %v7191, %v7193
      %v7195 = vrot.slane %v6893, 2
      %v7196 = vsel %vm1699, %v7193, %v7195
      %v7197 = vrot.slane %v6894, 2
      %v7198 = vsel %vm1699, %v7195, %v7197
      %v7199 = vrot.slane %v6895, 2
      %v7200 = vsel %vm1699, %v7197, %v7199
      %v7201 = vrot.slane %v7136, 2
      %v7202 = vsel %vm1699, %v7199, %v7201
      %7203 = vrot.lane.b32.xlu0 %v7138, 96
      %v7204 = vpop.permute.xlu0 %7203
      %7205 = vrot.lane.b32.xlu0 %v7140, 96
      %v7206 = vpop.permute.xlu0 %7205
      %7207 = vrot.lane.b32.xlu0 %v7142, 96
      %v7208 = vpop.permute.xlu0 %7207
      %7209 = vrot.lane.b32.xlu0 %v7144, 96
      %v7210 = vpop.permute.xlu0 %7209
      %7211 = vrot.lane.b32.xlu0 %v7146, 96
      %v7212 = vpop.permute.xlu0 %7211
      %7213 = vrot.lane.b32.xlu0 %v7148, 96
      %v7214 = vpop.permute.xlu0 %7213
      %7215 = vrot.lane.b32.xlu0 %v7150, 96
      %v7216 = vpop.permute.xlu0 %7215
      %7217 = vrot.lane.b32.xlu0 %v7152, 96
      %v7218 = vpop.permute.xlu0 %7217
      %7219 = vrot.lane.b32.xlu0 %v7154, 96
      %v7220 = vpop.permute.xlu0 %7219
      %7221 = vrot.lane.b32.xlu0 %v7156, 96
      %v7222 = vpop.permute.xlu0 %7221
      %7223 = vrot.lane.b32.xlu0 %v7158, 96
      %v7224 = vpop.permute.xlu0 %7223
      %7225 = vrot.lane.b32.xlu0 %v7160, 96
      %v7226 = vpop.permute.xlu0 %7225
      %7227 = vrot.lane.b32.xlu0 %v7162, 96
      %v7228 = vpop.permute.xlu0 %7227
      %7229 = vrot.lane.b32.xlu0 %v7164, 96
      %v7230 = vpop.permute.xlu0 %7229
      %7231 = vrot.lane.b32.xlu0 %v7166, 96
      %v7232 = vpop.permute.xlu0 %7231
      %7233 = vrot.lane.b32.xlu0 %v7168, 96
      %v7234 = vpop.permute.xlu0 %7233
      %7235 = vrot.lane.b32.xlu0 %v7170, 96
      %v7236 = vpop.permute.xlu0 %7235
      %7237 = vrot.lane.b32.xlu0 %v7172, 96
      %v7238 = vpop.permute.xlu0 %7237
      %7239 = vrot.lane.b32.xlu0 %v7174, 96
      %v7240 = vpop.permute.xlu0 %7239
      %7241 = vrot.lane.b32.xlu0 %v7176, 96
      %v7242 = vpop.permute.xlu0 %7241
      %7243 = vrot.lane.b32.xlu0 %v7178, 96
      %v7244 = vpop.permute.xlu0 %7243
      %7245 = vrot.lane.b32.xlu0 %v7180, 96
      %v7246 = vpop.permute.xlu0 %7245
      %7247 = vrot.lane.b32.xlu0 %v7182, 96
      %v7248 = vpop.permute.xlu0 %7247
      %7249 = vrot.lane.b32.xlu0 %v7184, 96
      %v7250 = vpop.permute.xlu0 %7249
      %7251 = vrot.lane.b32.xlu0 %v7186, 96
      %v7252 = vpop.permute.xlu0 %7251
      %7253 = vrot.lane.b32.xlu0 %v7188, 96
      %v7254 = vpop.permute.xlu0 %7253
      %7255 = vrot.lane.b32.xlu0 %v7190, 96
      %v7256 = vpop.permute.xlu0 %7255
      %7257 = vrot.lane.b32.xlu0 %v7192, 96
      %v7258 = vpop.permute.xlu0 %7257
      %7259 = vrot.lane.b32.xlu0 %v7194, 96
      %v7260 = vpop.permute.xlu0 %7259
      %7261 = vrot.lane.b32.xlu0 %v7196, 96
      %v7262 = vpop.permute.xlu0 %7261
      %7263 = vrot.lane.b32.xlu0 %v7198, 96
      %v7264 = vpop.permute.xlu0 %7263
      %7265 = vrot.lane.b32.xlu0 %v7200, 96
      %v7266 = vpop.permute.xlu0 %7265
      %7267 = vrot.lane.b32.xlu0 %v7202, 96
      %v7268 = vpop.permute.xlu0 %7267
      %7269 = vrot.lane.b32.xlu0 %v7201, 96
      %v7270 = vpop.permute.xlu0 %7269
      %v7305 = vadd.f32 %v7102, %v7204
      %v7306 = vadd.f32 %v7103, %v7206
      %v7307 = vadd.f32 %v7104, %v7208
      %v7308 = vadd.f32 %v7105, %v7210
      %v7309 = vadd.f32 %v7106, %v7212
      %v7310 = vadd.f32 %v7107, %v7214
      %v7311 = vadd.f32 %v7108, %v7216
      %v7312 = vadd.f32 %v7109, %v7218
      %v7313 = vadd.f32 %v7110, %v7220
      %v7314 = vadd.f32 %v7111, %v7222
      %v7315 = vadd.f32 %v7112, %v7224
      %v7316 = vadd.f32 %v7113, %v7226
      %v7317 = vadd.f32 %v7114, %v7228
      %v7318 = vadd.f32 %v7115, %v7230
      %v7319 = vadd.f32 %v7116, %v7232
      %v7320 = vadd.f32 %v7117, %v7234
      %v7321 = vadd.f32 %v7118, %v7236
      %v7322 = vadd.f32 %v7119, %v7238
      %v7323 = vadd.f32 %v7120, %v7240
      %v7324 = vadd.f32 %v7121, %v7242
      %v7325 = vadd.f32 %v7122, %v7244
      %v7326 = vadd.f32 %v7123, %v7246
      %v7327 = vadd.f32 %v7124, %v7248
      %v7328 = vadd.f32 %v7125, %v7250
      %v7329 = vadd.f32 %v7126, %v7252
      %v7330 = vadd.f32 %v7127, %v7254
      %v7331 = vadd.f32 %v7128, %v7256
      %v7332 = vadd.f32 %v7129, %v7258
      %v7333 = vadd.f32 %v7130, %v7260
      %v7334 = vadd.f32 %v7131, %v7262
      %v7335 = vadd.f32 %v7132, %v7264
      %v7336 = vadd.f32 %v7133, %v7266
      %v7337 = vadd.f32 %v7134, %v7268
      %v7338 = vadd.f32 %v7135, %v7270
      %v7339 = vld [vmem:[#allocation5 + $0x28] sm:$0xfe]
      %v7340 = vld [vmem:[#allocation5 + $0x550] sm:$0x1]
      %vm7343 = vcmask 1044480
      %v7344 = vrot.slane %v7339, 3
      %v7345 = vrot.slane %v6865, 3
      %v7346 = vsel %vm7343, %v7344, %v7345
      %v7347 = vrot.slane %v6866, 3
      %v7348 = vsel %vm7343, %v7345, %v7347
      %v7349 = vrot.slane %v6867, 3
      %v7350 = vsel %vm7343, %v7347, %v7349
      %v7351 = vrot.slane %v6868, 3
      %v7352 = vsel %vm7343, %v7349, %v7351
      %v7353 = vrot.slane %v6869, 3
      %v7354 = vsel %vm7343, %v7351, %v7353
      %v7355 = vrot.slane %v6870, 3
      %v7356 = vsel %vm7343, %v7353, %v7355
      %v7357 = vrot.slane %v6871, 3
      %v7358 = vsel %vm7343, %v7355, %v7357
      %v7359 = vrot.slane %v6872, 3
      %v7360 = vsel %vm7343, %v7357, %v7359
      %v7361 = vrot.slane %v6873, 3
      %v7362 = vsel %vm7343, %v7359, %v7361
      %v7363 = vrot.slane %v6874, 3
      %v7364 = vsel %vm7343, %v7361, %v7363
      %v7365 = vrot.slane %v6875, 3
      %v7366 = vsel %vm7343, %v7363, %v7365
      %v7367 = vrot.slane %v6876, 3
      %v7368 = vsel %vm7343, %v7365, %v7367
      %v7369 = vrot.slane %v6877, 3
      %v7370 = vsel %vm7343, %v7367, %v7369
      %v7371 = vrot.slane %v6878, 3
      %v7372 = vsel %vm7343, %v7369, %v7371
      %v7373 = vrot.slane %v6879, 3
      %v7374 = vsel %vm7343, %v7371, %v7373
      %v7375 = vrot.slane %v6880, 3
      %v7376 = vsel %vm7343, %v7373, %v7375
      %v7377 = vrot.slane %v6881, 3
      %v7378 = vsel %vm7343, %v7375, %v7377
      %v7379 = vrot.slane %v6882, 3
      %v7380 = vsel %vm7343, %v7377, %v7379
      %v7381 = vrot.slane %v6883, 3
      %v7382 = vsel %vm7343, %v7379, %v7381
      %v7383 = vrot.slane %v6884, 3
      %v7384 = vsel %vm7343, %v7381, %v7383
      %v7385 = vrot.slane %v6885, 3
      %v7386 = vsel %vm7343, %v7383, %v7385
      %v7387 = vrot.slane %v6886, 3
      %v7388 = vsel %vm7343, %v7385, %v7387
      %v7389 = vrot.slane %v6887, 3
      %v7390 = vsel %vm7343, %v7387, %v7389
      %v7391 = vrot.slane %v6888, 3
      %v7392 = vsel %vm7343, %v7389, %v7391
      %v7393 = vrot.slane %v6889, 3
      %v7394 = vsel %vm7343, %v7391, %v7393
      %v7395 = vrot.slane %v6890, 3
      %v7396 = vsel %vm7343, %v7393, %v7395
      %v7397 = vrot.slane %v6891, 3
      %v7398 = vsel %vm7343, %v7395, %v7397
      %v7399 = vrot.slane %v6892, 3
      %v7400 = vsel %vm7343, %v7397, %v7399
      %v7401 = vrot.slane %v6893, 3
      %v7402 = vsel %vm7343, %v7399, %v7401
      %v7403 = vrot.slane %v6894, 3
      %v7404 = vsel %vm7343, %v7401, %v7403
      %v7405 = vrot.slane %v6895, 3
      %v7406 = vsel %vm7343, %v7403, %v7405
      %v7407 = vrot.slane %v7136, 3
      %v7408 = vsel %vm7343, %v7405, %v7407
      %v7409 = vrot.slane %v7340, 3
      %v7410 = vsel %vm7343, %v7407, %v7409
      %7411 = vrot.lane.b32.xlu0 %v7344, 80
      %v7412 = vpop.permute.xlu0 %7411
      %7413 = vrot.lane.b32.xlu0 %v7346, 80
      %v7414 = vpop.permute.xlu0 %7413
      %7415 = vrot.lane.b32.xlu0 %v7348, 80
      %v7416 = vpop.permute.xlu0 %7415
      %7417 = vrot.lane.b32.xlu0 %v7350, 80
      %v7418 = vpop.permute.xlu0 %7417
      %7419 = vrot.lane.b32.xlu0 %v7352, 80
      %v7420 = vpop.permute.xlu0 %7419
      %7421 = vrot.lane.b32.xlu0 %v7354, 80
      %v7422 = vpop.permute.xlu0 %7421
      %7423 = vrot.lane.b32.xlu0 %v7356, 80
      %v7424 = vpop.permute.xlu0 %7423
      %7425 = vrot.lane.b32.xlu0 %v7358, 80
      %v7426 = vpop.permute.xlu0 %7425
      %7427 = vrot.lane.b32.xlu0 %v7360, 80
      %v7428 = vpop.permute.xlu0 %7427
      %7429 = vrot.lane.b32.xlu0 %v7362, 80
      %v7430 = vpop.permute.xlu0 %7429
      %7431 = vrot.lane.b32.xlu0 %v7364, 80
      %v7432 = vpop.permute.xlu0 %7431
      %7433 = vrot.lane.b32.xlu0 %v7366, 80
      %v7434 = vpop.permute.xlu0 %7433
      %7435 = vrot.lane.b32.xlu0 %v7368, 80
      %v7436 = vpop.permute.xlu0 %7435
      %7437 = vrot.lane.b32.xlu0 %v7370, 80
      %v7438 = vpop.permute.xlu0 %7437
      %7439 = vrot.lane.b32.xlu0 %v7372, 80
      %v7440 = vpop.permute.xlu0 %7439
      %7441 = vrot.lane.b32.xlu0 %v7374, 80
      %v7442 = vpop.permute.xlu0 %7441
      %7443 = vrot.lane.b32.xlu0 %v7376, 80
      %v7444 = vpop.permute.xlu0 %7443
      %7445 = vrot.lane.b32.xlu0 %v7378, 80
      %v7446 = vpop.permute.xlu0 %7445
      %7447 = vrot.lane.b32.xlu0 %v7380, 80
      %v7448 = vpop.permute.xlu0 %7447
      %7449 = vrot.lane.b32.xlu0 %v7382, 80
      %v7450 = vpop.permute.xlu0 %7449
      %7451 = vrot.lane.b32.xlu0 %v7384, 80
      %v7452 = vpop.permute.xlu0 %7451
      %7453 = vrot.lane.b32.xlu0 %v7386, 80
      %v7454 = vpop.permute.xlu0 %7453
      %7455 = vrot.lane.b32.xlu0 %v7388, 80
      %v7456 = vpop.permute.xlu0 %7455
      %7457 = vrot.lane.b32.xlu0 %v7390, 80
      %v7458 = vpop.permute.xlu0 %7457
      %7459 = vrot.lane.b32.xlu0 %v7392, 80
      %v7460 = vpop.permute.xlu0 %7459
      %7461 = vrot.lane.b32.xlu0 %v7394, 80
      %v7462 = vpop.permute.xlu0 %7461
      %7463 = vrot.lane.b32.xlu0 %v7396, 80
      %v7464 = vpop.permute.xlu0 %7463
      %7465 = vrot.lane.b32.xlu0 %v7398, 80
      %v7466 = vpop.permute.xlu0 %7465
      %7467 = vrot.lane.b32.xlu0 %v7400, 80
      %v7468 = vpop.permute.xlu0 %7467
      %7469 = vrot.lane.b32.xlu0 %v7402, 80
      %v7470 = vpop.permute.xlu0 %7469
      %7471 = vrot.lane.b32.xlu0 %v7404, 80
      %v7472 = vpop.permute.xlu0 %7471
      %7473 = vrot.lane.b32.xlu0 %v7406, 80
      %v7474 = vpop.permute.xlu0 %7473
      %7475 = vrot.lane.b32.xlu0 %v7408, 80
      %v7476 = vpop.permute.xlu0 %7475
      %7477 = vrot.lane.b32.xlu0 %v7410, 80
      %v7478 = vpop.permute.xlu0 %7477
      %v7513 = vadd.f32 %v7305, %v7412
      %v7514 = vadd.f32 %v7306, %v7414
      %v7515 = vadd.f32 %v7307, %v7416
      %v7516 = vadd.f32 %v7308, %v7418
      %v7517 = vadd.f32 %v7309, %v7420
      %v7518 = vadd.f32 %v7310, %v7422
      %v7519 = vadd.f32 %v7311, %v7424
      %v7520 = vadd.f32 %v7312, %v7426
      %v7521 = vadd.f32 %v7313, %v7428
      %v7522 = vadd.f32 %v7314, %v7430
      %v7523 = vadd.f32 %v7315, %v7432
      %v7524 = vadd.f32 %v7316, %v7434
      %v7525 = vadd.f32 %v7317, %v7436
      %v7526 = vadd.f32 %v7318, %v7438
      %v7527 = vadd.f32 %v7319, %v7440
      %v7528 = vadd.f32 %v7320, %v7442
      %v7529 = vadd.f32 %v7321, %v7444
      %v7530 = vadd.f32 %v7322, %v7446
      %v7531 = vadd.f32 %v7323, %v7448
      %v7532 = vadd.f32 %v7324, %v7450
      %v7533 = vadd.f32 %v7325, %v7452
      %v7534 = vadd.f32 %v7326, %v7454
      %v7535 = vadd.f32 %v7327, %v7456
      %v7536 = vadd.f32 %v7328, %v7458
      %v7537 = vadd.f32 %v7329, %v7460
      %v7538 = vadd.f32 %v7330, %v7462
      %v7539 = vadd.f32 %v7331, %v7464
      %v7540 = vadd.f32 %v7332, %v7466
      %v7541 = vadd.f32 %v7333, %v7468
      %v7542 = vadd.f32 %v7334, %v7470
      %v7543 = vadd.f32 %v7335, %v7472
      %v7544 = vadd.f32 %v7336, %v7474
      %v7545 = vadd.f32 %v7337, %v7476
      %v7546 = vadd.f32 %v7338, %v7478
      %v7547 = vld [vmem:[#allocation5 + $0x78] sm:$0xc0]
      %v7548 = vld [vmem:[#allocation5 + $0x550] sm:$0xff]
      %v7549 = vld [vmem:[#allocation5 + $0x578] sm:$0xff]
      %v7550 = vld [vmem:[#allocation5 + $0x5a0] sm:$0x3f]
      %7555 = vrot.lane.b32.xlu0 %v7547, 64
      %v7556 = vpop.permute.xlu0 %7555
      %7557 = vrot.lane.b32.xlu0 %v6867, 64
      %v7558 = vpop.permute.xlu0 %7557
      %7559 = vrot.lane.b32.xlu0 %v6868, 64
      %v7560 = vpop.permute.xlu0 %7559
      %7561 = vrot.lane.b32.xlu0 %v6869, 64
      %v7562 = vpop.permute.xlu0 %7561
      %7563 = vrot.lane.b32.xlu0 %v6870, 64
      %v7564 = vpop.permute.xlu0 %7563
      %7565 = vrot.lane.b32.xlu0 %v6871, 64
      %v7566 = vpop.permute.xlu0 %7565
      %7567 = vrot.lane.b32.xlu0 %v6872, 64
      %v7568 = vpop.permute.xlu0 %7567
      %7569 = vrot.lane.b32.xlu0 %v6873, 64
      %v7570 = vpop.permute.xlu0 %7569
      %7571 = vrot.lane.b32.xlu0 %v6874, 64
      %v7572 = vpop.permute.xlu0 %7571
      %7573 = vrot.lane.b32.xlu0 %v6875, 64
      %v7574 = vpop.permute.xlu0 %7573
      %7575 = vrot.lane.b32.xlu0 %v6876, 64
      %v7576 = vpop.permute.xlu0 %7575
      %7577 = vrot.lane.b32.xlu0 %v6877, 64
      %v7578 = vpop.permute.xlu0 %7577
      %7579 = vrot.lane.b32.xlu0 %v6878, 64
      %v7580 = vpop.permute.xlu0 %7579
      %7581 = vrot.lane.b32.xlu0 %v6879, 64
      %v7582 = vpop.permute.xlu0 %7581
      %7583 = vrot.lane.b32.xlu0 %v6880, 64
      %v7584 = vpop.permute.xlu0 %7583
      %7585 = vrot.lane.b32.xlu0 %v6881, 64
      %v7586 = vpop.permute.xlu0 %7585
      %7587 = vrot.lane.b32.xlu0 %v6882, 64
      %v7588 = vpop.permute.xlu0 %7587
      %7589 = vrot.lane.b32.xlu0 %v6883, 64
      %v7590 = vpop.permute.xlu0 %7589
      %7591 = vrot.lane.b32.xlu0 %v6884, 64
      %v7592 = vpop.permute.xlu0 %7591
      %7593 = vrot.lane.b32.xlu0 %v6885, 64
      %v7594 = vpop.permute.xlu0 %7593
      %7595 = vrot.lane.b32.xlu0 %v6886, 64
      %v7596 = vpop.permute.xlu0 %7595
      %7597 = vrot.lane.b32.xlu0 %v6887, 64
      %v7598 = vpop.permute.xlu0 %7597
      %7599 = vrot.lane.b32.xlu0 %v6888, 64
      %v7600 = vpop.permute.xlu0 %7599
      %7601 = vrot.lane.b32.xlu0 %v6889, 64
      %v7602 = vpop.permute.xlu0 %7601
      %7603 = vrot.lane.b32.xlu0 %v6890, 64
      %v7604 = vpop.permute.xlu0 %7603
      %7605 = vrot.lane.b32.xlu0 %v6891, 64
      %v7606 = vpop.permute.xlu0 %7605
      %7607 = vrot.lane.b32.xlu0 %v6892, 64
      %v7608 = vpop.permute.xlu0 %7607
      %7609 = vrot.lane.b32.xlu0 %v6893, 64
      %v7610 = vpop.permute.xlu0 %7609
      %7611 = vrot.lane.b32.xlu0 %v6894, 64
      %v7612 = vpop.permute.xlu0 %7611
      %7613 = vrot.lane.b32.xlu0 %v6895, 64
      %v7614 = vpop.permute.xlu0 %7613
      %7615 = vrot.lane.b32.xlu0 %v7136, 64
      %v7616 = vpop.permute.xlu0 %7615
      %7617 = vrot.lane.b32.xlu0 %v7548, 64
      %v7618 = vpop.permute.xlu0 %7617
      %7619 = vrot.lane.b32.xlu0 %v7549, 64
      %v7620 = vpop.permute.xlu0 %7619
      %7621 = vrot.lane.b32.xlu0 %v7550, 64
      %v7622 = vpop.permute.xlu0 %7621
      %v7657 = vadd.f32 %v7513, %v7556
      %v7658 = vadd.f32 %v7514, %v7558
      %v7659 = vadd.f32 %v7515, %v7560
      %v7660 = vadd.f32 %v7516, %v7562
      %v7661 = vadd.f32 %v7517, %v7564
      %v7662 = vadd.f32 %v7518, %v7566
      %v7663 = vadd.f32 %v7519, %v7568
      %v7664 = vadd.f32 %v7520, %v7570
      %v7665 = vadd.f32 %v7521, %v7572
      %v7666 = vadd.f32 %v7522, %v7574
      %v7667 = vadd.f32 %v7523, %v7576
      %v7668 = vadd.f32 %v7524, %v7578
      %v7669 = vadd.f32 %v7525, %v7580
      %v7670 = vadd.f32 %v7526, %v7582
      %v7671 = vadd.f32 %v7527, %v7584
      %v7672 = vadd.f32 %v7528, %v7586
      %v7673 = vadd.f32 %v7529, %v7588
      %v7674 = vadd.f32 %v7530, %v7590
      %v7675 = vadd.f32 %v7531, %v7592
      %v7676 = vadd.f32 %v7532, %v7594
      %v7677 = vadd.f32 %v7533, %v7596
      %v7678 = vadd.f32 %v7534, %v7598
      %v7679 = vadd.f32 %v7535, %v7600
      %v7680 = vadd.f32 %v7536, %v7602
      %v7681 = vadd.f32 %v7537, %v7604
      %v7682 = vadd.f32 %v7538, %v7606
      %v7683 = vadd.f32 %v7539, %v7608
      %v7684 = vadd.f32 %v7540, %v7610
      %v7685 = vadd.f32 %v7541, %v7612
      %v7686 = vadd.f32 %v7542, %v7614
      %v7687 = vadd.f32 %v7543, %v7616
      %v7688 = vadd.f32 %v7544, %v7618
      %v7689 = vadd.f32 %v7545, %v7620
      %v7690 = vadd.f32 %v7546, %v7622
      %v7691 = vld [vmem:[#allocation5 + $0x78] sm:$0x80]
      %v7692 = vld [vmem:[#allocation5 + $0x5a0] sm:$0x7f]
      %v7695 = vrot.slane %v7691, 1
      %v7696 = vsel %vm1511, %v7695, %v6940
      %v7697 = vrot.slane %v7136, 1
      %v7698 = vsel %vm1511, %v6996, %v7697
      %v7699 = vrot.slane %v7548, 1
      %v7700 = vsel %vm1511, %v7697, %v7699
      %v7701 = vrot.slane %v7549, 1
      %v7702 = vsel %vm1511, %v7699, %v7701
      %v7703 = vrot.slane %v7692, 1
      %v7704 = vsel %vm1511, %v7701, %v7703
      %7705 = vrot.lane.b32.xlu0 %v7696, 48
      %v7706 = vpop.permute.xlu0 %7705
      %7707 = vrot.lane.b32.xlu0 %v6943, 48
      %v7708 = vpop.permute.xlu0 %7707
      %7709 = vrot.lane.b32.xlu0 %v6945, 48
      %v7710 = vpop.permute.xlu0 %7709
      %7711 = vrot.lane.b32.xlu0 %v6947, 48
      %v7712 = vpop.permute.xlu0 %7711
      %7713 = vrot.lane.b32.xlu0 %v6949, 48
      %v7714 = vpop.permute.xlu0 %7713
      %7715 = vrot.lane.b32.xlu0 %v6951, 48
      %v7716 = vpop.permute.xlu0 %7715
      %7717 = vrot.lane.b32.xlu0 %v6953, 48
      %v7718 = vpop.permute.xlu0 %7717
      %7719 = vrot.lane.b32.xlu0 %v6955, 48
      %v7720 = vpop.permute.xlu0 %7719
      %7721 = vrot.lane.b32.xlu0 %v6957, 48
      %v7722 = vpop.permute.xlu0 %7721
      %7723 = vrot.lane.b32.xlu0 %v6959, 48
      %v7724 = vpop.permute.xlu0 %7723
      %7725 = vrot.lane.b32.xlu0 %v6961, 48
      %v7726 = vpop.permute.xlu0 %7725
      %7727 = vrot.lane.b32.xlu0 %v6963, 48
      %v7728 = vpop.permute.xlu0 %7727
      %7729 = vrot.lane.b32.xlu0 %v6965, 48
      %v7730 = vpop.permute.xlu0 %7729
      %7731 = vrot.lane.b32.xlu0 %v6967, 48
      %v7732 = vpop.permute.xlu0 %7731
      %7733 = vrot.lane.b32.xlu0 %v6969, 48
      %v7734 = vpop.permute.xlu0 %7733
      %7735 = vrot.lane.b32.xlu0 %v6971, 48
      %v7736 = vpop.permute.xlu0 %7735
      %7737 = vrot.lane.b32.xlu0 %v6973, 48
      %v7738 = vpop.permute.xlu0 %7737
      %7739 = vrot.lane.b32.xlu0 %v6975, 48
      %v7740 = vpop.permute.xlu0 %7739
      %7741 = vrot.lane.b32.xlu0 %v6977, 48
      %v7742 = vpop.permute.xlu0 %7741
      %7743 = vrot.lane.b32.xlu0 %v6979, 48
      %v7744 = vpop.permute.xlu0 %7743
      %7745 = vrot.lane.b32.xlu0 %v6981, 48
      %v7746 = vpop.permute.xlu0 %7745
      %7747 = vrot.lane.b32.xlu0 %v6983, 48
      %v7748 = vpop.permute.xlu0 %7747
      %7749 = vrot.lane.b32.xlu0 %v6985, 48
      %v7750 = vpop.permute.xlu0 %7749
      %7751 = vrot.lane.b32.xlu0 %v6987, 48
      %v7752 = vpop.permute.xlu0 %7751
      %7753 = vrot.lane.b32.xlu0 %v6989, 48
      %v7754 = vpop.permute.xlu0 %7753
      %7755 = vrot.lane.b32.xlu0 %v6991, 48
      %v7756 = vpop.permute.xlu0 %7755
      %7757 = vrot.lane.b32.xlu0 %v6993, 48
      %v7758 = vpop.permute.xlu0 %7757
      %7759 = vrot.lane.b32.xlu0 %v6995, 48
      %v7760 = vpop.permute.xlu0 %7759
      %7761 = vrot.lane.b32.xlu0 %v6997, 48
      %v7762 = vpop.permute.xlu0 %7761
      %7763 = vrot.lane.b32.xlu0 %v7698, 48
      %v7764 = vpop.permute.xlu0 %7763
      %7765 = vrot.lane.b32.xlu0 %v7700, 48
      %v7766 = vpop.permute.xlu0 %7765
      %7767 = vrot.lane.b32.xlu0 %v7702, 48
      %v7768 = vpop.permute.xlu0 %7767
      %7769 = vrot.lane.b32.xlu0 %v7704, 48
      %v7770 = vpop.permute.xlu0 %7769
      %7771 = vrot.lane.b32.xlu0 %v7703, 48
      %v7772 = vpop.permute.xlu0 %7771
      %v7807 = vadd.f32 %v7657, %v7706
      %v7808 = vadd.f32 %v7658, %v7708
      %v7809 = vadd.f32 %v7659, %v7710
      %v7810 = vadd.f32 %v7660, %v7712
      %v7811 = vadd.f32 %v7661, %v7714
      %v7812 = vadd.f32 %v7662, %v7716
      %v7813 = vadd.f32 %v7663, %v7718
      %v7814 = vadd.f32 %v7664, %v7720
      %v7815 = vadd.f32 %v7665, %v7722
      %v7816 = vadd.f32 %v7666, %v7724
      %v7817 = vadd.f32 %v7667, %v7726
      %v7818 = vadd.f32 %v7668, %v7728
      %v7819 = vadd.f32 %v7669, %v7730
      %v7820 = vadd.f32 %v7670, %v7732
      %v7821 = vadd.f32 %v7671, %v7734
      %v7822 = vadd.f32 %v7672, %v7736
      %v7823 = vadd.f32 %v7673, %v7738
      %v7824 = vadd.f32 %v7674, %v7740
      %v7825 = vadd.f32 %v7675, %v7742
      %v7826 = vadd.f32 %v7676, %v7744
      %v7827 = vadd.f32 %v7677, %v7746
      %v7828 = vadd.f32 %v7678, %v7748
      %v7829 = vadd.f32 %v7679, %v7750
      %v7830 = vadd.f32 %v7680, %v7752
      %v7831 = vadd.f32 %v7681, %v7754
      %v7832 = vadd.f32 %v7682, %v7756
      %v7833 = vadd.f32 %v7683, %v7758
      %v7834 = vadd.f32 %v7684, %v7760
      %v7835 = vadd.f32 %v7685, %v7762
      %v7836 = vadd.f32 %v7686, %v7764
      %v7837 = vadd.f32 %v7687, %v7766
      %v7838 = vadd.f32 %v7688, %v7768
      %v7839 = vadd.f32 %v7689, %v7770
      %v7840 = vadd.f32 %v7690, %v7772
      %v7841 = vld [vmem:[#allocation5 + $0x5a0] sm:$0xff]
      %v7843 = vrot.slane %v7548, 2
      %v7844 = vsel %vm1699, %v7201, %v7843
      %v7845 = vrot.slane %v7549, 2
      %v7846 = vsel %vm1699, %v7843, %v7845
      %v7847 = vrot.slane %v7841, 2
      %v7848 = vsel %vm1699, %v7845, %v7847
      %7849 = vrot.lane.b32.xlu0 %v7143, 32
      %v7850 = vpop.permute.xlu0 %7849
      %7851 = vrot.lane.b32.xlu0 %v7146, 32
      %v7852 = vpop.permute.xlu0 %7851
      %7853 = vrot.lane.b32.xlu0 %v7148, 32
      %v7854 = vpop.permute.xlu0 %7853
      %7855 = vrot.lane.b32.xlu0 %v7150, 32
      %v7856 = vpop.permute.xlu0 %7855
      %7857 = vrot.lane.b32.xlu0 %v7152, 32
      %v7858 = vpop.permute.xlu0 %7857
      %7859 = vrot.lane.b32.xlu0 %v7154, 32
      %v7860 = vpop.permute.xlu0 %7859
      %7861 = vrot.lane.b32.xlu0 %v7156, 32
      %v7862 = vpop.permute.xlu0 %7861
      %7863 = vrot.lane.b32.xlu0 %v7158, 32
      %v7864 = vpop.permute.xlu0 %7863
      %7865 = vrot.lane.b32.xlu0 %v7160, 32
      %v7866 = vpop.permute.xlu0 %7865
      %7867 = vrot.lane.b32.xlu0 %v7162, 32
      %v7868 = vpop.permute.xlu0 %7867
      %7869 = vrot.lane.b32.xlu0 %v7164, 32
      %v7870 = vpop.permute.xlu0 %7869
      %7871 = vrot.lane.b32.xlu0 %v7166, 32
      %v7872 = vpop.permute.xlu0 %7871
      %7873 = vrot.lane.b32.xlu0 %v7168, 32
      %v7874 = vpop.permute.xlu0 %7873
      %7875 = vrot.lane.b32.xlu0 %v7170, 32
      %v7876 = vpop.permute.xlu0 %7875
      %7877 = vrot.lane.b32.xlu0 %v7172, 32
      %v7878 = vpop.permute.xlu0 %7877
      %7879 = vrot.lane.b32.xlu0 %v7174, 32
      %v7880 = vpop.permute.xlu0 %7879
      %7881 = vrot.lane.b32.xlu0 %v7176, 32
      %v7882 = vpop.permute.xlu0 %7881
      %7883 = vrot.lane.b32.xlu0 %v7178, 32
      %v7884 = vpop.permute.xlu0 %7883
      %7885 = vrot.lane.b32.xlu0 %v7180, 32
      %v7886 = vpop.permute.xlu0 %7885
      %7887 = vrot.lane.b32.xlu0 %v7182, 32
      %v7888 = vpop.permute.xlu0 %7887
      %7889 = vrot.lane.b32.xlu0 %v7184, 32
      %v7890 = vpop.permute.xlu0 %7889
      %7891 = vrot.lane.b32.xlu0 %v7186, 32
      %v7892 = vpop.permute.xlu0 %7891
      %7893 = vrot.lane.b32.xlu0 %v7188, 32
      %v7894 = vpop.permute.xlu0 %7893
      %7895 = vrot.lane.b32.xlu0 %v7190, 32
      %v7896 = vpop.permute.xlu0 %7895
      %7897 = vrot.lane.b32.xlu0 %v7192, 32
      %v7898 = vpop.permute.xlu0 %7897
      %7899 = vrot.lane.b32.xlu0 %v7194, 32
      %v7900 = vpop.permute.xlu0 %7899
      %7901 = vrot.lane.b32.xlu0 %v7196, 32
      %v7902 = vpop.permute.xlu0 %7901
      %7903 = vrot.lane.b32.xlu0 %v7198, 32
      %v7904 = vpop.permute.xlu0 %7903
      %7905 = vrot.lane.b32.xlu0 %v7200, 32
      %v7906 = vpop.permute.xlu0 %7905
      %7907 = vrot.lane.b32.xlu0 %v7202, 32
      %v7908 = vpop.permute.xlu0 %7907
      %7909 = vrot.lane.b32.xlu0 %v7844, 32
      %v7910 = vpop.permute.xlu0 %7909
      %7911 = vrot.lane.b32.xlu0 %v7846, 32
      %v7912 = vpop.permute.xlu0 %7911
      %7913 = vrot.lane.b32.xlu0 %v7848, 32
      %v7914 = vpop.permute.xlu0 %7913
      %7915 = vrot.lane.b32.xlu0 %v7847, 32
      %v7916 = vpop.permute.xlu0 %7915
      %v7951 = vadd.f32 %v7807, %v7850
      %v7952 = vadd.f32 %v7808, %v7852
      %v7953 = vadd.f32 %v7809, %v7854
      %v7954 = vadd.f32 %v7810, %v7856
      %v7955 = vadd.f32 %v7811, %v7858
      %v7956 = vadd.f32 %v7812, %v7860
      %v7957 = vadd.f32 %v7813, %v7862
      %v7958 = vadd.f32 %v7814, %v7864
      %v7959 = vadd.f32 %v7815, %v7866
      %v7960 = vadd.f32 %v7816, %v7868
      %v7961 = vadd.f32 %v7817, %v7870
      %v7962 = vadd.f32 %v7818, %v7872
      %v7963 = vadd.f32 %v7819, %v7874
      %v7964 = vadd.f32 %v7820, %v7876
      %v7965 = vadd.f32 %v7821, %v7878
      %v7966 = vadd.f32 %v7822, %v7880
      %v7967 = vadd.f32 %v7823, %v7882
      %v7968 = vadd.f32 %v7824, %v7884
      %v7969 = vadd.f32 %v7825, %v7886
      %v7970 = vadd.f32 %v7826, %v7888
      %v7971 = vadd.f32 %v7827, %v7890
      %v7972 = vadd.f32 %v7828, %v7892
      %v7973 = vadd.f32 %v7829, %v7894
      %v7974 = vadd.f32 %v7830, %v7896
      %v7975 = vadd.f32 %v7831, %v7898
      %v7976 = vadd.f32 %v7832, %v7900
      %v7977 = vadd.f32 %v7833, %v7902
      %v7978 = vadd.f32 %v7834, %v7904
      %v7979 = vadd.f32 %v7835, %v7906
      %v7980 = vadd.f32 %v7836, %v7908
      %v7981 = vadd.f32 %v7837, %v7910
      %v7982 = vadd.f32 %v7838, %v7912
      %v7983 = vadd.f32 %v7839, %v7914
      %v7984 = vadd.f32 %v7840, %v7916
      %v7985 = vld [vmem:[#allocation5 + $0xa0] sm:$0xfe]
      %v7986 = vld [vmem:[#allocation5 + $0x5c8] sm:$0x1]
      %v7989 = vrot.slane %v7985, 3
      %v7990 = vsel %vm7343, %v7989, %v7351
      %v7991 = vrot.slane %v7548, 3
      %v7992 = vsel %vm7343, %v7407, %v7991
      %v7993 = vrot.slane %v7549, 3
      %v7994 = vsel %vm7343, %v7991, %v7993
      %v7995 = vrot.slane %v7841, 3
      %v7996 = vsel %vm7343, %v7993, %v7995
      %v7997 = vrot.slane %v7986, 3
      %v7998 = vsel %vm7343, %v7995, %v7997
      %7999 = vrot.lane.b32.xlu0 %v7989, 16
      %v8000 = vpop.permute.xlu0 %7999
      %8001 = vrot.lane.b32.xlu0 %v7990, 16
      %v8002 = vpop.permute.xlu0 %8001
      %8003 = vrot.lane.b32.xlu0 %v7354, 16
      %v8004 = vpop.permute.xlu0 %8003
      %8005 = vrot.lane.b32.xlu0 %v7356, 16
      %v8006 = vpop.permute.xlu0 %8005
      %8007 = vrot.lane.b32.xlu0 %v7358, 16
      %v8008 = vpop.permute.xlu0 %8007
      %8009 = vrot.lane.b32.xlu0 %v7360, 16
      %v8010 = vpop.permute.xlu0 %8009
      %8011 = vrot.lane.b32.xlu0 %v7362, 16
      %v8012 = vpop.permute.xlu0 %8011
      %8013 = vrot.lane.b32.xlu0 %v7364, 16
      %v8014 = vpop.permute.xlu0 %8013
      %8015 = vrot.lane.b32.xlu0 %v7366, 16
      %v8016 = vpop.permute.xlu0 %8015
      %8017 = vrot.lane.b32.xlu0 %v7368, 16
      %v8018 = vpop.permute.xlu0 %8017
      %8019 = vrot.lane.b32.xlu0 %v7370, 16
      %v8020 = vpop.permute.xlu0 %8019
      %8021 = vrot.lane.b32.xlu0 %v7372, 16
      %v8022 = vpop.permute.xlu0 %8021
      %8023 = vrot.lane.b32.xlu0 %v7374, 16
      %v8024 = vpop.permute.xlu0 %8023
      %8025 = vrot.lane.b32.xlu0 %v7376, 16
      %v8026 = vpop.permute.xlu0 %8025
      %8027 = vrot.lane.b32.xlu0 %v7378, 16
      %v8028 = vpop.permute.xlu0 %8027
      %8029 = vrot.lane.b32.xlu0 %v7380, 16
      %v8030 = vpop.permute.xlu0 %8029
      %8031 = vrot.lane.b32.xlu0 %v7382, 16
      %v8032 = vpop.permute.xlu0 %8031
      %8033 = vrot.lane.b32.xlu0 %v7384, 16
      %v8034 = vpop.permute.xlu0 %8033
      %8035 = vrot.lane.b32.xlu0 %v7386, 16
      %v8036 = vpop.permute.xlu0 %8035
      %8037 = vrot.lane.b32.xlu0 %v7388, 16
      %v8038 = vpop.permute.xlu0 %8037
      %8039 = vrot.lane.b32.xlu0 %v7390, 16
      %v8040 = vpop.permute.xlu0 %8039
      %8041 = vrot.lane.b32.xlu0 %v7392, 16
      %v8042 = vpop.permute.xlu0 %8041
      %8043 = vrot.lane.b32.xlu0 %v7394, 16
      %v8044 = vpop.permute.xlu0 %8043
      %8045 = vrot.lane.b32.xlu0 %v7396, 16
      %v8046 = vpop.permute.xlu0 %8045
      %8047 = vrot.lane.b32.xlu0 %v7398, 16
      %v8048 = vpop.permute.xlu0 %8047
      %8049 = vrot.lane.b32.xlu0 %v7400, 16
      %v8050 = vpop.permute.xlu0 %8049
      %8051 = vrot.lane.b32.xlu0 %v7402, 16
      %v8052 = vpop.permute.xlu0 %8051
      %8053 = vrot.lane.b32.xlu0 %v7404, 16
      %v8054 = vpop.permute.xlu0 %8053
      %8055 = vrot.lane.b32.xlu0 %v7406, 16
      %v8056 = vpop.permute.xlu0 %8055
      %8057 = vrot.lane.b32.xlu0 %v7408, 16
      %v8058 = vpop.permute.xlu0 %8057
      %8059 = vrot.lane.b32.xlu0 %v7992, 16
      %v8060 = vpop.permute.xlu0 %8059
      %8061 = vrot.lane.b32.xlu0 %v7994, 16
      %v8062 = vpop.permute.xlu0 %8061
      %8063 = vrot.lane.b32.xlu0 %v7996, 16
      %v8064 = vpop.permute.xlu0 %8063
      %8065 = vrot.lane.b32.xlu0 %v7998, 16
      %v8066 = vpop.permute.xlu0 %8065
      %v8101 = vadd.f32 %v7951, %v8000
      %v8102 = vadd.f32 %v7952, %v8002
      %v8103 = vadd.f32 %v7953, %v8004
      %v8104 = vadd.f32 %v7954, %v8006
      %v8105 = vadd.f32 %v7955, %v8008
      %v8106 = vadd.f32 %v7956, %v8010
      %v8107 = vadd.f32 %v7957, %v8012
      %v8108 = vadd.f32 %v7958, %v8014
      %v8109 = vadd.f32 %v7959, %v8016
      %v8110 = vadd.f32 %v7960, %v8018
      %v8111 = vadd.f32 %v7961, %v8020
      %v8112 = vadd.f32 %v7962, %v8022
      %v8113 = vadd.f32 %v7963, %v8024
      %v8114 = vadd.f32 %v7964, %v8026
      %v8115 = vadd.f32 %v7965, %v8028
      %v8116 = vadd.f32 %v7966, %v8030
      %v8117 = vadd.f32 %v7967, %v8032
      %v8118 = vadd.f32 %v7968, %v8034
      %v8119 = vadd.f32 %v7969, %v8036
      %v8120 = vadd.f32 %v7970, %v8038
      %v8121 = vadd.f32 %v7971, %v8040
      %v8122 = vadd.f32 %v7972, %v8042
      %v8123 = vadd.f32 %v7973, %v8044
      %v8124 = vadd.f32 %v7974, %v8046
      %v8125 = vadd.f32 %v7975, %v8048
      %v8126 = vadd.f32 %v7976, %v8050
      %v8127 = vadd.f32 %v7977, %v8052
      %v8128 = vadd.f32 %v7978, %v8054
      %v8129 = vadd.f32 %v7979, %v8056
      %v8130 = vadd.f32 %v7980, %v8058
      %v8131 = vadd.f32 %v7981, %v8060
      %v8132 = vadd.f32 %v7982, %v8062
      %v8133 = vadd.f32 %v7983, %v8064
      %v8134 = vadd.f32 %v7984, %v8066
      %v8135 = vld [vmem:[#allocation5 + $0xf8] sm:$0xc0]
      %v8136 = vld [vmem:[#allocation5 + $0x120] sm:$0xff]
      %v8137 = vld [vmem:[#allocation5 + $0x148] sm:$0xff]
      %v8138 = vld [vmem:[#allocation5 + $0x170] sm:$0xff]
      %v8139 = vld [vmem:[#allocation5 + $0x198] sm:$0xff]
      %v8140 = vld [vmem:[#allocation5 + $0x1c0] sm:$0xff]
      %v8141 = vld [vmem:[#allocation5 + $0x1e8] sm:$0xff]
      %v8142 = vld [vmem:[#allocation5 + $0x210] sm:$0xff]
      %v8143 = vld [vmem:[#allocation5 + $0x238] sm:$0xff]
      %v8144 = vld [vmem:[#allocation5 + $0x260] sm:$0xff]
      %v8145 = vld [vmem:[#allocation5 + $0x288] sm:$0xff]
      %v8146 = vld [vmem:[#allocation5 + $0x2b0] sm:$0xff]
      %v8147 = vld [vmem:[#allocation5 + $0x2d8] sm:$0xff]
      %v8148 = vld [vmem:[#allocation5 + $0x300] sm:$0xff]
      %v8149 = vld [vmem:[#allocation5 + $0x328] sm:$0xff]
      %v8150 = vld [vmem:[#allocation5 + $0x350] sm:$0xff]
      %v8151 = vld [vmem:[#allocation5 + $0x378] sm:$0xff]
      %v8152 = vld [vmem:[#allocation5 + $0x3a0] sm:$0xff]
      %v8153 = vld [vmem:[#allocation5 + $0x3c8] sm:$0xff]
      %v8154 = vld [vmem:[#allocation5 + $0x3f0] sm:$0xff]
      %v8155 = vld [vmem:[#allocation5 + $0x418] sm:$0xff]
      %v8156 = vld [vmem:[#allocation5 + $0x440] sm:$0xff]
      %v8157 = vld [vmem:[#allocation5 + $0x468] sm:$0xff]
      %v8158 = vld [vmem:[#allocation5 + $0x490] sm:$0xff]
      %v8159 = vld [vmem:[#allocation5 + $0x4b8] sm:$0xff]
      %v8160 = vld [vmem:[#allocation5 + $0x4e0] sm:$0xff]
      %v8161 = vld [vmem:[#allocation5 + $0x508] sm:$0xff]
      %v8162 = vld [vmem:[#allocation5 + $0x530] sm:$0xff]
      %v8163 = vld [vmem:[#allocation5 + $0x558] sm:$0xff]
      %v8164 = vld [vmem:[#allocation5 + $0x580] sm:$0xff]
      %v8165 = vld [vmem:[#allocation5 + $0x5a8] sm:$0xff]
      %v8166 = vld [vmem:[#allocation5 + $0x5d0] sm:$0xff]
      %v8167 = vld [vmem:[#allocation5 + $0x5f8] sm:$0xff]
      %v8168 = vld [vmem:[#allocation5 + $0x620] sm:$0x3f]
      %v8169 = vadd.f32 %v8101, %v8135
      %v8170 = vadd.f32 %v8102, %v8136
      %v8171 = vadd.f32 %v8103, %v8137
      %v8172 = vadd.f32 %v8104, %v8138
      %v8173 = vadd.f32 %v8105, %v8139
      %v8174 = vadd.f32 %v8106, %v8140
      %v8175 = vadd.f32 %v8107, %v8141
      %v8176 = vadd.f32 %v8108, %v8142
      %v8177 = vadd.f32 %v8109, %v8143
      %v8178 = vadd.f32 %v8110, %v8144
      %v8179 = vadd.f32 %v8111, %v8145
      %v8180 = vadd.f32 %v8112, %v8146
      %v8181 = vadd.f32 %v8113, %v8147
      %v8182 = vadd.f32 %v8114, %v8148
      %v8183 = vadd.f32 %v8115, %v8149
      %v8184 = vadd.f32 %v8116, %v8150
      %v8185 = vadd.f32 %v8117, %v8151
      %v8186 = vadd.f32 %v8118, %v8152
      %v8187 = vadd.f32 %v8119, %v8153
      %v8188 = vadd.f32 %v8120, %v8154
      %v8189 = vadd.f32 %v8121, %v8155
      %v8190 = vadd.f32 %v8122, %v8156
      %v8191 = vadd.f32 %v8123, %v8157
      %v8192 = vadd.f32 %v8124, %v8158
      %v8193 = vadd.f32 %v8125, %v8159
      %v8194 = vadd.f32 %v8126, %v8160
      %v8195 = vadd.f32 %v8127, %v8161
      %v8196 = vadd.f32 %v8128, %v8162
      %v8197 = vadd.f32 %v8129, %v8163
      %v8198 = vadd.f32 %v8130, %v8164
      %v8199 = vadd.f32 %v8131, %v8165
      %v8200 = vadd.f32 %v8132, %v8166
      %v8201 = vadd.f32 %v8133, %v8167
      %v8202 = vadd.f32 %v8134, %v8168
      %v8203 = vld [vmem:[#allocation5 + $0xf8] sm:$0x80]
      %v8204 = vld [vmem:[#allocation5 + $0x620] sm:$0x7f]
      %v8239 = vrot.slane %v8203, 1
      %v8240 = vrot.slane %v8136, 1
      %v8241 = vsel %vm1511, %v8239, %v8240
      %v8242 = vrot.slane %v8137, 1
      %v8243 = vsel %vm1511, %v8240, %v8242
      %v8244 = vrot.slane %v8138, 1
      %v8245 = vsel %vm1511, %v8242, %v8244
      %v8246 = vrot.slane %v8139, 1
      %v8247 = vsel %vm1511, %v8244, %v8246
      %v8248 = vrot.slane %v8140, 1
      %v8249 = vsel %vm1511, %v8246, %v8248
      %v8250 = vrot.slane %v8141, 1
      %v8251 = vsel %vm1511, %v8248, %v8250
      %v8252 = vrot.slane %v8142, 1
      %v8253 = vsel %vm1511, %v8250, %v8252
      %v8254 = vrot.slane %v8143, 1
      %v8255 = vsel %vm1511, %v8252, %v8254
      %v8256 = vrot.slane %v8144, 1
      %v8257 = vsel %vm1511, %v8254, %v8256
      %v8258 = vrot.slane %v8145, 1
      %v8259 = vsel %vm1511, %v8256, %v8258
      %v8260 = vrot.slane %v8146, 1
      %v8261 = vsel %vm1511, %v8258, %v8260
      %v8262 = vrot.slane %v8147, 1
      %v8263 = vsel %vm1511, %v8260, %v8262
      %v8264 = vrot.slane %v8148, 1
      %v8265 = vsel %vm1511, %v8262, %v8264
      %v8266 = vrot.slane %v8149, 1
      %v8267 = vsel %vm1511, %v8264, %v8266
      %v8268 = vrot.slane %v8150, 1
      %v8269 = vsel %vm1511, %v8266, %v8268
      %v8270 = vrot.slane %v8151, 1
      %v8271 = vsel %vm1511, %v8268, %v8270
      %v8272 = vrot.slane %v8152, 1
      %v8273 = vsel %vm1511, %v8270, %v8272
      %v8274 = vrot.slane %v8153, 1
      %v8275 = vsel %vm1511, %v8272, %v8274
      %v8276 = vrot.slane %v8154, 1
      %v8277 = vsel %vm1511, %v8274, %v8276
      %v8278 = vrot.slane %v8155, 1
      %v8279 = vsel %vm1511, %v8276, %v8278
      %v8280 = vrot.slane %v8156, 1
      %v8281 = vsel %vm1511, %v8278, %v8280
      %v8282 = vrot.slane %v8157, 1
      %v8283 = vsel %vm1511, %v8280, %v8282
      %v8284 = vrot.slane %v8158, 1
      %v8285 = vsel %vm1511, %v8282, %v8284
      %v8286 = vrot.slane %v8159, 1
      %v8287 = vsel %vm1511, %v8284, %v8286
      %v8288 = vrot.slane %v8160, 1
      %v8289 = vsel %vm1511, %v8286, %v8288
      %v8290 = vrot.slane %v8161, 1
      %v8291 = vsel %vm1511, %v8288, %v8290
      %v8292 = vrot.slane %v8162, 1
      %v8293 = vsel %vm1511, %v8290, %v8292
      %v8294 = vrot.slane %v8163, 1
      %v8295 = vsel %vm1511, %v8292, %v8294
      %v8296 = vrot.slane %v8164, 1
      %v8297 = vsel %vm1511, %v8294, %v8296
      %v8298 = vrot.slane %v8165, 1
      %v8299 = vsel %vm1511, %v8296, %v8298
      %v8300 = vrot.slane %v8166, 1
      %v8301 = vsel %vm1511, %v8298, %v8300
      %v8302 = vrot.slane %v8167, 1
      %v8303 = vsel %vm1511, %v8300, %v8302
      %v8304 = vrot.slane %v8204, 1
      %v8305 = vsel %vm1511, %v8302, %v8304
      %8306 = vrot.lane.b32.xlu0 %v8241, 112
      %v8307 = vpop.permute.xlu0 %8306
      %8308 = vrot.lane.b32.xlu0 %v8243, 112
      %v8309 = vpop.permute.xlu0 %8308
      %8310 = vrot.lane.b32.xlu0 %v8245, 112
      %v8311 = vpop.permute.xlu0 %8310
      %8312 = vrot.lane.b32.xlu0 %v8247, 112
      %v8313 = vpop.permute.xlu0 %8312
      %8314 = vrot.lane.b32.xlu0 %v8249, 112
      %v8315 = vpop.permute.xlu0 %8314
      %8316 = vrot.lane.b32.xlu0 %v8251, 112
      %v8317 = vpop.permute.xlu0 %8316
      %8318 = vrot.lane.b32.xlu0 %v8253, 112
      %v8319 = vpop.permute.xlu0 %8318
      %8320 = vrot.lane.b32.xlu0 %v8255, 112
      %v8321 = vpop.permute.xlu0 %8320
      %8322 = vrot.lane.b32.xlu0 %v8257, 112
      %v8323 = vpop.permute.xlu0 %8322
      %8324 = vrot.lane.b32.xlu0 %v8259, 112
      %v8325 = vpop.permute.xlu0 %8324
      %8326 = vrot.lane.b32.xlu0 %v8261, 112
      %v8327 = vpop.permute.xlu0 %8326
      %8328 = vrot.lane.b32.xlu0 %v8263, 112
      %v8329 = vpop.permute.xlu0 %8328
      %8330 = vrot.lane.b32.xlu0 %v8265, 112
      %v8331 = vpop.permute.xlu0 %8330
      %8332 = vrot.lane.b32.xlu0 %v8267, 112
      %v8333 = vpop.permute.xlu0 %8332
      %8334 = vrot.lane.b32.xlu0 %v8269, 112
      %v8335 = vpop.permute.xlu0 %8334
      %8336 = vrot.lane.b32.xlu0 %v8271, 112
      %v8337 = vpop.permute.xlu0 %8336
      %8338 = vrot.lane.b32.xlu0 %v8273, 112
      %v8339 = vpop.permute.xlu0 %8338
      %8340 = vrot.lane.b32.xlu0 %v8275, 112
      %v8341 = vpop.permute.xlu0 %8340
      %8342 = vrot.lane.b32.xlu0 %v8277, 112
      %v8343 = vpop.permute.xlu0 %8342
      %8344 = vrot.lane.b32.xlu0 %v8279, 112
      %v8345 = vpop.permute.xlu0 %8344
      %8346 = vrot.lane.b32.xlu0 %v8281, 112
      %v8347 = vpop.permute.xlu0 %8346
      %8348 = vrot.lane.b32.xlu0 %v8283, 112
      %v8349 = vpop.permute.xlu0 %8348
      %8350 = vrot.lane.b32.xlu0 %v8285, 112
      %v8351 = vpop.permute.xlu0 %8350
      %8352 = vrot.lane.b32.xlu0 %v8287, 112
      %v8353 = vpop.permute.xlu0 %8352
      %8354 = vrot.lane.b32.xlu0 %v8289, 112
      %v8355 = vpop.permute.xlu0 %8354
      %8356 = vrot.lane.b32.xlu0 %v8291, 112
      %v8357 = vpop.permute.xlu0 %8356
      %8358 = vrot.lane.b32.xlu0 %v8293, 112
      %v8359 = vpop.permute.xlu0 %8358
      %8360 = vrot.lane.b32.xlu0 %v8295, 112
      %v8361 = vpop.permute.xlu0 %8360
      %8362 = vrot.lane.b32.xlu0 %v8297, 112
      %v8363 = vpop.permute.xlu0 %8362
      %8364 = vrot.lane.b32.xlu0 %v8299, 112
      %v8365 = vpop.permute.xlu0 %8364
      %8366 = vrot.lane.b32.xlu0 %v8301, 112
      %v8367 = vpop.permute.xlu0 %8366
      %8368 = vrot.lane.b32.xlu0 %v8303, 112
      %v8369 = vpop.permute.xlu0 %8368
      %8370 = vrot.lane.b32.xlu0 %v8305, 112
      %v8371 = vpop.permute.xlu0 %8370
      %8372 = vrot.lane.b32.xlu0 %v8304, 112
      %v8373 = vpop.permute.xlu0 %8372
      %v8408 = vadd.f32 %v8169, %v8307
      %v8409 = vadd.f32 %v8170, %v8309
      %v8410 = vadd.f32 %v8171, %v8311
      %v8411 = vadd.f32 %v8172, %v8313
      %v8412 = vadd.f32 %v8173, %v8315
      %v8413 = vadd.f32 %v8174, %v8317
      %v8414 = vadd.f32 %v8175, %v8319
      %v8415 = vadd.f32 %v8176, %v8321
      %v8416 = vadd.f32 %v8177, %v8323
      %v8417 = vadd.f32 %v8178, %v8325
      %v8418 = vadd.f32 %v8179, %v8327
      %v8419 = vadd.f32 %v8180, %v8329
      %v8420 = vadd.f32 %v8181, %v8331
      %v8421 = vadd.f32 %v8182, %v8333
      %v8422 = vadd.f32 %v8183, %v8335
      %v8423 = vadd.f32 %v8184, %v8337
      %v8424 = vadd.f32 %v8185, %v8339
      %v8425 = vadd.f32 %v8186, %v8341
      %v8426 = vadd.f32 %v8187, %v8343
      %v8427 = vadd.f32 %v8188, %v8345
      %v8428 = vadd.f32 %v8189, %v8347
      %v8429 = vadd.f32 %v8190, %v8349
      %v8430 = vadd.f32 %v8191, %v8351
      %v8431 = vadd.f32 %v8192, %v8353
      %v8432 = vadd.f32 %v8193, %v8355
      %v8433 = vadd.f32 %v8194, %v8357
      %v8434 = vadd.f32 %v8195, %v8359
      %v8435 = vadd.f32 %v8196, %v8361
      %v8436 = vadd.f32 %v8197, %v8363
      %v8437 = vadd.f32 %v8198, %v8365
      %v8438 = vadd.f32 %v8199, %v8367
      %v8439 = vadd.f32 %v8200, %v8369
      %v8440 = vadd.f32 %v8201, %v8371
      %v8441 = vadd.f32 %v8202, %v8373
      %v8442 = vld [vmem:[#allocation5 + $0x620] sm:$0xff]
      %v8444 = vrot.slane %v8136, 2
      %v8445 = vrot.slane %v8137, 2
      %v8446 = vsel %vm1699, %v8444, %v8445
      %v8447 = vrot.slane %v8138, 2
      %v8448 = vsel %vm1699, %v8445, %v8447
      %v8449 = vrot.slane %v8139, 2
      %v8450 = vsel %vm1699, %v8447, %v8449
      %v8451 = vrot.slane %v8140, 2
      %v8452 = vsel %vm1699, %v8449, %v8451
      %v8453 = vrot.slane %v8141, 2
      %v8454 = vsel %vm1699, %v8451, %v8453
      %v8455 = vrot.slane %v8142, 2
      %v8456 = vsel %vm1699, %v8453, %v8455
      %v8457 = vrot.slane %v8143, 2
      %v8458 = vsel %vm1699, %v8455, %v8457
      %v8459 = vrot.slane %v8144, 2
      %v8460 = vsel %vm1699, %v8457, %v8459
      %v8461 = vrot.slane %v8145, 2
      %v8462 = vsel %vm1699, %v8459, %v8461
      %v8463 = vrot.slane %v8146, 2
      %v8464 = vsel %vm1699, %v8461, %v8463
      %v8465 = vrot.slane %v8147, 2
      %v8466 = vsel %vm1699, %v8463, %v8465
      %v8467 = vrot.slane %v8148, 2
      %v8468 = vsel %vm1699, %v8465, %v8467
      %v8469 = vrot.slane %v8149, 2
      %v8470 = vsel %vm1699, %v8467, %v8469
      %v8471 = vrot.slane %v8150, 2
      %v8472 = vsel %vm1699, %v8469, %v8471
      %v8473 = vrot.slane %v8151, 2
      %v8474 = vsel %vm1699, %v8471, %v8473
      %v8475 = vrot.slane %v8152, 2
      %v8476 = vsel %vm1699, %v8473, %v8475
      %v8477 = vrot.slane %v8153, 2
      %v8478 = vsel %vm1699, %v8475, %v8477
      %v8479 = vrot.slane %v8154, 2
      %v8480 = vsel %vm1699, %v8477, %v8479
      %v8481 = vrot.slane %v8155, 2
      %v8482 = vsel %vm1699, %v8479, %v8481
      %v8483 = vrot.slane %v8156, 2
      %v8484 = vsel %vm1699, %v8481, %v8483
      %v8485 = vrot.slane %v8157, 2
      %v8486 = vsel %vm1699, %v8483, %v8485
      %v8487 = vrot.slane %v8158, 2
      %v8488 = vsel %vm1699, %v8485, %v8487
      %v8489 = vrot.slane %v8159, 2
      %v8490 = vsel %vm1699, %v8487, %v8489
      %v8491 = vrot.slane %v8160, 2
      %v8492 = vsel %vm1699, %v8489, %v8491
      %v8493 = vrot.slane %v8161, 2
      %v8494 = vsel %vm1699, %v8491, %v8493
      %v8495 = vrot.slane %v8162, 2
      %v8496 = vsel %vm1699, %v8493, %v8495
      %v8497 = vrot.slane %v8163, 2
      %v8498 = vsel %vm1699, %v8495, %v8497
      %v8499 = vrot.slane %v8164, 2
      %v8500 = vsel %vm1699, %v8497, %v8499
      %v8501 = vrot.slane %v8165, 2
      %v8502 = vsel %vm1699, %v8499, %v8501
      %v8503 = vrot.slane %v8166, 2
      %v8504 = vsel %vm1699, %v8501, %v8503
      %v8505 = vrot.slane %v8167, 2
      %v8506 = vsel %vm1699, %v8503, %v8505
      %v8507 = vrot.slane %v8442, 2
      %v8508 = vsel %vm1699, %v8505, %v8507
      %8509 = vrot.lane.b32.xlu0 %v8444, 96
      %v8510 = vpop.permute.xlu0 %8509
      %8511 = vrot.lane.b32.xlu0 %v8446, 96
      %v8512 = vpop.permute.xlu0 %8511
      %8513 = vrot.lane.b32.xlu0 %v8448, 96
      %v8514 = vpop.permute.xlu0 %8513
      %8515 = vrot.lane.b32.xlu0 %v8450, 96
      %v8516 = vpop.permute.xlu0 %8515
      %8517 = vrot.lane.b32.xlu0 %v8452, 96
      %v8518 = vpop.permute.xlu0 %8517
      %8519 = vrot.lane.b32.xlu0 %v8454, 96
      %v8520 = vpop.permute.xlu0 %8519
      %8521 = vrot.lane.b32.xlu0 %v8456, 96
      %v8522 = vpop.permute.xlu0 %8521
      %8523 = vrot.lane.b32.xlu0 %v8458, 96
      %v8524 = vpop.permute.xlu0 %8523
      %8525 = vrot.lane.b32.xlu0 %v8460, 96
      %v8526 = vpop.permute.xlu0 %8525
      %8527 = vrot.lane.b32.xlu0 %v8462, 96
      %v8528 = vpop.permute.xlu0 %8527
      %8529 = vrot.lane.b32.xlu0 %v8464, 96
      %v8530 = vpop.permute.xlu0 %8529
      %8531 = vrot.lane.b32.xlu0 %v8466, 96
      %v8532 = vpop.permute.xlu0 %8531
      %8533 = vrot.lane.b32.xlu0 %v8468, 96
      %v8534 = vpop.permute.xlu0 %8533
      %8535 = vrot.lane.b32.xlu0 %v8470, 96
      %v8536 = vpop.permute.xlu0 %8535
      %8537 = vrot.lane.b32.xlu0 %v8472, 96
      %v8538 = vpop.permute.xlu0 %8537
      %8539 = vrot.lane.b32.xlu0 %v8474, 96
      %v8540 = vpop.permute.xlu0 %8539
      %8541 = vrot.lane.b32.xlu0 %v8476, 96
      %v8542 = vpop.permute.xlu0 %8541
      %8543 = vrot.lane.b32.xlu0 %v8478, 96
      %v8544 = vpop.permute.xlu0 %8543
      %8545 = vrot.lane.b32.xlu0 %v8480, 96
      %v8546 = vpop.permute.xlu0 %8545
      %8547 = vrot.lane.b32.xlu0 %v8482, 96
      %v8548 = vpop.permute.xlu0 %8547
      %8549 = vrot.lane.b32.xlu0 %v8484, 96
      %v8550 = vpop.permute.xlu0 %8549
      %8551 = vrot.lane.b32.xlu0 %v8486, 96
      %v8552 = vpop.permute.xlu0 %8551
      %8553 = vrot.lane.b32.xlu0 %v8488, 96
      %v8554 = vpop.permute.xlu0 %8553
      %8555 = vrot.lane.b32.xlu0 %v8490, 96
      %v8556 = vpop.permute.xlu0 %8555
      %8557 = vrot.lane.b32.xlu0 %v8492, 96
      %v8558 = vpop.permute.xlu0 %8557
      %8559 = vrot.lane.b32.xlu0 %v8494, 96
      %v8560 = vpop.permute.xlu0 %8559
      %8561 = vrot.lane.b32.xlu0 %v8496, 96
      %v8562 = vpop.permute.xlu0 %8561
      %8563 = vrot.lane.b32.xlu0 %v8498, 96
      %v8564 = vpop.permute.xlu0 %8563
      %8565 = vrot.lane.b32.xlu0 %v8500, 96
      %v8566 = vpop.permute.xlu0 %8565
      %8567 = vrot.lane.b32.xlu0 %v8502, 96
      %v8568 = vpop.permute.xlu0 %8567
      %8569 = vrot.lane.b32.xlu0 %v8504, 96
      %v8570 = vpop.permute.xlu0 %8569
      %8571 = vrot.lane.b32.xlu0 %v8506, 96
      %v8572 = vpop.permute.xlu0 %8571
      %8573 = vrot.lane.b32.xlu0 %v8508, 96
      %v8574 = vpop.permute.xlu0 %8573
      %8575 = vrot.lane.b32.xlu0 %v8507, 96
      %v8576 = vpop.permute.xlu0 %8575
      %v8611 = vadd.f32 %v8408, %v8510
      %v8612 = vadd.f32 %v8409, %v8512
      %v8613 = vadd.f32 %v8410, %v8514
      %v8614 = vadd.f32 %v8411, %v8516
      %v8615 = vadd.f32 %v8412, %v8518
      %v8616 = vadd.f32 %v8413, %v8520
      %v8617 = vadd.f32 %v8414, %v8522
      %v8618 = vadd.f32 %v8415, %v8524
      %v8619 = vadd.f32 %v8416, %v8526
      %v8620 = vadd.f32 %v8417, %v8528
      %v8621 = vadd.f32 %v8418, %v8530
      %v8622 = vadd.f32 %v8419, %v8532
      %v8623 = vadd.f32 %v8420, %v8534
      %v8624 = vadd.f32 %v8421, %v8536
      %v8625 = vadd.f32 %v8422, %v8538
      %v8626 = vadd.f32 %v8423, %v8540
      %v8627 = vadd.f32 %v8424, %v8542
      %v8628 = vadd.f32 %v8425, %v8544
      %v8629 = vadd.f32 %v8426, %v8546
      %v8630 = vadd.f32 %v8427, %v8548
      %v8631 = vadd.f32 %v8428, %v8550
      %v8632 = vadd.f32 %v8429, %v8552
      %v8633 = vadd.f32 %v8430, %v8554
      %v8634 = vadd.f32 %v8431, %v8556
      %v8635 = vadd.f32 %v8432, %v8558
      %v8636 = vadd.f32 %v8433, %v8560
      %v8637 = vadd.f32 %v8434, %v8562
      %v8638 = vadd.f32 %v8435, %v8564
      %v8639 = vadd.f32 %v8436, %v8566
      %v8640 = vadd.f32 %v8437, %v8568
      %v8641 = vadd.f32 %v8438, %v8570
      %v8642 = vadd.f32 %v8439, %v8572
      %v8643 = vadd.f32 %v8440, %v8574
      %v8644 = vadd.f32 %v8441, %v8576
      %v8645 = vld [vmem:[#allocation5 + $0x120] sm:$0xfe]
      %v8646 = vld [vmem:[#allocation5 + $0x648] sm:$0x1]
      %v8649 = vrot.slane %v8645, 3
      %v8650 = vrot.slane %v8137, 3
      %v8651 = vsel %vm7343, %v8649, %v8650
      %v8652 = vrot.slane %v8138, 3
      %v8653 = vsel %vm7343, %v8650, %v8652
      %v8654 = vrot.slane %v8139, 3
      %v8655 = vsel %vm7343, %v8652, %v8654
      %v8656 = vrot.slane %v8140, 3
      %v8657 = vsel %vm7343, %v8654, %v8656
      %v8658 = vrot.slane %v8141, 3
      %v8659 = vsel %vm7343, %v8656, %v8658
      %v8660 = vrot.slane %v8142, 3
      %v8661 = vsel %vm7343, %v8658, %v8660
      %v8662 = vrot.slane %v8143, 3
      %v8663 = vsel %vm7343, %v8660, %v8662
      %v8664 = vrot.slane %v8144, 3
      %v8665 = vsel %vm7343, %v8662, %v8664
      %v8666 = vrot.slane %v8145, 3
      %v8667 = vsel %vm7343, %v8664, %v8666
      %v8668 = vrot.slane %v8146, 3
      %v8669 = vsel %vm7343, %v8666, %v8668
      %v8670 = vrot.slane %v8147, 3
      %v8671 = vsel %vm7343, %v8668, %v8670
      %v8672 = vrot.slane %v8148, 3
      %v8673 = vsel %vm7343, %v8670, %v8672
      %v8674 = vrot.slane %v8149, 3
      %v8675 = vsel %vm7343, %v8672, %v8674
      %v8676 = vrot.slane %v8150, 3
      %v8677 = vsel %vm7343, %v8674, %v8676
      %v8678 = vrot.slane %v8151, 3
      %v8679 = vsel %vm7343, %v8676, %v8678
      %v8680 = vrot.slane %v8152, 3
      %v8681 = vsel %vm7343, %v8678, %v8680
      %v8682 = vrot.slane %v8153, 3
      %v8683 = vsel %vm7343, %v8680, %v8682
      %v8684 = vrot.slane %v8154, 3
      %v8685 = vsel %vm7343, %v8682, %v8684
      %v8686 = vrot.slane %v8155, 3
      %v8687 = vsel %vm7343, %v8684, %v8686
      %v8688 = vrot.slane %v8156, 3
      %v8689 = vsel %vm7343, %v8686, %v8688
      %v8690 = vrot.slane %v8157, 3
      %v8691 = vsel %vm7343, %v8688, %v8690
      %v8692 = vrot.slane %v8158, 3
      %v8693 = vsel %vm7343, %v8690, %v8692
      %v8694 = vrot.slane %v8159, 3
      %v8695 = vsel %vm7343, %v8692, %v8694
      %v8696 = vrot.slane %v8160, 3
      %v8697 = vsel %vm7343, %v8694, %v8696
      %v8698 = vrot.slane %v8161, 3
      %v8699 = vsel %vm7343, %v8696, %v8698
      %v8700 = vrot.slane %v8162, 3
      %v8701 = vsel %vm7343, %v8698, %v8700
      %v8702 = vrot.slane %v8163, 3
      %v8703 = vsel %vm7343, %v8700, %v8702
      %v8704 = vrot.slane %v8164, 3
      %v8705 = vsel %vm7343, %v8702, %v8704
      %v8706 = vrot.slane %v8165, 3
      %v8707 = vsel %vm7343, %v8704, %v8706
      %v8708 = vrot.slane %v8166, 3
      %v8709 = vsel %vm7343, %v8706, %v8708
      %v8710 = vrot.slane %v8167, 3
      %v8711 = vsel %vm7343, %v8708, %v8710
      %v8712 = vrot.slane %v8442, 3
      %v8713 = vsel %vm7343, %v8710, %v8712
      %v8714 = vrot.slane %v8646, 3
      %v8715 = vsel %vm7343, %v8712, %v8714
      %8716 = vrot.lane.b32.xlu0 %v8649, 80
      %v8717 = vpop.permute.xlu0 %8716
      %8718 = vrot.lane.b32.xlu0 %v8651, 80
      %v8719 = vpop.permute.xlu0 %8718
      %8720 = vrot.lane.b32.xlu0 %v8653, 80
      %v8721 = vpop.permute.xlu0 %8720
      %8722 = vrot.lane.b32.xlu0 %v8655, 80
      %v8723 = vpop.permute.xlu0 %8722
      %8724 = vrot.lane.b32.xlu0 %v8657, 80
      %v8725 = vpop.permute.xlu0 %8724
      %8726 = vrot.lane.b32.xlu0 %v8659, 80
      %v8727 = vpop.permute.xlu0 %8726
      %8728 = vrot.lane.b32.xlu0 %v8661, 80
      %v8729 = vpop.permute.xlu0 %8728
      %8730 = vrot.lane.b32.xlu0 %v8663, 80
      %v8731 = vpop.permute.xlu0 %8730
      %8732 = vrot.lane.b32.xlu0 %v8665, 80
      %v8733 = vpop.permute.xlu0 %8732
      %8734 = vrot.lane.b32.xlu0 %v8667, 80
      %v8735 = vpop.permute.xlu0 %8734
      %8736 = vrot.lane.b32.xlu0 %v8669, 80
      %v8737 = vpop.permute.xlu0 %8736
      %8738 = vrot.lane.b32.xlu0 %v8671, 80
      %v8739 = vpop.permute.xlu0 %8738
      %8740 = vrot.lane.b32.xlu0 %v8673, 80
      %v8741 = vpop.permute.xlu0 %8740
      %8742 = vrot.lane.b32.xlu0 %v8675, 80
      %v8743 = vpop.permute.xlu0 %8742
      %8744 = vrot.lane.b32.xlu0 %v8677, 80
      %v8745 = vpop.permute.xlu0 %8744
      %8746 = vrot.lane.b32.xlu0 %v8679, 80
      %v8747 = vpop.permute.xlu0 %8746
      %8748 = vrot.lane.b32.xlu0 %v8681, 80
      %v8749 = vpop.permute.xlu0 %8748
      %8750 = vrot.lane.b32.xlu0 %v8683, 80
      %v8751 = vpop.permute.xlu0 %8750
      %8752 = vrot.lane.b32.xlu0 %v8685, 80
      %v8753 = vpop.permute.xlu0 %8752
      %8754 = vrot.lane.b32.xlu0 %v8687, 80
      %v8755 = vpop.permute.xlu0 %8754
      %8756 = vrot.lane.b32.xlu0 %v8689, 80
      %v8757 = vpop.permute.xlu0 %8756
      %8758 = vrot.lane.b32.xlu0 %v8691, 80
      %v8759 = vpop.permute.xlu0 %8758
      %8760 = vrot.lane.b32.xlu0 %v8693, 80
      %v8761 = vpop.permute.xlu0 %8760
      %8762 = vrot.lane.b32.xlu0 %v8695, 80
      %v8763 = vpop.permute.xlu0 %8762
      %8764 = vrot.lane.b32.xlu0 %v8697, 80
      %v8765 = vpop.permute.xlu0 %8764
      %8766 = vrot.lane.b32.xlu0 %v8699, 80
      %v8767 = vpop.permute.xlu0 %8766
      %8768 = vrot.lane.b32.xlu0 %v8701, 80
      %v8769 = vpop.permute.xlu0 %8768
      %8770 = vrot.lane.b32.xlu0 %v8703, 80
      %v8771 = vpop.permute.xlu0 %8770
      %8772 = vrot.lane.b32.xlu0 %v8705, 80
      %v8773 = vpop.permute.xlu0 %8772
      %8774 = vrot.lane.b32.xlu0 %v8707, 80
      %v8775 = vpop.permute.xlu0 %8774
      %8776 = vrot.lane.b32.xlu0 %v8709, 80
      %v8777 = vpop.permute.xlu0 %8776
      %8778 = vrot.lane.b32.xlu0 %v8711, 80
      %v8779 = vpop.permute.xlu0 %8778
      %8780 = vrot.lane.b32.xlu0 %v8713, 80
      %v8781 = vpop.permute.xlu0 %8780
      %8782 = vrot.lane.b32.xlu0 %v8715, 80
      %v8783 = vpop.permute.xlu0 %8782
      %v8818 = vadd.f32 %v8611, %v8717
      %v8819 = vadd.f32 %v8612, %v8719
      %v8820 = vadd.f32 %v8613, %v8721
      %v8821 = vadd.f32 %v8614, %v8723
      %v8822 = vadd.f32 %v8615, %v8725
      %v8823 = vadd.f32 %v8616, %v8727
      %v8824 = vadd.f32 %v8617, %v8729
      %v8825 = vadd.f32 %v8618, %v8731
      %v8826 = vadd.f32 %v8619, %v8733
      %v8827 = vadd.f32 %v8620, %v8735
      %v8828 = vadd.f32 %v8621, %v8737
      %v8829 = vadd.f32 %v8622, %v8739
      %v8830 = vadd.f32 %v8623, %v8741
      %v8831 = vadd.f32 %v8624, %v8743
      %v8832 = vadd.f32 %v8625, %v8745
      %v8833 = vadd.f32 %v8626, %v8747
      %v8834 = vadd.f32 %v8627, %v8749
      %v8835 = vadd.f32 %v8628, %v8751
      %v8836 = vadd.f32 %v8629, %v8753
      %v8837 = vadd.f32 %v8630, %v8755
      %v8838 = vadd.f32 %v8631, %v8757
      %v8839 = vadd.f32 %v8632, %v8759
      %v8840 = vadd.f32 %v8633, %v8761
      %v8841 = vadd.f32 %v8634, %v8763
      %v8842 = vadd.f32 %v8635, %v8765
      %v8843 = vadd.f32 %v8636, %v8767
      %v8844 = vadd.f32 %v8637, %v8769
      %v8845 = vadd.f32 %v8638, %v8771
      %v8846 = vadd.f32 %v8639, %v8773
      %v8847 = vadd.f32 %v8640, %v8775
      %v8848 = vadd.f32 %v8641, %v8777
      %v8849 = vadd.f32 %v8642, %v8779
      %v8850 = vadd.f32 %v8643, %v8781
      %v8851 = vadd.f32 %v8644, %v8783
      %v8852 = vld [vmem:[#allocation5 + $0x170] sm:$0xc0]
      %v8853 = vld [vmem:[#allocation5 + $0x648] sm:$0xff]
      %v8854 = vld [vmem:[#allocation5 + $0x670] sm:$0xff]
      %v8855 = vld [vmem:[#allocation5 + $0x698] sm:$0x3f]
      %8860 = vrot.lane.b32.xlu0 %v8852, 64
      %v8861 = vpop.permute.xlu0 %8860
      %8862 = vrot.lane.b32.xlu0 %v8139, 64
      %v8863 = vpop.permute.xlu0 %8862
      %8864 = vrot.lane.b32.xlu0 %v8140, 64
      %v8865 = vpop.permute.xlu0 %8864
      %8866 = vrot.lane.b32.xlu0 %v8141, 64
      %v8867 = vpop.permute.xlu0 %8866
      %8868 = vrot.lane.b32.xlu0 %v8142, 64
      %v8869 = vpop.permute.xlu0 %8868
      %8870 = vrot.lane.b32.xlu0 %v8143, 64
      %v8871 = vpop.permute.xlu0 %8870
      %8872 = vrot.lane.b32.xlu0 %v8144, 64
      %v8873 = vpop.permute.xlu0 %8872
      %8874 = vrot.lane.b32.xlu0 %v8145, 64
      %v8875 = vpop.permute.xlu0 %8874
      %8876 = vrot.lane.b32.xlu0 %v8146, 64
      %v8877 = vpop.permute.xlu0 %8876
      %8878 = vrot.lane.b32.xlu0 %v8147, 64
      %v8879 = vpop.permute.xlu0 %8878
      %8880 = vrot.lane.b32.xlu0 %v8148, 64
      %v8881 = vpop.permute.xlu0 %8880
      %8882 = vrot.lane.b32.xlu0 %v8149, 64
      %v8883 = vpop.permute.xlu0 %8882
      %8884 = vrot.lane.b32.xlu0 %v8150, 64
      %v8885 = vpop.permute.xlu0 %8884
      %8886 = vrot.lane.b32.xlu0 %v8151, 64
      %v8887 = vpop.permute.xlu0 %8886
      %8888 = vrot.lane.b32.xlu0 %v8152, 64
      %v8889 = vpop.permute.xlu0 %8888
      %8890 = vrot.lane.b32.xlu0 %v8153, 64
      %v8891 = vpop.permute.xlu0 %8890
      %8892 = vrot.lane.b32.xlu0 %v8154, 64
      %v8893 = vpop.permute.xlu0 %8892
      %8894 = vrot.lane.b32.xlu0 %v8155, 64
      %v8895 = vpop.permute.xlu0 %8894
      %8896 = vrot.lane.b32.xlu0 %v8156, 64
      %v8897 = vpop.permute.xlu0 %8896
      %8898 = vrot.lane.b32.xlu0 %v8157, 64
      %v8899 = vpop.permute.xlu0 %8898
      %8900 = vrot.lane.b32.xlu0 %v8158, 64
      %v8901 = vpop.permute.xlu0 %8900
      %8902 = vrot.lane.b32.xlu0 %v8159, 64
      %v8903 = vpop.permute.xlu0 %8902
      %8904 = vrot.lane.b32.xlu0 %v8160, 64
      %v8905 = vpop.permute.xlu0 %8904
      %8906 = vrot.lane.b32.xlu0 %v8161, 64
      %v8907 = vpop.permute.xlu0 %8906
      %8908 = vrot.lane.b32.xlu0 %v8162, 64
      %v8909 = vpop.permute.xlu0 %8908
      %8910 = vrot.lane.b32.xlu0 %v8163, 64
      %v8911 = vpop.permute.xlu0 %8910
      %8912 = vrot.lane.b32.xlu0 %v8164, 64
      %v8913 = vpop.permute.xlu0 %8912
      %8914 = vrot.lane.b32.xlu0 %v8165, 64
      %v8915 = vpop.permute.xlu0 %8914
      %8916 = vrot.lane.b32.xlu0 %v8166, 64
      %v8917 = vpop.permute.xlu0 %8916
      %8918 = vrot.lane.b32.xlu0 %v8167, 64
      %v8919 = vpop.permute.xlu0 %8918
      %8920 = vrot.lane.b32.xlu0 %v8442, 64
      %v8921 = vpop.permute.xlu0 %8920
      %8922 = vrot.lane.b32.xlu0 %v8853, 64
      %v8923 = vpop.permute.xlu0 %8922
      %8924 = vrot.lane.b32.xlu0 %v8854, 64
      %v8925 = vpop.permute.xlu0 %8924
      %8926 = vrot.lane.b32.xlu0 %v8855, 64
      %v8927 = vpop.permute.xlu0 %8926
      %v8962 = vadd.f32 %v8818, %v8861
      %v8963 = vadd.f32 %v8819, %v8863
      %v8964 = vadd.f32 %v8820, %v8865
      %v8965 = vadd.f32 %v8821, %v8867
      %v8966 = vadd.f32 %v8822, %v8869
      %v8967 = vadd.f32 %v8823, %v8871
      %v8968 = vadd.f32 %v8824, %v8873
      %v8969 = vadd.f32 %v8825, %v8875
      %v8970 = vadd.f32 %v8826, %v8877
      %v8971 = vadd.f32 %v8827, %v8879
      %v8972 = vadd.f32 %v8828, %v8881
      %v8973 = vadd.f32 %v8829, %v8883
      %v8974 = vadd.f32 %v8830, %v8885
      %v8975 = vadd.f32 %v8831, %v8887
      %v8976 = vadd.f32 %v8832, %v8889
      %v8977 = vadd.f32 %v8833, %v8891
      %v8978 = vadd.f32 %v8834, %v8893
      %v8979 = vadd.f32 %v8835, %v8895
      %v8980 = vadd.f32 %v8836, %v8897
      %v8981 = vadd.f32 %v8837, %v8899
      %v8982 = vadd.f32 %v8838, %v8901
      %v8983 = vadd.f32 %v8839, %v8903
      %v8984 = vadd.f32 %v8840, %v8905
      %v8985 = vadd.f32 %v8841, %v8907
      %v8986 = vadd.f32 %v8842, %v8909
      %v8987 = vadd.f32 %v8843, %v8911
      %v8988 = vadd.f32 %v8844, %v8913
      %v8989 = vadd.f32 %v8845, %v8915
      %v8990 = vadd.f32 %v8846, %v8917
      %v8991 = vadd.f32 %v8847, %v8919
      %v8992 = vadd.f32 %v8848, %v8921
      %v8993 = vadd.f32 %v8849, %v8923
      %v8994 = vadd.f32 %v8850, %v8925
      %v8995 = vadd.f32 %v8851, %v8927
      %v8996 = vld [vmem:[#allocation5 + $0x170] sm:$0x80]
      %v8997 = vld [vmem:[#allocation5 + $0x698] sm:$0x7f]
      %v9000 = vrot.slane %v8996, 1
      %v9001 = vsel %vm1511, %v9000, %v8246
      %v9002 = vrot.slane %v8442, 1
      %v9003 = vsel %vm1511, %v8302, %v9002
      %v9004 = vrot.slane %v8853, 1
      %v9005 = vsel %vm1511, %v9002, %v9004
      %v9006 = vrot.slane %v8854, 1
      %v9007 = vsel %vm1511, %v9004, %v9006
      %v9008 = vrot.slane %v8997, 1
      %v9009 = vsel %vm1511, %v9006, %v9008
      %9010 = vrot.lane.b32.xlu0 %v9001, 48
      %v9011 = vpop.permute.xlu0 %9010
      %9012 = vrot.lane.b32.xlu0 %v8249, 48
      %v9013 = vpop.permute.xlu0 %9012
      %9014 = vrot.lane.b32.xlu0 %v8251, 48
      %v9015 = vpop.permute.xlu0 %9014
      %9016 = vrot.lane.b32.xlu0 %v8253, 48
      %v9017 = vpop.permute.xlu0 %9016
      %9018 = vrot.lane.b32.xlu0 %v8255, 48
      %v9019 = vpop.permute.xlu0 %9018
      %9020 = vrot.lane.b32.xlu0 %v8257, 48
      %v9021 = vpop.permute.xlu0 %9020
      %9022 = vrot.lane.b32.xlu0 %v8259, 48
      %v9023 = vpop.permute.xlu0 %9022
      %9024 = vrot.lane.b32.xlu0 %v8261, 48
      %v9025 = vpop.permute.xlu0 %9024
      %9026 = vrot.lane.b32.xlu0 %v8263, 48
      %v9027 = vpop.permute.xlu0 %9026
      %9028 = vrot.lane.b32.xlu0 %v8265, 48
      %v9029 = vpop.permute.xlu0 %9028
      %9030 = vrot.lane.b32.xlu0 %v8267, 48
      %v9031 = vpop.permute.xlu0 %9030
      %9032 = vrot.lane.b32.xlu0 %v8269, 48
      %v9033 = vpop.permute.xlu0 %9032
      %9034 = vrot.lane.b32.xlu0 %v8271, 48
      %v9035 = vpop.permute.xlu0 %9034
      %9036 = vrot.lane.b32.xlu0 %v8273, 48
      %v9037 = vpop.permute.xlu0 %9036
      %9038 = vrot.lane.b32.xlu0 %v8275, 48
      %v9039 = vpop.permute.xlu0 %9038
      %9040 = vrot.lane.b32.xlu0 %v8277, 48
      %v9041 = vpop.permute.xlu0 %9040
      %9042 = vrot.lane.b32.xlu0 %v8279, 48
      %v9043 = vpop.permute.xlu0 %9042
      %9044 = vrot.lane.b32.xlu0 %v8281, 48
      %v9045 = vpop.permute.xlu0 %9044
      %9046 = vrot.lane.b32.xlu0 %v8283, 48
      %v9047 = vpop.permute.xlu0 %9046
      %9048 = vrot.lane.b32.xlu0 %v8285, 48
      %v9049 = vpop.permute.xlu0 %9048
      %9050 = vrot.lane.b32.xlu0 %v8287, 48
      %v9051 = vpop.permute.xlu0 %9050
      %9052 = vrot.lane.b32.xlu0 %v8289, 48
      %v9053 = vpop.permute.xlu0 %9052
      %9054 = vrot.lane.b32.xlu0 %v8291, 48
      %v9055 = vpop.permute.xlu0 %9054
      %9056 = vrot.lane.b32.xlu0 %v8293, 48
      %v9057 = vpop.permute.xlu0 %9056
      %9058 = vrot.lane.b32.xlu0 %v8295, 48
      %v9059 = vpop.permute.xlu0 %9058
      %9060 = vrot.lane.b32.xlu0 %v8297, 48
      %v9061 = vpop.permute.xlu0 %9060
      %9062 = vrot.lane.b32.xlu0 %v8299, 48
      %v9063 = vpop.permute.xlu0 %9062
      %9064 = vrot.lane.b32.xlu0 %v8301, 48
      %v9065 = vpop.permute.xlu0 %9064
      %9066 = vrot.lane.b32.xlu0 %v8303, 48
      %v9067 = vpop.permute.xlu0 %9066
      %9068 = vrot.lane.b32.xlu0 %v9003, 48
      %v9069 = vpop.permute.xlu0 %9068
      %9070 = vrot.lane.b32.xlu0 %v9005, 48
      %v9071 = vpop.permute.xlu0 %9070
      %9072 = vrot.lane.b32.xlu0 %v9007, 48
      %v9073 = vpop.permute.xlu0 %9072
      %9074 = vrot.lane.b32.xlu0 %v9009, 48
      %v9075 = vpop.permute.xlu0 %9074
      %9076 = vrot.lane.b32.xlu0 %v9008, 48
      %v9077 = vpop.permute.xlu0 %9076
      %v9112 = vadd.f32 %v8962, %v9011
      %v9113 = vadd.f32 %v8963, %v9013
      %v9114 = vadd.f32 %v8964, %v9015
      %v9115 = vadd.f32 %v8965, %v9017
      %v9116 = vadd.f32 %v8966, %v9019
      %v9117 = vadd.f32 %v8967, %v9021
      %v9118 = vadd.f32 %v8968, %v9023
      %v9119 = vadd.f32 %v8969, %v9025
      %v9120 = vadd.f32 %v8970, %v9027
      %v9121 = vadd.f32 %v8971, %v9029
      %v9122 = vadd.f32 %v8972, %v9031
      %v9123 = vadd.f32 %v8973, %v9033
      %v9124 = vadd.f32 %v8974, %v9035
      %v9125 = vadd.f32 %v8975, %v9037
      %v9126 = vadd.f32 %v8976, %v9039
      %v9127 = vadd.f32 %v8977, %v9041
      %v9128 = vadd.f32 %v8978, %v9043
      %v9129 = vadd.f32 %v8979, %v9045
      %v9130 = vadd.f32 %v8980, %v9047
      %v9131 = vadd.f32 %v8981, %v9049
      %v9132 = vadd.f32 %v8982, %v9051
      %v9133 = vadd.f32 %v8983, %v9053
      %v9134 = vadd.f32 %v8984, %v9055
      %v9135 = vadd.f32 %v8985, %v9057
      %v9136 = vadd.f32 %v8986, %v9059
      %v9137 = vadd.f32 %v8987, %v9061
      %v9138 = vadd.f32 %v8988, %v9063
      %v9139 = vadd.f32 %v8989, %v9065
      %v9140 = vadd.f32 %v8990, %v9067
      %v9141 = vadd.f32 %v8991, %v9069
      %v9142 = vadd.f32 %v8992, %v9071
      %v9143 = vadd.f32 %v8993, %v9073
      %v9144 = vadd.f32 %v8994, %v9075
      %v9145 = vadd.f32 %v8995, %v9077
      %v9146 = vld [vmem:[#allocation5 + $0x698] sm:$0xff]
      %v9148 = vrot.slane %v8853, 2
      %v9149 = vsel %vm1699, %v8507, %v9148
      %v9150 = vrot.slane %v8854, 2
      %v9151 = vsel %vm1699, %v9148, %v9150
      %v9152 = vrot.slane %v9146, 2
      %v9153 = vsel %vm1699, %v9150, %v9152
      %9154 = vrot.lane.b32.xlu0 %v8449, 32
      %v9155 = vpop.permute.xlu0 %9154
      %9156 = vrot.lane.b32.xlu0 %v8452, 32
      %v9157 = vpop.permute.xlu0 %9156
      %9158 = vrot.lane.b32.xlu0 %v8454, 32
      %v9159 = vpop.permute.xlu0 %9158
      %9160 = vrot.lane.b32.xlu0 %v8456, 32
      %v9161 = vpop.permute.xlu0 %9160
      %9162 = vrot.lane.b32.xlu0 %v8458, 32
      %v9163 = vpop.permute.xlu0 %9162
      %9164 = vrot.lane.b32.xlu0 %v8460, 32
      %v9165 = vpop.permute.xlu0 %9164
      %9166 = vrot.lane.b32.xlu0 %v8462, 32
      %v9167 = vpop.permute.xlu0 %9166
      %9168 = vrot.lane.b32.xlu0 %v8464, 32
      %v9169 = vpop.permute.xlu0 %9168
      %9170 = vrot.lane.b32.xlu0 %v8466, 32
      %v9171 = vpop.permute.xlu0 %9170
      %9172 = vrot.lane.b32.xlu0 %v8468, 32
      %v9173 = vpop.permute.xlu0 %9172
      %9174 = vrot.lane.b32.xlu0 %v8470, 32
      %v9175 = vpop.permute.xlu0 %9174
      %9176 = vrot.lane.b32.xlu0 %v8472, 32
      %v9177 = vpop.permute.xlu0 %9176
      %9178 = vrot.lane.b32.xlu0 %v8474, 32
      %v9179 = vpop.permute.xlu0 %9178
      %9180 = vrot.lane.b32.xlu0 %v8476, 32
      %v9181 = vpop.permute.xlu0 %9180
      %9182 = vrot.lane.b32.xlu0 %v8478, 32
      %v9183 = vpop.permute.xlu0 %9182
      %9184 = vrot.lane.b32.xlu0 %v8480, 32
      %v9185 = vpop.permute.xlu0 %9184
      %9186 = vrot.lane.b32.xlu0 %v8482, 32
      %v9187 = vpop.permute.xlu0 %9186
      %9188 = vrot.lane.b32.xlu0 %v8484, 32
      %v9189 = vpop.permute.xlu0 %9188
      %9190 = vrot.lane.b32.xlu0 %v8486, 32
      %v9191 = vpop.permute.xlu0 %9190
      %9192 = vrot.lane.b32.xlu0 %v8488, 32
      %v9193 = vpop.permute.xlu0 %9192
      %9194 = vrot.lane.b32.xlu0 %v8490, 32
      %v9195 = vpop.permute.xlu0 %9194
      %9196 = vrot.lane.b32.xlu0 %v8492, 32
      %v9197 = vpop.permute.xlu0 %9196
      %9198 = vrot.lane.b32.xlu0 %v8494, 32
      %v9199 = vpop.permute.xlu0 %9198
      %9200 = vrot.lane.b32.xlu0 %v8496, 32
      %v9201 = vpop.permute.xlu0 %9200
      %9202 = vrot.lane.b32.xlu0 %v8498, 32
      %v9203 = vpop.permute.xlu0 %9202
      %9204 = vrot.lane.b32.xlu0 %v8500, 32
      %v9205 = vpop.permute.xlu0 %9204
      %9206 = vrot.lane.b32.xlu0 %v8502, 32
      %v9207 = vpop.permute.xlu0 %9206
      %9208 = vrot.lane.b32.xlu0 %v8504, 32
      %v9209 = vpop.permute.xlu0 %9208
      %9210 = vrot.lane.b32.xlu0 %v8506, 32
      %v9211 = vpop.permute.xlu0 %9210
      %9212 = vrot.lane.b32.xlu0 %v8508, 32
      %v9213 = vpop.permute.xlu0 %9212
      %9214 = vrot.lane.b32.xlu0 %v9149, 32
      %v9215 = vpop.permute.xlu0 %9214
      %9216 = vrot.lane.b32.xlu0 %v9151, 32
      %v9217 = vpop.permute.xlu0 %9216
      %9218 = vrot.lane.b32.xlu0 %v9153, 32
      %v9219 = vpop.permute.xlu0 %9218
      %9220 = vrot.lane.b32.xlu0 %v9152, 32
      %v9221 = vpop.permute.xlu0 %9220
      %v9256 = vadd.f32 %v9112, %v9155
      %v9257 = vadd.f32 %v9113, %v9157
      %v9258 = vadd.f32 %v9114, %v9159
      %v9259 = vadd.f32 %v9115, %v9161
      %v9260 = vadd.f32 %v9116, %v9163
      %v9261 = vadd.f32 %v9117, %v9165
      %v9262 = vadd.f32 %v9118, %v9167
      %v9263 = vadd.f32 %v9119, %v9169
      %v9264 = vadd.f32 %v9120, %v9171
      %v9265 = vadd.f32 %v9121, %v9173
      %v9266 = vadd.f32 %v9122, %v9175
      %v9267 = vadd.f32 %v9123, %v9177
      %v9268 = vadd.f32 %v9124, %v9179
      %v9269 = vadd.f32 %v9125, %v9181
      %v9270 = vadd.f32 %v9126, %v9183
      %v9271 = vadd.f32 %v9127, %v9185
      %v9272 = vadd.f32 %v9128, %v9187
      %v9273 = vadd.f32 %v9129, %v9189
      %v9274 = vadd.f32 %v9130, %v9191
      %v9275 = vadd.f32 %v9131, %v9193
      %v9276 = vadd.f32 %v9132, %v9195
      %v9277 = vadd.f32 %v9133, %v9197
      %v9278 = vadd.f32 %v9134, %v9199
      %v9279 = vadd.f32 %v9135, %v9201
      %v9280 = vadd.f32 %v9136, %v9203
      %v9281 = vadd.f32 %v9137, %v9205
      %v9282 = vadd.f32 %v9138, %v9207
      %v9283 = vadd.f32 %v9139, %v9209
      %v9284 = vadd.f32 %v9140, %v9211
      %v9285 = vadd.f32 %v9141, %v9213
      %v9286 = vadd.f32 %v9142, %v9215
      %v9287 = vadd.f32 %v9143, %v9217
      %v9288 = vadd.f32 %v9144, %v9219
      %v9289 = vadd.f32 %v9145, %v9221
      %v9290 = vld [vmem:[#allocation5 + $0x198] sm:$0xfe]
      %v9291 = vld [vmem:[#allocation5 + $0x6c0] sm:$0x1]
      %v9294 = vrot.slane %v9290, 3
      %v9295 = vsel %vm7343, %v9294, %v8656
      %v9296 = vrot.slane %v8853, 3
      %v9297 = vsel %vm7343, %v8712, %v9296
      %v9298 = vrot.slane %v8854, 3
      %v9299 = vsel %vm7343, %v9296, %v9298
      %v9300 = vrot.slane %v9146, 3
      %v9301 = vsel %vm7343, %v9298, %v9300
      %v9302 = vrot.slane %v9291, 3
      %v9303 = vsel %vm7343, %v9300, %v9302
      %9304 = vrot.lane.b32.xlu0 %v9294, 16
      %v9305 = vpop.permute.xlu0 %9304
      %9306 = vrot.lane.b32.xlu0 %v9295, 16
      %v9307 = vpop.permute.xlu0 %9306
      %9308 = vrot.lane.b32.xlu0 %v8659, 16
      %v9309 = vpop.permute.xlu0 %9308
      %9310 = vrot.lane.b32.xlu0 %v8661, 16
      %v9311 = vpop.permute.xlu0 %9310
      %9312 = vrot.lane.b32.xlu0 %v8663, 16
      %v9313 = vpop.permute.xlu0 %9312
      %9314 = vrot.lane.b32.xlu0 %v8665, 16
      %v9315 = vpop.permute.xlu0 %9314
      %9316 = vrot.lane.b32.xlu0 %v8667, 16
      %v9317 = vpop.permute.xlu0 %9316
      %9318 = vrot.lane.b32.xlu0 %v8669, 16
      %v9319 = vpop.permute.xlu0 %9318
      %9320 = vrot.lane.b32.xlu0 %v8671, 16
      %v9321 = vpop.permute.xlu0 %9320
      %9322 = vrot.lane.b32.xlu0 %v8673, 16
      %v9323 = vpop.permute.xlu0 %9322
      %9324 = vrot.lane.b32.xlu0 %v8675, 16
      %v9325 = vpop.permute.xlu0 %9324
      %9326 = vrot.lane.b32.xlu0 %v8677, 16
      %v9327 = vpop.permute.xlu0 %9326
      %9328 = vrot.lane.b32.xlu0 %v8679, 16
      %v9329 = vpop.permute.xlu0 %9328
      %9330 = vrot.lane.b32.xlu0 %v8681, 16
      %v9331 = vpop.permute.xlu0 %9330
      %9332 = vrot.lane.b32.xlu0 %v8683, 16
      %v9333 = vpop.permute.xlu0 %9332
      %9334 = vrot.lane.b32.xlu0 %v8685, 16
      %v9335 = vpop.permute.xlu0 %9334
      %9336 = vrot.lane.b32.xlu0 %v8687, 16
      %v9337 = vpop.permute.xlu0 %9336
      %9338 = vrot.lane.b32.xlu0 %v8689, 16
      %v9339 = vpop.permute.xlu0 %9338
      %9340 = vrot.lane.b32.xlu0 %v8691, 16
      %v9341 = vpop.permute.xlu0 %9340
      %9342 = vrot.lane.b32.xlu0 %v8693, 16
      %v9343 = vpop.permute.xlu0 %9342
      %9344 = vrot.lane.b32.xlu0 %v8695, 16
      %v9345 = vpop.permute.xlu0 %9344
      %9346 = vrot.lane.b32.xlu0 %v8697, 16
      %v9347 = vpop.permute.xlu0 %9346
      %9348 = vrot.lane.b32.xlu0 %v8699, 16
      %v9349 = vpop.permute.xlu0 %9348
      %9350 = vrot.lane.b32.xlu0 %v8701, 16
      %v9351 = vpop.permute.xlu0 %9350
      %9352 = vrot.lane.b32.xlu0 %v8703, 16
      %v9353 = vpop.permute.xlu0 %9352
      %9354 = vrot.lane.b32.xlu0 %v8705, 16
      %v9355 = vpop.permute.xlu0 %9354
      %9356 = vrot.lane.b32.xlu0 %v8707, 16
      %v9357 = vpop.permute.xlu0 %9356
      %9358 = vrot.lane.b32.xlu0 %v8709, 16
      %v9359 = vpop.permute.xlu0 %9358
      %9360 = vrot.lane.b32.xlu0 %v8711, 16
      %v9361 = vpop.permute.xlu0 %9360
      %9362 = vrot.lane.b32.xlu0 %v8713, 16
      %v9363 = vpop.permute.xlu0 %9362
      %9364 = vrot.lane.b32.xlu0 %v9297, 16
      %v9365 = vpop.permute.xlu0 %9364
      %9366 = vrot.lane.b32.xlu0 %v9299, 16
      %v9367 = vpop.permute.xlu0 %9366
      %9368 = vrot.lane.b32.xlu0 %v9301, 16
      %v9369 = vpop.permute.xlu0 %9368
      %9370 = vrot.lane.b32.xlu0 %v9303, 16
      %v9371 = vpop.permute.xlu0 %9370
      %v9406 = vadd.f32 %v9256, %v9305
      %v9407 = vadd.f32 %v9257, %v9307
      %v9408 = vadd.f32 %v9258, %v9309
      %v9409 = vadd.f32 %v9259, %v9311
      %v9410 = vadd.f32 %v9260, %v9313
      %v9411 = vadd.f32 %v9261, %v9315
      %v9412 = vadd.f32 %v9262, %v9317
      %v9413 = vadd.f32 %v9263, %v9319
      %v9414 = vadd.f32 %v9264, %v9321
      %v9415 = vadd.f32 %v9265, %v9323
      %v9416 = vadd.f32 %v9266, %v9325
      %v9417 = vadd.f32 %v9267, %v9327
      %v9418 = vadd.f32 %v9268, %v9329
      %v9419 = vadd.f32 %v9269, %v9331
      %v9420 = vadd.f32 %v9270, %v9333
      %v9421 = vadd.f32 %v9271, %v9335
      %v9422 = vadd.f32 %v9272, %v9337
      %v9423 = vadd.f32 %v9273, %v9339
      %v9424 = vadd.f32 %v9274, %v9341
      %v9425 = vadd.f32 %v9275, %v9343
      %v9426 = vadd.f32 %v9276, %v9345
      %v9427 = vadd.f32 %v9277, %v9347
      %v9428 = vadd.f32 %v9278, %v9349
      %v9429 = vadd.f32 %v9279, %v9351
      %v9430 = vadd.f32 %v9280, %v9353
      %v9431 = vadd.f32 %v9281, %v9355
      %v9432 = vadd.f32 %v9282, %v9357
      %v9433 = vadd.f32 %v9283, %v9359
      %v9434 = vadd.f32 %v9284, %v9361
      %v9435 = vadd.f32 %v9285, %v9363
      %v9436 = vadd.f32 %v9286, %v9365
      %v9437 = vadd.f32 %v9287, %v9367
      %v9438 = vadd.f32 %v9288, %v9369
      %v9439 = vadd.f32 %v9289, %v9371
      %v9440 = vld [vmem:[%s10] sm:$0x1]
      %v9442 = vlaneseq
      %v9443 = vshrl.u32 %v9442, 7
      %v9444 = vsub.s32 0, %v9443
      %v9445 = vrot.slane %v9440, %v9444
      %v9447 = vadd.f32 %v9406, %v9445
      %v9448 = vadd.f32 %v9407, %v9445
      %v9449 = vadd.f32 %v9408, %v9445
      %v9450 = vadd.f32 %v9409, %v9445
      %v9451 = vadd.f32 %v9410, %v9445
      %v9452 = vadd.f32 %v9411, %v9445
      %v9453 = vadd.f32 %v9412, %v9445
      %v9454 = vadd.f32 %v9413, %v9445
      %v9455 = vadd.f32 %v9414, %v9445
      %v9456 = vadd.f32 %v9415, %v9445
      %v9457 = vadd.f32 %v9416, %v9445
      %v9458 = vadd.f32 %v9417, %v9445
      %v9459 = vadd.f32 %v9418, %v9445
      %v9460 = vadd.f32 %v9419, %v9445
      %v9461 = vadd.f32 %v9420, %v9445
      %v9462 = vadd.f32 %v9421, %v9445
      %v9463 = vadd.f32 %v9422, %v9445
      %v9464 = vadd.f32 %v9423, %v9445
      %v9465 = vadd.f32 %v9424, %v9445
      %v9466 = vadd.f32 %v9425, %v9445
      %v9467 = vadd.f32 %v9426, %v9445
      %v9468 = vadd.f32 %v9427, %v9445
      %v9469 = vadd.f32 %v9428, %v9445
      %v9470 = vadd.f32 %v9429, %v9445
      %v9471 = vadd.f32 %v9430, %v9445
      %v9472 = vadd.f32 %v9431, %v9445
      %v9473 = vadd.f32 %v9432, %v9445
      %v9474 = vadd.f32 %v9433, %v9445
      %v9475 = vadd.f32 %v9434, %v9445
      %v9476 = vadd.f32 %v9435, %v9445
      %v9477 = vadd.f32 %v9436, %v9445
      %v9478 = vadd.f32 %v9437, %v9445
      %v9479 = vadd.f32 %v9438, %v9445
      %v9480 = vadd.f32 %v9439, %v9445
      %9481 = vst.msk [vmem:[%s386 - $0x6] sm:$0xc0] %vm3169, %v9447
      %9482 = vst.msk [vmem:[%s386 + $0x2] sm:$0xff] %vm402, %v9448
      %9483 = vst.msk [vmem:[%s386 + $0xa] sm:$0xff] %vm402, %v9449
      %9484 = vst.msk [vmem:[%s386 + $0x12] sm:$0xff] %vm402, %v9450
      %9485 = vst.msk [vmem:[%s386 + $0x1a] sm:$0xff] %vm402, %v9451
      %9486 = vst.msk [vmem:[%s386 + $0x22] sm:$0xff] %vm402, %v9452
      %9487 = vst.msk [vmem:[%s386 + $0x2a] sm:$0xff] %vm402, %v9453
      %9488 = vst.msk [vmem:[%s386 + $0x32] sm:$0xff] %vm402, %v9454
      %9489 = vst.msk [vmem:[%s386 + $0x3a] sm:$0xff] %vm402, %v9455
      %9490 = vst.msk [vmem:[%s386 + $0x42] sm:$0xff] %vm402, %v9456
      %9491 = vst.msk [vmem:[%s386 + $0x4a] sm:$0xff] %vm402, %v9457
      %9492 = vst.msk [vmem:[%s386 + $0x52] sm:$0xff] %vm402, %v9458
      %9493 = vst.msk [vmem:[%s386 + $0x5a] sm:$0xff] %vm402, %v9459
      %9494 = vst.msk [vmem:[%s386 + $0x62] sm:$0xff] %vm402, %v9460
      %9495 = vst.msk [vmem:[%s386 + $0x6a] sm:$0xff] %vm402, %v9461
      %9496 = vst.msk [vmem:[%s386 + $0x72] sm:$0xff] %vm402, %v9462
      %9497 = vst.msk [vmem:[%s386 + $0x7a] sm:$0xff] %vm402, %v9463
      %9498 = vst.msk [vmem:[%s386 + $0x82] sm:$0xff] %vm402, %v9464
      %9499 = vst.msk [vmem:[%s386 + $0x8a] sm:$0xff] %vm402, %v9465
      %9500 = vst.msk [vmem:[%s386 + $0x92] sm:$0xff] %vm402, %v9466
      %9501 = vst.msk [vmem:[%s386 + $0x9a] sm:$0xff] %vm402, %v9467
      %9502 = vst.msk [vmem:[%s386 + $0xa2] sm:$0xff] %vm402, %v9468
      %9503 = vst.msk [vmem:[%s386 + $0xaa] sm:$0xff] %vm402, %v9469
      %9504 = vst.msk [vmem:[%s386 + $0xb2] sm:$0xff] %vm402, %v9470
      %9505 = vst.msk [vmem:[%s386 + $0xba] sm:$0xff] %vm402, %v9471
      %9506 = vst.msk [vmem:[%s386 + $0xc2] sm:$0xff] %vm402, %v9472
      %9507 = vst.msk [vmem:[%s386 + $0xca] sm:$0xff] %vm402, %v9473
      %9508 = vst.msk [vmem:[%s386 + $0xd2] sm:$0xff] %vm402, %v9474
      %9509 = vst.msk [vmem:[%s386 + $0xda] sm:$0xff] %vm402, %v9475
      %9510 = vst.msk [vmem:[%s386 + $0xe2] sm:$0xff] %vm402, %v9476
      %9511 = vst.msk [vmem:[%s386 + $0xea] sm:$0xff] %vm402, %v9477
      %9512 = vst.msk [vmem:[%s386 + $0xf2] sm:$0xff] %vm402, %v9478
      %9513 = vst.msk [vmem:[%s386 + $0xfa] sm:$0xff] %vm402, %v9479
      %9514 = vst.msk [vmem:[%s386 + $0x102] sm:$0x3f] %vm3200, %v9480
      %p9515 = scmp.lt.s32.totalorder %s22, 1
      %s9516 = scalar_select %p9515, %s22, 1
      %s9517 = smul.addr %s9516, 33
      %s9518 = smul.addr %s9517, 8
      %s9519 = scalar_lea.vmem %s11, %s9518
      // Predicated region
      $region65: #{model_forward.1} parent=63 // pred_check
        %p9520 = pneg %p276
      $region66: #{model_forward.1} parent=63 // pred_check_branch
        %9522 = sbr.rel (%p9520) target = $region68
      $region67: #{model_forward.1} parent=63 // pred_region
        _
      $region68: #{model_forward.1} parent=63 // pred_fallthru
        _
    $region64: #{model_forward.1} parent=5 // pred_fallthru
      _
    %p9523 = scmp.le.s32.totalorder 2, %s17
    // Predicated region
    $region69: #{model_forward.1} parent=5 // pred_check
      %p9524 = pneg %p9523
    $region70: #{model_forward.1} parent=5 // pred_check_branch
      %9526 = sbr.rel (%p9524) target = $region72
    $region71: #{model_forward.1} parent=5 // pred_region
      %s9527 = ssub.s32 %s17, 2
      // Predicated region
      $region73: #{model_forward.1} parent=71 // pred_check
        %p9528 = pneg %p282
      $region74: #{model_forward.1} parent=71 // pred_check_branch
        %9530 = sbr.rel (%p9528) target = $region76
      $region75: #{model_forward.1} parent=71 // pred_region
        %p9531 = scmp.lt.s32.totalorder %s23, 1
        %s9532 = scalar_select %p9531, %s23, 1
        %s9533 = smul.addr %s9532, 33
        %s9534 = smul.addr %s9533, 8
        %s9535 = scalar_lea.vmem %s11, %s9534
      $region76: #{model_forward.1} parent=71 // pred_fallthru
        _
    $region72: #{model_forward.1} parent=5 // pred_fallthru
      _
  $region6: #{model_forward.1} parent=0 // loop_footer
    %s21 = sadd.s32 1, %s17
  $region7: #{model_forward.1} parent=0 // loop_footer_branch
    %16 = sbr.rel target = $region3
  $region8: #{model_forward.1} parent=0 // loop_exit
    _

</llo_original>
